<compile_context>
chip_gen: v7x
topology: tpu7x:2x2x1
jax: 0.10.0
libtpu: 0.0.40
codegen_flags: <defaults>
</compile_context>

<pallas_src>
import jax
import jax.numpy as jnp
from jax.experimental import pallas as pl
from jax.experimental.pallas import tpu as pltpu

# ----------------------------------------------------------------------------
# Model hyper-parameters (synthetic, small Wav2Vec2-for-CTC style). Static!
# ----------------------------------------------------------------------------
HIDDEN = 32
NUM_HEADS = 4
HEAD_DIM = HIDDEN // NUM_HEADS
INTERMEDIATE = 128
NUM_LAYERS = 2
VOCAB = 16
VOCAB_PAD = 128                          # lane-dense lm_head width (sliced back)
CONV_LAYERS = ((32, 8, 4), (32, 4, 2))   # (out_channels, kernel, stride)
LN_EPS = 1e-5


# ----------------------------------------------------------------------------
# In-kernel math helpers
# ----------------------------------------------------------------------------
def _gelu(x):
    # TODO(synk): HF Wav2Vec2 uses erf-GELU; tanh approximation used here for a
    # robust EUP lowering.
    return 0.5 * x * (1.0 + jnp.tanh(0.7978845608028654 * (x + 0.044715 * x * x * x)))


def _layernorm(x, g, b, eps=LN_EPS):
    mu = jnp.mean(x, axis=-1, keepdims=True)
    xc = x - mu
    var = jnp.mean(xc * xc, axis=-1, keepdims=True)
    return xc * jax.lax.rsqrt(var + eps) * g + b


# ----------------------------------------------------------------------------
# The single fused forward kernel (one grid step per batch element)
# ----------------------------------------------------------------------------
def _fused_audio_encoder_kernel(
    patches1_ref,                               # (1, NCHUNK, 2*K1) bf16
    conv1_w_ref, conv1_b_ref,                   # (2*K1, 2*C1) bf16, (1, 2*C1)
    conv2_w_ref, conv2_b_ref,                   # (K2*C1, C2) bf16, (1, C2)
    fp_ln_g_ref, fp_ln_b_ref,                   # (1, C2)
    fp_w_ref, fp_b_ref,                         # (C2, H) bf16, (1, H)
    enc_ln_g_ref, enc_ln_b_ref,                 # (1, H)
    wqkv_ref, bqkv_ref,                         # (NL, H, 3H) bf16, (NL, 1, 3H)
    wo_ref, bo_ref,                             # (NL, H, H) bf16, (NL, 1, H)
    ln1_g_ref, ln1_b_ref,                       # (NL, 1, H)
    wf1_ref, bf1_ref,                           # (NL, H, FF) bf16, (NL, 1, FF)
    wf2_ref, bf2_ref,                           # (NL, FF, H) bf16, (NL, 1, H)
    ln2_g_ref, ln2_b_ref,                       # (NL, 1, H)
    lm_w_ref, lm_b_ref,                         # (H, VOCAB_PAD) bf16, (1, VOCAB_PAD)
    hs_ref,                                     # out: (NL+1, 1, L, H) f32
    logits_ref,                                 # out: (1, L, VOCAB_PAD) f32
):
    bf16 = jnp.bfloat16
    L = hs_ref.shape[2]

    # ------------------------- conv feature extractor -------------------------
    # conv1 directly in "chunk" layout (block-diagonal weight):
    #   chunked[c] = [GELU(conv1)[2c] | GELU(conv1)[2c+1]]            -> [NCHUNK, 2*C1]
    chunked = _gelu(
        jnp.dot(patches1_ref[0], conv1_w_ref[...],
                preferred_element_type=jnp.float32) + conv1_b_ref[...])
    # conv2 (kernel=4, stride=2) im2col = two row-shifted chunk views, lane-concat.
    patches2 = jnp.concatenate([chunked[:L, :], chunked[1:L + 1, :]], axis=-1)
    feat = _gelu(
        jnp.dot(patches2.astype(bf16), conv2_w_ref[...],
                preferred_element_type=jnp.float32) + conv2_b_ref[...])   # [L, C2]
    # TODO(synk): feature-extractor GroupNorm/LayerNorm of real Wav2Vec2 omitted.

    # --------------------------- feature projection ---------------------------
    x = _layernorm(feat, fp_ln_g_ref[...], fp_ln_b_ref[...])
    h = jnp.dot(x.astype(bf16), fp_w_ref[...],
                preferred_element_type=jnp.float32) + fp_b_ref[...]
    # TODO(synk): Wav2Vec2 grouped positional conv embedding (pos_conv_embed)
    # would be added to `h` here before the encoder-entry LayerNorm.
    h = _layernorm(h, enc_ln_g_ref[...], enc_ln_b_ref[...])
    hs_ref[0, 0, :, :] = h

    # ------------------------ transformer encoder layers ----------------------
    for l in range(NUM_LAYERS):
        # fused QKV projection (1/sqrt(head_dim) folded into the Q columns)
        qkv = jnp.dot(h.astype(bf16), wqkv_ref[l],
                      preferred_element_type=jnp.float32) + bqkv_ref[l]   # [L, 3H]

        # per-head scores stacked along sublanes -> ONE softmax over [NH*L, L]
        s = jnp.concatenate([
            jax.lax.dot_general(
                qkv[:, hd * HEAD_DIM:(hd + 1) * HEAD_DIM].astype(bf16),
                qkv[:, HIDDEN + hd * HEAD_DIM:HIDDEN + (hd + 1) * HEAD_DIM].astype(bf16),
                (((1,), (1,)), ((), ())),
                preferred_element_type=jnp.float32)
            for hd in range(NUM_HEADS)], axis=0)                          # [NH*L, L]
        s = s - jnp.max(s, axis=-1, keepdims=True)
        pr = jnp.exp(s)
        pr = pr * pl.reciprocal(jnp.sum(pr, axis=-1, keepdims=True), approx=True)
        pr = pr.astype(bf16)

        # per-head context, concatenated along lanes (no scratch-ref writes)
        ctx = jnp.concatenate([
            jnp.dot(pr[hd * L:(hd + 1) * L, :],
                    qkv[:, 2 * HIDDEN + hd * HEAD_DIM:
                        2 * HIDDEN + (hd + 1) * HEAD_DIM].astype(bf16),
                    preferred_element_type=jnp.float32)
            for hd in range(NUM_HEADS)], axis=-1)                         # [L, H]

        attn = jnp.dot(ctx.astype(bf16), wo_ref[l],
                       preferred_element_type=jnp.float32) + bo_ref[l]
        h = _layernorm(h + attn, ln1_g_ref[l], ln1_b_ref[l])

        ff = _gelu(jnp.dot(h.astype(bf16), wf1_ref[l],
                           preferred_element_type=jnp.float32) + bf1_ref[l])
        ff = jnp.dot(ff.astype(bf16), wf2_ref[l],
                     preferred_element_type=jnp.float32) + bf2_ref[l]
        h = _layernorm(h + ff, ln2_g_ref[l], ln2_b_ref[l])
        hs_ref[l + 1, 0, :, :] = h

    # ------------------ CTC lm_head (lane-dense 128-wide slab) ----------------
    logits_ref[0] = jnp.dot(h.astype(bf16), lm_w_ref[...],
                            preferred_element_type=jnp.float32) + lm_b_ref[...]


def _rep(shape):
    """BlockSpec for a weight replicated across the batch grid."""
    rank = len(shape)
    return pl.BlockSpec(shape, lambda *_, _rank=rank: (0,) * _rank)


# ----------------------------------------------------------------------------
# Forward pass (single pallas_call)
# ----------------------------------------------------------------------------
def audio_encoder_forward(params, audio_input_values):
    """audio_input_values: [B, T] f32 -> {'logits': [B, L, V], 'hidden_states': tuple}."""
    B, T = audio_input_values.shape
    (c1_out, c1_k, c1_s), (c2_out, c2_k, c2_s) = CONV_LAYERS
    L1 = (T - c1_k) // c1_s + 1
    L2 = (L1 - c2_k) // c2_s + 1
    # Chunk framing requires kernel == 2*stride for both convs and even L1.
    assert c1_k == 2 * c1_s and c2_k == 2 * c2_s and L1 % 2 == 0
    n_chunks = L1 // 2                       # = L2 + 1

    # conv1 frames in even/odd chunk layout: row c = [frame 2c | frame 2c+1]
    # (trivial XLA reshape+concat of the raw audio; everything else is in-kernel)
    even = audio_input_values[:, :n_chunks * c1_k].reshape(B, n_chunks, c1_k)
    odd = audio_input_values[:, c1_s:c1_s + n_chunks * c1_k].reshape(B, n_chunks, c1_k)
    patches1 = jnp.concatenate([even, odd], axis=-1).astype(jnp.bfloat16)

    nl = NUM_LAYERS
    hs_stacked, logits_pad = pl.pallas_call(
        _fused_audio_encoder_kernel,
        out_shape=(
            jax.ShapeDtypeStruct((nl + 1, B, L2, HIDDEN), jnp.float32),
            jax.ShapeDtypeStruct((B, L2, VOCAB_PAD), jnp.float32),
        ),
        grid=(B,),
        in_specs=[
            pl.BlockSpec((1, n_chunks, 2 * c1_k), lambda b: (b, 0, 0)),
            _rep((2 * c1_k, 2 * c1_out)), _rep((1, 2 * c1_out)),
            _rep((c2_k * c1_out, c2_out)), _rep((1, c2_out)),
            _rep((1, c2_out)), _rep((1, c2_out)),
            _rep((c2_out, HIDDEN)), _rep((1, HIDDEN)),
            _rep((1, HIDDEN)), _rep((1, HIDDEN)),
            _rep((nl, HIDDEN, 3 * HIDDEN)), _rep((nl, 1, 3 * HIDDEN)),
            _rep((nl, HIDDEN, HIDDEN)), _rep((nl, 1, HIDDEN)),
            _rep((nl, 1, HIDDEN)), _rep((nl, 1, HIDDEN)),
            _rep((nl, HIDDEN, INTERMEDIATE)), _rep((nl, 1, INTERMEDIATE)),
            _rep((nl, INTERMEDIATE, HIDDEN)), _rep((nl, 1, HIDDEN)),
            _rep((nl, 1, HIDDEN)), _rep((nl, 1, HIDDEN)),
            _rep((HIDDEN, VOCAB_PAD)), _rep((1, VOCAB_PAD)),
        ],
        out_specs=(
            pl.BlockSpec((nl + 1, 1, L2, HIDDEN), lambda b: (0, b, 0, 0)),
            pl.BlockSpec((1, L2, VOCAB_PAD), lambda b: (b, 0, 0)),
        ),
        compiler_params=pltpu.CompilerParams(dimension_semantics=("parallel",)),
    )(patches1,
      params["conv1_w_blk"], params["conv1_b_blk"],
      params["conv2_w"], params["conv2_b"],
      params["fp_ln_g"], params["fp_ln_b"], params["fp_w"], params["fp_b"],
      params["enc_ln_g"], params["enc_ln_b"],
      params["wqkv"], params["bqkv"], params["wo"], params["bo"],
      params["ln1_g"], params["ln1_b"],
      params["wf1"], params["bf1"], params["wf2"], params["bf2"],
      params["ln2_g"], params["ln2_b"],
      params["lm_w"], params["lm_b"])

    logits = logits_pad[..., :VOCAB]
    hidden_states = tuple(hs_stacked[i] for i in range(nl + 1))
    return {"logits": logits, "hidden_states": hidden_states}


# ----------------------------------------------------------------------------
# Synthetic parameters (matmul-ready layouts; weights bf16, biases/LN f32)
# ----------------------------------------------------------------------------
def init_params(key):
    ks = iter(jax.random.split(key, 32))
    bf16 = jnp.bfloat16

    def dense(k, fi, fo, std=0.02):
        return (jax.random.normal(k, (fi, fo), jnp.float32) * std,
                jnp.zeros((1, fo), jnp.float32))

    (c1_out, c1_k, _), (c2_out, c2_k, _) = CONV_LAYERS
    p = {}
    # conv1 in matmul layout [K1*Cin, C1] (k-major, cin-minor); plus the
    # block-diagonal version used by the fused kernel's chunk layout.
    w1 = jax.random.normal(next(ks), (c1_k * 1, c1_out), jnp.float32) * 0.1
    b1 = jnp.zeros((1, c1_out), jnp.float32)
    z = jnp.zeros_like(w1)
    p["conv1_w"] = w1.astype(bf16)
    p["conv1_b"] = b1
    p["conv1_w_blk"] = jnp.concatenate(
        [jnp.concatenate([w1, z], axis=1),
         jnp.concatenate([z, w1], axis=1)], axis=0).astype(bf16)   # [2*K1, 2*C1]
    p["conv1_b_blk"] = jnp.concatenate([b1, b1], axis=1)           # [1, 2*C1]
    # conv2 in matmul layout [K2*C1, C2]
    w2 = jax.random.normal(next(ks), (c2_k * c1_out, c2_out), jnp.float32) * 0.1
    p["conv2_w"] = w2.astype(bf16)
    p["conv2_b"] = jnp.zeros((1, c2_out), jnp.float32)

    # feature projection (LayerNorm + Linear conv_dim -> hidden) + encoder LN
    p["fp_ln_g"] = jnp.ones((1, c2_out), jnp.float32)
    p["fp_ln_b"] = jnp.zeros((1, c2_out), jnp.float32)
    fp_w, fp_b = dense(next(ks), c2_out, HIDDEN)
    p["fp_w"], p["fp_b"] = fp_w.astype(bf16), fp_b
    p["enc_ln_g"] = jnp.ones((1, HIDDEN), jnp.float32)
    p["enc_ln_b"] = jnp.zeros((1, HIDDEN), jnp.float32)

    # transformer layers (post-LN, wav2vec2-base style), stacked over layers
    scale = 1.0 / (HEAD_DIM ** 0.5)
    acc = {k: [] for k in ("wqkv", "bqkv", "wo", "bo", "ln1_g", "ln1_b",
                           "wf1", "bf1", "wf2", "bf2", "ln2_g", "ln2_b")}
    for _ in range(NUM_LAYERS):
        wq, bq = dense(next(ks), HIDDEN, HIDDEN)
        wk, bk = dense(next(ks), HIDDEN, HIDDEN)
        wv, bv = dense(next(ks), HIDDEN, HIDDEN)
        # fold the attention scale into the Q projection (weights AND bias)
        acc["wqkv"].append(jnp.concatenate([wq * scale, wk, wv], axis=1))
        acc["bqkv"].append(jnp.concatenate([bq * scale, bk, bv], axis=1))
        w, b = dense(next(ks), HIDDEN, HIDDEN)
        acc["wo"].append(w); acc["bo"].append(b)
        acc["ln1_g"].append(jnp.ones((1, HIDDEN), jnp.float32))
        acc["ln1_b"].append(jnp.zeros((1, HIDDEN), jnp.float32))
        w, b = dense(next(ks), HIDDEN, INTERMEDIATE)
        acc["wf1"].append(w); acc["bf1"].append(b)
        w, b = dense(next(ks), INTERMEDIATE, HIDDEN)
        acc["wf2"].append(w); acc["bf2"].append(b)
        acc["ln2_g"].append(jnp.ones((1, HIDDEN), jnp.float32))
        acc["ln2_b"].append(jnp.zeros((1, HIDDEN), jnp.float32))
    for k, v in acc.items():
        stacked = jnp.stack(v)
        p[k] = stacked.astype(bf16) if k in ("wqkv", "wo", "wf1", "wf2") else stacked

    # CTC lm_head, padded to a lane-dense 128-wide output slab
    lm_w, lm_b = dense(next(ks), HIDDEN, VOCAB)
    p["lm_w"] = jnp.pad(lm_w, ((0, 0), (0, VOCAB_PAD - VOCAB))).astype(bf16)
    p["lm_b"] = jnp.pad(lm_b, ((0, 0), (0, VOCAB_PAD - VOCAB)))
    return p


# ----------------------------------------------------------------------------
# Pure-JAX reference (mirrors the kernel math) for a numerical sanity check
# ----------------------------------------------------------------------------
def reference_forward(params, audio):
    bf16 = jnp.bfloat16

    def ln(t, g, b):
        mu = jnp.mean(t, -1, keepdims=True)
        var = jnp.mean((t - mu) ** 2, -1, keepdims=True)
        return (t - mu) * jax.lax.rsqrt(var + LN_EPS) * g + b

    def mm(a, b):
        return jnp.dot(a.astype(bf16), b.astype(bf16),
                       preferred_element_type=jnp.float32)

    (c1_out, c1_k, c1_s), (c2_out, c2_k, c2_s) = CONV_LAYERS
    x = audio[:, :, None]
    for (w, b, ksz, stride) in ((params["conv1_w"], params["conv1_b"], c1_k, c1_s),
                                (params["conv2_w"], params["conv2_b"], c2_k, c2_s)):
        B, Lc, Cin = x.shape
        Lout = (Lc - ksz) // stride + 1
        idx = jnp.arange(Lout)[:, None] * stride + jnp.arange(ksz)[None, :]
        patches = x[:, idx, :].reshape(B, Lout, ksz * Cin)
        x = _gelu(mm(patches, w) + b)

    h = ln(mm(ln(x, params["fp_ln_g"], params["fp_ln_b"]), params["fp_w"])
           + params["fp_b"], params["enc_ln_g"], params["enc_ln_b"])
    hidden = [h]
    B, L, _ = h.shape
    for l in range(NUM_LAYERS):
        qkv = mm(h, params["wqkv"][l]) + params["bqkv"][l]
        q, k, v = (qkv[..., :HIDDEN], qkv[..., HIDDEN:2 * HIDDEN],
                   qkv[..., 2 * HIDDEN:])

        def heads(t):
            return t.reshape(B, L, NUM_HEADS, HEAD_DIM).transpose(0, 2, 1, 3)

        qh, kh, vh = heads(q), heads(k), heads(v)
        # NOTE: the 1/sqrt(head_dim) scale is already folded into wqkv.
        s = jnp.einsum("bhqd,bhkd->bhqk", qh.astype(bf16), kh.astype(bf16),
                       preferred_element_type=jnp.float32)
        pr = jax.nn.softmax(s, axis=-1)
        a = jnp.einsum("bhqk,bhkd->bhqd", pr.astype(bf16), vh.astype(bf16),
                       preferred_element_type=jnp.float32)
        a = a.transpose(0, 2, 1, 3).reshape(B, L, HIDDEN)
        a = mm(a, params["wo"][l]) + params["bo"][l]
        h = ln(h + a, params["ln1_g"][l], params["ln1_b"][l])
        ff = _gelu(mm(h, params["wf1"][l]) + params["bf1"][l])
        ff = mm(ff, params["wf2"][l]) + params["bf2"][l]
        h = ln(h + ff, params["ln2_g"][l], params["ln2_b"][l])
        hidden.append(h)
    logits = (mm(h, params["lm_w"]) + params["lm_b"])[..., :VOCAB]
    return logits, hidden


if __name__ == "__main__":
    key = jax.random.PRNGKey(0)
    k_param, k_audio = jax.random.split(key)
    params = init_params(k_param)
    # T=524 so the conv stack ((k=8,s=4) then (k=4,s=2)) yields L=64 frames.
    B, T, L = 2, 524, 64
    audio = jax.random.normal(k_audio, (B, T), jnp.float32)

    fwd = jax.jit(audio_encoder_forward)
    out = fwd(params, audio)
    jax.block_until_ready(out)

    assert out["logits"].shape == (B, L, VOCAB)
    assert len(out["hidden_states"]) == NUM_LAYERS + 1
    assert all(hs.shape == (B, L, HIDDEN) for hs in out["hidden_states"])
    assert bool(jnp.all(jnp.isfinite(out["logits"])))

    ref_logits, ref_hidden = reference_forward(params, audio)
    assert bool(jnp.allclose(out["logits"], ref_logits, atol=3e-2, rtol=3e-2))
    assert bool(jnp.allclose(out["hidden_states"][0], ref_hidden[0],
                             atol=3e-2, rtol=3e-2))
    assert bool(jnp.allclose(out["hidden_states"][-1], ref_hidden[-1],
                             atol=3e-2, rtol=3e-2))
    print("KERNEL_OK")
</pallas_src>

<mosaic_0001>
module attributes {stable_mosaic.version = 11 : i64} {
  func.func @_fused_audio_encoder_kernel(%arg0: i32, %arg1: memref<1x65x16xbf16, #tpu.memory_space<vmem>>, %arg2: memref<16x64xbf16, #tpu.memory_space<vmem>>, %arg3: memref<1x64xf32, #tpu.memory_space<vmem>>, %arg4: memref<128x32xbf16, #tpu.memory_space<vmem>>, %arg5: memref<1x32xf32, #tpu.memory_space<vmem>>, %arg6: memref<1x32xf32, #tpu.memory_space<vmem>>, %arg7: memref<1x32xf32, #tpu.memory_space<vmem>>, %arg8: memref<32x32xbf16, #tpu.memory_space<vmem>>, %arg9: memref<1x32xf32, #tpu.memory_space<vmem>>, %arg10: memref<1x32xf32, #tpu.memory_space<vmem>>, %arg11: memref<1x32xf32, #tpu.memory_space<vmem>>, %arg12: memref<2x32x96xbf16, #tpu.memory_space<vmem>>, %arg13: memref<2x1x96xf32, #tpu.memory_space<vmem>>, %arg14: memref<2x32x32xbf16, #tpu.memory_space<vmem>>, %arg15: memref<2x1x32xf32, #tpu.memory_space<vmem>>, %arg16: memref<2x1x32xf32, #tpu.memory_space<vmem>>, %arg17: memref<2x1x32xf32, #tpu.memory_space<vmem>>, %arg18: memref<2x32x128xbf16, #tpu.memory_space<vmem>>, %arg19: memref<2x1x128xf32, #tpu.memory_space<vmem>>, %arg20: memref<2x128x32xbf16, #tpu.memory_space<vmem>>, %arg21: memref<2x1x32xf32, #tpu.memory_space<vmem>>, %arg22: memref<2x1x32xf32, #tpu.memory_space<vmem>>, %arg23: memref<2x1x32xf32, #tpu.memory_space<vmem>>, %arg24: memref<32x128xbf16, #tpu.memory_space<vmem>>, %arg25: memref<1x128xf32, #tpu.memory_space<vmem>>, %arg26: memref<3x1x64x32xf32, #tpu.memory_space<vmem>>, %arg27: memref<1x64x128xf32, #tpu.memory_space<vmem>>) attributes {dimension_semantics = [#tpu.dimension_semantics<parallel>], iteration_bounds = array<i64: 2>, scalar_prefetch = 0 : i64, scratch_operands = 0 : i64, tpu.core_type = #tpu.core_type<tc>, window_params = [{transform_indices = @transform_0, window_bounds = array<i64: 1, 65, 16>}, {pipeline_mode = #tpu.pipeline_mode<synchronous>, transform_indices = @transform_1, window_bounds = array<i64: 16, 64>}, {pipeline_mode = #tpu.pipeline_mode<synchronous>, transform_indices = @transform_2, window_bounds = array<i64: 1, 64>}, {pipeline_mode = #tpu.pipeline_mode<synchronous>, transform_indices = @transform_3, window_bounds = array<i64: 128, 32>}, {pipeline_mode = #tpu.pipeline_mode<synchronous>, transform_indices = @transform_4, window_bounds = array<i64: 1, 32>}, {pipeline_mode = #tpu.pipeline_mode<synchronous>, transform_indices = @transform_5, window_bounds = array<i64: 1, 32>}, {pipeline_mode = #tpu.pipeline_mode<synchronous>, transform_indices = @transform_6, window_bounds = array<i64: 1, 32>}, {pipeline_mode = #tpu.pipeline_mode<synchronous>, transform_indices = @transform_7, window_bounds = array<i64: 32, 32>}, {pipeline_mode = #tpu.pipeline_mode<synchronous>, transform_indices = @transform_8, window_bounds = array<i64: 1, 32>}, {pipeline_mode = #tpu.pipeline_mode<synchronous>, transform_indices = @transform_9, window_bounds = array<i64: 1, 32>}, {pipeline_mode = #tpu.pipeline_mode<synchronous>, transform_indices = @transform_10, window_bounds = array<i64: 1, 32>}, {pipeline_mode = #tpu.pipeline_mode<synchronous>, transform_indices = @transform_11, window_bounds = array<i64: 2, 32, 96>}, {pipeline_mode = #tpu.pipeline_mode<synchronous>, transform_indices = @transform_12, window_bounds = array<i64: 2, 1, 96>}, {pipeline_mode = #tpu.pipeline_mode<synchronous>, transform_indices = @transform_13, window_bounds = array<i64: 2, 32, 32>}, {pipeline_mode = #tpu.pipeline_mode<synchronous>, transform_indices = @transform_14, window_bounds = array<i64: 2, 1, 32>}, {pipeline_mode = #tpu.pipeline_mode<synchronous>, transform_indices = @transform_15, window_bounds = array<i64: 2, 1, 32>}, {pipeline_mode = #tpu.pipeline_mode<synchronous>, transform_indices = @transform_16, window_bounds = array<i64: 2, 1, 32>}, {pipeline_mode = #tpu.pipeline_mode<synchronous>, transform_indices = @transform_17, window_bounds = array<i64: 2, 32, 128>}, {pipeline_mode = #tpu.pipeline_mode<synchronous>, transform_indices = @transform_18, window_bounds = array<i64: 2, 1, 128>}, {pipeline_mode = #tpu.pipeline_mode<synchronous>, transform_indices = @transform_19, window_bounds = array<i64: 2, 128, 32>}, {pipeline_mode = #tpu.pipeline_mode<synchronous>, transform_indices = @transform_20, window_bounds = array<i64: 2, 1, 32>}, {pipeline_mode = #tpu.pipeline_mode<synchronous>, transform_indices = @transform_21, window_bounds = array<i64: 2, 1, 32>}, {pipeline_mode = #tpu.pipeline_mode<synchronous>, transform_indices = @transform_22, window_bounds = array<i64: 2, 1, 32>}, {pipeline_mode = #tpu.pipeline_mode<synchronous>, transform_indices = @transform_23, window_bounds = array<i64: 32, 128>}, {pipeline_mode = #tpu.pipeline_mode<synchronous>, transform_indices = @transform_24, window_bounds = array<i64: 1, 128>}, {transform_indices = @transform_25, window_bounds = array<i64: 3, 1, 64, 32>}, {transform_indices = @transform_26, window_bounds = array<i64: 1, 64, 128>}]} {
    %c0 = arith.constant 0 : index
    %c0_0 = arith.constant 0 : index
    %c0_1 = arith.constant 0 : index
    %0 = vector.load %arg1[%c0, %c0_0, %c0_1] : memref<1x65x16xbf16, #tpu.memory_space<vmem>>, vector<1x65x16xbf16>
    %1 = vector.shape_cast %0 : vector<1x65x16xbf16> to vector<65x16xbf16>
    %c0_2 = arith.constant 0 : index
    %c0_3 = arith.constant 0 : index
    %2 = vector.load %arg2[%c0_2, %c0_3] : memref<16x64xbf16, #tpu.memory_space<vmem>>, vector<16x64xbf16>
    %cst = arith.constant dense<0.000000e+00> : vector<65x64xf32>
    %3 = tpu.matmul %1, %2, %cst {dimension_numbers = #tpu.dot_dimension_numbers<[1], [0], [0], [1], [0, 0, 1, 1], [], []>} : vector<65x16xbf16>, vector<16x64xbf16>, vector<65x64xf32> -> vector<65x64xf32>
    %c0_4 = arith.constant 0 : index
    %c0_5 = arith.constant 0 : index
    %4 = vector.load %arg3[%c0_4, %c0_5] : memref<1x64xf32, #tpu.memory_space<vmem>>, vector<1x64xf32>
    %5 = vector.broadcast %4 : vector<1x64xf32> to vector<65x64xf32>
    %6 = arith.addf %3, %5 : vector<65x64xf32>
    %cst_6 = arith.constant 5.000000e-01 : f32
    %7 = vector.broadcast %cst_6 : f32 to vector<65x64xf32>
    %8 = arith.mulf %7, %6 : vector<65x64xf32>
    %cst_7 = arith.constant 4.471500e-02 : f32
    %9 = vector.broadcast %cst_7 : f32 to vector<65x64xf32>
    %10 = arith.mulf %9, %6 : vector<65x64xf32>
    %11 = arith.mulf %10, %6 : vector<65x64xf32>
    %12 = arith.mulf %11, %6 : vector<65x64xf32>
    %13 = arith.addf %6, %12 : vector<65x64xf32>
    %cst_8 = arith.constant 0.797884583 : f32
    %14 = vector.broadcast %cst_8 : f32 to vector<65x64xf32>
    %15 = arith.mulf %14, %13 : vector<65x64xf32>
    %16 = math.tanh %15 : vector<65x64xf32>
    %cst_9 = arith.constant 1.000000e+00 : f32
    %17 = vector.broadcast %cst_9 : f32 to vector<65x64xf32>
    %18 = arith.addf %17, %16 : vector<65x64xf32>
    %19 = arith.mulf %8, %18 : vector<65x64xf32>
    %20 = vector.extract_strided_slice %19 {offsets = [0, 0], sizes = [64, 64], strides = [1, 1]} : vector<65x64xf32> to vector<64x64xf32>
    %21 = vector.extract_strided_slice %19 {offsets = [1, 0], sizes = [64, 64], strides = [1, 1]} : vector<65x64xf32> to vector<64x64xf32>
    %22 = tpu.concatenate %20, %21 in 1 : vector<64x64xf32>, vector<64x64xf32> -> vector<64x128xf32>
    %23 = arith.truncf %22 : vector<64x128xf32> to vector<64x128xbf16>
    %c0_10 = arith.constant 0 : index
    %c0_11 = arith.constant 0 : index
    %24 = vector.load %arg4[%c0_10, %c0_11] : memref<128x32xbf16, #tpu.memory_space<vmem>>, vector<128x32xbf16>
    %cst_12 = arith.constant dense<0.000000e+00> : vector<64x32xf32>
    %25 = tpu.matmul %23, %24, %cst_12 {dimension_numbers = #tpu.dot_dimension_numbers<[1], [0], [0], [1], [0, 0, 1, 1], [], []>} : vector<64x128xbf16>, vector<128x32xbf16>, vector<64x32xf32> -> vector<64x32xf32>
    %c0_13 = arith.constant 0 : index
    %c0_14 = arith.constant 0 : index
    %26 = vector.load %arg5[%c0_13, %c0_14] : memref<1x32xf32, #tpu.memory_space<vmem>>, vector<1x32xf32>
    %27 = vector.broadcast %26 : vector<1x32xf32> to vector<64x32xf32>
    %28 = arith.addf %25, %27 : vector<64x32xf32>
    %cst_15 = arith.constant 5.000000e-01 : f32
    %29 = vector.broadcast %cst_15 : f32 to vector<64x32xf32>
    %30 = arith.mulf %29, %28 : vector<64x32xf32>
    %cst_16 = arith.constant 4.471500e-02 : f32
    %31 = vector.broadcast %cst_16 : f32 to vector<64x32xf32>
    %32 = arith.mulf %31, %28 : vector<64x32xf32>
    %33 = arith.mulf %32, %28 : vector<64x32xf32>
    %34 = arith.mulf %33, %28 : vector<64x32xf32>
    %35 = arith.addf %28, %34 : vector<64x32xf32>
    %cst_17 = arith.constant 0.797884583 : f32
    %36 = vector.broadcast %cst_17 : f32 to vector<64x32xf32>
    %37 = arith.mulf %36, %35 : vector<64x32xf32>
    %38 = math.tanh %37 : vector<64x32xf32>
    %cst_18 = arith.constant 1.000000e+00 : f32
    %39 = vector.broadcast %cst_18 : f32 to vector<64x32xf32>
    %40 = arith.addf %39, %38 : vector<64x32xf32>
    %41 = arith.mulf %30, %40 : vector<64x32xf32>
    %c0_19 = arith.constant 0 : index
    %c0_20 = arith.constant 0 : index
    %42 = vector.load %arg6[%c0_19, %c0_20] : memref<1x32xf32, #tpu.memory_space<vmem>>, vector<1x32xf32>
    %c0_21 = arith.constant 0 : index
    %c0_22 = arith.constant 0 : index
    %43 = vector.load %arg7[%c0_21, %c0_22] : memref<1x32xf32, #tpu.memory_space<vmem>>, vector<1x32xf32>
    %cst_23 = arith.constant dense<0.000000e+00> : vector<64xf32>
    %44 = vector.multi_reduction <add>, %41, %cst_23 [1] : vector<64x32xf32> to vector<64xf32>
    %45 = vector.shape_cast %44 : vector<64xf32> to vector<64x1xf32>
    %cst_24 = arith.constant 3.200000e+01 : f32
    %46 = vector.broadcast %cst_24 : f32 to vector<64x1xf32>
    %47 = arith.divf %45, %46 : vector<64x1xf32>
    %48 = vector.broadcast %47 : vector<64x1xf32> to vector<64x32xf32>
    %49 = arith.subf %41, %48 : vector<64x32xf32>
    %50 = arith.mulf %49, %49 : vector<64x32xf32>
    %cst_25 = arith.constant dense<0.000000e+00> : vector<64xf32>
    %51 = vector.multi_reduction <add>, %50, %cst_25 [1] : vector<64x32xf32> to vector<64xf32>
    %52 = vector.shape_cast %51 : vector<64xf32> to vector<64x1xf32>
    %cst_26 = arith.constant 3.200000e+01 : f32
    %53 = vector.broadcast %cst_26 : f32 to vector<64x1xf32>
    %54 = arith.divf %52, %53 : vector<64x1xf32>
    %cst_27 = arith.constant 9.99999974E-6 : f32
    %55 = vector.broadcast %cst_27 : f32 to vector<64x1xf32>
    %56 = arith.addf %54, %55 : vector<64x1xf32>
    %57 = math.rsqrt %56 : vector<64x1xf32>
    %58 = vector.broadcast %57 : vector<64x1xf32> to vector<64x32xf32>
    %59 = arith.mulf %49, %58 : vector<64x32xf32>
    %60 = vector.broadcast %42 : vector<1x32xf32> to vector<64x32xf32>
    %61 = arith.mulf %59, %60 : vector<64x32xf32>
    %62 = vector.broadcast %43 : vector<1x32xf32> to vector<64x32xf32>
    %63 = arith.addf %61, %62 : vector<64x32xf32>
    %64 = arith.truncf %63 : vector<64x32xf32> to vector<64x32xbf16>
    %c0_28 = arith.constant 0 : index
    %c0_29 = arith.constant 0 : index
    %65 = vector.load %arg8[%c0_28, %c0_29] : memref<32x32xbf16, #tpu.memory_space<vmem>>, vector<32x32xbf16>
    %cst_30 = arith.constant dense<0.000000e+00> : vector<64x32xf32>
    %66 = tpu.matmul %64, %65, %cst_30 {dimension_numbers = #tpu.dot_dimension_numbers<[1], [0], [0], [1], [0, 0, 1, 1], [], []>} : vector<64x32xbf16>, vector<32x32xbf16>, vector<64x32xf32> -> vector<64x32xf32>
    %c0_31 = arith.constant 0 : index
    %c0_32 = arith.constant 0 : index
    %67 = vector.load %arg9[%c0_31, %c0_32] : memref<1x32xf32, #tpu.memory_space<vmem>>, vector<1x32xf32>
    %68 = vector.broadcast %67 : vector<1x32xf32> to vector<64x32xf32>
    %69 = arith.addf %66, %68 : vector<64x32xf32>
    %c0_33 = arith.constant 0 : index
    %c0_34 = arith.constant 0 : index
    %70 = vector.load %arg10[%c0_33, %c0_34] : memref<1x32xf32, #tpu.memory_space<vmem>>, vector<1x32xf32>
    %c0_35 = arith.constant 0 : index
    %c0_36 = arith.constant 0 : index
    %71 = vector.load %arg11[%c0_35, %c0_36] : memref<1x32xf32, #tpu.memory_space<vmem>>, vector<1x32xf32>
    %cst_37 = arith.constant dense<0.000000e+00> : vector<64xf32>
    %72 = vector.multi_reduction <add>, %69, %cst_37 [1] : vector<64x32xf32> to vector<64xf32>
    %73 = vector.shape_cast %72 : vector<64xf32> to vector<64x1xf32>
    %cst_38 = arith.constant 3.200000e+01 : f32
    %74 = vector.broadcast %cst_38 : f32 to vector<64x1xf32>
    %75 = arith.divf %73, %74 : vector<64x1xf32>
    %76 = vector.broadcast %75 : vector<64x1xf32> to vector<64x32xf32>
    %77 = arith.subf %69, %76 : vector<64x32xf32>
    %78 = arith.mulf %77, %77 : vector<64x32xf32>
    %cst_39 = arith.constant dense<0.000000e+00> : vector<64xf32>
    %79 = vector.multi_reduction <add>, %78, %cst_39 [1] : vector<64x32xf32> to vector<64xf32>
    %80 = vector.shape_cast %79 : vector<64xf32> to vector<64x1xf32>
    %cst_40 = arith.constant 3.200000e+01 : f32
    %81 = vector.broadcast %cst_40 : f32 to vector<64x1xf32>
    %82 = arith.divf %80, %81 : vector<64x1xf32>
    %cst_41 = arith.constant 9.99999974E-6 : f32
    %83 = vector.broadcast %cst_41 : f32 to vector<64x1xf32>
    %84 = arith.addf %82, %83 : vector<64x1xf32>
    %85 = math.rsqrt %84 : vector<64x1xf32>
    %86 = vector.broadcast %85 : vector<64x1xf32> to vector<64x32xf32>
    %87 = arith.mulf %77, %86 : vector<64x32xf32>
    %88 = vector.broadcast %70 : vector<1x32xf32> to vector<64x32xf32>
    %89 = arith.mulf %87, %88 : vector<64x32xf32>
    %90 = vector.broadcast %71 : vector<1x32xf32> to vector<64x32xf32>
    %91 = arith.addf %89, %90 : vector<64x32xf32>
    %c0_42 = arith.constant 0 : index
    %c0_43 = arith.constant 0 : index
    %c0_44 = arith.constant 0 : index
    %c0_45 = arith.constant 0 : index
    %92 = vector.load %arg26[%c0_42, %c0_43, %c0_44, %c0_45] : memref<3x1x64x32xf32, #tpu.memory_space<vmem>>, vector<1x1x64x32xf32>
    %93 = vector.shape_cast %92 : vector<1x1x64x32xf32> to vector<64x32xf32>
    %94 = vector.shape_cast %91 : vector<64x32xf32> to vector<1x1x64x32xf32>
    tpu.vector_store %arg26[%c0_42, %c0_43, %c0_44, %c0_45], %94 {strides = array<i32>} : memref<3x1x64x32xf32, #tpu.memory_space<vmem>>, vector<1x1x64x32xf32>,
    %95 = arith.truncf %91 : vector<64x32xf32> to vector<64x32xbf16>
    %c0_46 = arith.constant 0 : index
    %c0_47 = arith.constant 0 : index
    %c0_48 = arith.constant 0 : index
    %96 = vector.load %arg12[%c0_46, %c0_47, %c0_48] : memref<2x32x96xbf16, #tpu.memory_space<vmem>>, vector<1x32x96xbf16>
    %97 = vector.shape_cast %96 : vector<1x32x96xbf16> to vector<32x96xbf16>
    %cst_49 = arith.constant dense<0.000000e+00> : vector<64x96xf32>
    %98 = tpu.matmul %95, %97, %cst_49 {dimension_numbers = #tpu.dot_dimension_numbers<[1], [0], [0], [1], [0, 0, 1, 1], [], []>} : vector<64x32xbf16>, vector<32x96xbf16>, vector<64x96xf32> -> vector<64x96xf32>
    %c0_50 = arith.constant 0 : index
    %c0_51 = arith.constant 0 : index
    %c0_52 = arith.constant 0 : index
    %99 = vector.load %arg13[%c0_50, %c0_51, %c0_52] : memref<2x1x96xf32, #tpu.memory_space<vmem>>, vector<1x1x96xf32>
    %100 = vector.shape_cast %99 : vector<1x1x96xf32> to vector<1x96xf32>
    %101 = vector.broadcast %100 : vector<1x96xf32> to vector<64x96xf32>
    %102 = arith.addf %98, %101 : vector<64x96xf32>
    %103 = vector.extract_strided_slice %102 {offsets = [0, 0], sizes = [64, 8], strides = [1, 1]} : vector<64x96xf32> to vector<64x8xf32>
    %104 = arith.truncf %103 : vector<64x8xf32> to vector<64x8xbf16>
    %105 = vector.extract_strided_slice %102 {offsets = [0, 32], sizes = [64, 8], strides = [1, 1]} : vector<64x96xf32> to vector<64x8xf32>
    %106 = arith.truncf %105 : vector<64x8xf32> to vector<64x8xbf16>
    %cst_53 = arith.constant dense<0.000000e+00> : vector<64x64xf32>
    %107 = tpu.matmul %104, %106, %cst_53 {dimension_numbers = #tpu.dot_dimension_numbers<[1], [1], [0], [0], [0, 0, 1, 0], [], []>} : vector<64x8xbf16>, vector<64x8xbf16>, vector<64x64xf32> -> vector<64x64xf32>
    %108 = vector.extract_strided_slice %102 {offsets = [0, 8], sizes = [64, 8], strides = [1, 1]} : vector<64x96xf32> to vector<64x8xf32>
    %109 = arith.truncf %108 : vector<64x8xf32> to vector<64x8xbf16>
    %110 = vector.extract_strided_slice %102 {offsets = [0, 40], sizes = [64, 8], strides = [1, 1]} : vector<64x96xf32> to vector<64x8xf32>
    %111 = arith.truncf %110 : vector<64x8xf32> to vector<64x8xbf16>
    %cst_54 = arith.constant dense<0.000000e+00> : vector<64x64xf32>
    %112 = tpu.matmul %109, %111, %cst_54 {dimension_numbers = #tpu.dot_dimension_numbers<[1], [1], [0], [0], [0, 0, 1, 0], [], []>} : vector<64x8xbf16>, vector<64x8xbf16>, vector<64x64xf32> -> vector<64x64xf32>
    %113 = vector.extract_strided_slice %102 {offsets = [0, 16], sizes = [64, 8], strides = [1, 1]} : vector<64x96xf32> to vector<64x8xf32>
    %114 = arith.truncf %113 : vector<64x8xf32> to vector<64x8xbf16>
    %115 = vector.extract_strided_slice %102 {offsets = [0, 48], sizes = [64, 8], strides = [1, 1]} : vector<64x96xf32> to vector<64x8xf32>
    %116 = arith.truncf %115 : vector<64x8xf32> to vector<64x8xbf16>
    %cst_55 = arith.constant dense<0.000000e+00> : vector<64x64xf32>
    %117 = tpu.matmul %114, %116, %cst_55 {dimension_numbers = #tpu.dot_dimension_numbers<[1], [1], [0], [0], [0, 0, 1, 0], [], []>} : vector<64x8xbf16>, vector<64x8xbf16>, vector<64x64xf32> -> vector<64x64xf32>
    %118 = vector.extract_strided_slice %102 {offsets = [0, 24], sizes = [64, 8], strides = [1, 1]} : vector<64x96xf32> to vector<64x8xf32>
    %119 = arith.truncf %118 : vector<64x8xf32> to vector<64x8xbf16>
    %120 = vector.extract_strided_slice %102 {offsets = [0, 56], sizes = [64, 8], strides = [1, 1]} : vector<64x96xf32> to vector<64x8xf32>
    %121 = arith.truncf %120 : vector<64x8xf32> to vector<64x8xbf16>
    %cst_56 = arith.constant dense<0.000000e+00> : vector<64x64xf32>
    %122 = tpu.matmul %119, %121, %cst_56 {dimension_numbers = #tpu.dot_dimension_numbers<[1], [1], [0], [0], [0, 0, 1, 0], [], []>} : vector<64x8xbf16>, vector<64x8xbf16>, vector<64x64xf32> -> vector<64x64xf32>
    %123 = tpu.concatenate %107, %112, %117, %122 in 0 : vector<64x64xf32>, vector<64x64xf32>, vector<64x64xf32>, vector<64x64xf32> -> vector<256x64xf32>
    %cst_57 = arith.constant dense<0xFF800000> : vector<256xf32>
    %124 = vector.multi_reduction <maximumf>, %123, %cst_57 [1] : vector<256x64xf32> to vector<256xf32>
    %125 = vector.shape_cast %124 : vector<256xf32> to vector<256x1xf32>
    %126 = vector.broadcast %125 : vector<256x1xf32> to vector<256x64xf32>
    %127 = arith.subf %123, %126 : vector<256x64xf32>
    %128 = math.exp %127 : vector<256x64xf32>
    %cst_58 = arith.constant dense<0.000000e+00> : vector<256xf32>
    %129 = vector.multi_reduction <add>, %128, %cst_58 [1] : vector<256x64xf32> to vector<256xf32>
    %130 = vector.shape_cast %129 : vector<256xf32> to vector<256x1xf32>
    %131 = tpu.reciprocal %130 {approx = true} : vector<256x1xf32> -> vector<256x1xf32>
    %132 = vector.broadcast %131 : vector<256x1xf32> to vector<256x64xf32>
    %133 = arith.mulf %128, %132 : vector<256x64xf32>
    %134 = arith.truncf %133 : vector<256x64xf32> to vector<256x64xbf16>
    %135 = vector.extract_strided_slice %134 {offsets = [0, 0], sizes = [64, 64], strides = [1, 1]} : vector<256x64xbf16> to vector<64x64xbf16>
    %136 = vector.extract_strided_slice %102 {offsets = [0, 64], sizes = [64, 8], strides = [1, 1]} : vector<64x96xf32> to vector<64x8xf32>
    %137 = arith.truncf %136 : vector<64x8xf32> to vector<64x8xbf16>
    %cst_59 = arith.constant dense<0.000000e+00> : vector<64x8xf32>
    %138 = tpu.matmul %135, %137, %cst_59 {dimension_numbers = #tpu.dot_dimension_numbers<[1], [0], [0], [1], [0, 0, 1, 1], [], []>} : vector<64x64xbf16>, vector<64x8xbf16>, vector<64x8xf32> -> vector<64x8xf32>
    %139 = vector.extract_strided_slice %134 {offsets = [64, 0], sizes = [64, 64], strides = [1, 1]} : vector<256x64xbf16> to vector<64x64xbf16>
    %140 = vector.extract_strided_slice %102 {offsets = [0, 72], sizes = [64, 8], strides = [1, 1]} : vector<64x96xf32> to vector<64x8xf32>
    %141 = arith.truncf %140 : vector<64x8xf32> to vector<64x8xbf16>
    %cst_60 = arith.constant dense<0.000000e+00> : vector<64x8xf32>
    %142 = tpu.matmul %139, %141, %cst_60 {dimension_numbers = #tpu.dot_dimension_numbers<[1], [0], [0], [1], [0, 0, 1, 1], [], []>} : vector<64x64xbf16>, vector<64x8xbf16>, vector<64x8xf32> -> vector<64x8xf32>
    %143 = vector.extract_strided_slice %134 {offsets = [128, 0], sizes = [64, 64], strides = [1, 1]} : vector<256x64xbf16> to vector<64x64xbf16>
    %144 = vector.extract_strided_slice %102 {offsets = [0, 80], sizes = [64, 8], strides = [1, 1]} : vector<64x96xf32> to vector<64x8xf32>
    %145 = arith.truncf %144 : vector<64x8xf32> to vector<64x8xbf16>
    %cst_61 = arith.constant dense<0.000000e+00> : vector<64x8xf32>
    %146 = tpu.matmul %143, %145, %cst_61 {dimension_numbers = #tpu.dot_dimension_numbers<[1], [0], [0], [1], [0, 0, 1, 1], [], []>} : vector<64x64xbf16>, vector<64x8xbf16>, vector<64x8xf32> -> vector<64x8xf32>
    %147 = vector.extract_strided_slice %134 {offsets = [192, 0], sizes = [64, 64], strides = [1, 1]} : vector<256x64xbf16> to vector<64x64xbf16>
    %148 = vector.extract_strided_slice %102 {offsets = [0, 88], sizes = [64, 8], strides = [1, 1]} : vector<64x96xf32> to vector<64x8xf32>
    %149 = arith.truncf %148 : vector<64x8xf32> to vector<64x8xbf16>
    %cst_62 = arith.constant dense<0.000000e+00> : vector<64x8xf32>
    %150 = tpu.matmul %147, %149, %cst_62 {dimension_numbers = #tpu.dot_dimension_numbers<[1], [0], [0], [1], [0, 0, 1, 1], [], []>} : vector<64x64xbf16>, vector<64x8xbf16>, vector<64x8xf32> -> vector<64x8xf32>
    %151 = tpu.concatenate %138, %142, %146, %150 in 1 : vector<64x8xf32>, vector<64x8xf32>, vector<64x8xf32>, vector<64x8xf32> -> vector<64x32xf32>
    %152 = arith.truncf %151 : vector<64x32xf32> to vector<64x32xbf16>
    %c0_63 = arith.constant 0 : index
    %c0_64 = arith.constant 0 : index
    %c0_65 = arith.constant 0 : index
    %153 = vector.load %arg14[%c0_63, %c0_64, %c0_65] : memref<2x32x32xbf16, #tpu.memory_space<vmem>>, vector<1x32x32xbf16>
    %154 = vector.shape_cast %153 : vector<1x32x32xbf16> to vector<32x32xbf16>
    %cst_66 = arith.constant dense<0.000000e+00> : vector<64x32xf32>
    %155 = tpu.matmul %152, %154, %cst_66 {dimension_numbers = #tpu.dot_dimension_numbers<[1], [0], [0], [1], [0, 0, 1, 1], [], []>} : vector<64x32xbf16>, vector<32x32xbf16>, vector<64x32xf32> -> vector<64x32xf32>
    %c0_67 = arith.constant 0 : index
    %c0_68 = arith.constant 0 : index
    %c0_69 = arith.constant 0 : index
    %156 = vector.load %arg15[%c0_67, %c0_68, %c0_69] : memref<2x1x32xf32, #tpu.memory_space<vmem>>, vector<1x1x32xf32>
    %157 = vector.shape_cast %156 : vector<1x1x32xf32> to vector<1x32xf32>
    %158 = vector.broadcast %157 : vector<1x32xf32> to vector<64x32xf32>
    %159 = arith.addf %155, %158 : vector<64x32xf32>
    %160 = arith.addf %91, %159 : vector<64x32xf32>
    %c0_70 = arith.constant 0 : index
    %c0_71 = arith.constant 0 : index
    %c0_72 = arith.constant 0 : index
    %161 = vector.load %arg16[%c0_70, %c0_71, %c0_72] : memref<2x1x32xf32, #tpu.memory_space<vmem>>, vector<1x1x32xf32>
    %162 = vector.shape_cast %161 : vector<1x1x32xf32> to vector<1x32xf32>
    %c0_73 = arith.constant 0 : index
    %c0_74 = arith.constant 0 : index
    %c0_75 = arith.constant 0 : index
    %163 = vector.load %arg17[%c0_73, %c0_74, %c0_75] : memref<2x1x32xf32, #tpu.memory_space<vmem>>, vector<1x1x32xf32>
    %164 = vector.shape_cast %163 : vector<1x1x32xf32> to vector<1x32xf32>
    %cst_76 = arith.constant dense<0.000000e+00> : vector<64xf32>
    %165 = vector.multi_reduction <add>, %160, %cst_76 [1] : vector<64x32xf32> to vector<64xf32>
    %166 = vector.shape_cast %165 : vector<64xf32> to vector<64x1xf32>
    %cst_77 = arith.constant 3.200000e+01 : f32
    %167 = vector.broadcast %cst_77 : f32 to vector<64x1xf32>
    %168 = arith.divf %166, %167 : vector<64x1xf32>
    %169 = vector.broadcast %168 : vector<64x1xf32> to vector<64x32xf32>
    %170 = arith.subf %160, %169 : vector<64x32xf32>
    %171 = arith.mulf %170, %170 : vector<64x32xf32>
    %cst_78 = arith.constant dense<0.000000e+00> : vector<64xf32>
    %172 = vector.multi_reduction <add>, %171, %cst_78 [1] : vector<64x32xf32> to vector<64xf32>
    %173 = vector.shape_cast %172 : vector<64xf32> to vector<64x1xf32>
    %cst_79 = arith.constant 3.200000e+01 : f32
    %174 = vector.broadcast %cst_79 : f32 to vector<64x1xf32>
    %175 = arith.divf %173, %174 : vector<64x1xf32>
    %cst_80 = arith.constant 9.99999974E-6 : f32
    %176 = vector.broadcast %cst_80 : f32 to vector<64x1xf32>
    %177 = arith.addf %175, %176 : vector<64x1xf32>
    %178 = math.rsqrt %177 : vector<64x1xf32>
    %179 = vector.broadcast %178 : vector<64x1xf32> to vector<64x32xf32>
    %180 = arith.mulf %170, %179 : vector<64x32xf32>
    %181 = vector.broadcast %162 : vector<1x32xf32> to vector<64x32xf32>
    %182 = arith.mulf %180, %181 : vector<64x32xf32>
    %183 = vector.broadcast %164 : vector<1x32xf32> to vector<64x32xf32>
    %184 = arith.addf %182, %183 : vector<64x32xf32>
    %185 = arith.truncf %184 : vector<64x32xf32> to vector<64x32xbf16>
    %c0_81 = arith.constant 0 : index
    %c0_82 = arith.constant 0 : index
    %c0_83 = arith.constant 0 : index
    %186 = vector.load %arg18[%c0_81, %c0_82, %c0_83] : memref<2x32x128xbf16, #tpu.memory_space<vmem>>, vector<1x32x128xbf16>
    %187 = vector.shape_cast %186 : vector<1x32x128xbf16> to vector<32x128xbf16>
    %cst_84 = arith.constant dense<0.000000e+00> : vector<64x128xf32>
    %188 = tpu.matmul %185, %187, %cst_84 {dimension_numbers = #tpu.dot_dimension_numbers<[1], [0], [0], [1], [0, 0, 1, 1], [], []>} : vector<64x32xbf16>, vector<32x128xbf16>, vector<64x128xf32> -> vector<64x128xf32>
    %c0_85 = arith.constant 0 : index
    %c0_86 = arith.constant 0 : index
    %c0_87 = arith.constant 0 : index
    %189 = vector.load %arg19[%c0_85, %c0_86, %c0_87] : memref<2x1x128xf32, #tpu.memory_space<vmem>>, vector<1x1x128xf32>
    %190 = vector.shape_cast %189 : vector<1x1x128xf32> to vector<1x128xf32>
    %191 = vector.broadcast %190 : vector<1x128xf32> to vector<64x128xf32>
    %192 = arith.addf %188, %191 : vector<64x128xf32>
    %cst_88 = arith.constant 5.000000e-01 : f32
    %193 = vector.broadcast %cst_88 : f32 to vector<64x128xf32>
    %194 = arith.mulf %193, %192 : vector<64x128xf32>
    %cst_89 = arith.constant 4.471500e-02 : f32
    %195 = vector.broadcast %cst_89 : f32 to vector<64x128xf32>
    %196 = arith.mulf %195, %192 : vector<64x128xf32>
    %197 = arith.mulf %196, %192 : vector<64x128xf32>
    %198 = arith.mulf %197, %192 : vector<64x128xf32>
    %199 = arith.addf %192, %198 : vector<64x128xf32>
    %cst_90 = arith.constant 0.797884583 : f32
    %200 = vector.broadcast %cst_90 : f32 to vector<64x128xf32>
    %201 = arith.mulf %200, %199 : vector<64x128xf32>
    %202 = math.tanh %201 : vector<64x128xf32>
    %cst_91 = arith.constant 1.000000e+00 : f32
    %203 = vector.broadcast %cst_91 : f32 to vector<64x128xf32>
    %204 = arith.addf %203, %202 : vector<64x128xf32>
    %205 = arith.mulf %194, %204 : vector<64x128xf32>
    %206 = arith.truncf %205 : vector<64x128xf32> to vector<64x128xbf16>
    %c0_92 = arith.constant 0 : index
    %c0_93 = arith.constant 0 : index
    %c0_94 = arith.constant 0 : index
    %207 = vector.load %arg20[%c0_92, %c0_93, %c0_94] : memref<2x128x32xbf16, #tpu.memory_space<vmem>>, vector<1x128x32xbf16>
    %208 = vector.shape_cast %207 : vector<1x128x32xbf16> to vector<128x32xbf16>
    %cst_95 = arith.constant dense<0.000000e+00> : vector<64x32xf32>
    %209 = tpu.matmul %206, %208, %cst_95 {dimension_numbers = #tpu.dot_dimension_numbers<[1], [0], [0], [1], [0, 0, 1, 1], [], []>} : vector<64x128xbf16>, vector<128x32xbf16>, vector<64x32xf32> -> vector<64x32xf32>
    %c0_96 = arith.constant 0 : index
    %c0_97 = arith.constant 0 : index
    %c0_98 = arith.constant 0 : index
    %210 = vector.load %arg21[%c0_96, %c0_97, %c0_98] : memref<2x1x32xf32, #tpu.memory_space<vmem>>, vector<1x1x32xf32>
    %211 = vector.shape_cast %210 : vector<1x1x32xf32> to vector<1x32xf32>
    %212 = vector.broadcast %211 : vector<1x32xf32> to vector<64x32xf32>
    %213 = arith.addf %209, %212 : vector<64x32xf32>
    %214 = arith.addf %184, %213 : vector<64x32xf32>
    %c0_99 = arith.constant 0 : index
    %c0_100 = arith.constant 0 : index
    %c0_101 = arith.constant 0 : index
    %215 = vector.load %arg22[%c0_99, %c0_100, %c0_101] : memref<2x1x32xf32, #tpu.memory_space<vmem>>, vector<1x1x32xf32>
    %216 = vector.shape_cast %215 : vector<1x1x32xf32> to vector<1x32xf32>
    %c0_102 = arith.constant 0 : index
    %c0_103 = arith.constant 0 : index
    %c0_104 = arith.constant 0 : index
    %217 = vector.load %arg23[%c0_102, %c0_103, %c0_104] : memref<2x1x32xf32, #tpu.memory_space<vmem>>, vector<1x1x32xf32>
    %218 = vector.shape_cast %217 : vector<1x1x32xf32> to vector<1x32xf32>
    %cst_105 = arith.constant dense<0.000000e+00> : vector<64xf32>
    %219 = vector.multi_reduction <add>, %214, %cst_105 [1] : vector<64x32xf32> to vector<64xf32>
    %220 = vector.shape_cast %219 : vector<64xf32> to vector<64x1xf32>
    %cst_106 = arith.constant 3.200000e+01 : f32
    %221 = vector.broadcast %cst_106 : f32 to vector<64x1xf32>
    %222 = arith.divf %220, %221 : vector<64x1xf32>
    %223 = vector.broadcast %222 : vector<64x1xf32> to vector<64x32xf32>
    %224 = arith.subf %214, %223 : vector<64x32xf32>
    %225 = arith.mulf %224, %224 : vector<64x32xf32>
    %cst_107 = arith.constant dense<0.000000e+00> : vector<64xf32>
    %226 = vector.multi_reduction <add>, %225, %cst_107 [1] : vector<64x32xf32> to vector<64xf32>
    %227 = vector.shape_cast %226 : vector<64xf32> to vector<64x1xf32>
    %cst_108 = arith.constant 3.200000e+01 : f32
    %228 = vector.broadcast %cst_108 : f32 to vector<64x1xf32>
    %229 = arith.divf %227, %228 : vector<64x1xf32>
    %cst_109 = arith.constant 9.99999974E-6 : f32
    %230 = vector.broadcast %cst_109 : f32 to vector<64x1xf32>
    %231 = arith.addf %229, %230 : vector<64x1xf32>
    %232 = math.rsqrt %231 : vector<64x1xf32>
    %233 = vector.broadcast %232 : vector<64x1xf32> to vector<64x32xf32>
    %234 = arith.mulf %224, %233 : vector<64x32xf32>
    %235 = vector.broadcast %216 : vector<1x32xf32> to vector<64x32xf32>
    %236 = arith.mulf %234, %235 : vector<64x32xf32>
    %237 = vector.broadcast %218 : vector<1x32xf32> to vector<64x32xf32>
    %238 = arith.addf %236, %237 : vector<64x32xf32>
    %c1 = arith.constant 1 : index
    %c0_110 = arith.constant 0 : index
    %c0_111 = arith.constant 0 : index
    %c0_112 = arith.constant 0 : index
    %239 = vector.load %arg26[%c1, %c0_110, %c0_111, %c0_112] : memref<3x1x64x32xf32, #tpu.memory_space<vmem>>, vector<1x1x64x32xf32>
    %240 = vector.shape_cast %239 : vector<1x1x64x32xf32> to vector<64x32xf32>
    %241 = vector.shape_cast %238 : vector<64x32xf32> to vector<1x1x64x32xf32>
    tpu.vector_store %arg26[%c1, %c0_110, %c0_111, %c0_112], %241 {strides = array<i32>} : memref<3x1x64x32xf32, #tpu.memory_space<vmem>>, vector<1x1x64x32xf32>,
    %242 = arith.truncf %238 : vector<64x32xf32> to vector<64x32xbf16>
    %c1_113 = arith.constant 1 : index
    %c0_114 = arith.constant 0 : index
    %c0_115 = arith.constant 0 : index
    %243 = vector.load %arg12[%c1_113, %c0_114, %c0_115] : memref<2x32x96xbf16, #tpu.memory_space<vmem>>, vector<1x32x96xbf16>
    %244 = vector.shape_cast %243 : vector<1x32x96xbf16> to vector<32x96xbf16>
    %cst_116 = arith.constant dense<0.000000e+00> : vector<64x96xf32>
    %245 = tpu.matmul %242, %244, %cst_116 {dimension_numbers = #tpu.dot_dimension_numbers<[1], [0], [0], [1], [0, 0, 1, 1], [], []>} : vector<64x32xbf16>, vector<32x96xbf16>, vector<64x96xf32> -> vector<64x96xf32>
    %c1_117 = arith.constant 1 : index
    %c0_118 = arith.constant 0 : index
    %c0_119 = arith.constant 0 : index
    %246 = vector.load %arg13[%c1_117, %c0_118, %c0_119] : memref<2x1x96xf32, #tpu.memory_space<vmem>>, vector<1x1x96xf32>
    %247 = vector.shape_cast %246 : vector<1x1x96xf32> to vector<1x96xf32>
    %248 = vector.broadcast %247 : vector<1x96xf32> to vector<64x96xf32>
    %249 = arith.addf %245, %248 : vector<64x96xf32>
    %250 = vector.extract_strided_slice %249 {offsets = [0, 0], sizes = [64, 8], strides = [1, 1]} : vector<64x96xf32> to vector<64x8xf32>
    %251 = arith.truncf %250 : vector<64x8xf32> to vector<64x8xbf16>
    %252 = vector.extract_strided_slice %249 {offsets = [0, 32], sizes = [64, 8], strides = [1, 1]} : vector<64x96xf32> to vector<64x8xf32>
    %253 = arith.truncf %252 : vector<64x8xf32> to vector<64x8xbf16>
    %cst_120 = arith.constant dense<0.000000e+00> : vector<64x64xf32>
    %254 = tpu.matmul %251, %253, %cst_120 {dimension_numbers = #tpu.dot_dimension_numbers<[1], [1], [0], [0], [0, 0, 1, 0], [], []>} : vector<64x8xbf16>, vector<64x8xbf16>, vector<64x64xf32> -> vector<64x64xf32>
    %255 = vector.extract_strided_slice %249 {offsets = [0, 8], sizes = [64, 8], strides = [1, 1]} : vector<64x96xf32> to vector<64x8xf32>
    %256 = arith.truncf %255 : vector<64x8xf32> to vector<64x8xbf16>
    %257 = vector.extract_strided_slice %249 {offsets = [0, 40], sizes = [64, 8], strides = [1, 1]} : vector<64x96xf32> to vector<64x8xf32>
    %258 = arith.truncf %257 : vector<64x8xf32> to vector<64x8xbf16>
    %cst_121 = arith.constant dense<0.000000e+00> : vector<64x64xf32>
    %259 = tpu.matmul %256, %258, %cst_121 {dimension_numbers = #tpu.dot_dimension_numbers<[1], [1], [0], [0], [0, 0, 1, 0], [], []>} : vector<64x8xbf16>, vector<64x8xbf16>, vector<64x64xf32> -> vector<64x64xf32>
    %260 = vector.extract_strided_slice %249 {offsets = [0, 16], sizes = [64, 8], strides = [1, 1]} : vector<64x96xf32> to vector<64x8xf32>
    %261 = arith.truncf %260 : vector<64x8xf32> to vector<64x8xbf16>
    %262 = vector.extract_strided_slice %249 {offsets = [0, 48], sizes = [64, 8], strides = [1, 1]} : vector<64x96xf32> to vector<64x8xf32>
    %263 = arith.truncf %262 : vector<64x8xf32> to vector<64x8xbf16>
    %cst_122 = arith.constant dense<0.000000e+00> : vector<64x64xf32>
    %264 = tpu.matmul %261, %263, %cst_122 {dimension_numbers = #tpu.dot_dimension_numbers<[1], [1], [0], [0], [0, 0, 1, 0], [], []>} : vector<64x8xbf16>, vector<64x8xbf16>, vector<64x64xf32> -> vector<64x64xf32>
    %265 = vector.extract_strided_slice %249 {offsets = [0, 24], sizes = [64, 8], strides = [1, 1]} : vector<64x96xf32> to vector<64x8xf32>
    %266 = arith.truncf %265 : vector<64x8xf32> to vector<64x8xbf16>
    %267 = vector.extract_strided_slice %249 {offsets = [0, 56], sizes = [64, 8], strides = [1, 1]} : vector<64x96xf32> to vector<64x8xf32>
    %268 = arith.truncf %267 : vector<64x8xf32> to vector<64x8xbf16>
    %cst_123 = arith.constant dense<0.000000e+00> : vector<64x64xf32>
    %269 = tpu.matmul %266, %268, %cst_123 {dimension_numbers = #tpu.dot_dimension_numbers<[1], [1], [0], [0], [0, 0, 1, 0], [], []>} : vector<64x8xbf16>, vector<64x8xbf16>, vector<64x64xf32> -> vector<64x64xf32>
    %270 = tpu.concatenate %254, %259, %264, %269 in 0 : vector<64x64xf32>, vector<64x64xf32>, vector<64x64xf32>, vector<64x64xf32> -> vector<256x64xf32>
    %cst_124 = arith.constant dense<0xFF800000> : vector<256xf32>
    %271 = vector.multi_reduction <maximumf>, %270, %cst_124 [1] : vector<256x64xf32> to vector<256xf32>
    %272 = vector.shape_cast %271 : vector<256xf32> to vector<256x1xf32>
    %273 = vector.broadcast %272 : vector<256x1xf32> to vector<256x64xf32>
    %274 = arith.subf %270, %273 : vector<256x64xf32>
    %275 = math.exp %274 : vector<256x64xf32>
    %cst_125 = arith.constant dense<0.000000e+00> : vector<256xf32>
    %276 = vector.multi_reduction <add>, %275, %cst_125 [1] : vector<256x64xf32> to vector<256xf32>
    %277 = vector.shape_cast %276 : vector<256xf32> to vector<256x1xf32>
    %278 = tpu.reciprocal %277 {approx = true} : vector<256x1xf32> -> vector<256x1xf32>
    %279 = vector.broadcast %278 : vector<256x1xf32> to vector<256x64xf32>
    %280 = arith.mulf %275, %279 : vector<256x64xf32>
    %281 = arith.truncf %280 : vector<256x64xf32> to vector<256x64xbf16>
    %282 = vector.extract_strided_slice %281 {offsets = [0, 0], sizes = [64, 64], strides = [1, 1]} : vector<256x64xbf16> to vector<64x64xbf16>
    %283 = vector.extract_strided_slice %249 {offsets = [0, 64], sizes = [64, 8], strides = [1, 1]} : vector<64x96xf32> to vector<64x8xf32>
    %284 = arith.truncf %283 : vector<64x8xf32> to vector<64x8xbf16>
    %cst_126 = arith.constant dense<0.000000e+00> : vector<64x8xf32>
    %285 = tpu.matmul %282, %284, %cst_126 {dimension_numbers = #tpu.dot_dimension_numbers<[1], [0], [0], [1], [0, 0, 1, 1], [], []>} : vector<64x64xbf16>, vector<64x8xbf16>, vector<64x8xf32> -> vector<64x8xf32>
    %286 = vector.extract_strided_slice %281 {offsets = [64, 0], sizes = [64, 64], strides = [1, 1]} : vector<256x64xbf16> to vector<64x64xbf16>
    %287 = vector.extract_strided_slice %249 {offsets = [0, 72], sizes = [64, 8], strides = [1, 1]} : vector<64x96xf32> to vector<64x8xf32>
    %288 = arith.truncf %287 : vector<64x8xf32> to vector<64x8xbf16>
    %cst_127 = arith.constant dense<0.000000e+00> : vector<64x8xf32>
    %289 = tpu.matmul %286, %288, %cst_127 {dimension_numbers = #tpu.dot_dimension_numbers<[1], [0], [0], [1], [0, 0, 1, 1], [], []>} : vector<64x64xbf16>, vector<64x8xbf16>, vector<64x8xf32> -> vector<64x8xf32>
    %290 = vector.extract_strided_slice %281 {offsets = [128, 0], sizes = [64, 64], strides = [1, 1]} : vector<256x64xbf16> to vector<64x64xbf16>
    %291 = vector.extract_strided_slice %249 {offsets = [0, 80], sizes = [64, 8], strides = [1, 1]} : vector<64x96xf32> to vector<64x8xf32>
    %292 = arith.truncf %291 : vector<64x8xf32> to vector<64x8xbf16>
    %cst_128 = arith.constant dense<0.000000e+00> : vector<64x8xf32>
    %293 = tpu.matmul %290, %292, %cst_128 {dimension_numbers = #tpu.dot_dimension_numbers<[1], [0], [0], [1], [0, 0, 1, 1], [], []>} : vector<64x64xbf16>, vector<64x8xbf16>, vector<64x8xf32> -> vector<64x8xf32>
    %294 = vector.extract_strided_slice %281 {offsets = [192, 0], sizes = [64, 64], strides = [1, 1]} : vector<256x64xbf16> to vector<64x64xbf16>
    %295 = vector.extract_strided_slice %249 {offsets = [0, 88], sizes = [64, 8], strides = [1, 1]} : vector<64x96xf32> to vector<64x8xf32>
    %296 = arith.truncf %295 : vector<64x8xf32> to vector<64x8xbf16>
    %cst_129 = arith.constant dense<0.000000e+00> : vector<64x8xf32>
    %297 = tpu.matmul %294, %296, %cst_129 {dimension_numbers = #tpu.dot_dimension_numbers<[1], [0], [0], [1], [0, 0, 1, 1], [], []>} : vector<64x64xbf16>, vector<64x8xbf16>, vector<64x8xf32> -> vector<64x8xf32>
    %298 = tpu.concatenate %285, %289, %293, %297 in 1 : vector<64x8xf32>, vector<64x8xf32>, vector<64x8xf32>, vector<64x8xf32> -> vector<64x32xf32>
    %299 = arith.truncf %298 : vector<64x32xf32> to vector<64x32xbf16>
    %c1_130 = arith.constant 1 : index
    %c0_131 = arith.constant 0 : index
    %c0_132 = arith.constant 0 : index
    %300 = vector.load %arg14[%c1_130, %c0_131, %c0_132] : memref<2x32x32xbf16, #tpu.memory_space<vmem>>, vector<1x32x32xbf16>
    %301 = vector.shape_cast %300 : vector<1x32x32xbf16> to vector<32x32xbf16>
    %cst_133 = arith.constant dense<0.000000e+00> : vector<64x32xf32>
    %302 = tpu.matmul %299, %301, %cst_133 {dimension_numbers = #tpu.dot_dimension_numbers<[1], [0], [0], [1], [0, 0, 1, 1], [], []>} : vector<64x32xbf16>, vector<32x32xbf16>, vector<64x32xf32> -> vector<64x32xf32>
    %c1_134 = arith.constant 1 : index
    %c0_135 = arith.constant 0 : index
    %c0_136 = arith.constant 0 : index
    %303 = vector.load %arg15[%c1_134, %c0_135, %c0_136] : memref<2x1x32xf32, #tpu.memory_space<vmem>>, vector<1x1x32xf32>
    %304 = vector.shape_cast %303 : vector<1x1x32xf32> to vector<1x32xf32>
    %305 = vector.broadcast %304 : vector<1x32xf32> to vector<64x32xf32>
    %306 = arith.addf %302, %305 : vector<64x32xf32>
    %307 = arith.addf %238, %306 : vector<64x32xf32>
    %c1_137 = arith.constant 1 : index
    %c0_138 = arith.constant 0 : index
    %c0_139 = arith.constant 0 : index
    %308 = vector.load %arg16[%c1_137, %c0_138, %c0_139] : memref<2x1x32xf32, #tpu.memory_space<vmem>>, vector<1x1x32xf32>
    %309 = vector.shape_cast %308 : vector<1x1x32xf32> to vector<1x32xf32>
    %c1_140 = arith.constant 1 : index
    %c0_141 = arith.constant 0 : index
    %c0_142 = arith.constant 0 : index
    %310 = vector.load %arg17[%c1_140, %c0_141, %c0_142] : memref<2x1x32xf32, #tpu.memory_space<vmem>>, vector<1x1x32xf32>
    %311 = vector.shape_cast %310 : vector<1x1x32xf32> to vector<1x32xf32>
    %cst_143 = arith.constant dense<0.000000e+00> : vector<64xf32>
    %312 = vector.multi_reduction <add>, %307, %cst_143 [1] : vector<64x32xf32> to vector<64xf32>
    %313 = vector.shape_cast %312 : vector<64xf32> to vector<64x1xf32>
    %cst_144 = arith.constant 3.200000e+01 : f32
    %314 = vector.broadcast %cst_144 : f32 to vector<64x1xf32>
    %315 = arith.divf %313, %314 : vector<64x1xf32>
    %316 = vector.broadcast %315 : vector<64x1xf32> to vector<64x32xf32>
    %317 = arith.subf %307, %316 : vector<64x32xf32>
    %318 = arith.mulf %317, %317 : vector<64x32xf32>
    %cst_145 = arith.constant dense<0.000000e+00> : vector<64xf32>
    %319 = vector.multi_reduction <add>, %318, %cst_145 [1] : vector<64x32xf32> to vector<64xf32>
    %320 = vector.shape_cast %319 : vector<64xf32> to vector<64x1xf32>
    %cst_146 = arith.constant 3.200000e+01 : f32
    %321 = vector.broadcast %cst_146 : f32 to vector<64x1xf32>
    %322 = arith.divf %320, %321 : vector<64x1xf32>
    %cst_147 = arith.constant 9.99999974E-6 : f32
    %323 = vector.broadcast %cst_147 : f32 to vector<64x1xf32>
    %324 = arith.addf %322, %323 : vector<64x1xf32>
    %325 = math.rsqrt %324 : vector<64x1xf32>
    %326 = vector.broadcast %325 : vector<64x1xf32> to vector<64x32xf32>
    %327 = arith.mulf %317, %326 : vector<64x32xf32>
    %328 = vector.broadcast %309 : vector<1x32xf32> to vector<64x32xf32>
    %329 = arith.mulf %327, %328 : vector<64x32xf32>
    %330 = vector.broadcast %311 : vector<1x32xf32> to vector<64x32xf32>
    %331 = arith.addf %329, %330 : vector<64x32xf32>
    %332 = arith.truncf %331 : vector<64x32xf32> to vector<64x32xbf16>
    %c1_148 = arith.constant 1 : index
    %c0_149 = arith.constant 0 : index
    %c0_150 = arith.constant 0 : index
    %333 = vector.load %arg18[%c1_148, %c0_149, %c0_150] : memref<2x32x128xbf16, #tpu.memory_space<vmem>>, vector<1x32x128xbf16>
    %334 = vector.shape_cast %333 : vector<1x32x128xbf16> to vector<32x128xbf16>
    %cst_151 = arith.constant dense<0.000000e+00> : vector<64x128xf32>
    %335 = tpu.matmul %332, %334, %cst_151 {dimension_numbers = #tpu.dot_dimension_numbers<[1], [0], [0], [1], [0, 0, 1, 1], [], []>} : vector<64x32xbf16>, vector<32x128xbf16>, vector<64x128xf32> -> vector<64x128xf32>
    %c1_152 = arith.constant 1 : index
    %c0_153 = arith.constant 0 : index
    %c0_154 = arith.constant 0 : index
    %336 = vector.load %arg19[%c1_152, %c0_153, %c0_154] : memref<2x1x128xf32, #tpu.memory_space<vmem>>, vector<1x1x128xf32>
    %337 = vector.shape_cast %336 : vector<1x1x128xf32> to vector<1x128xf32>
    %338 = vector.broadcast %337 : vector<1x128xf32> to vector<64x128xf32>
    %339 = arith.addf %335, %338 : vector<64x128xf32>
    %cst_155 = arith.constant 5.000000e-01 : f32
    %340 = vector.broadcast %cst_155 : f32 to vector<64x128xf32>
    %341 = arith.mulf %340, %339 : vector<64x128xf32>
    %cst_156 = arith.constant 4.471500e-02 : f32
    %342 = vector.broadcast %cst_156 : f32 to vector<64x128xf32>
    %343 = arith.mulf %342, %339 : vector<64x128xf32>
    %344 = arith.mulf %343, %339 : vector<64x128xf32>
    %345 = arith.mulf %344, %339 : vector<64x128xf32>
    %346 = arith.addf %339, %345 : vector<64x128xf32>
    %cst_157 = arith.constant 0.797884583 : f32
    %347 = vector.broadcast %cst_157 : f32 to vector<64x128xf32>
    %348 = arith.mulf %347, %346 : vector<64x128xf32>
    %349 = math.tanh %348 : vector<64x128xf32>
    %cst_158 = arith.constant 1.000000e+00 : f32
    %350 = vector.broadcast %cst_158 : f32 to vector<64x128xf32>
    %351 = arith.addf %350, %349 : vector<64x128xf32>
    %352 = arith.mulf %341, %351 : vector<64x128xf32>
    %353 = arith.truncf %352 : vector<64x128xf32> to vector<64x128xbf16>
    %c1_159 = arith.constant 1 : index
    %c0_160 = arith.constant 0 : index
    %c0_161 = arith.constant 0 : index
    %354 = vector.load %arg20[%c1_159, %c0_160, %c0_161] : memref<2x128x32xbf16, #tpu.memory_space<vmem>>, vector<1x128x32xbf16>
    %355 = vector.shape_cast %354 : vector<1x128x32xbf16> to vector<128x32xbf16>
    %cst_162 = arith.constant dense<0.000000e+00> : vector<64x32xf32>
    %356 = tpu.matmul %353, %355, %cst_162 {dimension_numbers = #tpu.dot_dimension_numbers<[1], [0], [0], [1], [0, 0, 1, 1], [], []>} : vector<64x128xbf16>, vector<128x32xbf16>, vector<64x32xf32> -> vector<64x32xf32>
    %c1_163 = arith.constant 1 : index
    %c0_164 = arith.constant 0 : index
    %c0_165 = arith.constant 0 : index
    %357 = vector.load %arg21[%c1_163, %c0_164, %c0_165] : memref<2x1x32xf32, #tpu.memory_space<vmem>>, vector<1x1x32xf32>
    %358 = vector.shape_cast %357 : vector<1x1x32xf32> to vector<1x32xf32>
    %359 = vector.broadcast %358 : vector<1x32xf32> to vector<64x32xf32>
    %360 = arith.addf %356, %359 : vector<64x32xf32>
    %361 = arith.addf %331, %360 : vector<64x32xf32>
    %c1_166 = arith.constant 1 : index
    %c0_167 = arith.constant 0 : index
    %c0_168 = arith.constant 0 : index
    %362 = vector.load %arg22[%c1_166, %c0_167, %c0_168] : memref<2x1x32xf32, #tpu.memory_space<vmem>>, vector<1x1x32xf32>
    %363 = vector.shape_cast %362 : vector<1x1x32xf32> to vector<1x32xf32>
    %c1_169 = arith.constant 1 : index
    %c0_170 = arith.constant 0 : index
    %c0_171 = arith.constant 0 : index
    %364 = vector.load %arg23[%c1_169, %c0_170, %c0_171] : memref<2x1x32xf32, #tpu.memory_space<vmem>>, vector<1x1x32xf32>
    %365 = vector.shape_cast %364 : vector<1x1x32xf32> to vector<1x32xf32>
    %cst_172 = arith.constant dense<0.000000e+00> : vector<64xf32>
    %366 = vector.multi_reduction <add>, %361, %cst_172 [1] : vector<64x32xf32> to vector<64xf32>
    %367 = vector.shape_cast %366 : vector<64xf32> to vector<64x1xf32>
    %cst_173 = arith.constant 3.200000e+01 : f32
    %368 = vector.broadcast %cst_173 : f32 to vector<64x1xf32>
    %369 = arith.divf %367, %368 : vector<64x1xf32>
    %370 = vector.broadcast %369 : vector<64x1xf32> to vector<64x32xf32>
    %371 = arith.subf %361, %370 : vector<64x32xf32>
    %372 = arith.mulf %371, %371 : vector<64x32xf32>
    %cst_174 = arith.constant dense<0.000000e+00> : vector<64xf32>
    %373 = vector.multi_reduction <add>, %372, %cst_174 [1] : vector<64x32xf32> to vector<64xf32>
    %374 = vector.shape_cast %373 : vector<64xf32> to vector<64x1xf32>
    %cst_175 = arith.constant 3.200000e+01 : f32
    %375 = vector.broadcast %cst_175 : f32 to vector<64x1xf32>
    %376 = arith.divf %374, %375 : vector<64x1xf32>
    %cst_176 = arith.constant 9.99999974E-6 : f32
    %377 = vector.broadcast %cst_176 : f32 to vector<64x1xf32>
    %378 = arith.addf %376, %377 : vector<64x1xf32>
    %379 = math.rsqrt %378 : vector<64x1xf32>
    %380 = vector.broadcast %379 : vector<64x1xf32> to vector<64x32xf32>
    %381 = arith.mulf %371, %380 : vector<64x32xf32>
    %382 = vector.broadcast %363 : vector<1x32xf32> to vector<64x32xf32>
    %383 = arith.mulf %381, %382 : vector<64x32xf32>
    %384 = vector.broadcast %365 : vector<1x32xf32> to vector<64x32xf32>
    %385 = arith.addf %383, %384 : vector<64x32xf32>
    %c2 = arith.constant 2 : index
    %c0_177 = arith.constant 0 : index
    %c0_178 = arith.constant 0 : index
    %c0_179 = arith.constant 0 : index
    %386 = vector.load %arg26[%c2, %c0_177, %c0_178, %c0_179] : memref<3x1x64x32xf32, #tpu.memory_space<vmem>>, vector<1x1x64x32xf32>
    %387 = vector.shape_cast %386 : vector<1x1x64x32xf32> to vector<64x32xf32>
    %388 = vector.shape_cast %385 : vector<64x32xf32> to vector<1x1x64x32xf32>
    tpu.vector_store %arg26[%c2, %c0_177, %c0_178, %c0_179], %388 {strides = array<i32>} : memref<3x1x64x32xf32, #tpu.memory_space<vmem>>, vector<1x1x64x32xf32>,
    %389 = arith.truncf %385 : vector<64x32xf32> to vector<64x32xbf16>
    %c0_180 = arith.constant 0 : index
    %c0_181 = arith.constant 0 : index
    %390 = vector.load %arg24[%c0_180, %c0_181] : memref<32x128xbf16, #tpu.memory_space<vmem>>, vector<32x128xbf16>
    %cst_182 = arith.constant dense<0.000000e+00> : vector<64x128xf32>
    %391 = tpu.matmul %389, %390, %cst_182 {dimension_numbers = #tpu.dot_dimension_numbers<[1], [0], [0], [1], [0, 0, 1, 1], [], []>} : vector<64x32xbf16>, vector<32x128xbf16>, vector<64x128xf32> -> vector<64x128xf32>
    %c0_183 = arith.constant 0 : index
    %c0_184 = arith.constant 0 : index
    %392 = vector.load %arg25[%c0_183, %c0_184] : memref<1x128xf32, #tpu.memory_space<vmem>>, vector<1x128xf32>
    %393 = vector.broadcast %392 : vector<1x128xf32> to vector<64x128xf32>
    %394 = arith.addf %391, %393 : vector<64x128xf32>
    %c0_185 = arith.constant 0 : index
    %c0_186 = arith.constant 0 : index
    %c0_187 = arith.constant 0 : index
    %395 = vector.load %arg27[%c0_185, %c0_186, %c0_187] : memref<1x64x128xf32, #tpu.memory_space<vmem>>, vector<1x64x128xf32>
    %396 = vector.shape_cast %395 : vector<1x64x128xf32> to vector<64x128xf32>
    %397 = vector.shape_cast %394 : vector<64x128xf32> to vector<1x64x128xf32>
    tpu.vector_store %arg27[%c0_185, %c0_186, %c0_187], %397 {strides = array<i32>} : memref<1x64x128xf32, #tpu.memory_space<vmem>>, vector<1x64x128xf32>,
    return
  }
  func.func @transform_0(%arg0: i32) -> (i32, i32, i32) {
    %c0_i32 = arith.constant 0 : i32
    %c0_i32_0 = arith.constant 0 : i32
    %c0_i32_1 = arith.constant 0 : i32
    return %arg0, %c0_i32, %c0_i32_0 : i32, i32, i32
  }
  func.func @transform_1(%arg0: i32) -> (i32, i32) {
    %c0_i32 = arith.constant 0 : i32
    %c0_i32_0 = arith.constant 0 : i32
    %c0_i32_1 = arith.constant 0 : i32
    return %c0_i32, %c0_i32_0 : i32, i32
  }
  func.func @transform_2(%arg0: i32) -> (i32, i32) {
    %c0_i32 = arith.constant 0 : i32
    %c0_i32_0 = arith.constant 0 : i32
    %c0_i32_1 = arith.constant 0 : i32
    return %c0_i32, %c0_i32_0 : i32, i32
  }
  func.func @transform_3(%arg0: i32) -> (i32, i32) {
    %c0_i32 = arith.constant 0 : i32
    %c0_i32_0 = arith.constant 0 : i32
    %c0_i32_1 = arith.constant 0 : i32
    return %c0_i32, %c0_i32_0 : i32, i32
  }
  func.func @transform_4(%arg0: i32) -> (i32, i32) {
    %c0_i32 = arith.constant 0 : i32
    %c0_i32_0 = arith.constant 0 : i32
    %c0_i32_1 = arith.constant 0 : i32
    return %c0_i32, %c0_i32_0 : i32, i32
  }
  func.func @transform_5(%arg0: i32) -> (i32, i32) {
    %c0_i32 = arith.constant 0 : i32
    %c0_i32_0 = arith.constant 0 : i32
    %c0_i32_1 = arith.constant 0 : i32
    return %c0_i32, %c0_i32_0 : i32, i32
  }
  func.func @transform_6(%arg0: i32) -> (i32, i32) {
    %c0_i32 = arith.constant 0 : i32
    %c0_i32_0 = arith.constant 0 : i32
    %c0_i32_1 = arith.constant 0 : i32
    return %c0_i32, %c0_i32_0 : i32, i32
  }
  func.func @transform_7(%arg0: i32) -> (i32, i32) {
    %c0_i32 = arith.constant 0 : i32
    %c0_i32_0 = arith.constant 0 : i32
    %c0_i32_1 = arith.constant 0 : i32
    return %c0_i32, %c0_i32_0 : i32, i32
  }
  func.func @transform_8(%arg0: i32) -> (i32, i32) {
    %c0_i32 = arith.constant 0 : i32
    %c0_i32_0 = arith.constant 0 : i32
    %c0_i32_1 = arith.constant 0 : i32
    return %c0_i32, %c0_i32_0 : i32, i32
  }
  func.func @transform_9(%arg0: i32) -> (i32, i32) {
    %c0_i32 = arith.constant 0 : i32
    %c0_i32_0 = arith.constant 0 : i32
    %c0_i32_1 = arith.constant 0 : i32
    return %c0_i32, %c0_i32_0 : i32, i32
  }
  func.func @transform_10(%arg0: i32) -> (i32, i32) {
    %c0_i32 = arith.constant 0 : i32
    %c0_i32_0 = arith.constant 0 : i32
    %c0_i32_1 = arith.constant 0 : i32
    return %c0_i32, %c0_i32_0 : i32, i32
  }
  func.func @transform_11(%arg0: i32) -> (i32, i32, i32) {
    %c0_i32 = arith.constant 0 : i32
    %c0_i32_0 = arith.constant 0 : i32
    %c0_i32_1 = arith.constant 0 : i32
    %c0_i32_2 = arith.constant 0 : i32
    return %c0_i32, %c0_i32_0, %c0_i32_1 : i32, i32, i32
  }
  func.func @transform_12(%arg0: i32) -> (i32, i32, i32) {
    %c0_i32 = arith.constant 0 : i32
    %c0_i32_0 = arith.constant 0 : i32
    %c0_i32_1 = arith.constant 0 : i32
    %c0_i32_2 = arith.constant 0 : i32
    return %c0_i32, %c0_i32_0, %c0_i32_1 : i32, i32, i32
  }
  func.func @transform_13(%arg0: i32) -> (i32, i32, i32) {
    %c0_i32 = arith.constant 0 : i32
    %c0_i32_0 = arith.constant 0 : i32
    %c0_i32_1 = arith.constant 0 : i32
    %c0_i32_2 = arith.constant 0 : i32
    return %c0_i32, %c0_i32_0, %c0_i32_1 : i32, i32, i32
  }
  func.func @transform_14(%arg0: i32) -> (i32, i32, i32) {
    %c0_i32 = arith.constant 0 : i32
    %c0_i32_0 = arith.constant 0 : i32
    %c0_i32_1 = arith.constant 0 : i32
    %c0_i32_2 = arith.constant 0 : i32
    return %c0_i32, %c0_i32_0, %c0_i32_1 : i32, i32, i32
  }
  func.func @transform_15(%arg0: i32) -> (i32, i32, i32) {
    %c0_i32 = arith.constant 0 : i32
    %c0_i32_0 = arith.constant 0 : i32
    %c0_i32_1 = arith.constant 0 : i32
    %c0_i32_2 = arith.constant 0 : i32
    return %c0_i32, %c0_i32_0, %c0_i32_1 : i32, i32, i32
  }
  func.func @transform_16(%arg0: i32) -> (i32, i32, i32) {
    %c0_i32 = arith.constant 0 : i32
    %c0_i32_0 = arith.constant 0 : i32
    %c0_i32_1 = arith.constant 0 : i32
    %c0_i32_2 = arith.constant 0 : i32
    return %c0_i32, %c0_i32_0, %c0_i32_1 : i32, i32, i32
  }
  func.func @transform_17(%arg0: i32) -> (i32, i32, i32) {
    %c0_i32 = arith.constant 0 : i32
    %c0_i32_0 = arith.constant 0 : i32
    %c0_i32_1 = arith.constant 0 : i32
    %c0_i32_2 = arith.constant 0 : i32
    return %c0_i32, %c0_i32_0, %c0_i32_1 : i32, i32, i32
  }
  func.func @transform_18(%arg0: i32) -> (i32, i32, i32) {
    %c0_i32 = arith.constant 0 : i32
    %c0_i32_0 = arith.constant 0 : i32
    %c0_i32_1 = arith.constant 0 : i32
    %c0_i32_2 = arith.constant 0 : i32
    return %c0_i32, %c0_i32_0, %c0_i32_1 : i32, i32, i32
  }
  func.func @transform_19(%arg0: i32) -> (i32, i32, i32) {
    %c0_i32 = arith.constant 0 : i32
    %c0_i32_0 = arith.constant 0 : i32
    %c0_i32_1 = arith.constant 0 : i32
    %c0_i32_2 = arith.constant 0 : i32
    return %c0_i32, %c0_i32_0, %c0_i32_1 : i32, i32, i32
  }
  func.func @transform_20(%arg0: i32) -> (i32, i32, i32) {
    %c0_i32 = arith.constant 0 : i32
    %c0_i32_0 = arith.constant 0 : i32
    %c0_i32_1 = arith.constant 0 : i32
    %c0_i32_2 = arith.constant 0 : i32
    return %c0_i32, %c0_i32_0, %c0_i32_1 : i32, i32, i32
  }
  func.func @transform_21(%arg0: i32) -> (i32, i32, i32) {
    %c0_i32 = arith.constant 0 : i32
    %c0_i32_0 = arith.constant 0 : i32
    %c0_i32_1 = arith.constant 0 : i32
    %c0_i32_2 = arith.constant 0 : i32
    return %c0_i32, %c0_i32_0, %c0_i32_1 : i32, i32, i32
  }
  func.func @transform_22(%arg0: i32) -> (i32, i32, i32) {
    %c0_i32 = arith.constant 0 : i32
    %c0_i32_0 = arith.constant 0 : i32
    %c0_i32_1 = arith.constant 0 : i32
    %c0_i32_2 = arith.constant 0 : i32
    return %c0_i32, %c0_i32_0, %c0_i32_1 : i32, i32, i32
  }
  func.func @transform_23(%arg0: i32) -> (i32, i32) {
    %c0_i32 = arith.constant 0 : i32
    %c0_i32_0 = arith.constant 0 : i32
    %c0_i32_1 = arith.constant 0 : i32
    return %c0_i32, %c0_i32_0 : i32, i32
  }
  func.func @transform_24(%arg0: i32) -> (i32, i32) {
    %c0_i32 = arith.constant 0 : i32
    %c0_i32_0 = arith.constant 0 : i32
    %c0_i32_1 = arith.constant 0 : i32
    return %c0_i32, %c0_i32_0 : i32, i32
  }
  func.func @transform_25(%arg0: i32) -> (i32, i32, i32, i32) {
    %c0_i32 = arith.constant 0 : i32
    %c0_i32_0 = arith.constant 0 : i32
    %c0_i32_1 = arith.constant 0 : i32
    %c0_i32_2 = arith.constant 0 : i32
    return %c0_i32, %arg0, %c0_i32_0, %c0_i32_1 : i32, i32, i32, i32
  }
  func.func @transform_26(%arg0: i32) -> (i32, i32, i32) {
    %c0_i32 = arith.constant 0 : i32
    %c0_i32_0 = arith.constant 0 : i32
    %c0_i32_1 = arith.constant 0 : i32
    return %arg0, %c0_i32, %c0_i32_0 : i32, i32, i32
  }
}

</mosaic_0001>

<llo_original>
// kernel: audio_encoder_forward.1
$region0: #{audio_encoder_forward.1}
  #allocation0 [shape = 'u32[]', space=smem, size = 0x4, offset = 0x4, fixed_abs, tag = 'smem constant byte address 0x4 - core index']
  #allocation1 [shape = 'u32[144,128]{1,0:T(1,128)}', space=vmem, size = 0x12000, scoped, tag = 'internal scratch']
  %s0 = inlined_call_operand.vmem [shape: bf16[2,65,16], index: 0, kind: input, shape index: {}]
  %s1 = inlined_call_operand.vmem [shape: bf16[16,64], index: 1, kind: input, shape index: {}]
  %s2 = inlined_call_operand.vmem [shape: f32[1,64], index: 2, kind: input, shape index: {}]
  %s3 = inlined_call_operand.vmem [shape: bf16[128,32], index: 3, kind: input, shape index: {}]
  %s4 = inlined_call_operand.vmem [shape: f32[1,32], index: 4, kind: input, shape index: {}]
  %s5 = inlined_call_operand.vmem [shape: f32[1,32], index: 5, kind: input, shape index: {}]
  %s6 = inlined_call_operand.vmem [shape: f32[1,32], index: 6, kind: input, shape index: {}]
  %s7 = inlined_call_operand.vmem [shape: bf16[32,32], index: 7, kind: input, shape index: {}]
  %s8 = inlined_call_operand.vmem [shape: f32[1,32], index: 8, kind: input, shape index: {}]
  %s9 = inlined_call_operand.vmem [shape: f32[1,32], index: 9, kind: input, shape index: {}]
  %s10 = inlined_call_operand.vmem [shape: f32[1,32], index: 10, kind: input, shape index: {}]
  %s11 = inlined_call_operand.vmem [shape: bf16[2,32,96], index: 11, kind: input, shape index: {}]
  %s12 = inlined_call_operand.vmem [shape: f32[2,1,96], index: 12, kind: input, shape index: {}]
  %s13 = inlined_call_operand.vmem [shape: bf16[2,32,32], index: 13, kind: input, shape index: {}]
  %s14 = inlined_call_operand.vmem [shape: f32[2,1,32], index: 14, kind: input, shape index: {}]
  %s15 = inlined_call_operand.vmem [shape: f32[2,1,32], index: 15, kind: input, shape index: {}]
  %s16 = inlined_call_operand.vmem [shape: f32[2,1,32], index: 16, kind: input, shape index: {}]
  %s17 = inlined_call_operand.vmem [shape: bf16[2,32,128], index: 17, kind: input, shape index: {}]
  %s18 = inlined_call_operand.vmem [shape: f32[2,1,128], index: 18, kind: input, shape index: {}]
  %s19 = inlined_call_operand.vmem [shape: bf16[2,128,32], index: 19, kind: input, shape index: {}]
  %s20 = inlined_call_operand.vmem [shape: f32[2,1,32], index: 20, kind: input, shape index: {}]
  %s21 = inlined_call_operand.vmem [shape: f32[2,1,32], index: 21, kind: input, shape index: {}]
  %s22 = inlined_call_operand.vmem [shape: f32[2,1,32], index: 22, kind: input, shape index: {}]
  %s23 = inlined_call_operand.vmem [shape: bf16[32,128], index: 23, kind: input, shape index: {}]
  %s24 = inlined_call_operand.vmem [shape: f32[1,128], index: 24, kind: input, shape index: {}]
  %s25 = inlined_call_operand.vmem [shape: f32[3,2,64,32], index: 25, kind: output, shape index: {0}]
  %s26 = inlined_call_operand.vmem [shape: f32[2,64,128], index: 26, kind: output, shape index: {1}]
  %27 = xla_tuple %s25, %s26
  %s28 = sld [smem:[#allocation0]]
  $region175: #{audio_encoder_forward.1} parent=0
    _
  %s30 = ssub.s32 1, %s28
  %s31 = scalar_select 0, %s30, %s28
  $region1: #{audio_encoder_forward.1} parent=0
    #allocation2 [shape = 'u8[196608]{0}', space=vmem, size = 0x30000, scoped, tag = 'output window, operand 0']
    loop: start=0, step=1, limit=4
    $region2: #{audio_encoder_forward.1} parent=1 // loop_pre_header
      _
    $region3: #{audio_encoder_forward.1} parent=1 // loop_header
      %s33 = sphi 0, %s37
      %p34 = scmp.ge.s32.totalorder %s33, 4
      %s43 = sphi 0, %s45
      %s46 = sphi 0, %s43
      %s47 = sphi 0, %s46
      %s63 = sphi 0, %s47
      %s67 = sphi 0, %s67
      %s69 = sphi 0, %s67
      %s70 = sphi 0, %s69
      %s84 = sphi 0, %s70
      %s88 = sphi 0, %s88
      %s90 = sphi 0, %s88
      %s91 = sphi 0, %s90
      %s105 = sphi 0, %s91
      %s109 = sphi 0, %s109
      %s111 = sphi 0, %s109
      %s112 = sphi 0, %s111
      %s126 = sphi 0, %s112
      %s130 = sphi 0, %s130
      %s132 = sphi 0, %s130
      %s133 = sphi 0, %s132
      %s147 = sphi 0, %s133
      %s151 = sphi 0, %s151
      %s153 = sphi 0, %s151
      %s154 = sphi 0, %s153
      %s168 = sphi 0, %s154
      %s172 = sphi 0, %s172
      %s174 = sphi 0, %s172
      %s175 = sphi 0, %s174
      %s189 = sphi 0, %s175
      %s193 = sphi 0, %s193
      %s195 = sphi 0, %s193
      %s196 = sphi 0, %s195
      %s210 = sphi 0, %s196
      %s214 = sphi 0, %s214
      %s216 = sphi 0, %s214
      %s217 = sphi 0, %s216
      %s231 = sphi 0, %s217
      %s235 = sphi 0, %s235
      %s237 = sphi 0, %s235
      %s238 = sphi 0, %s237
      %s252 = sphi 0, %s238
      %s256 = sphi 0, %s256
      %s258 = sphi 0, %s256
      %s259 = sphi 0, %s258
      %s273 = sphi 0, %s259
      %s277 = sphi 0, %s277
      %s279 = sphi 0, %s277
      %s280 = sphi 0, %s279
      %s294 = sphi 0, %s280
      %s298 = sphi 0, %s298
      %s300 = sphi 0, %s298
      %s301 = sphi 0, %s300
      %s315 = sphi 0, %s301
      %s319 = sphi 0, %s319
      %s321 = sphi 0, %s319
      %s322 = sphi 0, %s321
      %s336 = sphi 0, %s322
      %s340 = sphi 0, %s340
      %s342 = sphi 0, %s340
      %s343 = sphi 0, %s342
      %s357 = sphi 0, %s343
      %s361 = sphi 0, %s361
      %s363 = sphi 0, %s361
      %s364 = sphi 0, %s363
      %s378 = sphi 0, %s364
      %s382 = sphi 0, %s382
      %s384 = sphi 0, %s382
      %s385 = sphi 0, %s384
      %s399 = sphi 0, %s385
      %s403 = sphi 0, %s403
      %s405 = sphi 0, %s403
      %s406 = sphi 0, %s405
      %s420 = sphi 0, %s406
      %s424 = sphi 0, %s424
      %s426 = sphi 0, %s424
      %s427 = sphi 0, %s426
      %s441 = sphi 0, %s427
      %s445 = sphi 0, %s445
      %s447 = sphi 0, %s445
      %s448 = sphi 0, %s447
      %s462 = sphi 0, %s448
      %s466 = sphi 0, %s466
      %s468 = sphi 0, %s466
      %s469 = sphi 0, %s468
      %s483 = sphi 0, %s469
      %s487 = sphi 0, %s487
      %s489 = sphi 0, %s487
      %s490 = sphi 0, %s489
      %s504 = sphi 0, %s490
      %s508 = sphi 0, %s508
      %s510 = sphi 0, %s508
      %s511 = sphi 0, %s510
      %s525 = sphi 0, %s511
      %s529 = sphi 0, %s529
      %s531 = sphi 0, %s529
      %s532 = sphi 0, %s531
      %s546 = sphi 0, %s532
      %s550 = sphi 0, %s550
      %s552 = sphi 0, %s550
      %s553 = sphi 0, %s552
      %s567 = sphi 0, %s553
      %s573 = sphi 0, %s575
      %s576 = sphi 0, %s573
      %s577 = sphi 0, %s576
      %s593 = sphi 0, %s577
      %s599 = sphi 0, %s601
      %s602 = sphi 0, %s599
      %s603 = sphi 0, %s602
      %s619 = sphi 0, %s603
    $region4: #{audio_encoder_forward.1} parent=1 // loop_header_branch
      %36 = sbr.rel (%p34) target = $region8
    $region5: #{audio_encoder_forward.1} parent=1 // loop_body
      %s38 = ssub.s32 %s33, 1
      %s39 = ssub.s32 %s33, 2
      %s40 = sadd.s32 %s33, 1
      %s41 = ssub.s32 %s33, %s40
      %p42 = scmp.eq.s32.totalorder %s41, 0
      %s44 = sadd.s32 %s43, 1
      %s45 = scalar_select %p42, %s43, %s44
      %p48 = pneg %p42
      %p49 = scmp.eq.s32.totalorder %s33, 1
      %p50 = por %p48, %p49
      %p51 = scmp.ne.s32.totalorder %s43, %s46
      %p52 = scmp.eq.s32.totalorder %s33, 0
      %p53 = por %p51, %p52
      %p54 = scmp.ne.s32.totalorder %s43, %s46
      %p55 = scmp.eq.s32.totalorder %s38, 1
      %p56 = por %p54, %p55
      %p57 = scmp.ne.s32.totalorder %s46, %s47
      %p58 = scmp.eq.s32.totalorder %s38, 0
      %p59 = por %p57, %p58
      %p60 = scmp.ne.s32.totalorder %s46, %s47
      %p61 = scmp.eq.s32.totalorder %s39, 1
      %p62 = por %p60, %p61
      %p64 = scmp.ne.s32.totalorder %s47, %s63
      %p65 = scmp.eq.s32.totalorder %s39, 0
      %p66 = por %p64, %p65
      %s68 = sadd.s32 %s67, 1
      %p71 = scmp.eq.s32.totalorder %s33, 1
      %p72 = scmp.ne.s32.totalorder %s67, %s69
      %p73 = scmp.eq.s32.totalorder %s33, 0
      %p74 = por %p72, %p73
      %p75 = scmp.ne.s32.totalorder %s67, %s69
      %p76 = scmp.eq.s32.totalorder %s38, 1
      %p77 = por %p75, %p76
      %p78 = scmp.ne.s32.totalorder %s69, %s70
      %p79 = scmp.eq.s32.totalorder %s38, 0
      %p80 = por %p78, %p79
      %p81 = scmp.ne.s32.totalorder %s69, %s70
      %p82 = scmp.eq.s32.totalorder %s39, 1
      %p83 = por %p81, %p82
      %p85 = scmp.ne.s32.totalorder %s70, %s84
      %p86 = scmp.eq.s32.totalorder %s39, 0
      %p87 = por %p85, %p86
      %s89 = sadd.s32 %s88, 1
      %p92 = scmp.eq.s32.totalorder %s33, 1
      %p93 = scmp.ne.s32.totalorder %s88, %s90
      %p94 = scmp.eq.s32.totalorder %s33, 0
      %p95 = por %p93, %p94
      %p96 = scmp.ne.s32.totalorder %s88, %s90
      %p97 = scmp.eq.s32.totalorder %s38, 1
      %p98 = por %p96, %p97
      %p99 = scmp.ne.s32.totalorder %s90, %s91
      %p100 = scmp.eq.s32.totalorder %s38, 0
      %p101 = por %p99, %p100
      %p102 = scmp.ne.s32.totalorder %s90, %s91
      %p103 = scmp.eq.s32.totalorder %s39, 1
      %p104 = por %p102, %p103
      %p106 = scmp.ne.s32.totalorder %s91, %s105
      %p107 = scmp.eq.s32.totalorder %s39, 0
      %p108 = por %p106, %p107
      %s110 = sadd.s32 %s109, 1
      %p113 = scmp.eq.s32.totalorder %s33, 1
      %p114 = scmp.ne.s32.totalorder %s109, %s111
      %p115 = scmp.eq.s32.totalorder %s33, 0
      %p116 = por %p114, %p115
      %p117 = scmp.ne.s32.totalorder %s109, %s111
      %p118 = scmp.eq.s32.totalorder %s38, 1
      %p119 = por %p117, %p118
      %p120 = scmp.ne.s32.totalorder %s111, %s112
      %p121 = scmp.eq.s32.totalorder %s38, 0
      %p122 = por %p120, %p121
      %p123 = scmp.ne.s32.totalorder %s111, %s112
      %p124 = scmp.eq.s32.totalorder %s39, 1
      %p125 = por %p123, %p124
      %p127 = scmp.ne.s32.totalorder %s112, %s126
      %p128 = scmp.eq.s32.totalorder %s39, 0
      %p129 = por %p127, %p128
      %s131 = sadd.s32 %s130, 1
      %p134 = scmp.eq.s32.totalorder %s33, 1
      %p135 = scmp.ne.s32.totalorder %s130, %s132
      %p136 = scmp.eq.s32.totalorder %s33, 0
      %p137 = por %p135, %p136
      %p138 = scmp.ne.s32.totalorder %s130, %s132
      %p139 = scmp.eq.s32.totalorder %s38, 1
      %p140 = por %p138, %p139
      %p141 = scmp.ne.s32.totalorder %s132, %s133
      %p142 = scmp.eq.s32.totalorder %s38, 0
      %p143 = por %p141, %p142
      %p144 = scmp.ne.s32.totalorder %s132, %s133
      %p145 = scmp.eq.s32.totalorder %s39, 1
      %p146 = por %p144, %p145
      %p148 = scmp.ne.s32.totalorder %s133, %s147
      %p149 = scmp.eq.s32.totalorder %s39, 0
      %p150 = por %p148, %p149
      %s152 = sadd.s32 %s151, 1
      %p155 = scmp.eq.s32.totalorder %s33, 1
      %p156 = scmp.ne.s32.totalorder %s151, %s153
      %p157 = scmp.eq.s32.totalorder %s33, 0
      %p158 = por %p156, %p157
      %p159 = scmp.ne.s32.totalorder %s151, %s153
      %p160 = scmp.eq.s32.totalorder %s38, 1
      %p161 = por %p159, %p160
      %p162 = scmp.ne.s32.totalorder %s153, %s154
      %p163 = scmp.eq.s32.totalorder %s38, 0
      %p164 = por %p162, %p163
      %p165 = scmp.ne.s32.totalorder %s153, %s154
      %p166 = scmp.eq.s32.totalorder %s39, 1
      %p167 = por %p165, %p166
      %p169 = scmp.ne.s32.totalorder %s154, %s168
      %p170 = scmp.eq.s32.totalorder %s39, 0
      %p171 = por %p169, %p170
      %s173 = sadd.s32 %s172, 1
      %p176 = scmp.eq.s32.totalorder %s33, 1
      %p177 = scmp.ne.s32.totalorder %s172, %s174
      %p178 = scmp.eq.s32.totalorder %s33, 0
      %p179 = por %p177, %p178
      %p180 = scmp.ne.s32.totalorder %s172, %s174
      %p181 = scmp.eq.s32.totalorder %s38, 1
      %p182 = por %p180, %p181
      %p183 = scmp.ne.s32.totalorder %s174, %s175
      %p184 = scmp.eq.s32.totalorder %s38, 0
      %p185 = por %p183, %p184
      %p186 = scmp.ne.s32.totalorder %s174, %s175
      %p187 = scmp.eq.s32.totalorder %s39, 1
      %p188 = por %p186, %p187
      %p190 = scmp.ne.s32.totalorder %s175, %s189
      %p191 = scmp.eq.s32.totalorder %s39, 0
      %p192 = por %p190, %p191
      %s194 = sadd.s32 %s193, 1
      %p197 = scmp.eq.s32.totalorder %s33, 1
      %p198 = scmp.ne.s32.totalorder %s193, %s195
      %p199 = scmp.eq.s32.totalorder %s33, 0
      %p200 = por %p198, %p199
      %p201 = scmp.ne.s32.totalorder %s193, %s195
      %p202 = scmp.eq.s32.totalorder %s38, 1
      %p203 = por %p201, %p202
      %p204 = scmp.ne.s32.totalorder %s195, %s196
      %p205 = scmp.eq.s32.totalorder %s38, 0
      %p206 = por %p204, %p205
      %p207 = scmp.ne.s32.totalorder %s195, %s196
      %p208 = scmp.eq.s32.totalorder %s39, 1
      %p209 = por %p207, %p208
      %p211 = scmp.ne.s32.totalorder %s196, %s210
      %p212 = scmp.eq.s32.totalorder %s39, 0
      %p213 = por %p211, %p212
      %s215 = sadd.s32 %s214, 1
      %p218 = scmp.eq.s32.totalorder %s33, 1
      %p219 = scmp.ne.s32.totalorder %s214, %s216
      %p220 = scmp.eq.s32.totalorder %s33, 0
      %p221 = por %p219, %p220
      %p222 = scmp.ne.s32.totalorder %s214, %s216
      %p223 = scmp.eq.s32.totalorder %s38, 1
      %p224 = por %p222, %p223
      %p225 = scmp.ne.s32.totalorder %s216, %s217
      %p226 = scmp.eq.s32.totalorder %s38, 0
      %p227 = por %p225, %p226
      %p228 = scmp.ne.s32.totalorder %s216, %s217
      %p229 = scmp.eq.s32.totalorder %s39, 1
      %p230 = por %p228, %p229
      %p232 = scmp.ne.s32.totalorder %s217, %s231
      %p233 = scmp.eq.s32.totalorder %s39, 0
      %p234 = por %p232, %p233
      %s236 = sadd.s32 %s235, 1
      %p239 = scmp.eq.s32.totalorder %s33, 1
      %p240 = scmp.ne.s32.totalorder %s235, %s237
      %p241 = scmp.eq.s32.totalorder %s33, 0
      %p242 = por %p240, %p241
      %p243 = scmp.ne.s32.totalorder %s235, %s237
      %p244 = scmp.eq.s32.totalorder %s38, 1
      %p245 = por %p243, %p244
      %p246 = scmp.ne.s32.totalorder %s237, %s238
      %p247 = scmp.eq.s32.totalorder %s38, 0
      %p248 = por %p246, %p247
      %p249 = scmp.ne.s32.totalorder %s237, %s238
      %p250 = scmp.eq.s32.totalorder %s39, 1
      %p251 = por %p249, %p250
      %p253 = scmp.ne.s32.totalorder %s238, %s252
      %p254 = scmp.eq.s32.totalorder %s39, 0
      %p255 = por %p253, %p254
      %s257 = sadd.s32 %s256, 1
      %p260 = scmp.eq.s32.totalorder %s33, 1
      %p261 = scmp.ne.s32.totalorder %s256, %s258
      %p262 = scmp.eq.s32.totalorder %s33, 0
      %p263 = por %p261, %p262
      %p264 = scmp.ne.s32.totalorder %s256, %s258
      %p265 = scmp.eq.s32.totalorder %s38, 1
      %p266 = por %p264, %p265
      %p267 = scmp.ne.s32.totalorder %s258, %s259
      %p268 = scmp.eq.s32.totalorder %s38, 0
      %p269 = por %p267, %p268
      %p270 = scmp.ne.s32.totalorder %s258, %s259
      %p271 = scmp.eq.s32.totalorder %s39, 1
      %p272 = por %p270, %p271
      %p274 = scmp.ne.s32.totalorder %s259, %s273
      %p275 = scmp.eq.s32.totalorder %s39, 0
      %p276 = por %p274, %p275
      %s278 = sadd.s32 %s277, 1
      %p281 = scmp.eq.s32.totalorder %s33, 1
      %p282 = scmp.ne.s32.totalorder %s277, %s279
      %p283 = scmp.eq.s32.totalorder %s33, 0
      %p284 = por %p282, %p283
      %p285 = scmp.ne.s32.totalorder %s277, %s279
      %p286 = scmp.eq.s32.totalorder %s38, 1
      %p287 = por %p285, %p286
      %p288 = scmp.ne.s32.totalorder %s279, %s280
      %p289 = scmp.eq.s32.totalorder %s38, 0
      %p290 = por %p288, %p289
      %p291 = scmp.ne.s32.totalorder %s279, %s280
      %p292 = scmp.eq.s32.totalorder %s39, 1
      %p293 = por %p291, %p292
      %p295 = scmp.ne.s32.totalorder %s280, %s294
      %p296 = scmp.eq.s32.totalorder %s39, 0
      %p297 = por %p295, %p296
      %s299 = sadd.s32 %s298, 1
      %p302 = scmp.eq.s32.totalorder %s33, 1
      %p303 = scmp.ne.s32.totalorder %s298, %s300
      %p304 = scmp.eq.s32.totalorder %s33, 0
      %p305 = por %p303, %p304
      %p306 = scmp.ne.s32.totalorder %s298, %s300
      %p307 = scmp.eq.s32.totalorder %s38, 1
      %p308 = por %p306, %p307
      %p309 = scmp.ne.s32.totalorder %s300, %s301
      %p310 = scmp.eq.s32.totalorder %s38, 0
      %p311 = por %p309, %p310
      %p312 = scmp.ne.s32.totalorder %s300, %s301
      %p313 = scmp.eq.s32.totalorder %s39, 1
      %p314 = por %p312, %p313
      %p316 = scmp.ne.s32.totalorder %s301, %s315
      %p317 = scmp.eq.s32.totalorder %s39, 0
      %p318 = por %p316, %p317
      %s320 = sadd.s32 %s319, 1
      %p323 = scmp.eq.s32.totalorder %s33, 1
      %p324 = scmp.ne.s32.totalorder %s319, %s321
      %p325 = scmp.eq.s32.totalorder %s33, 0
      %p326 = por %p324, %p325
      %p327 = scmp.ne.s32.totalorder %s319, %s321
      %p328 = scmp.eq.s32.totalorder %s38, 1
      %p329 = por %p327, %p328
      %p330 = scmp.ne.s32.totalorder %s321, %s322
      %p331 = scmp.eq.s32.totalorder %s38, 0
      %p332 = por %p330, %p331
      %p333 = scmp.ne.s32.totalorder %s321, %s322
      %p334 = scmp.eq.s32.totalorder %s39, 1
      %p335 = por %p333, %p334
      %p337 = scmp.ne.s32.totalorder %s322, %s336
      %p338 = scmp.eq.s32.totalorder %s39, 0
      %p339 = por %p337, %p338
      %s341 = sadd.s32 %s340, 1
      %p344 = scmp.eq.s32.totalorder %s33, 1
      %p345 = scmp.ne.s32.totalorder %s340, %s342
      %p346 = scmp.eq.s32.totalorder %s33, 0
      %p347 = por %p345, %p346
      %p348 = scmp.ne.s32.totalorder %s340, %s342
      %p349 = scmp.eq.s32.totalorder %s38, 1
      %p350 = por %p348, %p349
      %p351 = scmp.ne.s32.totalorder %s342, %s343
      %p352 = scmp.eq.s32.totalorder %s38, 0
      %p353 = por %p351, %p352
      %p354 = scmp.ne.s32.totalorder %s342, %s343
      %p355 = scmp.eq.s32.totalorder %s39, 1
      %p356 = por %p354, %p355
      %p358 = scmp.ne.s32.totalorder %s343, %s357
      %p359 = scmp.eq.s32.totalorder %s39, 0
      %p360 = por %p358, %p359
      %s362 = sadd.s32 %s361, 1
      %p365 = scmp.eq.s32.totalorder %s33, 1
      %p366 = scmp.ne.s32.totalorder %s361, %s363
      %p367 = scmp.eq.s32.totalorder %s33, 0
      %p368 = por %p366, %p367
      %p369 = scmp.ne.s32.totalorder %s361, %s363
      %p370 = scmp.eq.s32.totalorder %s38, 1
      %p371 = por %p369, %p370
      %p372 = scmp.ne.s32.totalorder %s363, %s364
      %p373 = scmp.eq.s32.totalorder %s38, 0
      %p374 = por %p372, %p373
      %p375 = scmp.ne.s32.totalorder %s363, %s364
      %p376 = scmp.eq.s32.totalorder %s39, 1
      %p377 = por %p375, %p376
      %p379 = scmp.ne.s32.totalorder %s364, %s378
      %p380 = scmp.eq.s32.totalorder %s39, 0
      %p381 = por %p379, %p380
      %s383 = sadd.s32 %s382, 1
      %p386 = scmp.eq.s32.totalorder %s33, 1
      %p387 = scmp.ne.s32.totalorder %s382, %s384
      %p388 = scmp.eq.s32.totalorder %s33, 0
      %p389 = por %p387, %p388
      %p390 = scmp.ne.s32.totalorder %s382, %s384
      %p391 = scmp.eq.s32.totalorder %s38, 1
      %p392 = por %p390, %p391
      %p393 = scmp.ne.s32.totalorder %s384, %s385
      %p394 = scmp.eq.s32.totalorder %s38, 0
      %p395 = por %p393, %p394
      %p396 = scmp.ne.s32.totalorder %s384, %s385
      %p397 = scmp.eq.s32.totalorder %s39, 1
      %p398 = por %p396, %p397
      %p400 = scmp.ne.s32.totalorder %s385, %s399
      %p401 = scmp.eq.s32.totalorder %s39, 0
      %p402 = por %p400, %p401
      %s404 = sadd.s32 %s403, 1
      %p407 = scmp.eq.s32.totalorder %s33, 1
      %p408 = scmp.ne.s32.totalorder %s403, %s405
      %p409 = scmp.eq.s32.totalorder %s33, 0
      %p410 = por %p408, %p409
      %p411 = scmp.ne.s32.totalorder %s403, %s405
      %p412 = scmp.eq.s32.totalorder %s38, 1
      %p413 = por %p411, %p412
      %p414 = scmp.ne.s32.totalorder %s405, %s406
      %p415 = scmp.eq.s32.totalorder %s38, 0
      %p416 = por %p414, %p415
      %p417 = scmp.ne.s32.totalorder %s405, %s406
      %p418 = scmp.eq.s32.totalorder %s39, 1
      %p419 = por %p417, %p418
      %p421 = scmp.ne.s32.totalorder %s406, %s420
      %p422 = scmp.eq.s32.totalorder %s39, 0
      %p423 = por %p421, %p422
      %s425 = sadd.s32 %s424, 1
      %p428 = scmp.eq.s32.totalorder %s33, 1
      %p429 = scmp.ne.s32.totalorder %s424, %s426
      %p430 = scmp.eq.s32.totalorder %s33, 0
      %p431 = por %p429, %p430
      %p432 = scmp.ne.s32.totalorder %s424, %s426
      %p433 = scmp.eq.s32.totalorder %s38, 1
      %p434 = por %p432, %p433
      %p435 = scmp.ne.s32.totalorder %s426, %s427
      %p436 = scmp.eq.s32.totalorder %s38, 0
      %p437 = por %p435, %p436
      %p438 = scmp.ne.s32.totalorder %s426, %s427
      %p439 = scmp.eq.s32.totalorder %s39, 1
      %p440 = por %p438, %p439
      %p442 = scmp.ne.s32.totalorder %s427, %s441
      %p443 = scmp.eq.s32.totalorder %s39, 0
      %p444 = por %p442, %p443
      %s446 = sadd.s32 %s445, 1
      %p449 = scmp.eq.s32.totalorder %s33, 1
      %p450 = scmp.ne.s32.totalorder %s445, %s447
      %p451 = scmp.eq.s32.totalorder %s33, 0
      %p452 = por %p450, %p451
      %p453 = scmp.ne.s32.totalorder %s445, %s447
      %p454 = scmp.eq.s32.totalorder %s38, 1
      %p455 = por %p453, %p454
      %p456 = scmp.ne.s32.totalorder %s447, %s448
      %p457 = scmp.eq.s32.totalorder %s38, 0
      %p458 = por %p456, %p457
      %p459 = scmp.ne.s32.totalorder %s447, %s448
      %p460 = scmp.eq.s32.totalorder %s39, 1
      %p461 = por %p459, %p460
      %p463 = scmp.ne.s32.totalorder %s448, %s462
      %p464 = scmp.eq.s32.totalorder %s39, 0
      %p465 = por %p463, %p464
      %s467 = sadd.s32 %s466, 1
      %p470 = scmp.eq.s32.totalorder %s33, 1
      %p471 = scmp.ne.s32.totalorder %s466, %s468
      %p472 = scmp.eq.s32.totalorder %s33, 0
      %p473 = por %p471, %p472
      %p474 = scmp.ne.s32.totalorder %s466, %s468
      %p475 = scmp.eq.s32.totalorder %s38, 1
      %p476 = por %p474, %p475
      %p477 = scmp.ne.s32.totalorder %s468, %s469
      %p478 = scmp.eq.s32.totalorder %s38, 0
      %p479 = por %p477, %p478
      %p480 = scmp.ne.s32.totalorder %s468, %s469
      %p481 = scmp.eq.s32.totalorder %s39, 1
      %p482 = por %p480, %p481
      %p484 = scmp.ne.s32.totalorder %s469, %s483
      %p485 = scmp.eq.s32.totalorder %s39, 0
      %p486 = por %p484, %p485
      %s488 = sadd.s32 %s487, 1
      %p491 = scmp.eq.s32.totalorder %s33, 1
      %p492 = scmp.ne.s32.totalorder %s487, %s489
      %p493 = scmp.eq.s32.totalorder %s33, 0
      %p494 = por %p492, %p493
      %p495 = scmp.ne.s32.totalorder %s487, %s489
      %p496 = scmp.eq.s32.totalorder %s38, 1
      %p497 = por %p495, %p496
      %p498 = scmp.ne.s32.totalorder %s489, %s490
      %p499 = scmp.eq.s32.totalorder %s38, 0
      %p500 = por %p498, %p499
      %p501 = scmp.ne.s32.totalorder %s489, %s490
      %p502 = scmp.eq.s32.totalorder %s39, 1
      %p503 = por %p501, %p502
      %p505 = scmp.ne.s32.totalorder %s490, %s504
      %p506 = scmp.eq.s32.totalorder %s39, 0
      %p507 = por %p505, %p506
      %s509 = sadd.s32 %s508, 1
      %p512 = scmp.eq.s32.totalorder %s33, 1
      %p513 = scmp.ne.s32.totalorder %s508, %s510
      %p514 = scmp.eq.s32.totalorder %s33, 0
      %p515 = por %p513, %p514
      %p516 = scmp.ne.s32.totalorder %s508, %s510
      %p517 = scmp.eq.s32.totalorder %s38, 1
      %p518 = por %p516, %p517
      %p519 = scmp.ne.s32.totalorder %s510, %s511
      %p520 = scmp.eq.s32.totalorder %s38, 0
      %p521 = por %p519, %p520
      %p522 = scmp.ne.s32.totalorder %s510, %s511
      %p523 = scmp.eq.s32.totalorder %s39, 1
      %p524 = por %p522, %p523
      %p526 = scmp.ne.s32.totalorder %s511, %s525
      %p527 = scmp.eq.s32.totalorder %s39, 0
      %p528 = por %p526, %p527
      %s530 = sadd.s32 %s529, 1
      %p533 = scmp.eq.s32.totalorder %s33, 1
      %p534 = scmp.ne.s32.totalorder %s529, %s531
      %p535 = scmp.eq.s32.totalorder %s33, 0
      %p536 = por %p534, %p535
      %p537 = scmp.ne.s32.totalorder %s529, %s531
      %p538 = scmp.eq.s32.totalorder %s38, 1
      %p539 = por %p537, %p538
      %p540 = scmp.ne.s32.totalorder %s531, %s532
      %p541 = scmp.eq.s32.totalorder %s38, 0
      %p542 = por %p540, %p541
      %p543 = scmp.ne.s32.totalorder %s531, %s532
      %p544 = scmp.eq.s32.totalorder %s39, 1
      %p545 = por %p543, %p544
      %p547 = scmp.ne.s32.totalorder %s532, %s546
      %p548 = scmp.eq.s32.totalorder %s39, 0
      %p549 = por %p547, %p548
      %s551 = sadd.s32 %s550, 1
      %p554 = scmp.eq.s32.totalorder %s33, 1
      %p555 = scmp.ne.s32.totalorder %s550, %s552
      %p556 = scmp.eq.s32.totalorder %s33, 0
      %p557 = por %p555, %p556
      %p558 = scmp.ne.s32.totalorder %s550, %s552
      %p559 = scmp.eq.s32.totalorder %s38, 1
      %p560 = por %p558, %p559
      %p561 = scmp.ne.s32.totalorder %s552, %s553
      %p562 = scmp.eq.s32.totalorder %s38, 0
      %p563 = por %p561, %p562
      %p564 = scmp.ne.s32.totalorder %s552, %s553
      %p565 = scmp.eq.s32.totalorder %s39, 1
      %p566 = por %p564, %p565
      %p568 = scmp.ne.s32.totalorder %s553, %s567
      %p569 = scmp.eq.s32.totalorder %s39, 0
      %p570 = por %p568, %p569
      %s571 = ssub.s32 %s33, %s40
      %p572 = scmp.eq.s32.totalorder %s571, 0
      %s574 = sadd.s32 %s573, 1
      %s575 = scalar_select %p572, %s573, %s574
      %p578 = pneg %p572
      %p579 = scmp.eq.s32.totalorder %s33, 1
      %p580 = por %p578, %p579
      %p581 = scmp.ne.s32.totalorder %s573, %s576
      %p582 = scmp.eq.s32.totalorder %s33, 0
      %p583 = por %p581, %p582
      %p584 = scmp.ne.s32.totalorder %s573, %s576
      %p585 = scmp.eq.s32.totalorder %s38, 1
      %p586 = por %p584, %p585
      %p587 = scmp.ne.s32.totalorder %s576, %s577
      %p588 = scmp.eq.s32.totalorder %s38, 0
      %p589 = por %p587, %p588
      %p590 = scmp.ne.s32.totalorder %s576, %s577
      %p591 = scmp.eq.s32.totalorder %s39, 1
      %p592 = por %p590, %p591
      %p594 = scmp.ne.s32.totalorder %s577, %s593
      %p595 = scmp.eq.s32.totalorder %s39, 0
      %p596 = por %p594, %p595
      %s597 = ssub.s32 %s33, %s40
      %p598 = scmp.eq.s32.totalorder %s597, 0
      %s600 = sadd.s32 %s599, 1
      %s601 = scalar_select %p598, %s599, %s600
      %p604 = pneg %p598
      %p605 = scmp.eq.s32.totalorder %s33, 1
      %p606 = por %p604, %p605
      %p607 = scmp.ne.s32.totalorder %s599, %s602
      %p608 = scmp.eq.s32.totalorder %s33, 0
      %p609 = por %p607, %p608
      %p610 = scmp.ne.s32.totalorder %s599, %s602
      %p611 = scmp.eq.s32.totalorder %s38, 1
      %p612 = por %p610, %p611
      %p613 = scmp.ne.s32.totalorder %s602, %s603
      %p614 = scmp.eq.s32.totalorder %s38, 0
      %p615 = por %p613, %p614
      %p616 = scmp.ne.s32.totalorder %s602, %s603
      %p617 = scmp.eq.s32.totalorder %s39, 1
      %p618 = por %p616, %p617
      %p620 = scmp.ne.s32.totalorder %s603, %s619
      %p621 = scmp.eq.s32.totalorder %s39, 0
      %p622 = por %p620, %p621
      %p623 = scmp.le.s32.totalorder 1, %s33
      %p624 = scmp.lt.s32.totalorder %s33, 3
      %p625 = pnand %p623, %p624
      %p626 = pneg %p625
      // Predicated region
      $region9: #{audio_encoder_forward.1} parent=5 // pred_check
        _
      $region10: #{audio_encoder_forward.1} parent=5 // pred_check_branch
        %628 = sbr.rel (%p625) target = $region12
      $region11: #{audio_encoder_forward.1} parent=5 // pred_region
        %s629 = ssub.s32 %s33, 1
        // Predicated region
        $region13: #{audio_encoder_forward.1} parent=11 // pred_check
          %p630 = pneg %p80
        $region14: #{audio_encoder_forward.1} parent=11 // pred_check_branch
          %632 = sbr.rel (%p630) target = $region16
        $region15: #{audio_encoder_forward.1} parent=11 // pred_region
          _
        $region16: #{audio_encoder_forward.1} parent=11 // pred_fallthru
          _
        // Predicated region
        $region17: #{audio_encoder_forward.1} parent=11 // pred_check
          %p633 = pneg %p101
        $region18: #{audio_encoder_forward.1} parent=11 // pred_check_branch
          %635 = sbr.rel (%p633) target = $region20
        $region19: #{audio_encoder_forward.1} parent=11 // pred_region
          _
        $region20: #{audio_encoder_forward.1} parent=11 // pred_fallthru
          _
        // Predicated region
        $region21: #{audio_encoder_forward.1} parent=11 // pred_check
          %p636 = pneg %p122
        $region22: #{audio_encoder_forward.1} parent=11 // pred_check_branch
          %638 = sbr.rel (%p636) target = $region24
        $region23: #{audio_encoder_forward.1} parent=11 // pred_region
          _
        $region24: #{audio_encoder_forward.1} parent=11 // pred_fallthru
          _
        // Predicated region
        $region25: #{audio_encoder_forward.1} parent=11 // pred_check
          %p639 = pneg %p143
        $region26: #{audio_encoder_forward.1} parent=11 // pred_check_branch
          %641 = sbr.rel (%p639) target = $region28
        $region27: #{audio_encoder_forward.1} parent=11 // pred_region
          _
        $region28: #{audio_encoder_forward.1} parent=11 // pred_fallthru
          _
        // Predicated region
        $region29: #{audio_encoder_forward.1} parent=11 // pred_check
          %p642 = pneg %p164
        $region30: #{audio_encoder_forward.1} parent=11 // pred_check_branch
          %644 = sbr.rel (%p642) target = $region32
        $region31: #{audio_encoder_forward.1} parent=11 // pred_region
          _
        $region32: #{audio_encoder_forward.1} parent=11 // pred_fallthru
          _
        // Predicated region
        $region33: #{audio_encoder_forward.1} parent=11 // pred_check
          %p645 = pneg %p185
        $region34: #{audio_encoder_forward.1} parent=11 // pred_check_branch
          %647 = sbr.rel (%p645) target = $region36
        $region35: #{audio_encoder_forward.1} parent=11 // pred_region
          _
        $region36: #{audio_encoder_forward.1} parent=11 // pred_fallthru
          _
        // Predicated region
        $region37: #{audio_encoder_forward.1} parent=11 // pred_check
          %p648 = pneg %p206
        $region38: #{audio_encoder_forward.1} parent=11 // pred_check_branch
          %650 = sbr.rel (%p648) target = $region40
        $region39: #{audio_encoder_forward.1} parent=11 // pred_region
          _
        $region40: #{audio_encoder_forward.1} parent=11 // pred_fallthru
          _
        // Predicated region
        $region41: #{audio_encoder_forward.1} parent=11 // pred_check
          %p651 = pneg %p227
        $region42: #{audio_encoder_forward.1} parent=11 // pred_check_branch
          %653 = sbr.rel (%p651) target = $region44
        $region43: #{audio_encoder_forward.1} parent=11 // pred_region
          _
        $region44: #{audio_encoder_forward.1} parent=11 // pred_fallthru
          _
        // Predicated region
        $region45: #{audio_encoder_forward.1} parent=11 // pred_check
          %p654 = pneg %p248
        $region46: #{audio_encoder_forward.1} parent=11 // pred_check_branch
          %656 = sbr.rel (%p654) target = $region48
        $region47: #{audio_encoder_forward.1} parent=11 // pred_region
          _
        $region48: #{audio_encoder_forward.1} parent=11 // pred_fallthru
          _
        // Predicated region
        $region49: #{audio_encoder_forward.1} parent=11 // pred_check
          %p657 = pneg %p269
        $region50: #{audio_encoder_forward.1} parent=11 // pred_check_branch
          %659 = sbr.rel (%p657) target = $region52
        $region51: #{audio_encoder_forward.1} parent=11 // pred_region
          _
        $region52: #{audio_encoder_forward.1} parent=11 // pred_fallthru
          _
        // Predicated region
        $region53: #{audio_encoder_forward.1} parent=11 // pred_check
          %p660 = pneg %p290
        $region54: #{audio_encoder_forward.1} parent=11 // pred_check_branch
          %662 = sbr.rel (%p660) target = $region56
        $region55: #{audio_encoder_forward.1} parent=11 // pred_region
          _
        $region56: #{audio_encoder_forward.1} parent=11 // pred_fallthru
          _
        // Predicated region
        $region57: #{audio_encoder_forward.1} parent=11 // pred_check
          %p663 = pneg %p311
        $region58: #{audio_encoder_forward.1} parent=11 // pred_check_branch
          %665 = sbr.rel (%p663) target = $region60
        $region59: #{audio_encoder_forward.1} parent=11 // pred_region
          _
        $region60: #{audio_encoder_forward.1} parent=11 // pred_fallthru
          _
        // Predicated region
        $region61: #{audio_encoder_forward.1} parent=11 // pred_check
          %p666 = pneg %p332
        $region62: #{audio_encoder_forward.1} parent=11 // pred_check_branch
          %668 = sbr.rel (%p666) target = $region64
        $region63: #{audio_encoder_forward.1} parent=11 // pred_region
          _
        $region64: #{audio_encoder_forward.1} parent=11 // pred_fallthru
          _
        // Predicated region
        $region65: #{audio_encoder_forward.1} parent=11 // pred_check
          %p669 = pneg %p353
        $region66: #{audio_encoder_forward.1} parent=11 // pred_check_branch
          %671 = sbr.rel (%p669) target = $region68
        $region67: #{audio_encoder_forward.1} parent=11 // pred_region
          _
        $region68: #{audio_encoder_forward.1} parent=11 // pred_fallthru
          _
        // Predicated region
        $region69: #{audio_encoder_forward.1} parent=11 // pred_check
          %p672 = pneg %p374
        $region70: #{audio_encoder_forward.1} parent=11 // pred_check_branch
          %674 = sbr.rel (%p672) target = $region72
        $region71: #{audio_encoder_forward.1} parent=11 // pred_region
          _
        $region72: #{audio_encoder_forward.1} parent=11 // pred_fallthru
          _
        // Predicated region
        $region73: #{audio_encoder_forward.1} parent=11 // pred_check
          %p675 = pneg %p395
        $region74: #{audio_encoder_forward.1} parent=11 // pred_check_branch
          %677 = sbr.rel (%p675) target = $region76
        $region75: #{audio_encoder_forward.1} parent=11 // pred_region
          _
        $region76: #{audio_encoder_forward.1} parent=11 // pred_fallthru
          _
        // Predicated region
        $region77: #{audio_encoder_forward.1} parent=11 // pred_check
          %p678 = pneg %p416
        $region78: #{audio_encoder_forward.1} parent=11 // pred_check_branch
          %680 = sbr.rel (%p678) target = $region80
        $region79: #{audio_encoder_forward.1} parent=11 // pred_region
          _
        $region80: #{audio_encoder_forward.1} parent=11 // pred_fallthru
          _
        // Predicated region
        $region81: #{audio_encoder_forward.1} parent=11 // pred_check
          %p681 = pneg %p437
        $region82: #{audio_encoder_forward.1} parent=11 // pred_check_branch
          %683 = sbr.rel (%p681) target = $region84
        $region83: #{audio_encoder_forward.1} parent=11 // pred_region
          _
        $region84: #{audio_encoder_forward.1} parent=11 // pred_fallthru
          _
        // Predicated region
        $region85: #{audio_encoder_forward.1} parent=11 // pred_check
          %p684 = pneg %p458
        $region86: #{audio_encoder_forward.1} parent=11 // pred_check_branch
          %686 = sbr.rel (%p684) target = $region88
        $region87: #{audio_encoder_forward.1} parent=11 // pred_region
          _
        $region88: #{audio_encoder_forward.1} parent=11 // pred_fallthru
          _
        // Predicated region
        $region89: #{audio_encoder_forward.1} parent=11 // pred_check
          %p687 = pneg %p479
        $region90: #{audio_encoder_forward.1} parent=11 // pred_check_branch
          %689 = sbr.rel (%p687) target = $region92
        $region91: #{audio_encoder_forward.1} parent=11 // pred_region
          _
        $region92: #{audio_encoder_forward.1} parent=11 // pred_fallthru
          _
        // Predicated region
        $region93: #{audio_encoder_forward.1} parent=11 // pred_check
          %p690 = pneg %p500
        $region94: #{audio_encoder_forward.1} parent=11 // pred_check_branch
          %692 = sbr.rel (%p690) target = $region96
        $region95: #{audio_encoder_forward.1} parent=11 // pred_region
          _
        $region96: #{audio_encoder_forward.1} parent=11 // pred_fallthru
          _
        // Predicated region
        $region97: #{audio_encoder_forward.1} parent=11 // pred_check
          %p693 = pneg %p521
        $region98: #{audio_encoder_forward.1} parent=11 // pred_check_branch
          %695 = sbr.rel (%p693) target = $region100
        $region99: #{audio_encoder_forward.1} parent=11 // pred_region
          _
        $region100: #{audio_encoder_forward.1} parent=11 // pred_fallthru
          _
        // Predicated region
        $region101: #{audio_encoder_forward.1} parent=11 // pred_check
          %p696 = pneg %p542
        $region102: #{audio_encoder_forward.1} parent=11 // pred_check_branch
          %698 = sbr.rel (%p696) target = $region104
        $region103: #{audio_encoder_forward.1} parent=11 // pred_region
          _
        $region104: #{audio_encoder_forward.1} parent=11 // pred_fallthru
          _
        // Predicated region
        $region105: #{audio_encoder_forward.1} parent=11 // pred_check
          %p699 = pneg %p563
        $region106: #{audio_encoder_forward.1} parent=11 // pred_check_branch
          %701 = sbr.rel (%p699) target = $region108
        $region107: #{audio_encoder_forward.1} parent=11 // pred_region
          _
        $region108: #{audio_encoder_forward.1} parent=11 // pred_fallthru
          _
      $region12: #{audio_encoder_forward.1} parent=5 // pred_fallthru
        _
      %p702 = scmp.lt.s32.totalorder %s33, 2
      // Predicated region
      $region109: #{audio_encoder_forward.1} parent=5 // pred_check
        %p703 = pneg %p702
      $region110: #{audio_encoder_forward.1} parent=5 // pred_check_branch
        %705 = sbr.rel (%p703) target = $region112
      $region111: #{audio_encoder_forward.1} parent=5 // pred_region
        // Predicated region
        $region113: #{audio_encoder_forward.1} parent=111 // pred_check
          %p706 = pneg %p53
        $region114: #{audio_encoder_forward.1} parent=111 // pred_check_branch
          %708 = sbr.rel (%p706) target = $region116
        $region115: #{audio_encoder_forward.1} parent=111 // pred_region
          %p709 = scmp.lt.s32.totalorder %s33, 1
          %s710 = scalar_select %p709, %s33, 1
          %s711 = smul.addr %s710, 9
          %s712 = smul.addr %s711, 4
          %s713 = scalar_lea.vmem %s0, %s712
        $region116: #{audio_encoder_forward.1} parent=111 // pred_fallthru
          _
      $region112: #{audio_encoder_forward.1} parent=5 // pred_fallthru
        _
      %p714 = scmp.le.s32.totalorder 1, %s33
      %p715 = scmp.lt.s32.totalorder %s33, 3
      %p716 = pnand %p714, %p715
      %p717 = pneg %p716
      // Predicated region
      $region117: #{audio_encoder_forward.1} parent=5 // pred_check
        _
      $region118: #{audio_encoder_forward.1} parent=5 // pred_check_branch
        %719 = sbr.rel (%p716) target = $region120
      $region119: #{audio_encoder_forward.1} parent=5 // pred_region
        %s720 = ssub.s32 %s33, 1
        %p721 = scmp.lt.s32.totalorder %s38, 1
        %s722 = scalar_select %p721, %s38, 1
        %s723 = smul.addr %s722, 9
        %s724 = smul.addr %s723, 4
        %s725 = scalar_lea.vmem %s0, %s724
        %p726 = pneg %p59
        %p727 = pneg %p56
        %p728 = pneg %p80
        %p729 = pneg %p77
        %p730 = pneg %p101
        %p731 = pneg %p98
        %p732 = pneg %p122
        %p733 = pneg %p119
        %p734 = pneg %p143
        %p735 = pneg %p140
        %p736 = pneg %p164
        %p737 = pneg %p161
        %p738 = pneg %p185
        %p739 = pneg %p182
        %p740 = pneg %p206
        %p741 = pneg %p203
        %p742 = pneg %p227
        %p743 = pneg %p224
        %p744 = pneg %p248
        %p745 = pneg %p245
        %p746 = pneg %p269
        %p747 = pneg %p266
        %p748 = pneg %p290
        %p749 = pneg %p287
        %p750 = pneg %p311
        %p751 = pneg %p308
        %p752 = pneg %p332
        %p753 = pneg %p329
        %p754 = pneg %p353
        %p755 = pneg %p350
        %p756 = pneg %p374
        %p757 = pneg %p371
        %p758 = pneg %p395
        %p759 = pneg %p392
        %p760 = pneg %p416
        %p761 = pneg %p413
        %p762 = pneg %p437
        %p763 = pneg %p434
        %p764 = pneg %p458
        %p765 = pneg %p455
        %p766 = pneg %p479
        %p767 = pneg %p476
        %p768 = pneg %p500
        %p769 = pneg %p497
        %p770 = pneg %p521
        %p771 = pneg %p518
        %p772 = pneg %p542
        %p773 = pneg %p539
        %p774 = pneg %p563
        %p775 = pneg %p560
        %p776 = pneg %p589
        %p777 = pneg %p586
        %s778 = sand.u32 %s576, 1
        %s779 = sand.u32 %s576, 1
        %s780 = smul.addr %s779, 192
        %s781 = scalar_lea.vmem [#allocation2], %s780
        %p782 = pneg %p615
        %p783 = pneg %p612
        %p784 = scmp.lt.s32.totalorder %s38, 1
        %s785 = scalar_select %p784, %s38, 1
        %s786 = smul.addr %s785, 8
        %s787 = smul.addr %s786, 8
        %s788 = scalar_lea.vmem %s26, %s787
        %p789 = scmp.lt.s32.totalorder %s38, 1
        %s790 = scalar_select %p789, %s38, 1
        %s791 = smul.addr %s790, 9
        %s792 = smul.addr %s791, 4
        %s793 = scalar_lea.vmem %s0, %s792
        %p794 = scmp.lt.s32.totalorder %s38, 1
        %s795 = scalar_select %p794, %s38, 1
        %s796 = smul.addr %s795, 8
        %s797 = smul.addr %s796, 8
        %s798 = scalar_lea.vmem %s26, %s797
        %v800 = vld [vmem:[%s793] sm:$0xf]
        %v801 = vld [vmem:[%s793 + $0x4] sm:$0xf]
        %v802 = vld [vmem:[%s793 + $0x8] sm:$0xf]
        %v803 = vld [vmem:[%s793 + $0xc] sm:$0xf]
        %v804 = vld [vmem:[%s793 + $0x10] sm:$0xf]
        %v805 = vld [vmem:[%s793 + $0x14] sm:$0xf]
        %v806 = vld [vmem:[%s793 + $0x18] sm:$0xf]
        %v807 = vld [vmem:[%s793 + $0x1c] sm:$0xf]
        %v808 = vld [vmem:[%s793 + $0x20] sm:$0x1]
        %v809 = vld [vmem:[%s1] sm:$0xf]
        %v810 = vld [vmem:[%s1 + $0x4] sm:$0xf]
        %v811 = vld [vmem:[%s2] sm:$0x1]
        %v813 = vlaneseq
        %v814 = vshrl.u32 %v813, 7
        %v815 = vsub.s32 0, %v814
        %v816 = vrot.slane %v811, %v815
        %v827 = vunpack.c.l.b16 %v800
        %v828 = vunpack.c.l.b16 %v801
        %v829 = vunpack.c.l.b16 %v802
        %v830 = vunpack.c.l.b16 %v803
        %v831 = vunpack.c.l.b16 %v804
        %v832 = vunpack.c.l.b16 %v805
        %v833 = vunpack.c.l.b16 %v806
        %v834 = vunpack.c.l.b16 %v807
        %v835 = vunpack.c.l.b16 %v808
        %v836 = vpack.c.b16 %v828, %v827
        %v837 = vpack.c.b16 %v830, %v829
        %v838 = vpack.c.b16 %v832, %v831
        %v839 = vpack.c.b16 %v834, %v833
        %v840 = vpack.c.b16 %v835, %v835
        %v843 = vunpack.c.l.b16 %v809
        %v844 = vunpack.c.l.b16 %v810
        %v845 = vpack.c.b16 %v844, %v843
        %vm847 = vcmask 130048
        %v849 = vsel %vm847, %v836, 0
        %v852 = vsel %vm847, %v837, 0
        %v855 = vsel %vm847, %v838, 0
        %v858 = vsel %vm847, %v839, 0
        %v861 = vsel %vm847, %v840, 0
        %863 = vmatprep.subr.bf16.mxu0 0
        %864 = vmatpush1.bf16.msra.mxu0 %v845
        %865 = vmatprep.subr.bf16.mxu0 0
        %866 = vmatpush1.bf16.msra.mxu0 0
        %867 = vmatprep.subr.bf16.mxu0 0
        %868 = vmatpush1.bf16.msra.mxu0 0
        %869 = vmatprep.subr.bf16.mxu0 0
        %870 = vmatpush1.bf16.msra.mxu0 0
        %871 = vmatprep.subr.bf16.mxu0 0
        %872 = vmatpush1.bf16.msra.mxu0 0
        %873 = vmatprep.subr.bf16.mxu0 0
        %874 = vmatpush1.bf16.msra.mxu0 0
        %875 = vmatprep.subr.bf16.mxu0 0
        %876 = vmatpush1.bf16.msra.mxu0 0
        %877 = vmatprep.subr.bf16.mxu0 0
        %878 = vmatpush1.bf16.msra.mxu0 0
        %879 = vmatprep.subr.bf16.mxu0 0
        %880 = vmatpush1.bf16.msra.mxu0 0
        %881 = vmatprep.subr.bf16.mxu0 0
        %882 = vmatpush1.bf16.msra.mxu0 0
        %883 = vmatprep.subr.bf16.mxu0 0
        %884 = vmatpush1.bf16.msra.mxu0 0
        %885 = vmatprep.subr.bf16.mxu0 0
        %886 = vmatpush1.bf16.msra.mxu0 0
        %887 = vmatprep.subr.bf16.mxu0 0
        %888 = vmatpush1.bf16.msra.mxu0 0
        %889 = vmatprep.subr.bf16.mxu0 0
        %890 = vmatpush1.bf16.msra.mxu0 0
        %891 = vmatprep.subr.bf16.mxu0 0
        %892 = vmatpush1.bf16.msra.mxu0 0
        %893 = vmatprep.subr.bf16.mxu0 0
        %894 = vmatpush1.bf16.msra.mxu0 0
        %895 = vmatprep.mubr.bf16.mxu0 0
        %896 = vmatmul.mubr.bf16.gmra.mrb[0].mxu0 %v849
        %v897 = vpop.f32.mrb[0].mxu0
        %v898 = vadd.f32 %v816, %v897
        %v899 = vpop.f32.mrb[0].mxu0
        %v900 = vpop.f32.mrb[0].mxu0
        %v901 = vadd.f32 %v816, %v900
        %v902 = vpop.f32.mrb[0].mxu0
        %903 = vmatprep.mubr.bf16.mxu0 0
        %904 = vmatmul.mubr.bf16.gmra.mrb[0].mxu0 %v852
        %v905 = vpop.f32.mrb[0].mxu0
        %v906 = vadd.f32 %v816, %v905
        %v907 = vpop.f32.mrb[0].mxu0
        %v908 = vpop.f32.mrb[0].mxu0
        %v909 = vadd.f32 %v816, %v908
        %v910 = vpop.f32.mrb[0].mxu0
        %911 = vmatprep.mubr.bf16.mxu0 0
        %912 = vmatmul.mubr.bf16.gmra.mrb[0].mxu0 %v855
        %v913 = vpop.f32.mrb[0].mxu0
        %v914 = vadd.f32 %v816, %v913
        %v915 = vpop.f32.mrb[0].mxu0
        %v916 = vpop.f32.mrb[0].mxu0
        %v917 = vadd.f32 %v816, %v916
        %v918 = vpop.f32.mrb[0].mxu0
        %919 = vmatprep.mubr.bf16.mxu0 0
        %920 = vmatmul.mubr.bf16.gmra.mrb[0].mxu0 %v858
        %v921 = vpop.f32.mrb[0].mxu0
        %v922 = vadd.f32 %v816, %v921
        %v923 = vpop.f32.mrb[0].mxu0
        %v924 = vpop.f32.mrb[0].mxu0
        %v925 = vadd.f32 %v816, %v924
        %v926 = vpop.f32.mrb[0].mxu0
        %927 = vmatprep.mubr.bf16.mxu0 0
        %928 = vmatmul.mubr.bf16.gmra.mrb[0].mxu0 %v861
        %v929 = vpop.f32.mrb[0].mxu0
        %v930 = vadd.f32 %v816, %v929
        %v931 = vpop.f32.mrb[0].mxu0
        %v932 = vpop.f32.mrb[0].mxu0
        %v933 = vpop.f32.mrb[0].mxu0
        %934 = vdwg.mxu0
        %v935 = vmul.f32 %v898, 0.5
        %v936 = vmul.f32 %v901, 0.5
        %v937 = vmul.f32 %v906, 0.5
        %v938 = vmul.f32 %v909, 0.5
        %v939 = vmul.f32 %v914, 0.5
        %v940 = vmul.f32 %v917, 0.5
        %v941 = vmul.f32 %v922, 0.5
        %v942 = vmul.f32 %v925, 0.5
        %v943 = vmul.f32 %v930, 0.5
        %v944 = vmul.f32 %v898, 0.044715
        %v945 = vmul.f32 %v901, 0.044715
        %v946 = vmul.f32 %v906, 0.044715
        %v947 = vmul.f32 %v909, 0.044715
        %v948 = vmul.f32 %v914, 0.044715
        %v949 = vmul.f32 %v917, 0.044715
        %v950 = vmul.f32 %v922, 0.044715
        %v951 = vmul.f32 %v925, 0.044715
        %v952 = vmul.f32 %v930, 0.044715
        %v953 = vmul.f32 %v944, %v898
        %v954 = vmul.f32 %v945, %v901
        %v955 = vmul.f32 %v946, %v906
        %v956 = vmul.f32 %v947, %v909
        %v957 = vmul.f32 %v948, %v914
        %v958 = vmul.f32 %v949, %v917
        %v959 = vmul.f32 %v950, %v922
        %v960 = vmul.f32 %v951, %v925
        %v961 = vmul.f32 %v952, %v930
        %v962 = vmul.f32 %v953, %v898
        %v963 = vmul.f32 %v954, %v901
        %v964 = vmul.f32 %v955, %v906
        %v965 = vmul.f32 %v956, %v909
        %v966 = vmul.f32 %v957, %v914
        %v967 = vmul.f32 %v958, %v917
        %v968 = vmul.f32 %v959, %v922
        %v969 = vmul.f32 %v960, %v925
        %v970 = vmul.f32 %v961, %v930
        %v971 = vadd.f32 %v898, %v962
        %v972 = vadd.f32 %v901, %v963
        %v973 = vadd.f32 %v906, %v964
        %v974 = vadd.f32 %v909, %v965
        %v975 = vadd.f32 %v914, %v966
        %v976 = vadd.f32 %v917, %v967
        %v977 = vadd.f32 %v922, %v968
        %v978 = vadd.f32 %v925, %v969
        %v979 = vadd.f32 %v930, %v970
        %v980 = vmul.f32 %v971, 0.7978846
        %v981 = vmul.f32 %v972, 0.7978846
        %v982 = vmul.f32 %v973, 0.7978846
        %v983 = vmul.f32 %v974, 0.7978846
        %v984 = vmul.f32 %v975, 0.7978846
        %v985 = vmul.f32 %v976, 0.7978846
        %v986 = vmul.f32 %v977, 0.7978846
        %v987 = vmul.f32 %v978, 0.7978846
        %v988 = vmul.f32 %v979, 0.7978846
        %v989 = vtanh.pop %v980
        %v990 = vtanh.pop %v981
        %v991 = vtanh.pop %v982
        %v992 = vtanh.pop %v983
        %v993 = vtanh.pop %v984
        %v994 = vtanh.pop %v985
        %v995 = vtanh.pop %v986
        %v996 = vtanh.pop %v987
        %v997 = vtanh.pop %v988
        %v998 = vadd.f32 %v989, 1.0
        %v999 = vadd.f32 %v990, 1.0
        %v1000 = vadd.f32 %v991, 1.0
        %v1001 = vadd.f32 %v992, 1.0
        %v1002 = vadd.f32 %v993, 1.0
        %v1003 = vadd.f32 %v994, 1.0
        %v1004 = vadd.f32 %v995, 1.0
        %v1005 = vadd.f32 %v996, 1.0
        %v1006 = vadd.f32 %v997, 1.0
        %v1007 = vmul.f32 %v935, %v998
        %v1008 = vmul.f32 %v936, %v999
        %v1009 = vmul.f32 %v937, %v1000
        %v1010 = vmul.f32 %v938, %v1001
        %v1011 = vmul.f32 %v939, %v1002
        %v1012 = vmul.f32 %v940, %v1003
        %v1013 = vmul.f32 %v941, %v1004
        %v1014 = vmul.f32 %v942, %v1005
        %v1015 = vmul.f32 %v943, %v1006
        %vm1025 = vcmask 1046528
        %v1026 = vrot.slane %v1007, 1
        %v1027 = vrot.slane %v1008, 1
        %v1028 = vsel %vm1025, %v1026, %v1027
        %v1029 = vrot.slane %v1009, 1
        %v1030 = vsel %vm1025, %v1027, %v1029
        %v1031 = vrot.slane %v1010, 1
        %v1032 = vsel %vm1025, %v1029, %v1031
        %v1033 = vrot.slane %v1011, 1
        %v1034 = vsel %vm1025, %v1031, %v1033
        %v1035 = vrot.slane %v1012, 1
        %v1036 = vsel %vm1025, %v1033, %v1035
        %v1037 = vrot.slane %v1013, 1
        %v1038 = vsel %vm1025, %v1035, %v1037
        %v1039 = vrot.slane %v1014, 1
        %v1040 = vsel %vm1025, %v1037, %v1039
        %v1041 = vrot.slane %v1015, 1
        %v1042 = vsel %vm1025, %v1039, %v1041
        %1043 = vrot.lane.b32.xlu0 %v1028, 64
        %v1044 = vpop.permute.xlu0 %1043
        %1045 = vrot.lane.b32.xlu0 %v1030, 64
        %v1046 = vpop.permute.xlu0 %1045
        %1047 = vrot.lane.b32.xlu0 %v1032, 64
        %v1048 = vpop.permute.xlu0 %1047
        %1049 = vrot.lane.b32.xlu0 %v1034, 64
        %v1050 = vpop.permute.xlu0 %1049
        %1051 = vrot.lane.b32.xlu0 %v1036, 64
        %v1052 = vpop.permute.xlu0 %1051
        %1053 = vrot.lane.b32.xlu0 %v1038, 64
        %v1054 = vpop.permute.xlu0 %1053
        %1055 = vrot.lane.b32.xlu0 %v1040, 64
        %v1056 = vpop.permute.xlu0 %1055
        %1057 = vrot.lane.b32.xlu0 %v1042, 64
        %v1058 = vpop.permute.xlu0 %1057
        %vm1067 = vcmask 523264
        %v1068 = vsel %vm1067, %v1007, %v1044
        %v1069 = vsel %vm1067, %v1008, %v1046
        %v1070 = vsel %vm1067, %v1009, %v1048
        %v1071 = vsel %vm1067, %v1010, %v1050
        %v1072 = vsel %vm1067, %v1011, %v1052
        %v1073 = vsel %vm1067, %v1012, %v1054
        %v1074 = vsel %vm1067, %v1013, %v1056
        %v1075 = vsel %vm1067, %v1014, %v1058
        %v1076 = vpack.c.bf16 %v1069, %v1068
        %v1077 = vpack.c.bf16 %v1071, %v1070
        %v1078 = vpack.c.bf16 %v1073, %v1072
        %v1079 = vpack.c.bf16 %v1075, %v1074
        %v1080 = vld [vmem:[%s3] sm:$0xf]
        %v1081 = vld [vmem:[%s3 + $0x4] sm:$0xf]
        %v1082 = vld [vmem:[%s3 + $0x8] sm:$0xf]
        %v1083 = vld [vmem:[%s3 + $0xc] sm:$0xf]
        %v1084 = vld [vmem:[%s3 + $0x10] sm:$0xf]
        %v1085 = vld [vmem:[%s3 + $0x14] sm:$0xf]
        %v1086 = vld [vmem:[%s3 + $0x18] sm:$0xf]
        %v1087 = vld [vmem:[%s3 + $0x1c] sm:$0xf]
        %v1088 = vld [vmem:[%s3 + $0x20] sm:$0xf]
        %v1089 = vld [vmem:[%s3 + $0x24] sm:$0xf]
        %v1090 = vld [vmem:[%s3 + $0x28] sm:$0xf]
        %v1091 = vld [vmem:[%s3 + $0x2c] sm:$0xf]
        %v1092 = vld [vmem:[%s3 + $0x30] sm:$0xf]
        %v1093 = vld [vmem:[%s3 + $0x34] sm:$0xf]
        %v1094 = vld [vmem:[%s3 + $0x38] sm:$0xf]
        %v1095 = vld [vmem:[%s3 + $0x3c] sm:$0xf]
        %v1096 = vld [vmem:[%s4] sm:$0x1]
        %v1098 = vlaneseq
        %v1099 = vshrl.u32 %v1098, 7
        %v1100 = vsub.s32 0, %v1099
        %v1101 = vrot.slane %v1096, %v1100
        %v1119 = vunpack.c.l.b16 %v1080
        %v1120 = vunpack.c.l.b16 %v1081
        %v1121 = vunpack.c.l.b16 %v1082
        %v1122 = vunpack.c.l.b16 %v1083
        %v1123 = vunpack.c.l.b16 %v1084
        %v1124 = vunpack.c.l.b16 %v1085
        %v1125 = vunpack.c.l.b16 %v1086
        %v1126 = vunpack.c.l.b16 %v1087
        %v1127 = vunpack.c.l.b16 %v1088
        %v1128 = vunpack.c.l.b16 %v1089
        %v1129 = vunpack.c.l.b16 %v1090
        %v1130 = vunpack.c.l.b16 %v1091
        %v1131 = vunpack.c.l.b16 %v1092
        %v1132 = vunpack.c.l.b16 %v1093
        %v1133 = vunpack.c.l.b16 %v1094
        %v1134 = vunpack.c.l.b16 %v1095
        %v1135 = vpack.c.b16 %v1120, %v1119
        %v1136 = vpack.c.b16 %v1122, %v1121
        %v1137 = vpack.c.b16 %v1124, %v1123
        %v1138 = vpack.c.b16 %v1126, %v1125
        %v1139 = vpack.c.b16 %v1128, %v1127
        %v1140 = vpack.c.b16 %v1130, %v1129
        %v1141 = vpack.c.b16 %v1132, %v1131
        %v1142 = vpack.c.b16 %v1134, %v1133
        %1151 = vmatprep.subr.bf16.mxu0 0
        %1152 = vmatpush1.bf16.msra.mxu0 %v1135
        %1153 = vmatprep.subr.bf16.mxu0 0
        %1154 = vmatpush1.bf16.msra.mxu0 %v1136
        %1155 = vmatprep.subr.bf16.mxu0 0
        %1156 = vmatpush1.bf16.msra.mxu0 %v1137
        %1157 = vmatprep.subr.bf16.mxu0 0
        %1158 = vmatpush1.bf16.msra.mxu0 %v1138
        %1159 = vmatprep.subr.bf16.mxu0 0
        %1160 = vmatpush1.bf16.msra.mxu0 %v1139
        %1161 = vmatprep.subr.bf16.mxu0 0
        %1162 = vmatpush1.bf16.msra.mxu0 %v1140
        %1163 = vmatprep.subr.bf16.mxu0 0
        %1164 = vmatpush1.bf16.msra.mxu0 %v1141
        %1165 = vmatprep.subr.bf16.mxu0 0
        %1166 = vmatpush1.bf16.msra.mxu0 %v1142
        %1167 = vmatprep.subr.bf16.mxu0 0
        %1168 = vmatpush1.bf16.msra.mxu0 0
        %1169 = vmatprep.subr.bf16.mxu0 0
        %1170 = vmatpush1.bf16.msra.mxu0 0
        %1171 = vmatprep.subr.bf16.mxu0 0
        %1172 = vmatpush1.bf16.msra.mxu0 0
        %1173 = vmatprep.subr.bf16.mxu0 0
        %1174 = vmatpush1.bf16.msra.mxu0 0
        %1175 = vmatprep.subr.bf16.mxu0 0
        %1176 = vmatpush1.bf16.msra.mxu0 0
        %1177 = vmatprep.subr.bf16.mxu0 0
        %1178 = vmatpush1.bf16.msra.mxu0 0
        %1179 = vmatprep.subr.bf16.mxu0 0
        %1180 = vmatpush1.bf16.msra.mxu0 0
        %1181 = vmatprep.subr.bf16.mxu0 0
        %1182 = vmatpush1.bf16.msra.mxu0 0
        %1183 = vmatprep.mubr.bf16.mxu0 0
        %1184 = vmatmul.mubr.bf16.gmra.mrb[0].mxu0 %v1076
        %v1185 = vpop.f32.mrb[0].mxu0
        %v1186 = vadd.f32 %v1101, %v1185
        %v1187 = vpop.f32.mrb[0].mxu0
        %v1188 = vpop.f32.mrb[0].mxu0
        %v1189 = vadd.f32 %v1101, %v1188
        %v1190 = vpop.f32.mrb[0].mxu0
        %1191 = vmatprep.mubr.bf16.mxu0 0
        %1192 = vmatmul.mubr.bf16.gmra.mrb[0].mxu0 %v1077
        %v1193 = vpop.f32.mrb[0].mxu0
        %v1194 = vadd.f32 %v1101, %v1193
        %v1195 = vpop.f32.mrb[0].mxu0
        %v1196 = vpop.f32.mrb[0].mxu0
        %v1197 = vadd.f32 %v1101, %v1196
        %v1198 = vpop.f32.mrb[0].mxu0
        %1199 = vmatprep.mubr.bf16.mxu0 0
        %1200 = vmatmul.mubr.bf16.gmra.mrb[0].mxu0 %v1078
        %v1201 = vpop.f32.mrb[0].mxu0
        %v1202 = vadd.f32 %v1101, %v1201
        %v1203 = vpop.f32.mrb[0].mxu0
        %v1204 = vpop.f32.mrb[0].mxu0
        %v1205 = vadd.f32 %v1101, %v1204
        %v1206 = vpop.f32.mrb[0].mxu0
        %1207 = vmatprep.mubr.bf16.mxu0 0
        %1208 = vmatmul.mubr.bf16.gmra.mrb[0].mxu0 %v1079
        %v1209 = vpop.f32.mrb[0].mxu0
        %v1210 = vadd.f32 %v1101, %v1209
        %v1211 = vpop.f32.mrb[0].mxu0
        %v1212 = vpop.f32.mrb[0].mxu0
        %v1213 = vadd.f32 %v1101, %v1212
        %v1214 = vpop.f32.mrb[0].mxu0
        %1215 = vdwg.mxu0
        %v1216 = vmul.f32 %v1186, 0.5
        %v1217 = vmul.f32 %v1189, 0.5
        %v1218 = vmul.f32 %v1194, 0.5
        %v1219 = vmul.f32 %v1197, 0.5
        %v1220 = vmul.f32 %v1202, 0.5
        %v1221 = vmul.f32 %v1205, 0.5
        %v1222 = vmul.f32 %v1210, 0.5
        %v1223 = vmul.f32 %v1213, 0.5
        %v1224 = vmul.f32 %v1186, 0.044715
        %v1225 = vmul.f32 %v1189, 0.044715
        %v1226 = vmul.f32 %v1194, 0.044715
        %v1227 = vmul.f32 %v1197, 0.044715
        %v1228 = vmul.f32 %v1202, 0.044715
        %v1229 = vmul.f32 %v1205, 0.044715
        %v1230 = vmul.f32 %v1210, 0.044715
        %v1231 = vmul.f32 %v1213, 0.044715
        %v1232 = vmul.f32 %v1224, %v1186
        %v1233 = vmul.f32 %v1225, %v1189
        %v1234 = vmul.f32 %v1226, %v1194
        %v1235 = vmul.f32 %v1227, %v1197
        %v1236 = vmul.f32 %v1228, %v1202
        %v1237 = vmul.f32 %v1229, %v1205
        %v1238 = vmul.f32 %v1230, %v1210
        %v1239 = vmul.f32 %v1231, %v1213
        %v1240 = vmul.f32 %v1232, %v1186
        %v1241 = vmul.f32 %v1233, %v1189
        %v1242 = vmul.f32 %v1234, %v1194
        %v1243 = vmul.f32 %v1235, %v1197
        %v1244 = vmul.f32 %v1236, %v1202
        %v1245 = vmul.f32 %v1237, %v1205
        %v1246 = vmul.f32 %v1238, %v1210
        %v1247 = vmul.f32 %v1239, %v1213
        %v1248 = vadd.f32 %v1186, %v1240
        %v1249 = vadd.f32 %v1189, %v1241
        %v1250 = vadd.f32 %v1194, %v1242
        %v1251 = vadd.f32 %v1197, %v1243
        %v1252 = vadd.f32 %v1202, %v1244
        %v1253 = vadd.f32 %v1205, %v1245
        %v1254 = vadd.f32 %v1210, %v1246
        %v1255 = vadd.f32 %v1213, %v1247
        %v1256 = vmul.f32 %v1248, 0.7978846
        %v1257 = vmul.f32 %v1249, 0.7978846
        %v1258 = vmul.f32 %v1250, 0.7978846
        %v1259 = vmul.f32 %v1251, 0.7978846
        %v1260 = vmul.f32 %v1252, 0.7978846
        %v1261 = vmul.f32 %v1253, 0.7978846
        %v1262 = vmul.f32 %v1254, 0.7978846
        %v1263 = vmul.f32 %v1255, 0.7978846
        %v1264 = vtanh.pop %v1256
        %v1265 = vtanh.pop %v1257
        %v1266 = vtanh.pop %v1258
        %v1267 = vtanh.pop %v1259
        %v1268 = vtanh.pop %v1260
        %v1269 = vtanh.pop %v1261
        %v1270 = vtanh.pop %v1262
        %v1271 = vtanh.pop %v1263
        %v1272 = vadd.f32 %v1264, 1.0
        %v1273 = vadd.f32 %v1265, 1.0
        %v1274 = vadd.f32 %v1266, 1.0
        %v1275 = vadd.f32 %v1267, 1.0
        %v1276 = vadd.f32 %v1268, 1.0
        %v1277 = vadd.f32 %v1269, 1.0
        %v1278 = vadd.f32 %v1270, 1.0
        %v1279 = vadd.f32 %v1271, 1.0
        %v1280 = vmul.f32 %v1216, %v1272
        %v1281 = vmul.f32 %v1217, %v1273
        %v1282 = vmul.f32 %v1218, %v1274
        %v1283 = vmul.f32 %v1219, %v1275
        %v1284 = vmul.f32 %v1220, %v1276
        %v1285 = vmul.f32 %v1221, %v1277
        %v1286 = vmul.f32 %v1222, %v1278
        %v1287 = vmul.f32 %v1223, %v1279
        %v1288 = vld [vmem:[%s5] sm:$0x1]
        %v1289 = vld [vmem:[%s6] sm:$0x1]
        %vm1290 = vcmask 261120
        %v1291 = vsel %vm1290, %v1280, 0.0
        %1292 = vadd.xlane.f32.xlu0 %v1291
        %v1293 = vpop.xlane.xlu0 %1292
        %v1294 = vsel %vm1290, %v1281, 0.0
        %1295 = vadd.xlane.f32.xlu0 %v1294
        %v1296 = vpop.xlane.xlu0 %1295
        %v1297 = vsel %vm1290, %v1282, 0.0
        %1298 = vadd.xlane.f32.xlu0 %v1297
        %v1299 = vpop.xlane.xlu0 %1298
        %v1300 = vsel %vm1290, %v1283, 0.0
        %1301 = vadd.xlane.f32.xlu0 %v1300
        %v1302 = vpop.xlane.xlu0 %1301
        %v1303 = vsel %vm1290, %v1284, 0.0
        %1304 = vadd.xlane.f32.xlu0 %v1303
        %v1305 = vpop.xlane.xlu0 %1304
        %v1306 = vsel %vm1290, %v1285, 0.0
        %1307 = vadd.xlane.f32.xlu0 %v1306
        %v1308 = vpop.xlane.xlu0 %1307
        %v1309 = vsel %vm1290, %v1286, 0.0
        %1310 = vadd.xlane.f32.xlu0 %v1309
        %v1311 = vpop.xlane.xlu0 %1310
        %v1312 = vsel %vm1290, %v1287, 0.0
        %1313 = vadd.xlane.f32.xlu0 %v1312
        %v1314 = vpop.xlane.xlu0 %1313
        %v1315 = vrcp.pop 32.0
        %v1316 = vmul.f32 %v1293, %v1315
        %v1317 = vmul.f32 %v1296, %v1315
        %v1318 = vmul.f32 %v1299, %v1315
        %v1319 = vmul.f32 %v1302, %v1315
        %v1320 = vmul.f32 %v1305, %v1315
        %v1321 = vmul.f32 %v1308, %v1315
        %v1322 = vmul.f32 %v1311, %v1315
        %v1323 = vmul.f32 %v1314, %v1315
        %v1324 = vsub.f32 %v1280, %v1316
        %v1325 = vsub.f32 %v1281, %v1317
        %v1326 = vsub.f32 %v1282, %v1318
        %v1327 = vsub.f32 %v1283, %v1319
        %v1328 = vsub.f32 %v1284, %v1320
        %v1329 = vsub.f32 %v1285, %v1321
        %v1330 = vsub.f32 %v1286, %v1322
        %v1331 = vsub.f32 %v1287, %v1323
        %v1332 = vmul.f32 %v1324, %v1324
        %v1333 = vmul.f32 %v1325, %v1325
        %v1334 = vmul.f32 %v1326, %v1326
        %v1335 = vmul.f32 %v1327, %v1327
        %v1336 = vmul.f32 %v1328, %v1328
        %v1337 = vmul.f32 %v1329, %v1329
        %v1338 = vmul.f32 %v1330, %v1330
        %v1339 = vmul.f32 %v1331, %v1331
        %v1340 = vsel %vm1290, %v1332, 0.0
        %1341 = vadd.xlane.f32.xlu0 %v1340
        %v1342 = vpop.xlane.xlu0 %1341
        %v1343 = vsel %vm1290, %v1333, 0.0
        %1344 = vadd.xlane.f32.xlu0 %v1343
        %v1345 = vpop.xlane.xlu0 %1344
        %v1346 = vsel %vm1290, %v1334, 0.0
        %1347 = vadd.xlane.f32.xlu0 %v1346
        %v1348 = vpop.xlane.xlu0 %1347
        %v1349 = vsel %vm1290, %v1335, 0.0
        %1350 = vadd.xlane.f32.xlu0 %v1349
        %v1351 = vpop.xlane.xlu0 %1350
        %v1352 = vsel %vm1290, %v1336, 0.0
        %1353 = vadd.xlane.f32.xlu0 %v1352
        %v1354 = vpop.xlane.xlu0 %1353
        %v1355 = vsel %vm1290, %v1337, 0.0
        %1356 = vadd.xlane.f32.xlu0 %v1355
        %v1357 = vpop.xlane.xlu0 %1356
        %v1358 = vsel %vm1290, %v1338, 0.0
        %1359 = vadd.xlane.f32.xlu0 %v1358
        %v1360 = vpop.xlane.xlu0 %1359
        %v1361 = vsel %vm1290, %v1339, 0.0
        %1362 = vadd.xlane.f32.xlu0 %v1361
        %v1363 = vpop.xlane.xlu0 %1362
        %v1364 = vmul.f32 %v1342, %v1315
        %v1365 = vmul.f32 %v1345, %v1315
        %v1366 = vmul.f32 %v1348, %v1315
        %v1367 = vmul.f32 %v1351, %v1315
        %v1368 = vmul.f32 %v1354, %v1315
        %v1369 = vmul.f32 %v1357, %v1315
        %v1370 = vmul.f32 %v1360, %v1315
        %v1371 = vmul.f32 %v1363, %v1315
        %v1372 = vadd.f32 %v1364, 1e-05
        %v1373 = vadd.f32 %v1365, 1e-05
        %v1374 = vadd.f32 %v1366, 1e-05
        %v1375 = vadd.f32 %v1367, 1e-05
        %v1376 = vadd.f32 %v1368, 1e-05
        %v1377 = vadd.f32 %v1369, 1e-05
        %v1378 = vadd.f32 %v1370, 1e-05
        %v1379 = vadd.f32 %v1371, 1e-05
        %v1380 = vrsqrt.pop %v1372
        %v1381 = vrsqrt.pop %v1373
        %v1382 = vrsqrt.pop %v1374
        %v1383 = vrsqrt.pop %v1375
        %v1384 = vrsqrt.pop %v1376
        %v1385 = vrsqrt.pop %v1377
        %v1386 = vrsqrt.pop %v1378
        %v1387 = vrsqrt.pop %v1379
        %v1388 = vmul.f32 %v1324, %v1380
        %v1389 = vmul.f32 %v1325, %v1381
        %v1390 = vmul.f32 %v1326, %v1382
        %v1391 = vmul.f32 %v1327, %v1383
        %v1392 = vmul.f32 %v1328, %v1384
        %v1393 = vmul.f32 %v1329, %v1385
        %v1394 = vmul.f32 %v1330, %v1386
        %v1395 = vmul.f32 %v1331, %v1387
        %v1397 = vlaneseq
        %v1398 = vshrl.u32 %v1397, 7
        %v1399 = vsub.s32 0, %v1398
        %v1400 = vrot.slane %v1288, %v1399
        %v1402 = vmul.f32 %v1388, %v1400
        %v1403 = vmul.f32 %v1389, %v1400
        %v1404 = vmul.f32 %v1390, %v1400
        %v1405 = vmul.f32 %v1391, %v1400
        %v1406 = vmul.f32 %v1392, %v1400
        %v1407 = vmul.f32 %v1393, %v1400
        %v1408 = vmul.f32 %v1394, %v1400
        %v1409 = vmul.f32 %v1395, %v1400
        %v1411 = vlaneseq
        %v1412 = vshrl.u32 %v1411, 7
        %v1413 = vsub.s32 0, %v1412
        %v1414 = vrot.slane %v1289, %v1413
        %v1416 = vadd.f32 %v1402, %v1414
        %v1417 = vadd.f32 %v1403, %v1414
        %v1418 = vadd.f32 %v1404, %v1414
        %v1419 = vadd.f32 %v1405, %v1414
        %v1420 = vadd.f32 %v1406, %v1414
        %v1421 = vadd.f32 %v1407, %v1414
        %v1422 = vadd.f32 %v1408, %v1414
        %v1423 = vadd.f32 %v1409, %v1414
        %v1424 = vpack.c.bf16 %v1417, %v1416
        %v1425 = vpack.c.bf16 %v1419, %v1418
        %v1426 = vpack.c.bf16 %v1421, %v1420
        %v1427 = vpack.c.bf16 %v1423, %v1422
        %v1428 = vld [vmem:[%s7] sm:$0xf]
        %v1429 = vld [vmem:[%s7 + $0x4] sm:$0xf]
        %v1430 = vld [vmem:[%s7 + $0x8] sm:$0xf]
        %v1431 = vld [vmem:[%s7 + $0xc] sm:$0xf]
        %v1432 = vld [vmem:[%s8] sm:$0x1]
        %v1434 = vlaneseq
        %v1435 = vshrl.u32 %v1434, 7
        %v1436 = vsub.s32 0, %v1435
        %v1437 = vrot.slane %v1432, %v1436
        %v1443 = vunpack.c.l.b16 %v1428
        %v1444 = vunpack.c.l.b16 %v1429
        %v1445 = vunpack.c.l.b16 %v1430
        %v1446 = vunpack.c.l.b16 %v1431
        %v1447 = vpack.c.b16 %v1444, %v1443
        %v1448 = vpack.c.b16 %v1446, %v1445
        %v1452 = vsel %vm1290, %v1424, 0
        %v1455 = vsel %vm1290, %v1425, 0
        %v1458 = vsel %vm1290, %v1426, 0
        %v1461 = vsel %vm1290, %v1427, 0
        %1463 = vmatprep.subr.bf16.mxu0 0
        %1464 = vmatpush1.bf16.msra.mxu0 %v1447
        %1465 = vmatprep.subr.bf16.mxu0 0
        %1466 = vmatpush1.bf16.msra.mxu0 %v1448
        %1467 = vmatprep.subr.bf16.mxu0 0
        %1468 = vmatpush1.bf16.msra.mxu0 0
        %1469 = vmatprep.subr.bf16.mxu0 0
        %1470 = vmatpush1.bf16.msra.mxu0 0
        %1471 = vmatprep.subr.bf16.mxu0 0
        %1472 = vmatpush1.bf16.msra.mxu0 0
        %1473 = vmatprep.subr.bf16.mxu0 0
        %1474 = vmatpush1.bf16.msra.mxu0 0
        %1475 = vmatprep.subr.bf16.mxu0 0
        %1476 = vmatpush1.bf16.msra.mxu0 0
        %1477 = vmatprep.subr.bf16.mxu0 0
        %1478 = vmatpush1.bf16.msra.mxu0 0
        %1479 = vmatprep.subr.bf16.mxu0 0
        %1480 = vmatpush1.bf16.msra.mxu0 0
        %1481 = vmatprep.subr.bf16.mxu0 0
        %1482 = vmatpush1.bf16.msra.mxu0 0
        %1483 = vmatprep.subr.bf16.mxu0 0
        %1484 = vmatpush1.bf16.msra.mxu0 0
        %1485 = vmatprep.subr.bf16.mxu0 0
        %1486 = vmatpush1.bf16.msra.mxu0 0
        %1487 = vmatprep.subr.bf16.mxu0 0
        %1488 = vmatpush1.bf16.msra.mxu0 0
        %1489 = vmatprep.subr.bf16.mxu0 0
        %1490 = vmatpush1.bf16.msra.mxu0 0
        %1491 = vmatprep.subr.bf16.mxu0 0
        %1492 = vmatpush1.bf16.msra.mxu0 0
        %1493 = vmatprep.subr.bf16.mxu0 0
        %1494 = vmatpush1.bf16.msra.mxu0 0
        %1495 = vmatprep.mubr.bf16.mxu0 0
        %1496 = vmatmul.mubr.bf16.gmra.mrb[0].mxu0 %v1452
        %v1497 = vpop.f32.mrb[0].mxu0
        %v1498 = vadd.f32 %v1437, %v1497
        %v1499 = vpop.f32.mrb[0].mxu0
        %v1500 = vpop.f32.mrb[0].mxu0
        %v1501 = vadd.f32 %v1437, %v1500
        %v1502 = vpop.f32.mrb[0].mxu0
        %1503 = vmatprep.mubr.bf16.mxu0 0
        %1504 = vmatmul.mubr.bf16.gmra.mrb[0].mxu0 %v1455
        %v1505 = vpop.f32.mrb[0].mxu0
        %v1506 = vadd.f32 %v1437, %v1505
        %v1507 = vpop.f32.mrb[0].mxu0
        %v1508 = vpop.f32.mrb[0].mxu0
        %v1509 = vadd.f32 %v1437, %v1508
        %v1510 = vpop.f32.mrb[0].mxu0
        %1511 = vmatprep.mubr.bf16.mxu0 0
        %1512 = vmatmul.mubr.bf16.gmra.mrb[0].mxu0 %v1458
        %v1513 = vpop.f32.mrb[0].mxu0
        %v1514 = vadd.f32 %v1437, %v1513
        %v1515 = vpop.f32.mrb[0].mxu0
        %v1516 = vpop.f32.mrb[0].mxu0
        %v1517 = vadd.f32 %v1437, %v1516
        %v1518 = vpop.f32.mrb[0].mxu0
        %1519 = vmatprep.mubr.bf16.mxu0 0
        %1520 = vmatmul.mubr.bf16.gmra.mrb[0].mxu0 %v1461
        %v1521 = vpop.f32.mrb[0].mxu0
        %v1522 = vadd.f32 %v1437, %v1521
        %v1523 = vpop.f32.mrb[0].mxu0
        %v1524 = vpop.f32.mrb[0].mxu0
        %v1525 = vadd.f32 %v1437, %v1524
        %v1526 = vpop.f32.mrb[0].mxu0
        %1527 = vdwg.mxu0
        %v1528 = vld [vmem:[%s9] sm:$0x1]
        %v1529 = vld [vmem:[%s10] sm:$0x1]
        %v1530 = vsel %vm1290, %v1498, 0.0
        %1531 = vadd.xlane.f32.xlu0 %v1530
        %v1532 = vpop.xlane.xlu0 %1531
        %v1533 = vsel %vm1290, %v1501, 0.0
        %1534 = vadd.xlane.f32.xlu0 %v1533
        %v1535 = vpop.xlane.xlu0 %1534
        %v1536 = vsel %vm1290, %v1506, 0.0
        %1537 = vadd.xlane.f32.xlu0 %v1536
        %v1538 = vpop.xlane.xlu0 %1537
        %v1539 = vsel %vm1290, %v1509, 0.0
        %1540 = vadd.xlane.f32.xlu0 %v1539
        %v1541 = vpop.xlane.xlu0 %1540
        %v1542 = vsel %vm1290, %v1514, 0.0
        %1543 = vadd.xlane.f32.xlu0 %v1542
        %v1544 = vpop.xlane.xlu0 %1543
        %v1545 = vsel %vm1290, %v1517, 0.0
        %1546 = vadd.xlane.f32.xlu0 %v1545
        %v1547 = vpop.xlane.xlu0 %1546
        %v1548 = vsel %vm1290, %v1522, 0.0
        %1549 = vadd.xlane.f32.xlu0 %v1548
        %v1550 = vpop.xlane.xlu0 %1549
        %v1551 = vsel %vm1290, %v1525, 0.0
        %1552 = vadd.xlane.f32.xlu0 %v1551
        %v1553 = vpop.xlane.xlu0 %1552
        %v1554 = vmul.f32 %v1532, %v1315
        %v1555 = vmul.f32 %v1535, %v1315
        %v1556 = vmul.f32 %v1538, %v1315
        %v1557 = vmul.f32 %v1541, %v1315
        %v1558 = vmul.f32 %v1544, %v1315
        %v1559 = vmul.f32 %v1547, %v1315
        %v1560 = vmul.f32 %v1550, %v1315
        %v1561 = vmul.f32 %v1553, %v1315
        %v1562 = vsub.f32 %v1498, %v1554
        %v1563 = vsub.f32 %v1501, %v1555
        %v1564 = vsub.f32 %v1506, %v1556
        %v1565 = vsub.f32 %v1509, %v1557
        %v1566 = vsub.f32 %v1514, %v1558
        %v1567 = vsub.f32 %v1517, %v1559
        %v1568 = vsub.f32 %v1522, %v1560
        %v1569 = vsub.f32 %v1525, %v1561
        %v1570 = vmul.f32 %v1562, %v1562
        %v1571 = vmul.f32 %v1563, %v1563
        %v1572 = vmul.f32 %v1564, %v1564
        %v1573 = vmul.f32 %v1565, %v1565
        %v1574 = vmul.f32 %v1566, %v1566
        %v1575 = vmul.f32 %v1567, %v1567
        %v1576 = vmul.f32 %v1568, %v1568
        %v1577 = vmul.f32 %v1569, %v1569
        %v1578 = vsel %vm1290, %v1570, 0.0
        %1579 = vadd.xlane.f32.xlu0 %v1578
        %v1580 = vpop.xlane.xlu0 %1579
        %v1581 = vsel %vm1290, %v1571, 0.0
        %1582 = vadd.xlane.f32.xlu0 %v1581
        %v1583 = vpop.xlane.xlu0 %1582
        %v1584 = vsel %vm1290, %v1572, 0.0
        %1585 = vadd.xlane.f32.xlu0 %v1584
        %v1586 = vpop.xlane.xlu0 %1585
        %v1587 = vsel %vm1290, %v1573, 0.0
        %1588 = vadd.xlane.f32.xlu0 %v1587
        %v1589 = vpop.xlane.xlu0 %1588
        %v1590 = vsel %vm1290, %v1574, 0.0
        %1591 = vadd.xlane.f32.xlu0 %v1590
        %v1592 = vpop.xlane.xlu0 %1591
        %v1593 = vsel %vm1290, %v1575, 0.0
        %1594 = vadd.xlane.f32.xlu0 %v1593
        %v1595 = vpop.xlane.xlu0 %1594
        %v1596 = vsel %vm1290, %v1576, 0.0
        %1597 = vadd.xlane.f32.xlu0 %v1596
        %v1598 = vpop.xlane.xlu0 %1597
        %v1599 = vsel %vm1290, %v1577, 0.0
        %1600 = vadd.xlane.f32.xlu0 %v1599
        %v1601 = vpop.xlane.xlu0 %1600
        %v1602 = vmul.f32 %v1580, %v1315
        %v1603 = vmul.f32 %v1583, %v1315
        %v1604 = vmul.f32 %v1586, %v1315
        %v1605 = vmul.f32 %v1589, %v1315
        %v1606 = vmul.f32 %v1592, %v1315
        %v1607 = vmul.f32 %v1595, %v1315
        %v1608 = vmul.f32 %v1598, %v1315
        %v1609 = vmul.f32 %v1601, %v1315
        %v1610 = vadd.f32 %v1602, 1e-05
        %v1611 = vadd.f32 %v1603, 1e-05
        %v1612 = vadd.f32 %v1604, 1e-05
        %v1613 = vadd.f32 %v1605, 1e-05
        %v1614 = vadd.f32 %v1606, 1e-05
        %v1615 = vadd.f32 %v1607, 1e-05
        %v1616 = vadd.f32 %v1608, 1e-05
        %v1617 = vadd.f32 %v1609, 1e-05
        %v1618 = vrsqrt.pop %v1610
        %v1619 = vrsqrt.pop %v1611
        %v1620 = vrsqrt.pop %v1612
        %v1621 = vrsqrt.pop %v1613
        %v1622 = vrsqrt.pop %v1614
        %v1623 = vrsqrt.pop %v1615
        %v1624 = vrsqrt.pop %v1616
        %v1625 = vrsqrt.pop %v1617
        %v1626 = vmul.f32 %v1562, %v1618
        %v1627 = vmul.f32 %v1563, %v1619
        %v1628 = vmul.f32 %v1564, %v1620
        %v1629 = vmul.f32 %v1565, %v1621
        %v1630 = vmul.f32 %v1566, %v1622
        %v1631 = vmul.f32 %v1567, %v1623
        %v1632 = vmul.f32 %v1568, %v1624
        %v1633 = vmul.f32 %v1569, %v1625
        %v1635 = vlaneseq
        %v1636 = vshrl.u32 %v1635, 7
        %v1637 = vsub.s32 0, %v1636
        %v1638 = vrot.slane %v1528, %v1637
        %v1640 = vmul.f32 %v1626, %v1638
        %v1641 = vmul.f32 %v1627, %v1638
        %v1642 = vmul.f32 %v1628, %v1638
        %v1643 = vmul.f32 %v1629, %v1638
        %v1644 = vmul.f32 %v1630, %v1638
        %v1645 = vmul.f32 %v1631, %v1638
        %v1646 = vmul.f32 %v1632, %v1638
        %v1647 = vmul.f32 %v1633, %v1638
        %v1649 = vlaneseq
        %v1650 = vshrl.u32 %v1649, 7
        %v1651 = vsub.s32 0, %v1650
        %v1652 = vrot.slane %v1529, %v1651
        %v1654 = vadd.f32 %v1640, %v1652
        %v1655 = vadd.f32 %v1641, %v1652
        %v1656 = vadd.f32 %v1642, %v1652
        %v1657 = vadd.f32 %v1643, %v1652
        %v1658 = vadd.f32 %v1644, %v1652
        %v1659 = vadd.f32 %v1645, %v1652
        %v1660 = vadd.f32 %v1646, %v1652
        %v1661 = vadd.f32 %v1647, %v1652
        %1662 = vst.msk [vmem:[%s781] sm:$0xff] %vm1290, %v1654
        %1663 = vst.msk [vmem:[%s781 + $0x8] sm:$0xff] %vm1290, %v1655
        %1664 = vst.msk [vmem:[%s781 + $0x10] sm:$0xff] %vm1290, %v1656
        %1665 = vst.msk [vmem:[%s781 + $0x18] sm:$0xff] %vm1290, %v1657
        %1666 = vst.msk [vmem:[%s781 + $0x20] sm:$0xff] %vm1290, %v1658
        %1667 = vst.msk [vmem:[%s781 + $0x28] sm:$0xff] %vm1290, %v1659
        %1668 = vst.msk [vmem:[%s781 + $0x30] sm:$0xff] %vm1290, %v1660
        %1669 = vst.msk [vmem:[%s781 + $0x38] sm:$0xff] %vm1290, %v1661
        %v1670 = vpack.c.bf16 %v1655, %v1654
        %v1671 = vpack.c.bf16 %v1657, %v1656
        %v1672 = vpack.c.bf16 %v1659, %v1658
        %v1673 = vpack.c.bf16 %v1661, %v1660
        %v1674 = vld [vmem:[%s11] sm:$0xf]
        %v1675 = vld [vmem:[%s11 + $0x4] sm:$0xf]
        %v1676 = vld [vmem:[%s11 + $0x8] sm:$0xf]
        %v1677 = vld [vmem:[%s11 + $0xc] sm:$0xf]
        %v1678 = vld [vmem:[%s12] sm:$0x1]
        %v1680 = vlaneseq
        %v1681 = vshrl.u32 %v1680, 7
        %v1682 = vsub.s32 0, %v1681
        %v1683 = vrot.slane %v1678, %v1682
        %v1689 = vunpack.c.l.b16 %v1674
        %v1690 = vunpack.c.l.b16 %v1675
        %v1691 = vunpack.c.l.b16 %v1676
        %v1692 = vunpack.c.l.b16 %v1677
        %v1693 = vpack.c.b16 %v1690, %v1689
        %v1694 = vpack.c.b16 %v1692, %v1691
        %v1698 = vsel %vm1290, %v1670, 0
        %v1701 = vsel %vm1290, %v1671, 0
        %v1704 = vsel %vm1290, %v1672, 0
        %v1707 = vsel %vm1290, %v1673, 0
        %1709 = vmatprep.subr.bf16.mxu0 0
        %1710 = vmatpush1.bf16.msra.mxu0 %v1693
        %1711 = vmatprep.subr.bf16.mxu0 0
        %1712 = vmatpush1.bf16.msra.mxu0 %v1694
        %1713 = vmatprep.subr.bf16.mxu0 0
        %1714 = vmatpush1.bf16.msra.mxu0 0
        %1715 = vmatprep.subr.bf16.mxu0 0
        %1716 = vmatpush1.bf16.msra.mxu0 0
        %1717 = vmatprep.subr.bf16.mxu0 0
        %1718 = vmatpush1.bf16.msra.mxu0 0
        %1719 = vmatprep.subr.bf16.mxu0 0
        %1720 = vmatpush1.bf16.msra.mxu0 0
        %1721 = vmatprep.subr.bf16.mxu0 0
        %1722 = vmatpush1.bf16.msra.mxu0 0
        %1723 = vmatprep.subr.bf16.mxu0 0
        %1724 = vmatpush1.bf16.msra.mxu0 0
        %1725 = vmatprep.subr.bf16.mxu0 0
        %1726 = vmatpush1.bf16.msra.mxu0 0
        %1727 = vmatprep.subr.bf16.mxu0 0
        %1728 = vmatpush1.bf16.msra.mxu0 0
        %1729 = vmatprep.subr.bf16.mxu0 0
        %1730 = vmatpush1.bf16.msra.mxu0 0
        %1731 = vmatprep.subr.bf16.mxu0 0
        %1732 = vmatpush1.bf16.msra.mxu0 0
        %1733 = vmatprep.subr.bf16.mxu0 0
        %1734 = vmatpush1.bf16.msra.mxu0 0
        %1735 = vmatprep.subr.bf16.mxu0 0
        %1736 = vmatpush1.bf16.msra.mxu0 0
        %1737 = vmatprep.subr.bf16.mxu0 0
        %1738 = vmatpush1.bf16.msra.mxu0 0
        %1739 = vmatprep.subr.bf16.mxu0 0
        %1740 = vmatpush1.bf16.msra.mxu0 0
        %1741 = vmatprep.mubr.bf16.mxu0 0
        %1742 = vmatmul.mubr.bf16.gmra.mrb[0].mxu0 %v1698
        %v1743 = vpop.f32.mrb[0].mxu0
        %v1744 = vadd.f32 %v1683, %v1743
        %v1745 = vpop.f32.mrb[0].mxu0
        %v1746 = vpop.f32.mrb[0].mxu0
        %v1747 = vadd.f32 %v1683, %v1746
        %v1748 = vpop.f32.mrb[0].mxu0
        %1749 = vmatprep.mubr.bf16.mxu0 0
        %1750 = vmatmul.mubr.bf16.gmra.mrb[0].mxu0 %v1701
        %v1751 = vpop.f32.mrb[0].mxu0
        %v1752 = vadd.f32 %v1683, %v1751
        %v1753 = vpop.f32.mrb[0].mxu0
        %v1754 = vpop.f32.mrb[0].mxu0
        %v1755 = vadd.f32 %v1683, %v1754
        %v1756 = vpop.f32.mrb[0].mxu0
        %1757 = vmatprep.mubr.bf16.mxu0 0
        %1758 = vmatmul.mubr.bf16.gmra.mrb[0].mxu0 %v1704
        %v1759 = vpop.f32.mrb[0].mxu0
        %v1760 = vadd.f32 %v1683, %v1759
        %v1761 = vpop.f32.mrb[0].mxu0
        %v1762 = vpop.f32.mrb[0].mxu0
        %v1763 = vadd.f32 %v1683, %v1762
        %v1764 = vpop.f32.mrb[0].mxu0
        %1765 = vmatprep.mubr.bf16.mxu0 0
        %1766 = vmatmul.mubr.bf16.gmra.mrb[0].mxu0 %v1707
        %v1767 = vpop.f32.mrb[0].mxu0
        %v1768 = vadd.f32 %v1683, %v1767
        %v1769 = vpop.f32.mrb[0].mxu0
        %v1770 = vpop.f32.mrb[0].mxu0
        %v1771 = vadd.f32 %v1683, %v1770
        %v1772 = vpop.f32.mrb[0].mxu0
        %1773 = vdwg.mxu0
        %v1774 = vpack.c.bf16 %v1747, %v1744
        %v1775 = vpack.c.bf16 %v1755, %v1752
        %v1776 = vpack.c.bf16 %v1763, %v1760
        %v1777 = vpack.c.bf16 %v1771, %v1768
        %1782 = vrot.lane.b32.xlu0 %v1774, 96
        %v1783 = vpop.permute.xlu0 %1782
        %1784 = vrot.lane.b32.xlu0 %v1775, 96
        %v1785 = vpop.permute.xlu0 %1784
        %1786 = vrot.lane.b32.xlu0 %v1776, 96
        %v1787 = vpop.permute.xlu0 %1786
        %1788 = vrot.lane.b32.xlu0 %v1777, 96
        %v1789 = vpop.permute.xlu0 %1788
        %vm1790 = vcmask 64512
        %v1792 = vsel %vm1790, %v1774, 0
        %v1795 = vsel %vm1790, %v1775, 0
        %v1798 = vsel %vm1790, %v1776, 0
        %v1801 = vsel %vm1790, %v1777, 0
        %v1804 = vsel %vm1790, %v1783, 0
        %v1807 = vsel %vm1790, %v1785, 0
        %v1810 = vsel %vm1790, %v1787, 0
        %v1813 = vsel %vm1790, %v1789, 0
        %1815 = vmatprep.subr.bf16.mxu0 0
        %1816 = vmatpush1.bf16.xpose.msra.mxu0 %v1804
        %1817 = vmatprep.subr.bf16.mxu0 0
        %1818 = vmatpush1.bf16.xpose.msra.mxu0 %v1807
        %1819 = vmatprep.subr.bf16.mxu0 0
        %1820 = vmatpush1.bf16.xpose.msra.mxu0 %v1810
        %1821 = vmatprep.subr.bf16.mxu0 0
        %1822 = vmatpush1.bf16.xpose.msra.mxu0 %v1813
        %1823 = vmatprep.subr.bf16.mxu0 0
        %1824 = vmatpush1.bf16.xpose.msra.mxu0 0
        %1825 = vmatprep.subr.bf16.mxu0 0
        %1826 = vmatpush1.bf16.xpose.msra.mxu0 0
        %1827 = vmatprep.subr.bf16.mxu0 0
        %1828 = vmatpush1.bf16.xpose.msra.mxu0 0
        %1829 = vmatprep.subr.bf16.mxu0 0
        %1830 = vmatpush1.bf16.xpose.msra.mxu0 0
        %1831 = vmatprep.subr.bf16.mxu0 0
        %1832 = vmatpush1.bf16.xpose.msra.mxu0 0
        %1833 = vmatprep.subr.bf16.mxu0 0
        %1834 = vmatpush1.bf16.xpose.msra.mxu0 0
        %1835 = vmatprep.subr.bf16.mxu0 0
        %1836 = vmatpush1.bf16.xpose.msra.mxu0 0
        %1837 = vmatprep.subr.bf16.mxu0 0
        %1838 = vmatpush1.bf16.xpose.msra.mxu0 0
        %1839 = vmatprep.subr.bf16.mxu0 0
        %1840 = vmatpush1.bf16.xpose.msra.mxu0 0
        %1841 = vmatprep.subr.bf16.mxu0 0
        %1842 = vmatpush1.bf16.xpose.msra.mxu0 0
        %1843 = vmatprep.subr.bf16.mxu0 0
        %1844 = vmatpush1.bf16.xpose.msra.mxu0 0
        %1845 = vmatprep.subr.bf16.mxu0 0
        %1846 = vmatpush1.bf16.xpose.msra.mxu0 0
        %1847 = vmatprep.mubr.bf16.mxu0 0
        %1848 = vmatmul.mubr.bf16.gmra.mrb[0].mxu0 %v1792
        %v1849 = vpop.f32.mrb[0].mxu0
        %v1850 = vadd.f32 0.0, %v1849
        %v1851 = vpop.f32.mrb[0].mxu0
        %v1852 = vpop.f32.mrb[0].mxu0
        %v1853 = vadd.f32 0.0, %v1852
        %v1854 = vpop.f32.mrb[0].mxu0
        %1855 = vmatprep.mubr.bf16.mxu0 0
        %1856 = vmatmul.mubr.bf16.gmra.mrb[0].mxu0 %v1795
        %v1857 = vpop.f32.mrb[0].mxu0
        %v1858 = vadd.f32 0.0, %v1857
        %v1859 = vpop.f32.mrb[0].mxu0
        %v1860 = vpop.f32.mrb[0].mxu0
        %v1861 = vadd.f32 0.0, %v1860
        %v1862 = vpop.f32.mrb[0].mxu0
        %1863 = vmatprep.mubr.bf16.mxu0 0
        %1864 = vmatmul.mubr.bf16.gmra.mrb[0].mxu0 %v1798
        %v1865 = vpop.f32.mrb[0].mxu0
        %v1866 = vadd.f32 0.0, %v1865
        %v1867 = vpop.f32.mrb[0].mxu0
        %v1868 = vpop.f32.mrb[0].mxu0
        %v1869 = vadd.f32 0.0, %v1868
        %v1870 = vpop.f32.mrb[0].mxu0
        %1871 = vmatprep.mubr.bf16.mxu0 0
        %1872 = vmatmul.mubr.bf16.gmra.mrb[0].mxu0 %v1801
        %v1873 = vpop.f32.mrb[0].mxu0
        %v1874 = vadd.f32 0.0, %v1873
        %v1875 = vpop.f32.mrb[0].mxu0
        %v1876 = vpop.f32.mrb[0].mxu0
        %v1877 = vadd.f32 0.0, %v1876
        %v1878 = vpop.f32.mrb[0].mxu0
        %1879 = vdwg.mxu0
        %1880 = vrot.lane.b32.xlu0 %v1774, 120
        %v1881 = vpop.permute.xlu0 %1880
        %1882 = vrot.lane.b32.xlu0 %v1775, 120
        %v1883 = vpop.permute.xlu0 %1882
        %1884 = vrot.lane.b32.xlu0 %v1776, 120
        %v1885 = vpop.permute.xlu0 %1884
        %1886 = vrot.lane.b32.xlu0 %v1777, 120
        %v1887 = vpop.permute.xlu0 %1886
        %1888 = vrot.lane.b32.xlu0 %v1774, 88
        %v1889 = vpop.permute.xlu0 %1888
        %1890 = vrot.lane.b32.xlu0 %v1775, 88
        %v1891 = vpop.permute.xlu0 %1890
        %1892 = vrot.lane.b32.xlu0 %v1776, 88
        %v1893 = vpop.permute.xlu0 %1892
        %1894 = vrot.lane.b32.xlu0 %v1777, 88
        %v1895 = vpop.permute.xlu0 %1894
        %v1897 = vsel %vm1790, %v1881, 0
        %v1900 = vsel %vm1790, %v1883, 0
        %v1903 = vsel %vm1790, %v1885, 0
        %v1906 = vsel %vm1790, %v1887, 0
        %v1909 = vsel %vm1790, %v1889, 0
        %v1912 = vsel %vm1790, %v1891, 0
        %v1915 = vsel %vm1790, %v1893, 0
        %v1918 = vsel %vm1790, %v1895, 0
        %1920 = vmatprep.subr.bf16.mxu0 0
        %1921 = vmatpush1.bf16.xpose.msra.mxu0 %v1909
        %1922 = vmatprep.subr.bf16.mxu0 0
        %1923 = vmatpush1.bf16.xpose.msra.mxu0 %v1912
        %1924 = vmatprep.subr.bf16.mxu0 0
        %1925 = vmatpush1.bf16.xpose.msra.mxu0 %v1915
        %1926 = vmatprep.subr.bf16.mxu0 0
        %1927 = vmatpush1.bf16.xpose.msra.mxu0 %v1918
        %1928 = vmatprep.subr.bf16.mxu0 0
        %1929 = vmatpush1.bf16.xpose.msra.mxu0 0
        %1930 = vmatprep.subr.bf16.mxu0 0
        %1931 = vmatpush1.bf16.xpose.msra.mxu0 0
        %1932 = vmatprep.subr.bf16.mxu0 0
        %1933 = vmatpush1.bf16.xpose.msra.mxu0 0
        %1934 = vmatprep.subr.bf16.mxu0 0
        %1935 = vmatpush1.bf16.xpose.msra.mxu0 0
        %1936 = vmatprep.subr.bf16.mxu0 0
        %1937 = vmatpush1.bf16.xpose.msra.mxu0 0
        %1938 = vmatprep.subr.bf16.mxu0 0
        %1939 = vmatpush1.bf16.xpose.msra.mxu0 0
        %1940 = vmatprep.subr.bf16.mxu0 0
        %1941 = vmatpush1.bf16.xpose.msra.mxu0 0
        %1942 = vmatprep.subr.bf16.mxu0 0
        %1943 = vmatpush1.bf16.xpose.msra.mxu0 0
        %1944 = vmatprep.subr.bf16.mxu0 0
        %1945 = vmatpush1.bf16.xpose.msra.mxu0 0
        %1946 = vmatprep.subr.bf16.mxu0 0
        %1947 = vmatpush1.bf16.xpose.msra.mxu0 0
        %1948 = vmatprep.subr.bf16.mxu0 0
        %1949 = vmatpush1.bf16.xpose.msra.mxu0 0
        %1950 = vmatprep.subr.bf16.mxu0 0
        %1951 = vmatpush1.bf16.xpose.msra.mxu0 0
        %1952 = vmatprep.mubr.bf16.mxu0 0
        %1953 = vmatmul.mubr.bf16.gmra.mrb[0].mxu0 %v1897
        %v1954 = vpop.f32.mrb[0].mxu0
        %v1955 = vadd.f32 0.0, %v1954
        %v1956 = vpop.f32.mrb[0].mxu0
        %v1957 = vpop.f32.mrb[0].mxu0
        %v1958 = vadd.f32 0.0, %v1957
        %v1959 = vpop.f32.mrb[0].mxu0
        %1960 = vmatprep.mubr.bf16.mxu0 0
        %1961 = vmatmul.mubr.bf16.gmra.mrb[0].mxu0 %v1900
        %v1962 = vpop.f32.mrb[0].mxu0
        %v1963 = vadd.f32 0.0, %v1962
        %v1964 = vpop.f32.mrb[0].mxu0
        %v1965 = vpop.f32.mrb[0].mxu0
        %v1966 = vadd.f32 0.0, %v1965
        %v1967 = vpop.f32.mrb[0].mxu0
        %1968 = vmatprep.mubr.bf16.mxu0 0
        %1969 = vmatmul.mubr.bf16.gmra.mrb[0].mxu0 %v1903
        %v1970 = vpop.f32.mrb[0].mxu0
        %v1971 = vadd.f32 0.0, %v1970
        %v1972 = vpop.f32.mrb[0].mxu0
        %v1973 = vpop.f32.mrb[0].mxu0
        %v1974 = vadd.f32 0.0, %v1973
        %v1975 = vpop.f32.mrb[0].mxu0
        %1976 = vmatprep.mubr.bf16.mxu0 0
        %1977 = vmatmul.mubr.bf16.gmra.mrb[0].mxu0 %v1906
        %v1978 = vpop.f32.mrb[0].mxu0
        %v1979 = vadd.f32 0.0, %v1978
        %v1980 = vpop.f32.mrb[0].mxu0
        %v1981 = vpop.f32.mrb[0].mxu0
        %v1982 = vadd.f32 0.0, %v1981
        %v1983 = vpop.f32.mrb[0].mxu0
        %1984 = vdwg.mxu0
        %1985 = vrot.lane.b32.xlu0 %v1774, 112
        %v1986 = vpop.permute.xlu0 %1985
        %1987 = vrot.lane.b32.xlu0 %v1775, 112
        %v1988 = vpop.permute.xlu0 %1987
        %1989 = vrot.lane.b32.xlu0 %v1776, 112
        %v1990 = vpop.permute.xlu0 %1989
        %1991 = vrot.lane.b32.xlu0 %v1777, 112
        %v1992 = vpop.permute.xlu0 %1991
        %1993 = vrot.lane.b32.xlu0 %v1774, 80
        %v1994 = vpop.permute.xlu0 %1993
        %1995 = vrot.lane.b32.xlu0 %v1775, 80
        %v1996 = vpop.permute.xlu0 %1995
        %1997 = vrot.lane.b32.xlu0 %v1776, 80
        %v1998 = vpop.permute.xlu0 %1997
        %1999 = vrot.lane.b32.xlu0 %v1777, 80
        %v2000 = vpop.permute.xlu0 %1999
        %v2002 = vsel %vm1790, %v1986, 0
        %v2005 = vsel %vm1790, %v1988, 0
        %v2008 = vsel %vm1790, %v1990, 0
        %v2011 = vsel %vm1790, %v1992, 0
        %v2014 = vsel %vm1790, %v1994, 0
        %v2017 = vsel %vm1790, %v1996, 0
        %v2020 = vsel %vm1790, %v1998, 0
        %v2023 = vsel %vm1790, %v2000, 0
        %2025 = vmatprep.subr.bf16.mxu0 0
        %2026 = vmatpush1.bf16.xpose.msra.mxu0 %v2014
        %2027 = vmatprep.subr.bf16.mxu0 0
        %2028 = vmatpush1.bf16.xpose.msra.mxu0 %v2017
        %2029 = vmatprep.subr.bf16.mxu0 0
        %2030 = vmatpush1.bf16.xpose.msra.mxu0 %v2020
        %2031 = vmatprep.subr.bf16.mxu0 0
        %2032 = vmatpush1.bf16.xpose.msra.mxu0 %v2023
        %2033 = vmatprep.subr.bf16.mxu0 0
        %2034 = vmatpush1.bf16.xpose.msra.mxu0 0
        %2035 = vmatprep.subr.bf16.mxu0 0
        %2036 = vmatpush1.bf16.xpose.msra.mxu0 0
        %2037 = vmatprep.subr.bf16.mxu0 0
        %2038 = vmatpush1.bf16.xpose.msra.mxu0 0
        %2039 = vmatprep.subr.bf16.mxu0 0
        %2040 = vmatpush1.bf16.xpose.msra.mxu0 0
        %2041 = vmatprep.subr.bf16.mxu0 0
        %2042 = vmatpush1.bf16.xpose.msra.mxu0 0
        %2043 = vmatprep.subr.bf16.mxu0 0
        %2044 = vmatpush1.bf16.xpose.msra.mxu0 0
        %2045 = vmatprep.subr.bf16.mxu0 0
        %2046 = vmatpush1.bf16.xpose.msra.mxu0 0
        %2047 = vmatprep.subr.bf16.mxu0 0
        %2048 = vmatpush1.bf16.xpose.msra.mxu0 0
        %2049 = vmatprep.subr.bf16.mxu0 0
        %2050 = vmatpush1.bf16.xpose.msra.mxu0 0
        %2051 = vmatprep.subr.bf16.mxu0 0
        %2052 = vmatpush1.bf16.xpose.msra.mxu0 0
        %2053 = vmatprep.subr.bf16.mxu0 0
        %2054 = vmatpush1.bf16.xpose.msra.mxu0 0
        %2055 = vmatprep.subr.bf16.mxu0 0
        %2056 = vmatpush1.bf16.xpose.msra.mxu0 0
        %2057 = vmatprep.mubr.bf16.mxu0 0
        %2058 = vmatmul.mubr.bf16.gmra.mrb[0].mxu0 %v2002
        %v2059 = vpop.f32.mrb[0].mxu0
        %v2060 = vadd.f32 0.0, %v2059
        %v2061 = vpop.f32.mrb[0].mxu0
        %v2062 = vpop.f32.mrb[0].mxu0
        %v2063 = vadd.f32 0.0, %v2062
        %v2064 = vpop.f32.mrb[0].mxu0
        %2065 = vmatprep.mubr.bf16.mxu0 0
        %2066 = vmatmul.mubr.bf16.gmra.mrb[0].mxu0 %v2005
        %v2067 = vpop.f32.mrb[0].mxu0
        %v2068 = vadd.f32 0.0, %v2067
        %v2069 = vpop.f32.mrb[0].mxu0
        %v2070 = vpop.f32.mrb[0].mxu0
        %v2071 = vadd.f32 0.0, %v2070
        %v2072 = vpop.f32.mrb[0].mxu0
        %2073 = vmatprep.mubr.bf16.mxu0 0
        %2074 = vmatmul.mubr.bf16.gmra.mrb[0].mxu0 %v2008
        %v2075 = vpop.f32.mrb[0].mxu0
        %v2076 = vadd.f32 0.0, %v2075
        %v2077 = vpop.f32.mrb[0].mxu0
        %v2078 = vpop.f32.mrb[0].mxu0
        %v2079 = vadd.f32 0.0, %v2078
        %v2080 = vpop.f32.mrb[0].mxu0
        %2081 = vmatprep.mubr.bf16.mxu0 0
        %2082 = vmatmul.mubr.bf16.gmra.mrb[0].mxu0 %v2011
        %v2083 = vpop.f32.mrb[0].mxu0
        %v2084 = vadd.f32 0.0, %v2083
        %v2085 = vpop.f32.mrb[0].mxu0
        %v2086 = vpop.f32.mrb[0].mxu0
        %v2087 = vadd.f32 0.0, %v2086
        %v2088 = vpop.f32.mrb[0].mxu0
        %2089 = vdwg.mxu0
        %2090 = vrot.lane.b32.xlu0 %v1774, 104
        %v2091 = vpop.permute.xlu0 %2090
        %2092 = vrot.lane.b32.xlu0 %v1775, 104
        %v2093 = vpop.permute.xlu0 %2092
        %2094 = vrot.lane.b32.xlu0 %v1776, 104
        %v2095 = vpop.permute.xlu0 %2094
        %2096 = vrot.lane.b32.xlu0 %v1777, 104
        %v2097 = vpop.permute.xlu0 %2096
        %2098 = vrot.lane.b32.xlu0 %v1774, 72
        %v2099 = vpop.permute.xlu0 %2098
        %2100 = vrot.lane.b32.xlu0 %v1775, 72
        %v2101 = vpop.permute.xlu0 %2100
        %2102 = vrot.lane.b32.xlu0 %v1776, 72
        %v2103 = vpop.permute.xlu0 %2102
        %2104 = vrot.lane.b32.xlu0 %v1777, 72
        %v2105 = vpop.permute.xlu0 %2104
        %v2107 = vsel %vm1790, %v2091, 0
        %v2110 = vsel %vm1790, %v2093, 0
        %v2113 = vsel %vm1790, %v2095, 0
        %v2116 = vsel %vm1790, %v2097, 0
        %v2119 = vsel %vm1790, %v2099, 0
        %v2122 = vsel %vm1790, %v2101, 0
        %v2125 = vsel %vm1790, %v2103, 0
        %v2128 = vsel %vm1790, %v2105, 0
        %2130 = vmatprep.subr.bf16.mxu0 0
        %2131 = vmatpush1.bf16.xpose.msra.mxu0 %v2119
        %2132 = vmatprep.subr.bf16.mxu0 0
        %2133 = vmatpush1.bf16.xpose.msra.mxu0 %v2122
        %2134 = vmatprep.subr.bf16.mxu0 0
        %2135 = vmatpush1.bf16.xpose.msra.mxu0 %v2125
        %2136 = vmatprep.subr.bf16.mxu0 0
        %2137 = vmatpush1.bf16.xpose.msra.mxu0 %v2128
        %2138 = vmatprep.subr.bf16.mxu0 0
        %2139 = vmatpush1.bf16.xpose.msra.mxu0 0
        %2140 = vmatprep.subr.bf16.mxu0 0
        %2141 = vmatpush1.bf16.xpose.msra.mxu0 0
        %2142 = vmatprep.subr.bf16.mxu0 0
        %2143 = vmatpush1.bf16.xpose.msra.mxu0 0
        %2144 = vmatprep.subr.bf16.mxu0 0
        %2145 = vmatpush1.bf16.xpose.msra.mxu0 0
        %2146 = vmatprep.subr.bf16.mxu0 0
        %2147 = vmatpush1.bf16.xpose.msra.mxu0 0
        %2148 = vmatprep.subr.bf16.mxu0 0
        %2149 = vmatpush1.bf16.xpose.msra.mxu0 0
        %2150 = vmatprep.subr.bf16.mxu0 0
        %2151 = vmatpush1.bf16.xpose.msra.mxu0 0
        %2152 = vmatprep.subr.bf16.mxu0 0
        %2153 = vmatpush1.bf16.xpose.msra.mxu0 0
        %2154 = vmatprep.subr.bf16.mxu0 0
        %2155 = vmatpush1.bf16.xpose.msra.mxu0 0
        %2156 = vmatprep.subr.bf16.mxu0 0
        %2157 = vmatpush1.bf16.xpose.msra.mxu0 0
        %2158 = vmatprep.subr.bf16.mxu0 0
        %2159 = vmatpush1.bf16.xpose.msra.mxu0 0
        %2160 = vmatprep.subr.bf16.mxu0 0
        %2161 = vmatpush1.bf16.xpose.msra.mxu0 0
        %2162 = vmatprep.mubr.bf16.mxu0 0
        %2163 = vmatmul.mubr.bf16.gmra.mrb[0].mxu0 %v2107
        %v2164 = vpop.f32.mrb[0].mxu0
        %v2165 = vadd.f32 0.0, %v2164
        %v2166 = vpop.f32.mrb[0].mxu0
        %v2167 = vpop.f32.mrb[0].mxu0
        %v2168 = vadd.f32 0.0, %v2167
        %v2169 = vpop.f32.mrb[0].mxu0
        %2170 = vmatprep.mubr.bf16.mxu0 0
        %2171 = vmatmul.mubr.bf16.gmra.mrb[0].mxu0 %v2110
        %v2172 = vpop.f32.mrb[0].mxu0
        %v2173 = vadd.f32 0.0, %v2172
        %v2174 = vpop.f32.mrb[0].mxu0
        %v2175 = vpop.f32.mrb[0].mxu0
        %v2176 = vadd.f32 0.0, %v2175
        %v2177 = vpop.f32.mrb[0].mxu0
        %2178 = vmatprep.mubr.bf16.mxu0 0
        %2179 = vmatmul.mubr.bf16.gmra.mrb[0].mxu0 %v2113
        %v2180 = vpop.f32.mrb[0].mxu0
        %v2181 = vadd.f32 0.0, %v2180
        %v2182 = vpop.f32.mrb[0].mxu0
        %v2183 = vpop.f32.mrb[0].mxu0
        %v2184 = vadd.f32 0.0, %v2183
        %v2185 = vpop.f32.mrb[0].mxu0
        %2186 = vmatprep.mubr.bf16.mxu0 0
        %2187 = vmatmul.mubr.bf16.gmra.mrb[0].mxu0 %v2116
        %v2188 = vpop.f32.mrb[0].mxu0
        %v2189 = vadd.f32 0.0, %v2188
        %v2190 = vpop.f32.mrb[0].mxu0
        %v2191 = vpop.f32.mrb[0].mxu0
        %v2192 = vadd.f32 0.0, %v2191
        %v2193 = vpop.f32.mrb[0].mxu0
        %2194 = vdwg.mxu0
        %v2195 = vsel %vm1067, %v1850, -inf
        %2196 = vmax.xlane.f32.xlu0 %v2195
        %v2197 = vpop.xlane.xlu0 %2196
        %v2198 = vsel %vm1067, %v1853, -inf
        %2199 = vmax.xlane.f32.xlu0 %v2198
        %v2200 = vpop.xlane.xlu0 %2199
        %v2201 = vsel %vm1067, %v1858, -inf
        %2202 = vmax.xlane.f32.xlu0 %v2201
        %v2203 = vpop.xlane.xlu0 %2202
        %v2204 = vsel %vm1067, %v1861, -inf
        %2205 = vmax.xlane.f32.xlu0 %v2204
        %v2206 = vpop.xlane.xlu0 %2205
        %v2207 = vsel %vm1067, %v1866, -inf
        %2208 = vmax.xlane.f32.xlu0 %v2207
        %v2209 = vpop.xlane.xlu0 %2208
        %v2210 = vsel %vm1067, %v1869, -inf
        %2211 = vmax.xlane.f32.xlu0 %v2210
        %v2212 = vpop.xlane.xlu0 %2211
        %v2213 = vsel %vm1067, %v1874, -inf
        %2214 = vmax.xlane.f32.xlu0 %v2213
        %v2215 = vpop.xlane.xlu0 %2214
        %v2216 = vsel %vm1067, %v1877, -inf
        %2217 = vmax.xlane.f32.xlu0 %v2216
        %v2218 = vpop.xlane.xlu0 %2217
        %v2219 = vsel %vm1067, %v1955, -inf
        %2220 = vmax.xlane.f32.xlu0 %v2219
        %v2221 = vpop.xlane.xlu0 %2220
        %v2222 = vsel %vm1067, %v1958, -inf
        %2223 = vmax.xlane.f32.xlu0 %v2222
        %v2224 = vpop.xlane.xlu0 %2223
        %v2225 = vsel %vm1067, %v1963, -inf
        %2226 = vmax.xlane.f32.xlu0 %v2225
        %v2227 = vpop.xlane.xlu0 %2226
        %v2228 = vsel %vm1067, %v1966, -inf
        %2229 = vmax.xlane.f32.xlu0 %v2228
        %v2230 = vpop.xlane.xlu0 %2229
        %v2231 = vsel %vm1067, %v1971, -inf
        %2232 = vmax.xlane.f32.xlu0 %v2231
        %v2233 = vpop.xlane.xlu0 %2232
        %v2234 = vsel %vm1067, %v1974, -inf
        %2235 = vmax.xlane.f32.xlu0 %v2234
        %v2236 = vpop.xlane.xlu0 %2235
        %v2237 = vsel %vm1067, %v1979, -inf
        %2238 = vmax.xlane.f32.xlu0 %v2237
        %v2239 = vpop.xlane.xlu0 %2238
        %v2240 = vsel %vm1067, %v1982, -inf
        %2241 = vmax.xlane.f32.xlu0 %v2240
        %v2242 = vpop.xlane.xlu0 %2241
        %v2243 = vsel %vm1067, %v2060, -inf
        %2244 = vmax.xlane.f32.xlu0 %v2243
        %v2245 = vpop.xlane.xlu0 %2244
        %v2246 = vsel %vm1067, %v2063, -inf
        %2247 = vmax.xlane.f32.xlu0 %v2246
        %v2248 = vpop.xlane.xlu0 %2247
        %v2249 = vsel %vm1067, %v2068, -inf
        %2250 = vmax.xlane.f32.xlu0 %v2249
        %v2251 = vpop.xlane.xlu0 %2250
        %v2252 = vsel %vm1067, %v2071, -inf
        %2253 = vmax.xlane.f32.xlu0 %v2252
        %v2254 = vpop.xlane.xlu0 %2253
        %v2255 = vsel %vm1067, %v2076, -inf
        %2256 = vmax.xlane.f32.xlu0 %v2255
        %v2257 = vpop.xlane.xlu0 %2256
        %v2258 = vsel %vm1067, %v2079, -inf
        %2259 = vmax.xlane.f32.xlu0 %v2258
        %v2260 = vpop.xlane.xlu0 %2259
        %v2261 = vsel %vm1067, %v2084, -inf
        %2262 = vmax.xlane.f32.xlu0 %v2261
        %v2263 = vpop.xlane.xlu0 %2262
        %v2264 = vsel %vm1067, %v2087, -inf
        %2265 = vmax.xlane.f32.xlu0 %v2264
        %v2266 = vpop.xlane.xlu0 %2265
        %v2267 = vsel %vm1067, %v2165, -inf
        %2268 = vmax.xlane.f32.xlu0 %v2267
        %v2269 = vpop.xlane.xlu0 %2268
        %v2270 = vsel %vm1067, %v2168, -inf
        %2271 = vmax.xlane.f32.xlu0 %v2270
        %v2272 = vpop.xlane.xlu0 %2271
        %v2273 = vsel %vm1067, %v2173, -inf
        %2274 = vmax.xlane.f32.xlu0 %v2273
        %v2275 = vpop.xlane.xlu0 %2274
        %v2276 = vsel %vm1067, %v2176, -inf
        %2277 = vmax.xlane.f32.xlu0 %v2276
        %v2278 = vpop.xlane.xlu0 %2277
        %v2279 = vsel %vm1067, %v2181, -inf
        %2280 = vmax.xlane.f32.xlu0 %v2279
        %v2281 = vpop.xlane.xlu0 %2280
        %v2282 = vsel %vm1067, %v2184, -inf
        %2283 = vmax.xlane.f32.xlu0 %v2282
        %v2284 = vpop.xlane.xlu0 %2283
        %v2285 = vsel %vm1067, %v2189, -inf
        %2286 = vmax.xlane.f32.xlu0 %v2285
        %v2287 = vpop.xlane.xlu0 %2286
        %v2288 = vsel %vm1067, %v2192, -inf
        %2289 = vmax.xlane.f32.xlu0 %v2288
        %v2290 = vpop.xlane.xlu0 %2289
        %v2291 = vsub.f32 %v1850, %v2197
        %v2292 = vsub.f32 %v1853, %v2200
        %v2293 = vsub.f32 %v1858, %v2203
        %v2294 = vsub.f32 %v1861, %v2206
        %v2295 = vsub.f32 %v1866, %v2209
        %v2296 = vsub.f32 %v1869, %v2212
        %v2297 = vsub.f32 %v1874, %v2215
        %v2298 = vsub.f32 %v1877, %v2218
        %v2299 = vsub.f32 %v1955, %v2221
        %v2300 = vsub.f32 %v1958, %v2224
        %v2301 = vsub.f32 %v1963, %v2227
        %v2302 = vsub.f32 %v1966, %v2230
        %v2303 = vsub.f32 %v1971, %v2233
        %v2304 = vsub.f32 %v1974, %v2236
        %v2305 = vsub.f32 %v1979, %v2239
        %v2306 = vsub.f32 %v1982, %v2242
        %v2307 = vsub.f32 %v2060, %v2245
        %v2308 = vsub.f32 %v2063, %v2248
        %v2309 = vsub.f32 %v2068, %v2251
        %v2310 = vsub.f32 %v2071, %v2254
        %v2311 = vsub.f32 %v2076, %v2257
        %v2312 = vsub.f32 %v2079, %v2260
        %v2313 = vsub.f32 %v2084, %v2263
        %v2314 = vsub.f32 %v2087, %v2266
        %v2315 = vsub.f32 %v2165, %v2269
        %v2316 = vsub.f32 %v2168, %v2272
        %v2317 = vsub.f32 %v2173, %v2275
        %v2318 = vsub.f32 %v2176, %v2278
        %v2319 = vsub.f32 %v2181, %v2281
        %v2320 = vsub.f32 %v2184, %v2284
        %v2321 = vsub.f32 %v2189, %v2287
        %v2322 = vsub.f32 %v2192, %v2290
        %v2323 = vmul.f32 %v2291, 1.442695
        %v2324 = vpow.pop %v2323
        %v2325 = vmul.f32 %v2292, 1.442695
        %v2326 = vpow.pop %v2325
        %v2327 = vmul.f32 %v2293, 1.442695
        %v2328 = vpow.pop %v2327
        %v2329 = vmul.f32 %v2294, 1.442695
        %v2330 = vpow.pop %v2329
        %v2331 = vmul.f32 %v2295, 1.442695
        %v2332 = vpow.pop %v2331
        %v2333 = vmul.f32 %v2296, 1.442695
        %v2334 = vpow.pop %v2333
        %v2335 = vmul.f32 %v2297, 1.442695
        %v2336 = vpow.pop %v2335
        %v2337 = vmul.f32 %v2298, 1.442695
        %v2338 = vpow.pop %v2337
        %v2339 = vmul.f32 %v2299, 1.442695
        %v2340 = vpow.pop %v2339
        %v2341 = vmul.f32 %v2300, 1.442695
        %v2342 = vpow.pop %v2341
        %v2343 = vmul.f32 %v2301, 1.442695
        %v2344 = vpow.pop %v2343
        %v2345 = vmul.f32 %v2302, 1.442695
        %v2346 = vpow.pop %v2345
        %v2347 = vmul.f32 %v2303, 1.442695
        %v2348 = vpow.pop %v2347
        %v2349 = vmul.f32 %v2304, 1.442695
        %v2350 = vpow.pop %v2349
        %v2351 = vmul.f32 %v2305, 1.442695
        %v2352 = vpow.pop %v2351
        %v2353 = vmul.f32 %v2306, 1.442695
        %v2354 = vpow.pop %v2353
        %v2355 = vmul.f32 %v2307, 1.442695
        %v2356 = vpow.pop %v2355
        %v2357 = vmul.f32 %v2308, 1.442695
        %v2358 = vpow.pop %v2357
        %v2359 = vmul.f32 %v2309, 1.442695
        %v2360 = vpow.pop %v2359
        %v2361 = vmul.f32 %v2310, 1.442695
        %v2362 = vpow.pop %v2361
        %v2363 = vmul.f32 %v2311, 1.442695
        %v2364 = vpow.pop %v2363
        %v2365 = vmul.f32 %v2312, 1.442695
        %v2366 = vpow.pop %v2365
        %v2367 = vmul.f32 %v2313, 1.442695
        %v2368 = vpow.pop %v2367
        %v2369 = vmul.f32 %v2314, 1.442695
        %v2370 = vpow.pop %v2369
        %v2371 = vmul.f32 %v2315, 1.442695
        %v2372 = vpow.pop %v2371
        %v2373 = vmul.f32 %v2316, 1.442695
        %v2374 = vpow.pop %v2373
        %v2375 = vmul.f32 %v2317, 1.442695
        %v2376 = vpow.pop %v2375
        %v2377 = vmul.f32 %v2318, 1.442695
        %v2378 = vpow.pop %v2377
        %v2379 = vmul.f32 %v2319, 1.442695
        %v2380 = vpow.pop %v2379
        %v2381 = vmul.f32 %v2320, 1.442695
        %v2382 = vpow.pop %v2381
        %v2383 = vmul.f32 %v2321, 1.442695
        %v2384 = vpow.pop %v2383
        %v2385 = vmul.f32 %v2322, 1.442695
        %v2386 = vpow.pop %v2385
        %v2387 = vsel %vm1067, %v2324, 0.0
        %2388 = vadd.xlane.f32.xlu0 %v2387
        %v2389 = vpop.xlane.xlu0 %2388
        %v2390 = vsel %vm1067, %v2326, 0.0
        %2391 = vadd.xlane.f32.xlu0 %v2390
        %v2392 = vpop.xlane.xlu0 %2391
        %v2393 = vsel %vm1067, %v2328, 0.0
        %2394 = vadd.xlane.f32.xlu0 %v2393
        %v2395 = vpop.xlane.xlu0 %2394
        %v2396 = vsel %vm1067, %v2330, 0.0
        %2397 = vadd.xlane.f32.xlu0 %v2396
        %v2398 = vpop.xlane.xlu0 %2397
        %v2399 = vsel %vm1067, %v2332, 0.0
        %2400 = vadd.xlane.f32.xlu0 %v2399
        %v2401 = vpop.xlane.xlu0 %2400
        %v2402 = vsel %vm1067, %v2334, 0.0
        %2403 = vadd.xlane.f32.xlu0 %v2402
        %v2404 = vpop.xlane.xlu0 %2403
        %v2405 = vsel %vm1067, %v2336, 0.0
        %2406 = vadd.xlane.f32.xlu0 %v2405
        %v2407 = vpop.xlane.xlu0 %2406
        %v2408 = vsel %vm1067, %v2338, 0.0
        %2409 = vadd.xlane.f32.xlu0 %v2408
        %v2410 = vpop.xlane.xlu0 %2409
        %v2411 = vsel %vm1067, %v2340, 0.0
        %2412 = vadd.xlane.f32.xlu0 %v2411
        %v2413 = vpop.xlane.xlu0 %2412
        %v2414 = vsel %vm1067, %v2342, 0.0
        %2415 = vadd.xlane.f32.xlu0 %v2414
        %v2416 = vpop.xlane.xlu0 %2415
        %v2417 = vsel %vm1067, %v2344, 0.0
        %2418 = vadd.xlane.f32.xlu0 %v2417
        %v2419 = vpop.xlane.xlu0 %2418
        %v2420 = vsel %vm1067, %v2346, 0.0
        %2421 = vadd.xlane.f32.xlu0 %v2420
        %v2422 = vpop.xlane.xlu0 %2421
        %v2423 = vsel %vm1067, %v2348, 0.0
        %2424 = vadd.xlane.f32.xlu0 %v2423
        %v2425 = vpop.xlane.xlu0 %2424
        %v2426 = vsel %vm1067, %v2350, 0.0
        %2427 = vadd.xlane.f32.xlu0 %v2426
        %v2428 = vpop.xlane.xlu0 %2427
        %v2429 = vsel %vm1067, %v2352, 0.0
        %2430 = vadd.xlane.f32.xlu0 %v2429
        %v2431 = vpop.xlane.xlu0 %2430
        %v2432 = vsel %vm1067, %v2354, 0.0
        %2433 = vadd.xlane.f32.xlu0 %v2432
        %v2434 = vpop.xlane.xlu0 %2433
        %v2435 = vsel %vm1067, %v2356, 0.0
        %2436 = vadd.xlane.f32.xlu0 %v2435
        %v2437 = vpop.xlane.xlu0 %2436
        %v2438 = vsel %vm1067, %v2358, 0.0
        %2439 = vadd.xlane.f32.xlu0 %v2438
        %v2440 = vpop.xlane.xlu0 %2439
        %v2441 = vsel %vm1067, %v2360, 0.0
        %2442 = vadd.xlane.f32.xlu0 %v2441
        %v2443 = vpop.xlane.xlu0 %2442
        %v2444 = vsel %vm1067, %v2362, 0.0
        %2445 = vadd.xlane.f32.xlu0 %v2444
        %v2446 = vpop.xlane.xlu0 %2445
        %v2447 = vsel %vm1067, %v2364, 0.0
        %2448 = vadd.xlane.f32.xlu0 %v2447
        %v2449 = vpop.xlane.xlu0 %2448
        %v2450 = vsel %vm1067, %v2366, 0.0
        %2451 = vadd.xlane.f32.xlu0 %v2450
        %v2452 = vpop.xlane.xlu0 %2451
        %v2453 = vsel %vm1067, %v2368, 0.0
        %2454 = vadd.xlane.f32.xlu0 %v2453
        %v2455 = vpop.xlane.xlu0 %2454
        %v2456 = vsel %vm1067, %v2370, 0.0
        %2457 = vadd.xlane.f32.xlu0 %v2456
        %v2458 = vpop.xlane.xlu0 %2457
        %v2459 = vsel %vm1067, %v2372, 0.0
        %2460 = vadd.xlane.f32.xlu0 %v2459
        %v2461 = vpop.xlane.xlu0 %2460
        %v2462 = vsel %vm1067, %v2374, 0.0
        %2463 = vadd.xlane.f32.xlu0 %v2462
        %v2464 = vpop.xlane.xlu0 %2463
        %v2465 = vsel %vm1067, %v2376, 0.0
        %2466 = vadd.xlane.f32.xlu0 %v2465
        %v2467 = vpop.xlane.xlu0 %2466
        %v2468 = vsel %vm1067, %v2378, 0.0
        %2469 = vadd.xlane.f32.xlu0 %v2468
        %v2470 = vpop.xlane.xlu0 %2469
        %v2471 = vsel %vm1067, %v2380, 0.0
        %2472 = vadd.xlane.f32.xlu0 %v2471
        %v2473 = vpop.xlane.xlu0 %2472
        %v2474 = vsel %vm1067, %v2382, 0.0
        %2475 = vadd.xlane.f32.xlu0 %v2474
        %v2476 = vpop.xlane.xlu0 %2475
        %v2477 = vsel %vm1067, %v2384, 0.0
        %2478 = vadd.xlane.f32.xlu0 %v2477
        %v2479 = vpop.xlane.xlu0 %2478
        %v2480 = vsel %vm1067, %v2386, 0.0
        %2481 = vadd.xlane.f32.xlu0 %v2480
        %v2482 = vpop.xlane.xlu0 %2481
        %v2483 = vrcp.pop %v2389
        %v2484 = vrcp.pop %v2392
        %v2485 = vrcp.pop %v2395
        %v2486 = vrcp.pop %v2398
        %v2487 = vrcp.pop %v2401
        %v2488 = vrcp.pop %v2404
        %v2489 = vrcp.pop %v2407
        %v2490 = vrcp.pop %v2410
        %v2491 = vrcp.pop %v2413
        %v2492 = vrcp.pop %v2416
        %v2493 = vrcp.pop %v2419
        %v2494 = vrcp.pop %v2422
        %v2495 = vrcp.pop %v2425
        %v2496 = vrcp.pop %v2428
        %v2497 = vrcp.pop %v2431
        %v2498 = vrcp.pop %v2434
        %v2499 = vrcp.pop %v2437
        %v2500 = vrcp.pop %v2440
        %v2501 = vrcp.pop %v2443
        %v2502 = vrcp.pop %v2446
        %v2503 = vrcp.pop %v2449
        %v2504 = vrcp.pop %v2452
        %v2505 = vrcp.pop %v2455
        %v2506 = vrcp.pop %v2458
        %v2507 = vrcp.pop %v2461
        %v2508 = vrcp.pop %v2464
        %v2509 = vrcp.pop %v2467
        %v2510 = vrcp.pop %v2470
        %v2511 = vrcp.pop %v2473
        %v2512 = vrcp.pop %v2476
        %v2513 = vrcp.pop %v2479
        %v2514 = vrcp.pop %v2482
        %v2515 = vmul.f32 %v2324, %v2483
        %v2516 = vmul.f32 %v2326, %v2484
        %v2517 = vmul.f32 %v2328, %v2485
        %v2518 = vmul.f32 %v2330, %v2486
        %v2519 = vmul.f32 %v2332, %v2487
        %v2520 = vmul.f32 %v2334, %v2488
        %v2521 = vmul.f32 %v2336, %v2489
        %v2522 = vmul.f32 %v2338, %v2490
        %v2523 = vmul.f32 %v2340, %v2491
        %v2524 = vmul.f32 %v2342, %v2492
        %v2525 = vmul.f32 %v2344, %v2493
        %v2526 = vmul.f32 %v2346, %v2494
        %v2527 = vmul.f32 %v2348, %v2495
        %v2528 = vmul.f32 %v2350, %v2496
        %v2529 = vmul.f32 %v2352, %v2497
        %v2530 = vmul.f32 %v2354, %v2498
        %v2531 = vmul.f32 %v2356, %v2499
        %v2532 = vmul.f32 %v2358, %v2500
        %v2533 = vmul.f32 %v2360, %v2501
        %v2534 = vmul.f32 %v2362, %v2502
        %v2535 = vmul.f32 %v2364, %v2503
        %v2536 = vmul.f32 %v2366, %v2504
        %v2537 = vmul.f32 %v2368, %v2505
        %v2538 = vmul.f32 %v2370, %v2506
        %v2539 = vmul.f32 %v2372, %v2507
        %v2540 = vmul.f32 %v2374, %v2508
        %v2541 = vmul.f32 %v2376, %v2509
        %v2542 = vmul.f32 %v2378, %v2510
        %v2543 = vmul.f32 %v2380, %v2511
        %v2544 = vmul.f32 %v2382, %v2512
        %v2545 = vmul.f32 %v2384, %v2513
        %v2546 = vmul.f32 %v2386, %v2514
        %v2547 = vpack.c.bf16 %v2516, %v2515
        %v2548 = vpack.c.bf16 %v2518, %v2517
        %v2549 = vpack.c.bf16 %v2520, %v2519
        %v2550 = vpack.c.bf16 %v2522, %v2521
        %v2551 = vpack.c.bf16 %v2524, %v2523
        %v2552 = vpack.c.bf16 %v2526, %v2525
        %v2553 = vpack.c.bf16 %v2528, %v2527
        %v2554 = vpack.c.bf16 %v2530, %v2529
        %v2555 = vpack.c.bf16 %v2532, %v2531
        %v2556 = vpack.c.bf16 %v2534, %v2533
        %v2557 = vpack.c.bf16 %v2536, %v2535
        %v2558 = vpack.c.bf16 %v2538, %v2537
        %v2559 = vpack.c.bf16 %v2540, %v2539
        %v2560 = vpack.c.bf16 %v2542, %v2541
        %v2561 = vpack.c.bf16 %v2544, %v2543
        %v2562 = vpack.c.bf16 %v2546, %v2545
        %2563 = vrot.lane.b32.xlu0 %v1774, 64
        %v2564 = vpop.permute.xlu0 %2563
        %2565 = vrot.lane.b32.xlu0 %v1775, 64
        %v2566 = vpop.permute.xlu0 %2565
        %2567 = vrot.lane.b32.xlu0 %v1776, 64
        %v2568 = vpop.permute.xlu0 %2567
        %2569 = vrot.lane.b32.xlu0 %v1777, 64
        %v2570 = vpop.permute.xlu0 %2569
        %v2576 = vsel %vm1067, %v2547, 0
        %v2579 = vsel %vm1067, %v2548, 0
        %v2582 = vsel %vm1067, %v2549, 0
        %v2585 = vsel %vm1067, %v2550, 0
        %2587 = vmatprep.subr.bf16.mxu0 0
        %2588 = vmatpush1.bf16.msra.mxu0 %v2564
        %2589 = vmatprep.subr.bf16.mxu0 0
        %2590 = vmatpush1.bf16.msra.mxu0 %v2566
        %2591 = vmatprep.subr.bf16.mxu0 0
        %2592 = vmatpush1.bf16.msra.mxu0 %v2568
        %2593 = vmatprep.subr.bf16.mxu0 0
        %2594 = vmatpush1.bf16.msra.mxu0 %v2570
        %2595 = vmatprep.subr.bf16.mxu0 0
        %2596 = vmatpush1.bf16.msra.mxu0 0
        %2597 = vmatprep.subr.bf16.mxu0 0
        %2598 = vmatpush1.bf16.msra.mxu0 0
        %2599 = vmatprep.subr.bf16.mxu0 0
        %2600 = vmatpush1.bf16.msra.mxu0 0
        %2601 = vmatprep.subr.bf16.mxu0 0
        %2602 = vmatpush1.bf16.msra.mxu0 0
        %2603 = vmatprep.subr.bf16.mxu0 0
        %2604 = vmatpush1.bf16.msra.mxu0 0
        %2605 = vmatprep.subr.bf16.mxu0 0
        %2606 = vmatpush1.bf16.msra.mxu0 0
        %2607 = vmatprep.subr.bf16.mxu0 0
        %2608 = vmatpush1.bf16.msra.mxu0 0
        %2609 = vmatprep.subr.bf16.mxu0 0
        %2610 = vmatpush1.bf16.msra.mxu0 0
        %2611 = vmatprep.subr.bf16.mxu0 0
        %2612 = vmatpush1.bf16.msra.mxu0 0
        %2613 = vmatprep.subr.bf16.mxu0 0
        %2614 = vmatpush1.bf16.msra.mxu0 0
        %2615 = vmatprep.subr.bf16.mxu0 0
        %2616 = vmatpush1.bf16.msra.mxu0 0
        %2617 = vmatprep.subr.bf16.mxu0 0
        %2618 = vmatpush1.bf16.msra.mxu0 0
        %2619 = vmatprep.mubr.bf16.mxu0 0
        %2620 = vmatmul.mubr.bf16.gmra.mrb[0].mxu0 %v2576
        %v2621 = vpop.f32.mrb[0].mxu0
        %v2622 = vadd.f32 0.0, %v2621
        %v2623 = vpop.f32.mrb[0].mxu0
        %v2624 = vpop.f32.mrb[0].mxu0
        %v2625 = vadd.f32 0.0, %v2624
        %v2626 = vpop.f32.mrb[0].mxu0
        %2627 = vmatprep.mubr.bf16.mxu0 0
        %2628 = vmatmul.mubr.bf16.gmra.mrb[0].mxu0 %v2579
        %v2629 = vpop.f32.mrb[0].mxu0
        %v2630 = vadd.f32 0.0, %v2629
        %v2631 = vpop.f32.mrb[0].mxu0
        %v2632 = vpop.f32.mrb[0].mxu0
        %v2633 = vadd.f32 0.0, %v2632
        %v2634 = vpop.f32.mrb[0].mxu0
        %2635 = vmatprep.mubr.bf16.mxu0 0
        %2636 = vmatmul.mubr.bf16.gmra.mrb[0].mxu0 %v2582
        %v2637 = vpop.f32.mrb[0].mxu0
        %v2638 = vadd.f32 0.0, %v2637
        %v2639 = vpop.f32.mrb[0].mxu0
        %v2640 = vpop.f32.mrb[0].mxu0
        %v2641 = vadd.f32 0.0, %v2640
        %v2642 = vpop.f32.mrb[0].mxu0
        %2643 = vmatprep.mubr.bf16.mxu0 0
        %2644 = vmatmul.mubr.bf16.gmra.mrb[0].mxu0 %v2585
        %v2645 = vpop.f32.mrb[0].mxu0
        %v2646 = vadd.f32 0.0, %v2645
        %v2647 = vpop.f32.mrb[0].mxu0
        %v2648 = vpop.f32.mrb[0].mxu0
        %v2649 = vadd.f32 0.0, %v2648
        %v2650 = vpop.f32.mrb[0].mxu0
        %2651 = vdwg.mxu0
        %2652 = vrot.lane.b32.xlu0 %v1774, 56
        %v2653 = vpop.permute.xlu0 %2652
        %2654 = vrot.lane.b32.xlu0 %v1775, 56
        %v2655 = vpop.permute.xlu0 %2654
        %2656 = vrot.lane.b32.xlu0 %v1776, 56
        %v2657 = vpop.permute.xlu0 %2656
        %2658 = vrot.lane.b32.xlu0 %v1777, 56
        %v2659 = vpop.permute.xlu0 %2658
        %v2665 = vsel %vm1067, %v2551, 0
        %v2668 = vsel %vm1067, %v2552, 0
        %v2671 = vsel %vm1067, %v2553, 0
        %v2674 = vsel %vm1067, %v2554, 0
        %2676 = vmatprep.subr.bf16.mxu0 0
        %2677 = vmatpush1.bf16.msra.mxu0 %v2653
        %2678 = vmatprep.subr.bf16.mxu0 0
        %2679 = vmatpush1.bf16.msra.mxu0 %v2655
        %2680 = vmatprep.subr.bf16.mxu0 0
        %2681 = vmatpush1.bf16.msra.mxu0 %v2657
        %2682 = vmatprep.subr.bf16.mxu0 0
        %2683 = vmatpush1.bf16.msra.mxu0 %v2659
        %2684 = vmatprep.subr.bf16.mxu0 0
        %2685 = vmatpush1.bf16.msra.mxu0 0
        %2686 = vmatprep.subr.bf16.mxu0 0
        %2687 = vmatpush1.bf16.msra.mxu0 0
        %2688 = vmatprep.subr.bf16.mxu0 0
        %2689 = vmatpush1.bf16.msra.mxu0 0
        %2690 = vmatprep.subr.bf16.mxu0 0
        %2691 = vmatpush1.bf16.msra.mxu0 0
        %2692 = vmatprep.subr.bf16.mxu0 0
        %2693 = vmatpush1.bf16.msra.mxu0 0
        %2694 = vmatprep.subr.bf16.mxu0 0
        %2695 = vmatpush1.bf16.msra.mxu0 0
        %2696 = vmatprep.subr.bf16.mxu0 0
        %2697 = vmatpush1.bf16.msra.mxu0 0
        %2698 = vmatprep.subr.bf16.mxu0 0
        %2699 = vmatpush1.bf16.msra.mxu0 0
        %2700 = vmatprep.subr.bf16.mxu0 0
        %2701 = vmatpush1.bf16.msra.mxu0 0
        %2702 = vmatprep.subr.bf16.mxu0 0
        %2703 = vmatpush1.bf16.msra.mxu0 0
        %2704 = vmatprep.subr.bf16.mxu0 0
        %2705 = vmatpush1.bf16.msra.mxu0 0
        %2706 = vmatprep.subr.bf16.mxu0 0
        %2707 = vmatpush1.bf16.msra.mxu0 0
        %2708 = vmatprep.mubr.bf16.mxu0 0
        %2709 = vmatmul.mubr.bf16.gmra.mrb[0].mxu0 %v2665
        %v2710 = vpop.f32.mrb[0].mxu0
        %v2711 = vadd.f32 0.0, %v2710
        %v2712 = vpop.f32.mrb[0].mxu0
        %v2713 = vpop.f32.mrb[0].mxu0
        %v2714 = vadd.f32 0.0, %v2713
        %v2715 = vpop.f32.mrb[0].mxu0
        %2716 = vmatprep.mubr.bf16.mxu0 0
        %2717 = vmatmul.mubr.bf16.gmra.mrb[0].mxu0 %v2668
        %v2718 = vpop.f32.mrb[0].mxu0
        %v2719 = vadd.f32 0.0, %v2718
        %v2720 = vpop.f32.mrb[0].mxu0
        %v2721 = vpop.f32.mrb[0].mxu0
        %v2722 = vadd.f32 0.0, %v2721
        %v2723 = vpop.f32.mrb[0].mxu0
        %2724 = vmatprep.mubr.bf16.mxu0 0
        %2725 = vmatmul.mubr.bf16.gmra.mrb[0].mxu0 %v2671
        %v2726 = vpop.f32.mrb[0].mxu0
        %v2727 = vadd.f32 0.0, %v2726
        %v2728 = vpop.f32.mrb[0].mxu0
        %v2729 = vpop.f32.mrb[0].mxu0
        %v2730 = vadd.f32 0.0, %v2729
        %v2731 = vpop.f32.mrb[0].mxu0
        %2732 = vmatprep.mubr.bf16.mxu0 0
        %2733 = vmatmul.mubr.bf16.gmra.mrb[0].mxu0 %v2674
        %v2734 = vpop.f32.mrb[0].mxu0
        %v2735 = vadd.f32 0.0, %v2734
        %v2736 = vpop.f32.mrb[0].mxu0
        %v2737 = vpop.f32.mrb[0].mxu0
        %v2738 = vadd.f32 0.0, %v2737
        %v2739 = vpop.f32.mrb[0].mxu0
        %2740 = vdwg.mxu0
        %2741 = vrot.lane.b32.xlu0 %v1774, 48
        %v2742 = vpop.permute.xlu0 %2741
        %2743 = vrot.lane.b32.xlu0 %v1775, 48
        %v2744 = vpop.permute.xlu0 %2743
        %2745 = vrot.lane.b32.xlu0 %v1776, 48
        %v2746 = vpop.permute.xlu0 %2745
        %2747 = vrot.lane.b32.xlu0 %v1777, 48
        %v2748 = vpop.permute.xlu0 %2747
        %v2754 = vsel %vm1067, %v2555, 0
        %v2757 = vsel %vm1067, %v2556, 0
        %v2760 = vsel %vm1067, %v2557, 0
        %v2763 = vsel %vm1067, %v2558, 0
        %2765 = vmatprep.subr.bf16.mxu0 0
        %2766 = vmatpush1.bf16.msra.mxu0 %v2742
        %2767 = vmatprep.subr.bf16.mxu0 0
        %2768 = vmatpush1.bf16.msra.mxu0 %v2744
        %2769 = vmatprep.subr.bf16.mxu0 0
        %2770 = vmatpush1.bf16.msra.mxu0 %v2746
        %2771 = vmatprep.subr.bf16.mxu0 0
        %2772 = vmatpush1.bf16.msra.mxu0 %v2748
        %2773 = vmatprep.subr.bf16.mxu0 0
        %2774 = vmatpush1.bf16.msra.mxu0 0
        %2775 = vmatprep.subr.bf16.mxu0 0
        %2776 = vmatpush1.bf16.msra.mxu0 0
        %2777 = vmatprep.subr.bf16.mxu0 0
        %2778 = vmatpush1.bf16.msra.mxu0 0
        %2779 = vmatprep.subr.bf16.mxu0 0
        %2780 = vmatpush1.bf16.msra.mxu0 0
        %2781 = vmatprep.subr.bf16.mxu0 0
        %2782 = vmatpush1.bf16.msra.mxu0 0
        %2783 = vmatprep.subr.bf16.mxu0 0
        %2784 = vmatpush1.bf16.msra.mxu0 0
        %2785 = vmatprep.subr.bf16.mxu0 0
        %2786 = vmatpush1.bf16.msra.mxu0 0
        %2787 = vmatprep.subr.bf16.mxu0 0
        %2788 = vmatpush1.bf16.msra.mxu0 0
        %2789 = vmatprep.subr.bf16.mxu0 0
        %2790 = vmatpush1.bf16.msra.mxu0 0
        %2791 = vmatprep.subr.bf16.mxu0 0
        %2792 = vmatpush1.bf16.msra.mxu0 0
        %2793 = vmatprep.subr.bf16.mxu0 0
        %2794 = vmatpush1.bf16.msra.mxu0 0
        %2795 = vmatprep.subr.bf16.mxu0 0
        %2796 = vmatpush1.bf16.msra.mxu0 0
        %2797 = vmatprep.mubr.bf16.mxu0 0
        %2798 = vmatmul.mubr.bf16.gmra.mrb[0].mxu0 %v2754
        %v2799 = vpop.f32.mrb[0].mxu0
        %v2800 = vadd.f32 0.0, %v2799
        %v2801 = vpop.f32.mrb[0].mxu0
        %v2802 = vpop.f32.mrb[0].mxu0
        %v2803 = vadd.f32 0.0, %v2802
        %v2804 = vpop.f32.mrb[0].mxu0
        %2805 = vmatprep.mubr.bf16.mxu0 0
        %2806 = vmatmul.mubr.bf16.gmra.mrb[0].mxu0 %v2757
        %v2807 = vpop.f32.mrb[0].mxu0
        %v2808 = vadd.f32 0.0, %v2807
        %v2809 = vpop.f32.mrb[0].mxu0
        %v2810 = vpop.f32.mrb[0].mxu0
        %v2811 = vadd.f32 0.0, %v2810
        %v2812 = vpop.f32.mrb[0].mxu0
        %2813 = vmatprep.mubr.bf16.mxu0 0
        %2814 = vmatmul.mubr.bf16.gmra.mrb[0].mxu0 %v2760
        %v2815 = vpop.f32.mrb[0].mxu0
        %v2816 = vadd.f32 0.0, %v2815
        %v2817 = vpop.f32.mrb[0].mxu0
        %v2818 = vpop.f32.mrb[0].mxu0
        %v2819 = vadd.f32 0.0, %v2818
        %v2820 = vpop.f32.mrb[0].mxu0
        %2821 = vmatprep.mubr.bf16.mxu0 0
        %2822 = vmatmul.mubr.bf16.gmra.mrb[0].mxu0 %v2763
        %v2823 = vpop.f32.mrb[0].mxu0
        %v2824 = vadd.f32 0.0, %v2823
        %v2825 = vpop.f32.mrb[0].mxu0
        %v2826 = vpop.f32.mrb[0].mxu0
        %v2827 = vadd.f32 0.0, %v2826
        %v2828 = vpop.f32.mrb[0].mxu0
        %2829 = vdwg.mxu0
        %2830 = vrot.lane.b32.xlu0 %v1774, 40
        %v2831 = vpop.permute.xlu0 %2830
        %2832 = vrot.lane.b32.xlu0 %v1775, 40
        %v2833 = vpop.permute.xlu0 %2832
        %2834 = vrot.lane.b32.xlu0 %v1776, 40
        %v2835 = vpop.permute.xlu0 %2834
        %2836 = vrot.lane.b32.xlu0 %v1777, 40
        %v2837 = vpop.permute.xlu0 %2836
        %v2843 = vsel %vm1067, %v2559, 0
        %v2846 = vsel %vm1067, %v2560, 0
        %v2849 = vsel %vm1067, %v2561, 0
        %v2852 = vsel %vm1067, %v2562, 0
        %2854 = vmatprep.subr.bf16.mxu0 0
        %2855 = vmatpush1.bf16.msra.mxu0 %v2831
        %2856 = vmatprep.subr.bf16.mxu0 0
        %2857 = vmatpush1.bf16.msra.mxu0 %v2833
        %2858 = vmatprep.subr.bf16.mxu0 0
        %2859 = vmatpush1.bf16.msra.mxu0 %v2835
        %2860 = vmatprep.subr.bf16.mxu0 0
        %2861 = vmatpush1.bf16.msra.mxu0 %v2837
        %2862 = vmatprep.subr.bf16.mxu0 0
        %2863 = vmatpush1.bf16.msra.mxu0 0
        %2864 = vmatprep.subr.bf16.mxu0 0
        %2865 = vmatpush1.bf16.msra.mxu0 0
        %2866 = vmatprep.subr.bf16.mxu0 0
        %2867 = vmatpush1.bf16.msra.mxu0 0
        %2868 = vmatprep.subr.bf16.mxu0 0
        %2869 = vmatpush1.bf16.msra.mxu0 0
        %2870 = vmatprep.subr.bf16.mxu0 0
        %2871 = vmatpush1.bf16.msra.mxu0 0
        %2872 = vmatprep.subr.bf16.mxu0 0
        %2873 = vmatpush1.bf16.msra.mxu0 0
        %2874 = vmatprep.subr.bf16.mxu0 0
        %2875 = vmatpush1.bf16.msra.mxu0 0
        %2876 = vmatprep.subr.bf16.mxu0 0
        %2877 = vmatpush1.bf16.msra.mxu0 0
        %2878 = vmatprep.subr.bf16.mxu0 0
        %2879 = vmatpush1.bf16.msra.mxu0 0
        %2880 = vmatprep.subr.bf16.mxu0 0
        %2881 = vmatpush1.bf16.msra.mxu0 0
        %2882 = vmatprep.subr.bf16.mxu0 0
        %2883 = vmatpush1.bf16.msra.mxu0 0
        %2884 = vmatprep.subr.bf16.mxu0 0
        %2885 = vmatpush1.bf16.msra.mxu0 0
        %2886 = vmatprep.mubr.bf16.mxu0 0
        %2887 = vmatmul.mubr.bf16.gmra.mrb[0].mxu0 %v2843
        %v2888 = vpop.f32.mrb[0].mxu0
        %v2889 = vadd.f32 0.0, %v2888
        %v2890 = vpop.f32.mrb[0].mxu0
        %v2891 = vpop.f32.mrb[0].mxu0
        %v2892 = vadd.f32 0.0, %v2891
        %v2893 = vpop.f32.mrb[0].mxu0
        %2894 = vmatprep.mubr.bf16.mxu0 0
        %2895 = vmatmul.mubr.bf16.gmra.mrb[0].mxu0 %v2846
        %v2896 = vpop.f32.mrb[0].mxu0
        %v2897 = vadd.f32 0.0, %v2896
        %v2898 = vpop.f32.mrb[0].mxu0
        %v2899 = vpop.f32.mrb[0].mxu0
        %v2900 = vadd.f32 0.0, %v2899
        %v2901 = vpop.f32.mrb[0].mxu0
        %2902 = vmatprep.mubr.bf16.mxu0 0
        %2903 = vmatmul.mubr.bf16.gmra.mrb[0].mxu0 %v2849
        %v2904 = vpop.f32.mrb[0].mxu0
        %v2905 = vadd.f32 0.0, %v2904
        %v2906 = vpop.f32.mrb[0].mxu0
        %v2907 = vpop.f32.mrb[0].mxu0
        %v2908 = vadd.f32 0.0, %v2907
        %v2909 = vpop.f32.mrb[0].mxu0
        %2910 = vmatprep.mubr.bf16.mxu0 0
        %2911 = vmatmul.mubr.bf16.gmra.mrb[0].mxu0 %v2852
        %v2912 = vpop.f32.mrb[0].mxu0
        %v2913 = vadd.f32 0.0, %v2912
        %v2914 = vpop.f32.mrb[0].mxu0
        %v2915 = vpop.f32.mrb[0].mxu0
        %v2916 = vadd.f32 0.0, %v2915
        %v2917 = vpop.f32.mrb[0].mxu0
        %2918 = vdwg.mxu0
        %2927 = vrot.lane.b32.xlu0 %v2711, 8
        %v2928 = vpop.permute.xlu0 %2927
        %2929 = vrot.lane.b32.xlu0 %v2714, 8
        %v2930 = vpop.permute.xlu0 %2929
        %2931 = vrot.lane.b32.xlu0 %v2719, 8
        %v2932 = vpop.permute.xlu0 %2931
        %2933 = vrot.lane.b32.xlu0 %v2722, 8
        %v2934 = vpop.permute.xlu0 %2933
        %2935 = vrot.lane.b32.xlu0 %v2727, 8
        %v2936 = vpop.permute.xlu0 %2935
        %2937 = vrot.lane.b32.xlu0 %v2730, 8
        %v2938 = vpop.permute.xlu0 %2937
        %2939 = vrot.lane.b32.xlu0 %v2735, 8
        %v2940 = vpop.permute.xlu0 %2939
        %2941 = vrot.lane.b32.xlu0 %v2738, 8
        %v2942 = vpop.permute.xlu0 %2941
        %2959 = vrot.lane.b32.xlu0 %v2800, 16
        %v2960 = vpop.permute.xlu0 %2959
        %2961 = vrot.lane.b32.xlu0 %v2803, 16
        %v2962 = vpop.permute.xlu0 %2961
        %2963 = vrot.lane.b32.xlu0 %v2808, 16
        %v2964 = vpop.permute.xlu0 %2963
        %2965 = vrot.lane.b32.xlu0 %v2811, 16
        %v2966 = vpop.permute.xlu0 %2965
        %2967 = vrot.lane.b32.xlu0 %v2816, 16
        %v2968 = vpop.permute.xlu0 %2967
        %2969 = vrot.lane.b32.xlu0 %v2819, 16
        %v2970 = vpop.permute.xlu0 %2969
        %2971 = vrot.lane.b32.xlu0 %v2824, 16
        %v2972 = vpop.permute.xlu0 %2971
        %2973 = vrot.lane.b32.xlu0 %v2827, 16
        %v2974 = vpop.permute.xlu0 %2973
        %2991 = vrot.lane.b32.xlu0 %v2889, 24
        %v2992 = vpop.permute.xlu0 %2991
        %2993 = vrot.lane.b32.xlu0 %v2892, 24
        %v2994 = vpop.permute.xlu0 %2993
        %2995 = vrot.lane.b32.xlu0 %v2897, 24
        %v2996 = vpop.permute.xlu0 %2995
        %2997 = vrot.lane.b32.xlu0 %v2900, 24
        %v2998 = vpop.permute.xlu0 %2997
        %2999 = vrot.lane.b32.xlu0 %v2905, 24
        %v3000 = vpop.permute.xlu0 %2999
        %3001 = vrot.lane.b32.xlu0 %v2908, 24
        %v3002 = vpop.permute.xlu0 %3001
        %3003 = vrot.lane.b32.xlu0 %v2913, 24
        %v3004 = vpop.permute.xlu0 %3003
        %3005 = vrot.lane.b32.xlu0 %v2916, 24
        %v3006 = vpop.permute.xlu0 %3005
        %v3015 = vsel %vm1790, %v2622, %v2928
        %v3016 = vsel %vm1790, %v2625, %v2930
        %v3017 = vsel %vm1790, %v2630, %v2932
        %v3018 = vsel %vm1790, %v2633, %v2934
        %v3019 = vsel %vm1790, %v2638, %v2936
        %v3020 = vsel %vm1790, %v2641, %v2938
        %v3021 = vsel %vm1790, %v2646, %v2940
        %v3022 = vsel %vm1790, %v2649, %v2942
        %v3023 = vsel %vm847, %v3015, %v2960
        %v3024 = vsel %vm847, %v3016, %v2962
        %v3025 = vsel %vm847, %v3017, %v2964
        %v3026 = vsel %vm847, %v3018, %v2966
        %v3027 = vsel %vm847, %v3019, %v2968
        %v3028 = vsel %vm847, %v3020, %v2970
        %v3029 = vsel %vm847, %v3021, %v2972
        %v3030 = vsel %vm847, %v3022, %v2974
        %vm3031 = vcmask 195584
        %v3032 = vsel %vm3031, %v3023, %v2992
        %v3033 = vsel %vm3031, %v3024, %v2994
        %v3034 = vsel %vm3031, %v3025, %v2996
        %v3035 = vsel %vm3031, %v3026, %v2998
        %v3036 = vsel %vm3031, %v3027, %v3000
        %v3037 = vsel %vm3031, %v3028, %v3002
        %v3038 = vsel %vm3031, %v3029, %v3004
        %v3039 = vsel %vm3031, %v3030, %v3006
        %v3040 = vpack.c.bf16 %v3033, %v3032
        %v3041 = vpack.c.bf16 %v3035, %v3034
        %v3042 = vpack.c.bf16 %v3037, %v3036
        %v3043 = vpack.c.bf16 %v3039, %v3038
        %v3044 = vld [vmem:[%s13] sm:$0xf]
        %v3045 = vld [vmem:[%s13 + $0x4] sm:$0xf]
        %v3046 = vld [vmem:[%s13 + $0x8] sm:$0xf]
        %v3047 = vld [vmem:[%s13 + $0xc] sm:$0xf]
        %v3048 = vld [vmem:[%s14] sm:$0x1]
        %v3050 = vlaneseq
        %v3051 = vshrl.u32 %v3050, 7
        %v3052 = vsub.s32 0, %v3051
        %v3053 = vrot.slane %v3048, %v3052
        %v3059 = vunpack.c.l.b16 %v3044
        %v3060 = vunpack.c.l.b16 %v3045
        %v3061 = vunpack.c.l.b16 %v3046
        %v3062 = vunpack.c.l.b16 %v3047
        %v3063 = vpack.c.b16 %v3060, %v3059
        %v3064 = vpack.c.b16 %v3062, %v3061
        %v3068 = vsel %vm1290, %v3040, 0
        %v3071 = vsel %vm1290, %v3041, 0
        %v3074 = vsel %vm1290, %v3042, 0
        %v3077 = vsel %vm1290, %v3043, 0
        %3079 = vmatprep.subr.bf16.mxu0 0
        %3080 = vmatpush1.bf16.msra.mxu0 %v3063
        %3081 = vmatprep.subr.bf16.mxu0 0
        %3082 = vmatpush1.bf16.msra.mxu0 %v3064
        %3083 = vmatprep.subr.bf16.mxu0 0
        %3084 = vmatpush1.bf16.msra.mxu0 0
        %3085 = vmatprep.subr.bf16.mxu0 0
        %3086 = vmatpush1.bf16.msra.mxu0 0
        %3087 = vmatprep.subr.bf16.mxu0 0
        %3088 = vmatpush1.bf16.msra.mxu0 0
        %3089 = vmatprep.subr.bf16.mxu0 0
        %3090 = vmatpush1.bf16.msra.mxu0 0
        %3091 = vmatprep.subr.bf16.mxu0 0
        %3092 = vmatpush1.bf16.msra.mxu0 0
        %3093 = vmatprep.subr.bf16.mxu0 0
        %3094 = vmatpush1.bf16.msra.mxu0 0
        %3095 = vmatprep.subr.bf16.mxu0 0
        %3096 = vmatpush1.bf16.msra.mxu0 0
        %3097 = vmatprep.subr.bf16.mxu0 0
        %3098 = vmatpush1.bf16.msra.mxu0 0
        %3099 = vmatprep.subr.bf16.mxu0 0
        %3100 = vmatpush1.bf16.msra.mxu0 0
        %3101 = vmatprep.subr.bf16.mxu0 0
        %3102 = vmatpush1.bf16.msra.mxu0 0
        %3103 = vmatprep.subr.bf16.mxu0 0
        %3104 = vmatpush1.bf16.msra.mxu0 0
        %3105 = vmatprep.subr.bf16.mxu0 0
        %3106 = vmatpush1.bf16.msra.mxu0 0
        %3107 = vmatprep.subr.bf16.mxu0 0
        %3108 = vmatpush1.bf16.msra.mxu0 0
        %3109 = vmatprep.subr.bf16.mxu0 0
        %3110 = vmatpush1.bf16.msra.mxu0 0
        %3111 = vmatprep.mubr.bf16.mxu0 0
        %3112 = vmatmul.mubr.bf16.gmra.mrb[0].mxu0 %v3068
        %v3113 = vpop.f32.mrb[0].mxu0
        %v3114 = vadd.f32 %v3053, %v3113
        %v3115 = vpop.f32.mrb[0].mxu0
        %v3116 = vpop.f32.mrb[0].mxu0
        %v3117 = vadd.f32 %v3053, %v3116
        %v3118 = vpop.f32.mrb[0].mxu0
        %3119 = vmatprep.mubr.bf16.mxu0 0
        %3120 = vmatmul.mubr.bf16.gmra.mrb[0].mxu0 %v3071
        %v3121 = vpop.f32.mrb[0].mxu0
        %v3122 = vadd.f32 %v3053, %v3121
        %v3123 = vpop.f32.mrb[0].mxu0
        %v3124 = vpop.f32.mrb[0].mxu0
        %v3125 = vadd.f32 %v3053, %v3124
        %v3126 = vpop.f32.mrb[0].mxu0
        %3127 = vmatprep.mubr.bf16.mxu0 0
        %3128 = vmatmul.mubr.bf16.gmra.mrb[0].mxu0 %v3074
        %v3129 = vpop.f32.mrb[0].mxu0
        %v3130 = vadd.f32 %v3053, %v3129
        %v3131 = vpop.f32.mrb[0].mxu0
        %v3132 = vpop.f32.mrb[0].mxu0
        %v3133 = vadd.f32 %v3053, %v3132
        %v3134 = vpop.f32.mrb[0].mxu0
        %3135 = vmatprep.mubr.bf16.mxu0 0
        %3136 = vmatmul.mubr.bf16.gmra.mrb[0].mxu0 %v3077
        %v3137 = vpop.f32.mrb[0].mxu0
        %v3138 = vadd.f32 %v3053, %v3137
        %v3139 = vpop.f32.mrb[0].mxu0
        %v3140 = vpop.f32.mrb[0].mxu0
        %v3141 = vadd.f32 %v3053, %v3140
        %v3142 = vpop.f32.mrb[0].mxu0
        %3143 = vdwg.mxu0
        %v3144 = vadd.f32 %v1654, %v3114
        %v3145 = vadd.f32 %v1655, %v3117
        %v3146 = vadd.f32 %v1656, %v3122
        %v3147 = vadd.f32 %v1657, %v3125
        %v3148 = vadd.f32 %v1658, %v3130
        %v3149 = vadd.f32 %v1659, %v3133
        %v3150 = vadd.f32 %v1660, %v3138
        %v3151 = vadd.f32 %v1661, %v3141
        %v3152 = vld [vmem:[%s15] sm:$0x1]
        %v3153 = vld [vmem:[%s16] sm:$0x1]
        %v3154 = vsel %vm1290, %v3144, 0.0
        %3155 = vadd.xlane.f32.xlu0 %v3154
        %v3156 = vpop.xlane.xlu0 %3155
        %v3157 = vsel %vm1290, %v3145, 0.0
        %3158 = vadd.xlane.f32.xlu0 %v3157
        %v3159 = vpop.xlane.xlu0 %3158
        %v3160 = vsel %vm1290, %v3146, 0.0
        %3161 = vadd.xlane.f32.xlu0 %v3160
        %v3162 = vpop.xlane.xlu0 %3161
        %v3163 = vsel %vm1290, %v3147, 0.0
        %3164 = vadd.xlane.f32.xlu0 %v3163
        %v3165 = vpop.xlane.xlu0 %3164
        %v3166 = vsel %vm1290, %v3148, 0.0
        %3167 = vadd.xlane.f32.xlu0 %v3166
        %v3168 = vpop.xlane.xlu0 %3167
        %v3169 = vsel %vm1290, %v3149, 0.0
        %3170 = vadd.xlane.f32.xlu0 %v3169
        %v3171 = vpop.xlane.xlu0 %3170
        %v3172 = vsel %vm1290, %v3150, 0.0
        %3173 = vadd.xlane.f32.xlu0 %v3172
        %v3174 = vpop.xlane.xlu0 %3173
        %v3175 = vsel %vm1290, %v3151, 0.0
        %3176 = vadd.xlane.f32.xlu0 %v3175
        %v3177 = vpop.xlane.xlu0 %3176
        %v3178 = vmul.f32 %v3156, %v1315
        %v3179 = vmul.f32 %v3159, %v1315
        %v3180 = vmul.f32 %v3162, %v1315
        %v3181 = vmul.f32 %v3165, %v1315
        %v3182 = vmul.f32 %v3168, %v1315
        %v3183 = vmul.f32 %v3171, %v1315
        %v3184 = vmul.f32 %v3174, %v1315
        %v3185 = vmul.f32 %v3177, %v1315
        %v3186 = vsub.f32 %v3144, %v3178
        %v3187 = vsub.f32 %v3145, %v3179
        %v3188 = vsub.f32 %v3146, %v3180
        %v3189 = vsub.f32 %v3147, %v3181
        %v3190 = vsub.f32 %v3148, %v3182
        %v3191 = vsub.f32 %v3149, %v3183
        %v3192 = vsub.f32 %v3150, %v3184
        %v3193 = vsub.f32 %v3151, %v3185
        %v3194 = vmul.f32 %v3186, %v3186
        %v3195 = vmul.f32 %v3187, %v3187
        %v3196 = vmul.f32 %v3188, %v3188
        %v3197 = vmul.f32 %v3189, %v3189
        %v3198 = vmul.f32 %v3190, %v3190
        %v3199 = vmul.f32 %v3191, %v3191
        %v3200 = vmul.f32 %v3192, %v3192
        %v3201 = vmul.f32 %v3193, %v3193
        %v3202 = vsel %vm1290, %v3194, 0.0
        %3203 = vadd.xlane.f32.xlu0 %v3202
        %v3204 = vpop.xlane.xlu0 %3203
        %v3205 = vsel %vm1290, %v3195, 0.0
        %3206 = vadd.xlane.f32.xlu0 %v3205
        %v3207 = vpop.xlane.xlu0 %3206
        %v3208 = vsel %vm1290, %v3196, 0.0
        %3209 = vadd.xlane.f32.xlu0 %v3208
        %v3210 = vpop.xlane.xlu0 %3209
        %v3211 = vsel %vm1290, %v3197, 0.0
        %3212 = vadd.xlane.f32.xlu0 %v3211
        %v3213 = vpop.xlane.xlu0 %3212
        %v3214 = vsel %vm1290, %v3198, 0.0
        %3215 = vadd.xlane.f32.xlu0 %v3214
        %v3216 = vpop.xlane.xlu0 %3215
        %v3217 = vsel %vm1290, %v3199, 0.0
        %3218 = vadd.xlane.f32.xlu0 %v3217
        %v3219 = vpop.xlane.xlu0 %3218
        %v3220 = vsel %vm1290, %v3200, 0.0
        %3221 = vadd.xlane.f32.xlu0 %v3220
        %v3222 = vpop.xlane.xlu0 %3221
        %v3223 = vsel %vm1290, %v3201, 0.0
        %3224 = vadd.xlane.f32.xlu0 %v3223
        %v3225 = vpop.xlane.xlu0 %3224
        %v3226 = vmul.f32 %v3204, %v1315
        %v3227 = vmul.f32 %v3207, %v1315
        %v3228 = vmul.f32 %v3210, %v1315
        %v3229 = vmul.f32 %v3213, %v1315
        %v3230 = vmul.f32 %v3216, %v1315
        %v3231 = vmul.f32 %v3219, %v1315
        %v3232 = vmul.f32 %v3222, %v1315
        %v3233 = vmul.f32 %v3225, %v1315
        %v3234 = vadd.f32 %v3226, 1e-05
        %v3235 = vadd.f32 %v3227, 1e-05
        %v3236 = vadd.f32 %v3228, 1e-05
        %v3237 = vadd.f32 %v3229, 1e-05
        %v3238 = vadd.f32 %v3230, 1e-05
        %v3239 = vadd.f32 %v3231, 1e-05
        %v3240 = vadd.f32 %v3232, 1e-05
        %v3241 = vadd.f32 %v3233, 1e-05
        %v3242 = vrsqrt.pop %v3234
        %v3243 = vrsqrt.pop %v3235
        %v3244 = vrsqrt.pop %v3236
        %v3245 = vrsqrt.pop %v3237
        %v3246 = vrsqrt.pop %v3238
        %v3247 = vrsqrt.pop %v3239
        %v3248 = vrsqrt.pop %v3240
        %v3249 = vrsqrt.pop %v3241
        %v3250 = vmul.f32 %v3186, %v3242
        %v3251 = vmul.f32 %v3187, %v3243
        %v3252 = vmul.f32 %v3188, %v3244
        %v3253 = vmul.f32 %v3189, %v3245
        %v3254 = vmul.f32 %v3190, %v3246
        %v3255 = vmul.f32 %v3191, %v3247
        %v3256 = vmul.f32 %v3192, %v3248
        %v3257 = vmul.f32 %v3193, %v3249
        %v3259 = vlaneseq
        %v3260 = vshrl.u32 %v3259, 7
        %v3261 = vsub.s32 0, %v3260
        %v3262 = vrot.slane %v3152, %v3261
        %v3264 = vmul.f32 %v3250, %v3262
        %v3265 = vmul.f32 %v3251, %v3262
        %v3266 = vmul.f32 %v3252, %v3262
        %v3267 = vmul.f32 %v3253, %v3262
        %v3268 = vmul.f32 %v3254, %v3262
        %v3269 = vmul.f32 %v3255, %v3262
        %v3270 = vmul.f32 %v3256, %v3262
        %v3271 = vmul.f32 %v3257, %v3262
        %v3273 = vlaneseq
        %v3274 = vshrl.u32 %v3273, 7
        %v3275 = vsub.s32 0, %v3274
        %v3276 = vrot.slane %v3153, %v3275
        %v3278 = vadd.f32 %v3264, %v3276
        %v3279 = vadd.f32 %v3265, %v3276
        %v3280 = vadd.f32 %v3266, %v3276
        %v3281 = vadd.f32 %v3267, %v3276
        %v3282 = vadd.f32 %v3268, %v3276
        %v3283 = vadd.f32 %v3269, %v3276
        %v3284 = vadd.f32 %v3270, %v3276
        %v3285 = vadd.f32 %v3271, %v3276
        %v3286 = vpack.c.bf16 %v3279, %v3278
        %v3287 = vpack.c.bf16 %v3281, %v3280
        %v3288 = vpack.c.bf16 %v3283, %v3282
        %v3289 = vpack.c.bf16 %v3285, %v3284
        %v3290 = vld [vmem:[%s17] sm:$0xf]
        %v3291 = vld [vmem:[%s17 + $0x4] sm:$0xf]
        %v3292 = vld [vmem:[%s17 + $0x8] sm:$0xf]
        %v3293 = vld [vmem:[%s17 + $0xc] sm:$0xf]
        %v3294 = vld [vmem:[%s18] sm:$0x1]
        %v3296 = vlaneseq
        %v3297 = vshrl.u32 %v3296, 7
        %v3298 = vsub.s32 0, %v3297
        %v3299 = vrot.slane %v3294, %v3298
        %v3305 = vunpack.c.l.b16 %v3290
        %v3306 = vunpack.c.l.b16 %v3291
        %v3307 = vunpack.c.l.b16 %v3292
        %v3308 = vunpack.c.l.b16 %v3293
        %v3309 = vpack.c.b16 %v3306, %v3305
        %v3310 = vpack.c.b16 %v3308, %v3307
        %v3314 = vsel %vm1290, %v3286, 0
        %v3317 = vsel %vm1290, %v3287, 0
        %v3320 = vsel %vm1290, %v3288, 0
        %v3323 = vsel %vm1290, %v3289, 0
        %3325 = vmatprep.subr.bf16.mxu0 0
        %3326 = vmatpush1.bf16.msra.mxu0 %v3309
        %3327 = vmatprep.subr.bf16.mxu0 0
        %3328 = vmatpush1.bf16.msra.mxu0 %v3310
        %3329 = vmatprep.subr.bf16.mxu0 0
        %3330 = vmatpush1.bf16.msra.mxu0 0
        %3331 = vmatprep.subr.bf16.mxu0 0
        %3332 = vmatpush1.bf16.msra.mxu0 0
        %3333 = vmatprep.subr.bf16.mxu0 0
        %3334 = vmatpush1.bf16.msra.mxu0 0
        %3335 = vmatprep.subr.bf16.mxu0 0
        %3336 = vmatpush1.bf16.msra.mxu0 0
        %3337 = vmatprep.subr.bf16.mxu0 0
        %3338 = vmatpush1.bf16.msra.mxu0 0
        %3339 = vmatprep.subr.bf16.mxu0 0
        %3340 = vmatpush1.bf16.msra.mxu0 0
        %3341 = vmatprep.subr.bf16.mxu0 0
        %3342 = vmatpush1.bf16.msra.mxu0 0
        %3343 = vmatprep.subr.bf16.mxu0 0
        %3344 = vmatpush1.bf16.msra.mxu0 0
        %3345 = vmatprep.subr.bf16.mxu0 0
        %3346 = vmatpush1.bf16.msra.mxu0 0
        %3347 = vmatprep.subr.bf16.mxu0 0
        %3348 = vmatpush1.bf16.msra.mxu0 0
        %3349 = vmatprep.subr.bf16.mxu0 0
        %3350 = vmatpush1.bf16.msra.mxu0 0
        %3351 = vmatprep.subr.bf16.mxu0 0
        %3352 = vmatpush1.bf16.msra.mxu0 0
        %3353 = vmatprep.subr.bf16.mxu0 0
        %3354 = vmatpush1.bf16.msra.mxu0 0
        %3355 = vmatprep.subr.bf16.mxu0 0
        %3356 = vmatpush1.bf16.msra.mxu0 0
        %3357 = vmatprep.mubr.bf16.mxu0 0
        %3358 = vmatmul.mubr.bf16.gmra.mrb[0].mxu0 %v3314
        %v3359 = vpop.f32.mrb[0].mxu0
        %v3360 = vadd.f32 %v3299, %v3359
        %v3361 = vpop.f32.mrb[0].mxu0
        %v3362 = vpop.f32.mrb[0].mxu0
        %v3363 = vadd.f32 %v3299, %v3362
        %v3364 = vpop.f32.mrb[0].mxu0
        %3365 = vmatprep.mubr.bf16.mxu0 0
        %3366 = vmatmul.mubr.bf16.gmra.mrb[0].mxu0 %v3317
        %v3367 = vpop.f32.mrb[0].mxu0
        %v3368 = vadd.f32 %v3299, %v3367
        %v3369 = vpop.f32.mrb[0].mxu0
        %v3370 = vpop.f32.mrb[0].mxu0
        %v3371 = vadd.f32 %v3299, %v3370
        %v3372 = vpop.f32.mrb[0].mxu0
        %3373 = vmatprep.mubr.bf16.mxu0 0
        %3374 = vmatmul.mubr.bf16.gmra.mrb[0].mxu0 %v3320
        %v3375 = vpop.f32.mrb[0].mxu0
        %v3376 = vadd.f32 %v3299, %v3375
        %v3377 = vpop.f32.mrb[0].mxu0
        %v3378 = vpop.f32.mrb[0].mxu0
        %v3379 = vadd.f32 %v3299, %v3378
        %v3380 = vpop.f32.mrb[0].mxu0
        %3381 = vmatprep.mubr.bf16.mxu0 0
        %3382 = vmatmul.mubr.bf16.gmra.mrb[0].mxu0 %v3323
        %v3383 = vpop.f32.mrb[0].mxu0
        %v3384 = vadd.f32 %v3299, %v3383
        %v3385 = vpop.f32.mrb[0].mxu0
        %v3386 = vpop.f32.mrb[0].mxu0
        %v3387 = vadd.f32 %v3299, %v3386
        %v3388 = vpop.f32.mrb[0].mxu0
        %3389 = vdwg.mxu0
        %v3390 = vmul.f32 %v3360, 0.5
        %v3391 = vmul.f32 %v3363, 0.5
        %v3392 = vmul.f32 %v3368, 0.5
        %v3393 = vmul.f32 %v3371, 0.5
        %v3394 = vmul.f32 %v3376, 0.5
        %v3395 = vmul.f32 %v3379, 0.5
        %v3396 = vmul.f32 %v3384, 0.5
        %v3397 = vmul.f32 %v3387, 0.5
        %v3398 = vmul.f32 %v3360, 0.044715
        %v3399 = vmul.f32 %v3363, 0.044715
        %v3400 = vmul.f32 %v3368, 0.044715
        %v3401 = vmul.f32 %v3371, 0.044715
        %v3402 = vmul.f32 %v3376, 0.044715
        %v3403 = vmul.f32 %v3379, 0.044715
        %v3404 = vmul.f32 %v3384, 0.044715
        %v3405 = vmul.f32 %v3387, 0.044715
        %v3406 = vmul.f32 %v3398, %v3360
        %v3407 = vmul.f32 %v3399, %v3363
        %v3408 = vmul.f32 %v3400, %v3368
        %v3409 = vmul.f32 %v3401, %v3371
        %v3410 = vmul.f32 %v3402, %v3376
        %v3411 = vmul.f32 %v3403, %v3379
        %v3412 = vmul.f32 %v3404, %v3384
        %v3413 = vmul.f32 %v3405, %v3387
        %v3414 = vmul.f32 %v3406, %v3360
        %v3415 = vmul.f32 %v3407, %v3363
        %v3416 = vmul.f32 %v3408, %v3368
        %v3417 = vmul.f32 %v3409, %v3371
        %v3418 = vmul.f32 %v3410, %v3376
        %v3419 = vmul.f32 %v3411, %v3379
        %v3420 = vmul.f32 %v3412, %v3384
        %v3421 = vmul.f32 %v3413, %v3387
        %v3422 = vadd.f32 %v3360, %v3414
        %v3423 = vadd.f32 %v3363, %v3415
        %v3424 = vadd.f32 %v3368, %v3416
        %v3425 = vadd.f32 %v3371, %v3417
        %v3426 = vadd.f32 %v3376, %v3418
        %v3427 = vadd.f32 %v3379, %v3419
        %v3428 = vadd.f32 %v3384, %v3420
        %v3429 = vadd.f32 %v3387, %v3421
        %v3430 = vmul.f32 %v3422, 0.7978846
        %v3431 = vmul.f32 %v3423, 0.7978846
        %v3432 = vmul.f32 %v3424, 0.7978846
        %v3433 = vmul.f32 %v3425, 0.7978846
        %v3434 = vmul.f32 %v3426, 0.7978846
        %v3435 = vmul.f32 %v3427, 0.7978846
        %v3436 = vmul.f32 %v3428, 0.7978846
        %v3437 = vmul.f32 %v3429, 0.7978846
        %v3438 = vtanh.pop %v3430
        %v3439 = vtanh.pop %v3431
        %v3440 = vtanh.pop %v3432
        %v3441 = vtanh.pop %v3433
        %v3442 = vtanh.pop %v3434
        %v3443 = vtanh.pop %v3435
        %v3444 = vtanh.pop %v3436
        %v3445 = vtanh.pop %v3437
        %v3446 = vadd.f32 %v3438, 1.0
        %v3447 = vadd.f32 %v3439, 1.0
        %v3448 = vadd.f32 %v3440, 1.0
        %v3449 = vadd.f32 %v3441, 1.0
        %v3450 = vadd.f32 %v3442, 1.0
        %v3451 = vadd.f32 %v3443, 1.0
        %v3452 = vadd.f32 %v3444, 1.0
        %v3453 = vadd.f32 %v3445, 1.0
        %v3454 = vmul.f32 %v3390, %v3446
        %v3455 = vmul.f32 %v3391, %v3447
        %v3456 = vmul.f32 %v3392, %v3448
        %v3457 = vmul.f32 %v3393, %v3449
        %v3458 = vmul.f32 %v3394, %v3450
        %v3459 = vmul.f32 %v3395, %v3451
        %v3460 = vmul.f32 %v3396, %v3452
        %v3461 = vmul.f32 %v3397, %v3453
        %v3462 = vpack.c.bf16 %v3455, %v3454
        %v3463 = vpack.c.bf16 %v3457, %v3456
        %v3464 = vpack.c.bf16 %v3459, %v3458
        %v3465 = vpack.c.bf16 %v3461, %v3460
        %v3466 = vld [vmem:[%s19] sm:$0xf]
        %v3467 = vld [vmem:[%s19 + $0x4] sm:$0xf]
        %v3468 = vld [vmem:[%s19 + $0x8] sm:$0xf]
        %v3469 = vld [vmem:[%s19 + $0xc] sm:$0xf]
        %v3470 = vld [vmem:[%s19 + $0x10] sm:$0xf]
        %v3471 = vld [vmem:[%s19 + $0x14] sm:$0xf]
        %v3472 = vld [vmem:[%s19 + $0x18] sm:$0xf]
        %v3473 = vld [vmem:[%s19 + $0x1c] sm:$0xf]
        %v3474 = vld [vmem:[%s19 + $0x20] sm:$0xf]
        %v3475 = vld [vmem:[%s19 + $0x24] sm:$0xf]
        %v3476 = vld [vmem:[%s19 + $0x28] sm:$0xf]
        %v3477 = vld [vmem:[%s19 + $0x2c] sm:$0xf]
        %v3478 = vld [vmem:[%s19 + $0x30] sm:$0xf]
        %v3479 = vld [vmem:[%s19 + $0x34] sm:$0xf]
        %v3480 = vld [vmem:[%s19 + $0x38] sm:$0xf]
        %v3481 = vld [vmem:[%s19 + $0x3c] sm:$0xf]
        %v3482 = vld [vmem:[%s20] sm:$0x1]
        %v3484 = vlaneseq
        %v3485 = vshrl.u32 %v3484, 7
        %v3486 = vsub.s32 0, %v3485
        %v3487 = vrot.slane %v3482, %v3486
        %v3505 = vunpack.c.l.b16 %v3466
        %v3506 = vunpack.c.l.b16 %v3467
        %v3507 = vunpack.c.l.b16 %v3468
        %v3508 = vunpack.c.l.b16 %v3469
        %v3509 = vunpack.c.l.b16 %v3470
        %v3510 = vunpack.c.l.b16 %v3471
        %v3511 = vunpack.c.l.b16 %v3472
        %v3512 = vunpack.c.l.b16 %v3473
        %v3513 = vunpack.c.l.b16 %v3474
        %v3514 = vunpack.c.l.b16 %v3475
        %v3515 = vunpack.c.l.b16 %v3476
        %v3516 = vunpack.c.l.b16 %v3477
        %v3517 = vunpack.c.l.b16 %v3478
        %v3518 = vunpack.c.l.b16 %v3479
        %v3519 = vunpack.c.l.b16 %v3480
        %v3520 = vunpack.c.l.b16 %v3481
        %v3521 = vpack.c.b16 %v3506, %v3505
        %v3522 = vpack.c.b16 %v3508, %v3507
        %v3523 = vpack.c.b16 %v3510, %v3509
        %v3524 = vpack.c.b16 %v3512, %v3511
        %v3525 = vpack.c.b16 %v3514, %v3513
        %v3526 = vpack.c.b16 %v3516, %v3515
        %v3527 = vpack.c.b16 %v3518, %v3517
        %v3528 = vpack.c.b16 %v3520, %v3519
        %3537 = vmatprep.subr.bf16.mxu0 0
        %3538 = vmatpush1.bf16.msra.mxu0 %v3521
        %3539 = vmatprep.subr.bf16.mxu0 0
        %3540 = vmatpush1.bf16.msra.mxu0 %v3522
        %3541 = vmatprep.subr.bf16.mxu0 0
        %3542 = vmatpush1.bf16.msra.mxu0 %v3523
        %3543 = vmatprep.subr.bf16.mxu0 0
        %3544 = vmatpush1.bf16.msra.mxu0 %v3524
        %3545 = vmatprep.subr.bf16.mxu0 0
        %3546 = vmatpush1.bf16.msra.mxu0 %v3525
        %3547 = vmatprep.subr.bf16.mxu0 0
        %3548 = vmatpush1.bf16.msra.mxu0 %v3526
        %3549 = vmatprep.subr.bf16.mxu0 0
        %3550 = vmatpush1.bf16.msra.mxu0 %v3527
        %3551 = vmatprep.subr.bf16.mxu0 0
        %3552 = vmatpush1.bf16.msra.mxu0 %v3528
        %3553 = vmatprep.subr.bf16.mxu0 0
        %3554 = vmatpush1.bf16.msra.mxu0 0
        %3555 = vmatprep.subr.bf16.mxu0 0
        %3556 = vmatpush1.bf16.msra.mxu0 0
        %3557 = vmatprep.subr.bf16.mxu0 0
        %3558 = vmatpush1.bf16.msra.mxu0 0
        %3559 = vmatprep.subr.bf16.mxu0 0
        %3560 = vmatpush1.bf16.msra.mxu0 0
        %3561 = vmatprep.subr.bf16.mxu0 0
        %3562 = vmatpush1.bf16.msra.mxu0 0
        %3563 = vmatprep.subr.bf16.mxu0 0
        %3564 = vmatpush1.bf16.msra.mxu0 0
        %3565 = vmatprep.subr.bf16.mxu0 0
        %3566 = vmatpush1.bf16.msra.mxu0 0
        %3567 = vmatprep.subr.bf16.mxu0 0
        %3568 = vmatpush1.bf16.msra.mxu0 0
        %3569 = vmatprep.mubr.bf16.mxu0 0
        %3570 = vmatmul.mubr.bf16.gmra.mrb[0].mxu0 %v3462
        %v3571 = vpop.f32.mrb[0].mxu0
        %v3572 = vadd.f32 %v3487, %v3571
        %v3573 = vpop.f32.mrb[0].mxu0
        %v3574 = vpop.f32.mrb[0].mxu0
        %v3575 = vadd.f32 %v3487, %v3574
        %v3576 = vpop.f32.mrb[0].mxu0
        %3577 = vmatprep.mubr.bf16.mxu0 0
        %3578 = vmatmul.mubr.bf16.gmra.mrb[0].mxu0 %v3463
        %v3579 = vpop.f32.mrb[0].mxu0
        %v3580 = vadd.f32 %v3487, %v3579
        %v3581 = vpop.f32.mrb[0].mxu0
        %v3582 = vpop.f32.mrb[0].mxu0
        %v3583 = vadd.f32 %v3487, %v3582
        %v3584 = vpop.f32.mrb[0].mxu0
        %3585 = vmatprep.mubr.bf16.mxu0 0
        %3586 = vmatmul.mubr.bf16.gmra.mrb[0].mxu0 %v3464
        %v3587 = vpop.f32.mrb[0].mxu0
        %v3588 = vadd.f32 %v3487, %v3587
        %v3589 = vpop.f32.mrb[0].mxu0
        %v3590 = vpop.f32.mrb[0].mxu0
        %v3591 = vadd.f32 %v3487, %v3590
        %v3592 = vpop.f32.mrb[0].mxu0
        %3593 = vmatprep.mubr.bf16.mxu0 0
        %3594 = vmatmul.mubr.bf16.gmra.mrb[0].mxu0 %v3465
        %v3595 = vpop.f32.mrb[0].mxu0
        %v3596 = vadd.f32 %v3487, %v3595
        %v3597 = vpop.f32.mrb[0].mxu0
        %v3598 = vpop.f32.mrb[0].mxu0
        %v3599 = vadd.f32 %v3487, %v3598
        %v3600 = vpop.f32.mrb[0].mxu0
        %3601 = vdwg.mxu0
        %v3602 = vadd.f32 %v3278, %v3572
        %v3603 = vadd.f32 %v3279, %v3575
        %v3604 = vadd.f32 %v3280, %v3580
        %v3605 = vadd.f32 %v3281, %v3583
        %v3606 = vadd.f32 %v3282, %v3588
        %v3607 = vadd.f32 %v3283, %v3591
        %v3608 = vadd.f32 %v3284, %v3596
        %v3609 = vadd.f32 %v3285, %v3599
        %v3610 = vld [vmem:[%s21] sm:$0x1]
        %v3611 = vld [vmem:[%s22] sm:$0x1]
        %v3612 = vsel %vm1290, %v3602, 0.0
        %3613 = vadd.xlane.f32.xlu0 %v3612
        %v3614 = vpop.xlane.xlu0 %3613
        %v3615 = vsel %vm1290, %v3603, 0.0
        %3616 = vadd.xlane.f32.xlu0 %v3615
        %v3617 = vpop.xlane.xlu0 %3616
        %v3618 = vsel %vm1290, %v3604, 0.0
        %3619 = vadd.xlane.f32.xlu0 %v3618
        %v3620 = vpop.xlane.xlu0 %3619
        %v3621 = vsel %vm1290, %v3605, 0.0
        %3622 = vadd.xlane.f32.xlu0 %v3621
        %v3623 = vpop.xlane.xlu0 %3622
        %v3624 = vsel %vm1290, %v3606, 0.0
        %3625 = vadd.xlane.f32.xlu0 %v3624
        %v3626 = vpop.xlane.xlu0 %3625
        %v3627 = vsel %vm1290, %v3607, 0.0
        %3628 = vadd.xlane.f32.xlu0 %v3627
        %v3629 = vpop.xlane.xlu0 %3628
        %v3630 = vsel %vm1290, %v3608, 0.0
        %3631 = vadd.xlane.f32.xlu0 %v3630
        %v3632 = vpop.xlane.xlu0 %3631
        %v3633 = vsel %vm1290, %v3609, 0.0
        %3634 = vadd.xlane.f32.xlu0 %v3633
        %v3635 = vpop.xlane.xlu0 %3634
        %v3636 = vmul.f32 %v3614, %v1315
        %v3637 = vmul.f32 %v3617, %v1315
        %v3638 = vmul.f32 %v3620, %v1315
        %v3639 = vmul.f32 %v3623, %v1315
        %v3640 = vmul.f32 %v3626, %v1315
        %v3641 = vmul.f32 %v3629, %v1315
        %v3642 = vmul.f32 %v3632, %v1315
        %v3643 = vmul.f32 %v3635, %v1315
        %v3644 = vsub.f32 %v3602, %v3636
        %v3645 = vsub.f32 %v3603, %v3637
        %v3646 = vsub.f32 %v3604, %v3638
        %v3647 = vsub.f32 %v3605, %v3639
        %v3648 = vsub.f32 %v3606, %v3640
        %v3649 = vsub.f32 %v3607, %v3641
        %v3650 = vsub.f32 %v3608, %v3642
        %v3651 = vsub.f32 %v3609, %v3643
        %v3652 = vmul.f32 %v3644, %v3644
        %v3653 = vmul.f32 %v3645, %v3645
        %v3654 = vmul.f32 %v3646, %v3646
        %v3655 = vmul.f32 %v3647, %v3647
        %v3656 = vmul.f32 %v3648, %v3648
        %v3657 = vmul.f32 %v3649, %v3649
        %v3658 = vmul.f32 %v3650, %v3650
        %v3659 = vmul.f32 %v3651, %v3651
        %v3660 = vsel %vm1290, %v3652, 0.0
        %3661 = vadd.xlane.f32.xlu0 %v3660
        %v3662 = vpop.xlane.xlu0 %3661
        %v3663 = vsel %vm1290, %v3653, 0.0
        %3664 = vadd.xlane.f32.xlu0 %v3663
        %v3665 = vpop.xlane.xlu0 %3664
        %v3666 = vsel %vm1290, %v3654, 0.0
        %3667 = vadd.xlane.f32.xlu0 %v3666
        %v3668 = vpop.xlane.xlu0 %3667
        %v3669 = vsel %vm1290, %v3655, 0.0
        %3670 = vadd.xlane.f32.xlu0 %v3669
        %v3671 = vpop.xlane.xlu0 %3670
        %v3672 = vsel %vm1290, %v3656, 0.0
        %3673 = vadd.xlane.f32.xlu0 %v3672
        %v3674 = vpop.xlane.xlu0 %3673
        %v3675 = vsel %vm1290, %v3657, 0.0
        %3676 = vadd.xlane.f32.xlu0 %v3675
        %v3677 = vpop.xlane.xlu0 %3676
        %v3678 = vsel %vm1290, %v3658, 0.0
        %3679 = vadd.xlane.f32.xlu0 %v3678
        %v3680 = vpop.xlane.xlu0 %3679
        %v3681 = vsel %vm1290, %v3659, 0.0
        %3682 = vadd.xlane.f32.xlu0 %v3681
        %v3683 = vpop.xlane.xlu0 %3682
        %v3684 = vmul.f32 %v3662, %v1315
        %v3685 = vmul.f32 %v3665, %v1315
        %v3686 = vmul.f32 %v3668, %v1315
        %v3687 = vmul.f32 %v3671, %v1315
        %v3688 = vmul.f32 %v3674, %v1315
        %v3689 = vmul.f32 %v3677, %v1315
        %v3690 = vmul.f32 %v3680, %v1315
        %v3691 = vmul.f32 %v3683, %v1315
        %v3692 = vadd.f32 %v3684, 1e-05
        %v3693 = vadd.f32 %v3685, 1e-05
        %v3694 = vadd.f32 %v3686, 1e-05
        %v3695 = vadd.f32 %v3687, 1e-05
        %v3696 = vadd.f32 %v3688, 1e-05
        %v3697 = vadd.f32 %v3689, 1e-05
        %v3698 = vadd.f32 %v3690, 1e-05
        %v3699 = vadd.f32 %v3691, 1e-05
        %v3700 = vrsqrt.pop %v3692
        %v3701 = vrsqrt.pop %v3693
        %v3702 = vrsqrt.pop %v3694
        %v3703 = vrsqrt.pop %v3695
        %v3704 = vrsqrt.pop %v3696
        %v3705 = vrsqrt.pop %v3697
        %v3706 = vrsqrt.pop %v3698
        %v3707 = vrsqrt.pop %v3699
        %v3708 = vmul.f32 %v3644, %v3700
        %v3709 = vmul.f32 %v3645, %v3701
        %v3710 = vmul.f32 %v3646, %v3702
        %v3711 = vmul.f32 %v3647, %v3703
        %v3712 = vmul.f32 %v3648, %v3704
        %v3713 = vmul.f32 %v3649, %v3705
        %v3714 = vmul.f32 %v3650, %v3706
        %v3715 = vmul.f32 %v3651, %v3707
        %v3717 = vlaneseq
        %v3718 = vshrl.u32 %v3717, 7
        %v3719 = vsub.s32 0, %v3718
        %v3720 = vrot.slane %v3610, %v3719
        %v3722 = vmul.f32 %v3708, %v3720
        %v3723 = vmul.f32 %v3709, %v3720
        %v3724 = vmul.f32 %v3710, %v3720
        %v3725 = vmul.f32 %v3711, %v3720
        %v3726 = vmul.f32 %v3712, %v3720
        %v3727 = vmul.f32 %v3713, %v3720
        %v3728 = vmul.f32 %v3714, %v3720
        %v3729 = vmul.f32 %v3715, %v3720
        %v3731 = vlaneseq
        %v3732 = vshrl.u32 %v3731, 7
        %v3733 = vsub.s32 0, %v3732
        %v3734 = vrot.slane %v3611, %v3733
        %v3736 = vadd.f32 %v3722, %v3734
        %v3737 = vadd.f32 %v3723, %v3734
        %v3738 = vadd.f32 %v3724, %v3734
        %v3739 = vadd.f32 %v3725, %v3734
        %v3740 = vadd.f32 %v3726, %v3734
        %v3741 = vadd.f32 %v3727, %v3734
        %v3742 = vadd.f32 %v3728, %v3734
        %v3743 = vadd.f32 %v3729, %v3734
        %s3744 = scalar_lea.vmem %s781, 64 [#allocation2]
        %3745 = vst.msk [vmem:[%s3744] sm:$0xff] %vm1290, %v3736
        %3746 = vst.msk [vmem:[%s3744 + $0x8] sm:$0xff] %vm1290, %v3737
        %3747 = vst.msk [vmem:[%s3744 + $0x10] sm:$0xff] %vm1290, %v3738
        %3748 = vst.msk [vmem:[%s3744 + $0x18] sm:$0xff] %vm1290, %v3739
        %3749 = vst.msk [vmem:[%s3744 + $0x20] sm:$0xff] %vm1290, %v3740
        %3750 = vst.msk [vmem:[%s3744 + $0x28] sm:$0xff] %vm1290, %v3741
        %3751 = vst.msk [vmem:[%s3744 + $0x30] sm:$0xff] %vm1290, %v3742
        %3752 = vst.msk [vmem:[%s3744 + $0x38] sm:$0xff] %vm1290, %v3743
        %v3753 = vpack.c.bf16 %v3737, %v3736
        %v3754 = vpack.c.bf16 %v3739, %v3738
        %v3755 = vpack.c.bf16 %v3741, %v3740
        %v3756 = vpack.c.bf16 %v3743, %v3742
        %s3757 = scalar_lea.vmem %s11, 16
        %v3758 = vld [vmem:[%s3757] sm:$0xf]
        %v3759 = vld [vmem:[%s3757 + $0x4] sm:$0xf]
        %v3760 = vld [vmem:[%s3757 + $0x8] sm:$0xf]
        %v3761 = vld [vmem:[%s3757 + $0xc] sm:$0xf]
        %s3762 = scalar_lea.vmem %s12, 1
        %v3763 = vld [vmem:[%s3762] sm:$0x1]
        %v3765 = vlaneseq
        %v3766 = vshrl.u32 %v3765, 7
        %v3767 = vsub.s32 0, %v3766
        %v3768 = vrot.slane %v3763, %v3767
        %v3774 = vunpack.c.l.b16 %v3758
        %v3775 = vunpack.c.l.b16 %v3759
        %v3776 = vunpack.c.l.b16 %v3760
        %v3777 = vunpack.c.l.b16 %v3761
        %v3778 = vpack.c.b16 %v3775, %v3774
        %v3779 = vpack.c.b16 %v3777, %v3776
        %v3783 = vsel %vm1290, %v3753, 0
        %v3786 = vsel %vm1290, %v3754, 0
        %v3789 = vsel %vm1290, %v3755, 0
        %v3792 = vsel %vm1290, %v3756, 0
        %3794 = vmatprep.subr.bf16.mxu0 0
        %3795 = vmatpush1.bf16.msra.mxu0 %v3778
        %3796 = vmatprep.subr.bf16.mxu0 0
        %3797 = vmatpush1.bf16.msra.mxu0 %v3779
        %3798 = vmatprep.subr.bf16.mxu0 0
        %3799 = vmatpush1.bf16.msra.mxu0 0
        %3800 = vmatprep.subr.bf16.mxu0 0
        %3801 = vmatpush1.bf16.msra.mxu0 0
        %3802 = vmatprep.subr.bf16.mxu0 0
        %3803 = vmatpush1.bf16.msra.mxu0 0
        %3804 = vmatprep.subr.bf16.mxu0 0
        %3805 = vmatpush1.bf16.msra.mxu0 0
        %3806 = vmatprep.subr.bf16.mxu0 0
        %3807 = vmatpush1.bf16.msra.mxu0 0
        %3808 = vmatprep.subr.bf16.mxu0 0
        %3809 = vmatpush1.bf16.msra.mxu0 0
        %3810 = vmatprep.subr.bf16.mxu0 0
        %3811 = vmatpush1.bf16.msra.mxu0 0
        %3812 = vmatprep.subr.bf16.mxu0 0
        %3813 = vmatpush1.bf16.msra.mxu0 0
        %3814 = vmatprep.subr.bf16.mxu0 0
        %3815 = vmatpush1.bf16.msra.mxu0 0
        %3816 = vmatprep.subr.bf16.mxu0 0
        %3817 = vmatpush1.bf16.msra.mxu0 0
        %3818 = vmatprep.subr.bf16.mxu0 0
        %3819 = vmatpush1.bf16.msra.mxu0 0
        %3820 = vmatprep.subr.bf16.mxu0 0
        %3821 = vmatpush1.bf16.msra.mxu0 0
        %3822 = vmatprep.subr.bf16.mxu0 0
        %3823 = vmatpush1.bf16.msra.mxu0 0
        %3824 = vmatprep.subr.bf16.mxu0 0
        %3825 = vmatpush1.bf16.msra.mxu0 0
        %3826 = vmatprep.mubr.bf16.mxu0 0
        %3827 = vmatmul.mubr.bf16.gmra.mrb[0].mxu0 %v3783
        %v3828 = vpop.f32.mrb[0].mxu0
        %v3829 = vadd.f32 %v3768, %v3828
        %v3830 = vpop.f32.mrb[0].mxu0
        %v3831 = vpop.f32.mrb[0].mxu0
        %v3832 = vadd.f32 %v3768, %v3831
        %v3833 = vpop.f32.mrb[0].mxu0
        %3834 = vmatprep.mubr.bf16.mxu0 0
        %3835 = vmatmul.mubr.bf16.gmra.mrb[0].mxu0 %v3786
        %v3836 = vpop.f32.mrb[0].mxu0
        %v3837 = vadd.f32 %v3768, %v3836
        %v3838 = vpop.f32.mrb[0].mxu0
        %v3839 = vpop.f32.mrb[0].mxu0
        %v3840 = vadd.f32 %v3768, %v3839
        %v3841 = vpop.f32.mrb[0].mxu0
        %3842 = vmatprep.mubr.bf16.mxu0 0
        %3843 = vmatmul.mubr.bf16.gmra.mrb[0].mxu0 %v3789
        %v3844 = vpop.f32.mrb[0].mxu0
        %v3845 = vadd.f32 %v3768, %v3844
        %v3846 = vpop.f32.mrb[0].mxu0
        %v3847 = vpop.f32.mrb[0].mxu0
        %v3848 = vadd.f32 %v3768, %v3847
        %v3849 = vpop.f32.mrb[0].mxu0
        %3850 = vmatprep.mubr.bf16.mxu0 0
        %3851 = vmatmul.mubr.bf16.gmra.mrb[0].mxu0 %v3792
        %v3852 = vpop.f32.mrb[0].mxu0
        %v3853 = vadd.f32 %v3768, %v3852
        %v3854 = vpop.f32.mrb[0].mxu0
        %v3855 = vpop.f32.mrb[0].mxu0
        %v3856 = vadd.f32 %v3768, %v3855
        %v3857 = vpop.f32.mrb[0].mxu0
        %3858 = vdwg.mxu0
        %v3859 = vpack.c.bf16 %v3832, %v3829
        %v3860 = vpack.c.bf16 %v3840, %v3837
        %v3861 = vpack.c.bf16 %v3848, %v3845
        %v3862 = vpack.c.bf16 %v3856, %v3853
        %3867 = vrot.lane.b32.xlu0 %v3859, 96
        %v3868 = vpop.permute.xlu0 %3867
        %3869 = vrot.lane.b32.xlu0 %v3860, 96
        %v3870 = vpop.permute.xlu0 %3869
        %3871 = vrot.lane.b32.xlu0 %v3861, 96
        %v3872 = vpop.permute.xlu0 %3871
        %3873 = vrot.lane.b32.xlu0 %v3862, 96
        %v3874 = vpop.permute.xlu0 %3873
        %v3876 = vsel %vm1790, %v3859, 0
        %v3879 = vsel %vm1790, %v3860, 0
        %v3882 = vsel %vm1790, %v3861, 0
        %v3885 = vsel %vm1790, %v3862, 0
        %v3888 = vsel %vm1790, %v3868, 0
        %v3891 = vsel %vm1790, %v3870, 0
        %v3894 = vsel %vm1790, %v3872, 0
        %v3897 = vsel %vm1790, %v3874, 0
        %3899 = vmatprep.subr.bf16.mxu0 0
        %3900 = vmatpush1.bf16.xpose.msra.mxu0 %v3888
        %3901 = vmatprep.subr.bf16.mxu0 0
        %3902 = vmatpush1.bf16.xpose.msra.mxu0 %v3891
        %3903 = vmatprep.subr.bf16.mxu0 0
        %3904 = vmatpush1.bf16.xpose.msra.mxu0 %v3894
        %3905 = vmatprep.subr.bf16.mxu0 0
        %3906 = vmatpush1.bf16.xpose.msra.mxu0 %v3897
        %3907 = vmatprep.subr.bf16.mxu0 0
        %3908 = vmatpush1.bf16.xpose.msra.mxu0 0
        %3909 = vmatprep.subr.bf16.mxu0 0
        %3910 = vmatpush1.bf16.xpose.msra.mxu0 0
        %3911 = vmatprep.subr.bf16.mxu0 0
        %3912 = vmatpush1.bf16.xpose.msra.mxu0 0
        %3913 = vmatprep.subr.bf16.mxu0 0
        %3914 = vmatpush1.bf16.xpose.msra.mxu0 0
        %3915 = vmatprep.subr.bf16.mxu0 0
        %3916 = vmatpush1.bf16.xpose.msra.mxu0 0
        %3917 = vmatprep.subr.bf16.mxu0 0
        %3918 = vmatpush1.bf16.xpose.msra.mxu0 0
        %3919 = vmatprep.subr.bf16.mxu0 0
        %3920 = vmatpush1.bf16.xpose.msra.mxu0 0
        %3921 = vmatprep.subr.bf16.mxu0 0
        %3922 = vmatpush1.bf16.xpose.msra.mxu0 0
        %3923 = vmatprep.subr.bf16.mxu0 0
        %3924 = vmatpush1.bf16.xpose.msra.mxu0 0
        %3925 = vmatprep.subr.bf16.mxu0 0
        %3926 = vmatpush1.bf16.xpose.msra.mxu0 0
        %3927 = vmatprep.subr.bf16.mxu0 0
        %3928 = vmatpush1.bf16.xpose.msra.mxu0 0
        %3929 = vmatprep.subr.bf16.mxu0 0
        %3930 = vmatpush1.bf16.xpose.msra.mxu0 0
        %3931 = vmatprep.mubr.bf16.mxu0 0
        %3932 = vmatmul.mubr.bf16.gmra.mrb[0].mxu0 %v3876
        %v3933 = vpop.f32.mrb[0].mxu0
        %v3934 = vadd.f32 0.0, %v3933
        %v3935 = vpop.f32.mrb[0].mxu0
        %v3936 = vpop.f32.mrb[0].mxu0
        %v3937 = vadd.f32 0.0, %v3936
        %v3938 = vpop.f32.mrb[0].mxu0
        %3939 = vmatprep.mubr.bf16.mxu0 0
        %3940 = vmatmul.mubr.bf16.gmra.mrb[0].mxu0 %v3879
        %v3941 = vpop.f32.mrb[0].mxu0
        %v3942 = vadd.f32 0.0, %v3941
        %v3943 = vpop.f32.mrb[0].mxu0
        %v3944 = vpop.f32.mrb[0].mxu0
        %v3945 = vadd.f32 0.0, %v3944
        %v3946 = vpop.f32.mrb[0].mxu0
        %3947 = vmatprep.mubr.bf16.mxu0 0
        %3948 = vmatmul.mubr.bf16.gmra.mrb[0].mxu0 %v3882
        %v3949 = vpop.f32.mrb[0].mxu0
        %v3950 = vadd.f32 0.0, %v3949
        %v3951 = vpop.f32.mrb[0].mxu0
        %v3952 = vpop.f32.mrb[0].mxu0
        %v3953 = vadd.f32 0.0, %v3952
        %v3954 = vpop.f32.mrb[0].mxu0
        %3955 = vmatprep.mubr.bf16.mxu0 0
        %3956 = vmatmul.mubr.bf16.gmra.mrb[0].mxu0 %v3885
        %v3957 = vpop.f32.mrb[0].mxu0
        %v3958 = vadd.f32 0.0, %v3957
        %v3959 = vpop.f32.mrb[0].mxu0
        %v3960 = vpop.f32.mrb[0].mxu0
        %v3961 = vadd.f32 0.0, %v3960
        %v3962 = vpop.f32.mrb[0].mxu0
        %3963 = vdwg.mxu0
        %3964 = vrot.lane.b32.xlu0 %v3859, 120
        %v3965 = vpop.permute.xlu0 %3964
        %3966 = vrot.lane.b32.xlu0 %v3860, 120
        %v3967 = vpop.permute.xlu0 %3966
        %3968 = vrot.lane.b32.xlu0 %v3861, 120
        %v3969 = vpop.permute.xlu0 %3968
        %3970 = vrot.lane.b32.xlu0 %v3862, 120
        %v3971 = vpop.permute.xlu0 %3970
        %3972 = vrot.lane.b32.xlu0 %v3859, 88
        %v3973 = vpop.permute.xlu0 %3972
        %3974 = vrot.lane.b32.xlu0 %v3860, 88
        %v3975 = vpop.permute.xlu0 %3974
        %3976 = vrot.lane.b32.xlu0 %v3861, 88
        %v3977 = vpop.permute.xlu0 %3976
        %3978 = vrot.lane.b32.xlu0 %v3862, 88
        %v3979 = vpop.permute.xlu0 %3978
        %v3981 = vsel %vm1790, %v3965, 0
        %v3984 = vsel %vm1790, %v3967, 0
        %v3987 = vsel %vm1790, %v3969, 0
        %v3990 = vsel %vm1790, %v3971, 0
        %v3993 = vsel %vm1790, %v3973, 0
        %v3996 = vsel %vm1790, %v3975, 0
        %v3999 = vsel %vm1790, %v3977, 0
        %v4002 = vsel %vm1790, %v3979, 0
        %4004 = vmatprep.subr.bf16.mxu0 0
        %4005 = vmatpush1.bf16.xpose.msra.mxu0 %v3993
        %4006 = vmatprep.subr.bf16.mxu0 0
        %4007 = vmatpush1.bf16.xpose.msra.mxu0 %v3996
        %4008 = vmatprep.subr.bf16.mxu0 0
        %4009 = vmatpush1.bf16.xpose.msra.mxu0 %v3999
        %4010 = vmatprep.subr.bf16.mxu0 0
        %4011 = vmatpush1.bf16.xpose.msra.mxu0 %v4002
        %4012 = vmatprep.subr.bf16.mxu0 0
        %4013 = vmatpush1.bf16.xpose.msra.mxu0 0
        %4014 = vmatprep.subr.bf16.mxu0 0
        %4015 = vmatpush1.bf16.xpose.msra.mxu0 0
        %4016 = vmatprep.subr.bf16.mxu0 0
        %4017 = vmatpush1.bf16.xpose.msra.mxu0 0
        %4018 = vmatprep.subr.bf16.mxu0 0
        %4019 = vmatpush1.bf16.xpose.msra.mxu0 0
        %4020 = vmatprep.subr.bf16.mxu0 0
        %4021 = vmatpush1.bf16.xpose.msra.mxu0 0
        %4022 = vmatprep.subr.bf16.mxu0 0
        %4023 = vmatpush1.bf16.xpose.msra.mxu0 0
        %4024 = vmatprep.subr.bf16.mxu0 0
        %4025 = vmatpush1.bf16.xpose.msra.mxu0 0
        %4026 = vmatprep.subr.bf16.mxu0 0
        %4027 = vmatpush1.bf16.xpose.msra.mxu0 0
        %4028 = vmatprep.subr.bf16.mxu0 0
        %4029 = vmatpush1.bf16.xpose.msra.mxu0 0
        %4030 = vmatprep.subr.bf16.mxu0 0
        %4031 = vmatpush1.bf16.xpose.msra.mxu0 0
        %4032 = vmatprep.subr.bf16.mxu0 0
        %4033 = vmatpush1.bf16.xpose.msra.mxu0 0
        %4034 = vmatprep.subr.bf16.mxu0 0
        %4035 = vmatpush1.bf16.xpose.msra.mxu0 0
        %4036 = vmatprep.mubr.bf16.mxu0 0
        %4037 = vmatmul.mubr.bf16.gmra.mrb[0].mxu0 %v3981
        %v4038 = vpop.f32.mrb[0].mxu0
        %v4039 = vadd.f32 0.0, %v4038
        %v4040 = vpop.f32.mrb[0].mxu0
        %v4041 = vpop.f32.mrb[0].mxu0
        %v4042 = vadd.f32 0.0, %v4041
        %v4043 = vpop.f32.mrb[0].mxu0
        %4044 = vmatprep.mubr.bf16.mxu0 0
        %4045 = vmatmul.mubr.bf16.gmra.mrb[0].mxu0 %v3984
        %v4046 = vpop.f32.mrb[0].mxu0
        %v4047 = vadd.f32 0.0, %v4046
        %v4048 = vpop.f32.mrb[0].mxu0
        %v4049 = vpop.f32.mrb[0].mxu0
        %v4050 = vadd.f32 0.0, %v4049
        %v4051 = vpop.f32.mrb[0].mxu0
        %4052 = vmatprep.mubr.bf16.mxu0 0
        %4053 = vmatmul.mubr.bf16.gmra.mrb[0].mxu0 %v3987
        %v4054 = vpop.f32.mrb[0].mxu0
        %v4055 = vadd.f32 0.0, %v4054
        %v4056 = vpop.f32.mrb[0].mxu0
        %v4057 = vpop.f32.mrb[0].mxu0
        %v4058 = vadd.f32 0.0, %v4057
        %v4059 = vpop.f32.mrb[0].mxu0
        %4060 = vmatprep.mubr.bf16.mxu0 0
        %4061 = vmatmul.mubr.bf16.gmra.mrb[0].mxu0 %v3990
        %v4062 = vpop.f32.mrb[0].mxu0
        %v4063 = vadd.f32 0.0, %v4062
        %v4064 = vpop.f32.mrb[0].mxu0
        %v4065 = vpop.f32.mrb[0].mxu0
        %v4066 = vadd.f32 0.0, %v4065
        %v4067 = vpop.f32.mrb[0].mxu0
        %4068 = vdwg.mxu0
        %4069 = vrot.lane.b32.xlu0 %v3859, 112
        %v4070 = vpop.permute.xlu0 %4069
        %4071 = vrot.lane.b32.xlu0 %v3860, 112
        %v4072 = vpop.permute.xlu0 %4071
        %4073 = vrot.lane.b32.xlu0 %v3861, 112
        %v4074 = vpop.permute.xlu0 %4073
        %4075 = vrot.lane.b32.xlu0 %v3862, 112
        %v4076 = vpop.permute.xlu0 %4075
        %4077 = vrot.lane.b32.xlu0 %v3859, 80
        %v4078 = vpop.permute.xlu0 %4077
        %4079 = vrot.lane.b32.xlu0 %v3860, 80
        %v4080 = vpop.permute.xlu0 %4079
        %4081 = vrot.lane.b32.xlu0 %v3861, 80
        %v4082 = vpop.permute.xlu0 %4081
        %4083 = vrot.lane.b32.xlu0 %v3862, 80
        %v4084 = vpop.permute.xlu0 %4083
        %v4086 = vsel %vm1790, %v4070, 0
        %v4089 = vsel %vm1790, %v4072, 0
        %v4092 = vsel %vm1790, %v4074, 0
        %v4095 = vsel %vm1790, %v4076, 0
        %v4098 = vsel %vm1790, %v4078, 0
        %v4101 = vsel %vm1790, %v4080, 0
        %v4104 = vsel %vm1790, %v4082, 0
        %v4107 = vsel %vm1790, %v4084, 0
        %4109 = vmatprep.subr.bf16.mxu0 0
        %4110 = vmatpush1.bf16.xpose.msra.mxu0 %v4098
        %4111 = vmatprep.subr.bf16.mxu0 0
        %4112 = vmatpush1.bf16.xpose.msra.mxu0 %v4101
        %4113 = vmatprep.subr.bf16.mxu0 0
        %4114 = vmatpush1.bf16.xpose.msra.mxu0 %v4104
        %4115 = vmatprep.subr.bf16.mxu0 0
        %4116 = vmatpush1.bf16.xpose.msra.mxu0 %v4107
        %4117 = vmatprep.subr.bf16.mxu0 0
        %4118 = vmatpush1.bf16.xpose.msra.mxu0 0
        %4119 = vmatprep.subr.bf16.mxu0 0
        %4120 = vmatpush1.bf16.xpose.msra.mxu0 0
        %4121 = vmatprep.subr.bf16.mxu0 0
        %4122 = vmatpush1.bf16.xpose.msra.mxu0 0
        %4123 = vmatprep.subr.bf16.mxu0 0
        %4124 = vmatpush1.bf16.xpose.msra.mxu0 0
        %4125 = vmatprep.subr.bf16.mxu0 0
        %4126 = vmatpush1.bf16.xpose.msra.mxu0 0
        %4127 = vmatprep.subr.bf16.mxu0 0
        %4128 = vmatpush1.bf16.xpose.msra.mxu0 0
        %4129 = vmatprep.subr.bf16.mxu0 0
        %4130 = vmatpush1.bf16.xpose.msra.mxu0 0
        %4131 = vmatprep.subr.bf16.mxu0 0
        %4132 = vmatpush1.bf16.xpose.msra.mxu0 0
        %4133 = vmatprep.subr.bf16.mxu0 0
        %4134 = vmatpush1.bf16.xpose.msra.mxu0 0
        %4135 = vmatprep.subr.bf16.mxu0 0
        %4136 = vmatpush1.bf16.xpose.msra.mxu0 0
        %4137 = vmatprep.subr.bf16.mxu0 0
        %4138 = vmatpush1.bf16.xpose.msra.mxu0 0
        %4139 = vmatprep.subr.bf16.mxu0 0
        %4140 = vmatpush1.bf16.xpose.msra.mxu0 0
        %4141 = vmatprep.mubr.bf16.mxu0 0
        %4142 = vmatmul.mubr.bf16.gmra.mrb[0].mxu0 %v4086
        %v4143 = vpop.f32.mrb[0].mxu0
        %v4144 = vadd.f32 0.0, %v4143
        %v4145 = vpop.f32.mrb[0].mxu0
        %v4146 = vpop.f32.mrb[0].mxu0
        %v4147 = vadd.f32 0.0, %v4146
        %v4148 = vpop.f32.mrb[0].mxu0
        %4149 = vmatprep.mubr.bf16.mxu0 0
        %4150 = vmatmul.mubr.bf16.gmra.mrb[0].mxu0 %v4089
        %v4151 = vpop.f32.mrb[0].mxu0
        %v4152 = vadd.f32 0.0, %v4151
        %v4153 = vpop.f32.mrb[0].mxu0
        %v4154 = vpop.f32.mrb[0].mxu0
        %v4155 = vadd.f32 0.0, %v4154
        %v4156 = vpop.f32.mrb[0].mxu0
        %4157 = vmatprep.mubr.bf16.mxu0 0
        %4158 = vmatmul.mubr.bf16.gmra.mrb[0].mxu0 %v4092
        %v4159 = vpop.f32.mrb[0].mxu0
        %v4160 = vadd.f32 0.0, %v4159
        %v4161 = vpop.f32.mrb[0].mxu0
        %v4162 = vpop.f32.mrb[0].mxu0
        %v4163 = vadd.f32 0.0, %v4162
        %v4164 = vpop.f32.mrb[0].mxu0
        %4165 = vmatprep.mubr.bf16.mxu0 0
        %4166 = vmatmul.mubr.bf16.gmra.mrb[0].mxu0 %v4095
        %v4167 = vpop.f32.mrb[0].mxu0
        %v4168 = vadd.f32 0.0, %v4167
        %v4169 = vpop.f32.mrb[0].mxu0
        %v4170 = vpop.f32.mrb[0].mxu0
        %v4171 = vadd.f32 0.0, %v4170
        %v4172 = vpop.f32.mrb[0].mxu0
        %4173 = vdwg.mxu0
        %4174 = vrot.lane.b32.xlu0 %v3859, 104
        %v4175 = vpop.permute.xlu0 %4174
        %4176 = vrot.lane.b32.xlu0 %v3860, 104
        %v4177 = vpop.permute.xlu0 %4176
        %4178 = vrot.lane.b32.xlu0 %v3861, 104
        %v4179 = vpop.permute.xlu0 %4178
        %4180 = vrot.lane.b32.xlu0 %v3862, 104
        %v4181 = vpop.permute.xlu0 %4180
        %4182 = vrot.lane.b32.xlu0 %v3859, 72
        %v4183 = vpop.permute.xlu0 %4182
        %4184 = vrot.lane.b32.xlu0 %v3860, 72
        %v4185 = vpop.permute.xlu0 %4184
        %4186 = vrot.lane.b32.xlu0 %v3861, 72
        %v4187 = vpop.permute.xlu0 %4186
        %4188 = vrot.lane.b32.xlu0 %v3862, 72
        %v4189 = vpop.permute.xlu0 %4188
        %v4191 = vsel %vm1790, %v4175, 0
        %v4194 = vsel %vm1790, %v4177, 0
        %v4197 = vsel %vm1790, %v4179, 0
        %v4200 = vsel %vm1790, %v4181, 0
        %v4203 = vsel %vm1790, %v4183, 0
        %v4206 = vsel %vm1790, %v4185, 0
        %v4209 = vsel %vm1790, %v4187, 0
        %v4212 = vsel %vm1790, %v4189, 0
        %4214 = vmatprep.subr.bf16.mxu0 0
        %4215 = vmatpush1.bf16.xpose.msra.mxu0 %v4203
        %4216 = vmatprep.subr.bf16.mxu0 0
        %4217 = vmatpush1.bf16.xpose.msra.mxu0 %v4206
        %4218 = vmatprep.subr.bf16.mxu0 0
        %4219 = vmatpush1.bf16.xpose.msra.mxu0 %v4209
        %4220 = vmatprep.subr.bf16.mxu0 0
        %4221 = vmatpush1.bf16.xpose.msra.mxu0 %v4212
        %4222 = vmatprep.subr.bf16.mxu0 0
        %4223 = vmatpush1.bf16.xpose.msra.mxu0 0
        %4224 = vmatprep.subr.bf16.mxu0 0
        %4225 = vmatpush1.bf16.xpose.msra.mxu0 0
        %4226 = vmatprep.subr.bf16.mxu0 0
        %4227 = vmatpush1.bf16.xpose.msra.mxu0 0
        %4228 = vmatprep.subr.bf16.mxu0 0
        %4229 = vmatpush1.bf16.xpose.msra.mxu0 0
        %4230 = vmatprep.subr.bf16.mxu0 0
        %4231 = vmatpush1.bf16.xpose.msra.mxu0 0
        %4232 = vmatprep.subr.bf16.mxu0 0
        %4233 = vmatpush1.bf16.xpose.msra.mxu0 0
        %4234 = vmatprep.subr.bf16.mxu0 0
        %4235 = vmatpush1.bf16.xpose.msra.mxu0 0
        %4236 = vmatprep.subr.bf16.mxu0 0
        %4237 = vmatpush1.bf16.xpose.msra.mxu0 0
        %4238 = vmatprep.subr.bf16.mxu0 0
        %4239 = vmatpush1.bf16.xpose.msra.mxu0 0
        %4240 = vmatprep.subr.bf16.mxu0 0
        %4241 = vmatpush1.bf16.xpose.msra.mxu0 0
        %4242 = vmatprep.subr.bf16.mxu0 0
        %4243 = vmatpush1.bf16.xpose.msra.mxu0 0
        %4244 = vmatprep.subr.bf16.mxu0 0
        %4245 = vmatpush1.bf16.xpose.msra.mxu0 0
        %4246 = vmatprep.mubr.bf16.mxu0 0
        %4247 = vmatmul.mubr.bf16.gmra.mrb[0].mxu0 %v4191
        %v4248 = vpop.f32.mrb[0].mxu0
        %v4249 = vadd.f32 0.0, %v4248
        %v4250 = vpop.f32.mrb[0].mxu0
        %v4251 = vpop.f32.mrb[0].mxu0
        %v4252 = vadd.f32 0.0, %v4251
        %v4253 = vpop.f32.mrb[0].mxu0
        %4254 = vmatprep.mubr.bf16.mxu0 0
        %4255 = vmatmul.mubr.bf16.gmra.mrb[0].mxu0 %v4194
        %v4256 = vpop.f32.mrb[0].mxu0
        %v4257 = vadd.f32 0.0, %v4256
        %v4258 = vpop.f32.mrb[0].mxu0
        %v4259 = vpop.f32.mrb[0].mxu0
        %v4260 = vadd.f32 0.0, %v4259
        %v4261 = vpop.f32.mrb[0].mxu0
        %4262 = vmatprep.mubr.bf16.mxu0 0
        %4263 = vmatmul.mubr.bf16.gmra.mrb[0].mxu0 %v4197
        %v4264 = vpop.f32.mrb[0].mxu0
        %v4265 = vadd.f32 0.0, %v4264
        %v4266 = vpop.f32.mrb[0].mxu0
        %v4267 = vpop.f32.mrb[0].mxu0
        %v4268 = vadd.f32 0.0, %v4267
        %v4269 = vpop.f32.mrb[0].mxu0
        %4270 = vmatprep.mubr.bf16.mxu0 0
        %4271 = vmatmul.mubr.bf16.gmra.mrb[0].mxu0 %v4200
        %v4272 = vpop.f32.mrb[0].mxu0
        %v4273 = vadd.f32 0.0, %v4272
        %v4274 = vpop.f32.mrb[0].mxu0
        %v4275 = vpop.f32.mrb[0].mxu0
        %v4276 = vadd.f32 0.0, %v4275
        %v4277 = vpop.f32.mrb[0].mxu0
        %4278 = vdwg.mxu0
        %v4279 = vsel %vm1067, %v3934, -inf
        %4280 = vmax.xlane.f32.xlu0 %v4279
        %v4281 = vpop.xlane.xlu0 %4280
        %v4282 = vsel %vm1067, %v3937, -inf
        %4283 = vmax.xlane.f32.xlu0 %v4282
        %v4284 = vpop.xlane.xlu0 %4283
        %v4285 = vsel %vm1067, %v3942, -inf
        %4286 = vmax.xlane.f32.xlu0 %v4285
        %v4287 = vpop.xlane.xlu0 %4286
        %v4288 = vsel %vm1067, %v3945, -inf
        %4289 = vmax.xlane.f32.xlu0 %v4288
        %v4290 = vpop.xlane.xlu0 %4289
        %v4291 = vsel %vm1067, %v3950, -inf
        %4292 = vmax.xlane.f32.xlu0 %v4291
        %v4293 = vpop.xlane.xlu0 %4292
        %v4294 = vsel %vm1067, %v3953, -inf
        %4295 = vmax.xlane.f32.xlu0 %v4294
        %v4296 = vpop.xlane.xlu0 %4295
        %v4297 = vsel %vm1067, %v3958, -inf
        %4298 = vmax.xlane.f32.xlu0 %v4297
        %v4299 = vpop.xlane.xlu0 %4298
        %v4300 = vsel %vm1067, %v3961, -inf
        %4301 = vmax.xlane.f32.xlu0 %v4300
        %v4302 = vpop.xlane.xlu0 %4301
        %v4303 = vsel %vm1067, %v4039, -inf
        %4304 = vmax.xlane.f32.xlu0 %v4303
        %v4305 = vpop.xlane.xlu0 %4304
        %v4306 = vsel %vm1067, %v4042, -inf
        %4307 = vmax.xlane.f32.xlu0 %v4306
        %v4308 = vpop.xlane.xlu0 %4307
        %v4309 = vsel %vm1067, %v4047, -inf
        %4310 = vmax.xlane.f32.xlu0 %v4309
        %v4311 = vpop.xlane.xlu0 %4310
        %v4312 = vsel %vm1067, %v4050, -inf
        %4313 = vmax.xlane.f32.xlu0 %v4312
        %v4314 = vpop.xlane.xlu0 %4313
        %v4315 = vsel %vm1067, %v4055, -inf
        %4316 = vmax.xlane.f32.xlu0 %v4315
        %v4317 = vpop.xlane.xlu0 %4316
        %v4318 = vsel %vm1067, %v4058, -inf
        %4319 = vmax.xlane.f32.xlu0 %v4318
        %v4320 = vpop.xlane.xlu0 %4319
        %v4321 = vsel %vm1067, %v4063, -inf
        %4322 = vmax.xlane.f32.xlu0 %v4321
        %v4323 = vpop.xlane.xlu0 %4322
        %v4324 = vsel %vm1067, %v4066, -inf
        %4325 = vmax.xlane.f32.xlu0 %v4324
        %v4326 = vpop.xlane.xlu0 %4325
        %v4327 = vsel %vm1067, %v4144, -inf
        %4328 = vmax.xlane.f32.xlu0 %v4327
        %v4329 = vpop.xlane.xlu0 %4328
        %v4330 = vsel %vm1067, %v4147, -inf
        %4331 = vmax.xlane.f32.xlu0 %v4330
        %v4332 = vpop.xlane.xlu0 %4331
        %v4333 = vsel %vm1067, %v4152, -inf
        %4334 = vmax.xlane.f32.xlu0 %v4333
        %v4335 = vpop.xlane.xlu0 %4334
        %v4336 = vsel %vm1067, %v4155, -inf
        %4337 = vmax.xlane.f32.xlu0 %v4336
        %v4338 = vpop.xlane.xlu0 %4337
        %v4339 = vsel %vm1067, %v4160, -inf
        %4340 = vmax.xlane.f32.xlu0 %v4339
        %v4341 = vpop.xlane.xlu0 %4340
        %v4342 = vsel %vm1067, %v4163, -inf
        %4343 = vmax.xlane.f32.xlu0 %v4342
        %v4344 = vpop.xlane.xlu0 %4343
        %v4345 = vsel %vm1067, %v4168, -inf
        %4346 = vmax.xlane.f32.xlu0 %v4345
        %v4347 = vpop.xlane.xlu0 %4346
        %v4348 = vsel %vm1067, %v4171, -inf
        %4349 = vmax.xlane.f32.xlu0 %v4348
        %v4350 = vpop.xlane.xlu0 %4349
        %v4351 = vsel %vm1067, %v4249, -inf
        %4352 = vmax.xlane.f32.xlu0 %v4351
        %v4353 = vpop.xlane.xlu0 %4352
        %v4354 = vsel %vm1067, %v4252, -inf
        %4355 = vmax.xlane.f32.xlu0 %v4354
        %v4356 = vpop.xlane.xlu0 %4355
        %v4357 = vsel %vm1067, %v4257, -inf
        %4358 = vmax.xlane.f32.xlu0 %v4357
        %v4359 = vpop.xlane.xlu0 %4358
        %v4360 = vsel %vm1067, %v4260, -inf
        %4361 = vmax.xlane.f32.xlu0 %v4360
        %v4362 = vpop.xlane.xlu0 %4361
        %v4363 = vsel %vm1067, %v4265, -inf
        %4364 = vmax.xlane.f32.xlu0 %v4363
        %v4365 = vpop.xlane.xlu0 %4364
        %v4366 = vsel %vm1067, %v4268, -inf
        %4367 = vmax.xlane.f32.xlu0 %v4366
        %v4368 = vpop.xlane.xlu0 %4367
        %v4369 = vsel %vm1067, %v4273, -inf
        %4370 = vmax.xlane.f32.xlu0 %v4369
        %v4371 = vpop.xlane.xlu0 %4370
        %v4372 = vsel %vm1067, %v4276, -inf
        %4373 = vmax.xlane.f32.xlu0 %v4372
        %v4374 = vpop.xlane.xlu0 %4373
        %v4375 = vsub.f32 %v3934, %v4281
        %v4376 = vsub.f32 %v3937, %v4284
        %v4377 = vsub.f32 %v3942, %v4287
        %v4378 = vsub.f32 %v3945, %v4290
        %v4379 = vsub.f32 %v3950, %v4293
        %v4380 = vsub.f32 %v3953, %v4296
        %v4381 = vsub.f32 %v3958, %v4299
        %v4382 = vsub.f32 %v3961, %v4302
        %v4383 = vsub.f32 %v4039, %v4305
        %v4384 = vsub.f32 %v4042, %v4308
        %v4385 = vsub.f32 %v4047, %v4311
        %v4386 = vsub.f32 %v4050, %v4314
        %v4387 = vsub.f32 %v4055, %v4317
        %v4388 = vsub.f32 %v4058, %v4320
        %v4389 = vsub.f32 %v4063, %v4323
        %v4390 = vsub.f32 %v4066, %v4326
        %v4391 = vsub.f32 %v4144, %v4329
        %v4392 = vsub.f32 %v4147, %v4332
        %v4393 = vsub.f32 %v4152, %v4335
        %v4394 = vsub.f32 %v4155, %v4338
        %v4395 = vsub.f32 %v4160, %v4341
        %v4396 = vsub.f32 %v4163, %v4344
        %v4397 = vsub.f32 %v4168, %v4347
        %v4398 = vsub.f32 %v4171, %v4350
        %v4399 = vsub.f32 %v4249, %v4353
        %v4400 = vsub.f32 %v4252, %v4356
        %v4401 = vsub.f32 %v4257, %v4359
        %v4402 = vsub.f32 %v4260, %v4362
        %v4403 = vsub.f32 %v4265, %v4365
        %v4404 = vsub.f32 %v4268, %v4368
        %v4405 = vsub.f32 %v4273, %v4371
        %v4406 = vsub.f32 %v4276, %v4374
        %v4407 = vmul.f32 %v4375, 1.442695
        %v4408 = vpow.pop %v4407
        %v4409 = vmul.f32 %v4376, 1.442695
        %v4410 = vpow.pop %v4409
        %v4411 = vmul.f32 %v4377, 1.442695
        %v4412 = vpow.pop %v4411
        %v4413 = vmul.f32 %v4378, 1.442695
        %v4414 = vpow.pop %v4413
        %v4415 = vmul.f32 %v4379, 1.442695
        %v4416 = vpow.pop %v4415
        %v4417 = vmul.f32 %v4380, 1.442695
        %v4418 = vpow.pop %v4417
        %v4419 = vmul.f32 %v4381, 1.442695
        %v4420 = vpow.pop %v4419
        %v4421 = vmul.f32 %v4382, 1.442695
        %v4422 = vpow.pop %v4421
        %v4423 = vmul.f32 %v4383, 1.442695
        %v4424 = vpow.pop %v4423
        %v4425 = vmul.f32 %v4384, 1.442695
        %v4426 = vpow.pop %v4425
        %v4427 = vmul.f32 %v4385, 1.442695
        %v4428 = vpow.pop %v4427
        %v4429 = vmul.f32 %v4386, 1.442695
        %v4430 = vpow.pop %v4429
        %v4431 = vmul.f32 %v4387, 1.442695
        %v4432 = vpow.pop %v4431
        %v4433 = vmul.f32 %v4388, 1.442695
        %v4434 = vpow.pop %v4433
        %v4435 = vmul.f32 %v4389, 1.442695
        %v4436 = vpow.pop %v4435
        %v4437 = vmul.f32 %v4390, 1.442695
        %v4438 = vpow.pop %v4437
        %v4439 = vmul.f32 %v4391, 1.442695
        %v4440 = vpow.pop %v4439
        %v4441 = vmul.f32 %v4392, 1.442695
        %v4442 = vpow.pop %v4441
        %v4443 = vmul.f32 %v4393, 1.442695
        %v4444 = vpow.pop %v4443
        %v4445 = vmul.f32 %v4394, 1.442695
        %v4446 = vpow.pop %v4445
        %v4447 = vmul.f32 %v4395, 1.442695
        %v4448 = vpow.pop %v4447
        %v4449 = vmul.f32 %v4396, 1.442695
        %v4450 = vpow.pop %v4449
        %v4451 = vmul.f32 %v4397, 1.442695
        %v4452 = vpow.pop %v4451
        %v4453 = vmul.f32 %v4398, 1.442695
        %v4454 = vpow.pop %v4453
        %v4455 = vmul.f32 %v4399, 1.442695
        %v4456 = vpow.pop %v4455
        %v4457 = vmul.f32 %v4400, 1.442695
        %v4458 = vpow.pop %v4457
        %v4459 = vmul.f32 %v4401, 1.442695
        %v4460 = vpow.pop %v4459
        %v4461 = vmul.f32 %v4402, 1.442695
        %v4462 = vpow.pop %v4461
        %v4463 = vmul.f32 %v4403, 1.442695
        %v4464 = vpow.pop %v4463
        %v4465 = vmul.f32 %v4404, 1.442695
        %v4466 = vpow.pop %v4465
        %v4467 = vmul.f32 %v4405, 1.442695
        %v4468 = vpow.pop %v4467
        %v4469 = vmul.f32 %v4406, 1.442695
        %v4470 = vpow.pop %v4469
        %v4471 = vsel %vm1067, %v4408, 0.0
        %4472 = vadd.xlane.f32.xlu0 %v4471
        %v4473 = vpop.xlane.xlu0 %4472
        %v4474 = vsel %vm1067, %v4410, 0.0
        %4475 = vadd.xlane.f32.xlu0 %v4474
        %v4476 = vpop.xlane.xlu0 %4475
        %v4477 = vsel %vm1067, %v4412, 0.0
        %4478 = vadd.xlane.f32.xlu0 %v4477
        %v4479 = vpop.xlane.xlu0 %4478
        %v4480 = vsel %vm1067, %v4414, 0.0
        %4481 = vadd.xlane.f32.xlu0 %v4480
        %v4482 = vpop.xlane.xlu0 %4481
        %v4483 = vsel %vm1067, %v4416, 0.0
        %4484 = vadd.xlane.f32.xlu0 %v4483
        %v4485 = vpop.xlane.xlu0 %4484
        %v4486 = vsel %vm1067, %v4418, 0.0
        %4487 = vadd.xlane.f32.xlu0 %v4486
        %v4488 = vpop.xlane.xlu0 %4487
        %v4489 = vsel %vm1067, %v4420, 0.0
        %4490 = vadd.xlane.f32.xlu0 %v4489
        %v4491 = vpop.xlane.xlu0 %4490
        %v4492 = vsel %vm1067, %v4422, 0.0
        %4493 = vadd.xlane.f32.xlu0 %v4492
        %v4494 = vpop.xlane.xlu0 %4493
        %v4495 = vsel %vm1067, %v4424, 0.0
        %4496 = vadd.xlane.f32.xlu0 %v4495
        %v4497 = vpop.xlane.xlu0 %4496
        %v4498 = vsel %vm1067, %v4426, 0.0
        %4499 = vadd.xlane.f32.xlu0 %v4498
        %v4500 = vpop.xlane.xlu0 %4499
        %v4501 = vsel %vm1067, %v4428, 0.0
        %4502 = vadd.xlane.f32.xlu0 %v4501
        %v4503 = vpop.xlane.xlu0 %4502
        %v4504 = vsel %vm1067, %v4430, 0.0
        %4505 = vadd.xlane.f32.xlu0 %v4504
        %v4506 = vpop.xlane.xlu0 %4505
        %v4507 = vsel %vm1067, %v4432, 0.0
        %4508 = vadd.xlane.f32.xlu0 %v4507
        %v4509 = vpop.xlane.xlu0 %4508
        %v4510 = vsel %vm1067, %v4434, 0.0
        %4511 = vadd.xlane.f32.xlu0 %v4510
        %v4512 = vpop.xlane.xlu0 %4511
        %v4513 = vsel %vm1067, %v4436, 0.0
        %4514 = vadd.xlane.f32.xlu0 %v4513
        %v4515 = vpop.xlane.xlu0 %4514
        %v4516 = vsel %vm1067, %v4438, 0.0
        %4517 = vadd.xlane.f32.xlu0 %v4516
        %v4518 = vpop.xlane.xlu0 %4517
        %v4519 = vsel %vm1067, %v4440, 0.0
        %4520 = vadd.xlane.f32.xlu0 %v4519
        %v4521 = vpop.xlane.xlu0 %4520
        %v4522 = vsel %vm1067, %v4442, 0.0
        %4523 = vadd.xlane.f32.xlu0 %v4522
        %v4524 = vpop.xlane.xlu0 %4523
        %v4525 = vsel %vm1067, %v4444, 0.0
        %4526 = vadd.xlane.f32.xlu0 %v4525
        %v4527 = vpop.xlane.xlu0 %4526
        %v4528 = vsel %vm1067, %v4446, 0.0
        %4529 = vadd.xlane.f32.xlu0 %v4528
        %v4530 = vpop.xlane.xlu0 %4529
        %v4531 = vsel %vm1067, %v4448, 0.0
        %4532 = vadd.xlane.f32.xlu0 %v4531
        %v4533 = vpop.xlane.xlu0 %4532
        %v4534 = vsel %vm1067, %v4450, 0.0
        %4535 = vadd.xlane.f32.xlu0 %v4534
        %v4536 = vpop.xlane.xlu0 %4535
        %v4537 = vsel %vm1067, %v4452, 0.0
        %4538 = vadd.xlane.f32.xlu0 %v4537
        %v4539 = vpop.xlane.xlu0 %4538
        %v4540 = vsel %vm1067, %v4454, 0.0
        %4541 = vadd.xlane.f32.xlu0 %v4540
        %v4542 = vpop.xlane.xlu0 %4541
        %v4543 = vsel %vm1067, %v4456, 0.0
        %4544 = vadd.xlane.f32.xlu0 %v4543
        %v4545 = vpop.xlane.xlu0 %4544
        %v4546 = vsel %vm1067, %v4458, 0.0
        %4547 = vadd.xlane.f32.xlu0 %v4546
        %v4548 = vpop.xlane.xlu0 %4547
        %v4549 = vsel %vm1067, %v4460, 0.0
        %4550 = vadd.xlane.f32.xlu0 %v4549
        %v4551 = vpop.xlane.xlu0 %4550
        %v4552 = vsel %vm1067, %v4462, 0.0
        %4553 = vadd.xlane.f32.xlu0 %v4552
        %v4554 = vpop.xlane.xlu0 %4553
        %v4555 = vsel %vm1067, %v4464, 0.0
        %4556 = vadd.xlane.f32.xlu0 %v4555
        %v4557 = vpop.xlane.xlu0 %4556
        %v4558 = vsel %vm1067, %v4466, 0.0
        %4559 = vadd.xlane.f32.xlu0 %v4558
        %v4560 = vpop.xlane.xlu0 %4559
        %v4561 = vsel %vm1067, %v4468, 0.0
        %4562 = vadd.xlane.f32.xlu0 %v4561
        %v4563 = vpop.xlane.xlu0 %4562
        %v4564 = vsel %vm1067, %v4470, 0.0
        %4565 = vadd.xlane.f32.xlu0 %v4564
        %v4566 = vpop.xlane.xlu0 %4565
        %v4567 = vrcp.pop %v4473
        %v4568 = vrcp.pop %v4476
        %v4569 = vrcp.pop %v4479
        %v4570 = vrcp.pop %v4482
        %v4571 = vrcp.pop %v4485
        %v4572 = vrcp.pop %v4488
        %v4573 = vrcp.pop %v4491
        %v4574 = vrcp.pop %v4494
        %v4575 = vrcp.pop %v4497
        %v4576 = vrcp.pop %v4500
        %v4577 = vrcp.pop %v4503
        %v4578 = vrcp.pop %v4506
        %v4579 = vrcp.pop %v4509
        %v4580 = vrcp.pop %v4512
        %v4581 = vrcp.pop %v4515
        %v4582 = vrcp.pop %v4518
        %v4583 = vrcp.pop %v4521
        %v4584 = vrcp.pop %v4524
        %v4585 = vrcp.pop %v4527
        %v4586 = vrcp.pop %v4530
        %v4587 = vrcp.pop %v4533
        %v4588 = vrcp.pop %v4536
        %v4589 = vrcp.pop %v4539
        %v4590 = vrcp.pop %v4542
        %v4591 = vrcp.pop %v4545
        %v4592 = vrcp.pop %v4548
        %v4593 = vrcp.pop %v4551
        %v4594 = vrcp.pop %v4554
        %v4595 = vrcp.pop %v4557
        %v4596 = vrcp.pop %v4560
        %v4597 = vrcp.pop %v4563
        %v4598 = vrcp.pop %v4566
        %v4599 = vmul.f32 %v4408, %v4567
        %v4600 = vmul.f32 %v4410, %v4568
        %v4601 = vmul.f32 %v4412, %v4569
        %v4602 = vmul.f32 %v4414, %v4570
        %v4603 = vmul.f32 %v4416, %v4571
        %v4604 = vmul.f32 %v4418, %v4572
        %v4605 = vmul.f32 %v4420, %v4573
        %v4606 = vmul.f32 %v4422, %v4574
        %v4607 = vmul.f32 %v4424, %v4575
        %v4608 = vmul.f32 %v4426, %v4576
        %v4609 = vmul.f32 %v4428, %v4577
        %v4610 = vmul.f32 %v4430, %v4578
        %v4611 = vmul.f32 %v4432, %v4579
        %v4612 = vmul.f32 %v4434, %v4580
        %v4613 = vmul.f32 %v4436, %v4581
        %v4614 = vmul.f32 %v4438, %v4582
        %v4615 = vmul.f32 %v4440, %v4583
        %v4616 = vmul.f32 %v4442, %v4584
        %v4617 = vmul.f32 %v4444, %v4585
        %v4618 = vmul.f32 %v4446, %v4586
        %v4619 = vmul.f32 %v4448, %v4587
        %v4620 = vmul.f32 %v4450, %v4588
        %v4621 = vmul.f32 %v4452, %v4589
        %v4622 = vmul.f32 %v4454, %v4590
        %v4623 = vmul.f32 %v4456, %v4591
        %v4624 = vmul.f32 %v4458, %v4592
        %v4625 = vmul.f32 %v4460, %v4593
        %v4626 = vmul.f32 %v4462, %v4594
        %v4627 = vmul.f32 %v4464, %v4595
        %v4628 = vmul.f32 %v4466, %v4596
        %v4629 = vmul.f32 %v4468, %v4597
        %v4630 = vmul.f32 %v4470, %v4598
        %v4631 = vpack.c.bf16 %v4600, %v4599
        %v4632 = vpack.c.bf16 %v4602, %v4601
        %v4633 = vpack.c.bf16 %v4604, %v4603
        %v4634 = vpack.c.bf16 %v4606, %v4605
        %v4635 = vpack.c.bf16 %v4608, %v4607
        %v4636 = vpack.c.bf16 %v4610, %v4609
        %v4637 = vpack.c.bf16 %v4612, %v4611
        %v4638 = vpack.c.bf16 %v4614, %v4613
        %v4639 = vpack.c.bf16 %v4616, %v4615
        %v4640 = vpack.c.bf16 %v4618, %v4617
        %v4641 = vpack.c.bf16 %v4620, %v4619
        %v4642 = vpack.c.bf16 %v4622, %v4621
        %v4643 = vpack.c.bf16 %v4624, %v4623
        %v4644 = vpack.c.bf16 %v4626, %v4625
        %v4645 = vpack.c.bf16 %v4628, %v4627
        %v4646 = vpack.c.bf16 %v4630, %v4629
        %4647 = vrot.lane.b32.xlu0 %v3859, 64
        %v4648 = vpop.permute.xlu0 %4647
        %4649 = vrot.lane.b32.xlu0 %v3860, 64
        %v4650 = vpop.permute.xlu0 %4649
        %4651 = vrot.lane.b32.xlu0 %v3861, 64
        %v4652 = vpop.permute.xlu0 %4651
        %4653 = vrot.lane.b32.xlu0 %v3862, 64
        %v4654 = vpop.permute.xlu0 %4653
        %v4660 = vsel %vm1067, %v4631, 0
        %v4663 = vsel %vm1067, %v4632, 0
        %v4666 = vsel %vm1067, %v4633, 0
        %v4669 = vsel %vm1067, %v4634, 0
        %4671 = vmatprep.subr.bf16.mxu0 0
        %4672 = vmatpush1.bf16.msra.mxu0 %v4648
        %4673 = vmatprep.subr.bf16.mxu0 0
        %4674 = vmatpush1.bf16.msra.mxu0 %v4650
        %4675 = vmatprep.subr.bf16.mxu0 0
        %4676 = vmatpush1.bf16.msra.mxu0 %v4652
        %4677 = vmatprep.subr.bf16.mxu0 0
        %4678 = vmatpush1.bf16.msra.mxu0 %v4654
        %4679 = vmatprep.subr.bf16.mxu0 0
        %4680 = vmatpush1.bf16.msra.mxu0 0
        %4681 = vmatprep.subr.bf16.mxu0 0
        %4682 = vmatpush1.bf16.msra.mxu0 0
        %4683 = vmatprep.subr.bf16.mxu0 0
        %4684 = vmatpush1.bf16.msra.mxu0 0
        %4685 = vmatprep.subr.bf16.mxu0 0
        %4686 = vmatpush1.bf16.msra.mxu0 0
        %4687 = vmatprep.subr.bf16.mxu0 0
        %4688 = vmatpush1.bf16.msra.mxu0 0
        %4689 = vmatprep.subr.bf16.mxu0 0
        %4690 = vmatpush1.bf16.msra.mxu0 0
        %4691 = vmatprep.subr.bf16.mxu0 0
        %4692 = vmatpush1.bf16.msra.mxu0 0
        %4693 = vmatprep.subr.bf16.mxu0 0
        %4694 = vmatpush1.bf16.msra.mxu0 0
        %4695 = vmatprep.subr.bf16.mxu0 0
        %4696 = vmatpush1.bf16.msra.mxu0 0
        %4697 = vmatprep.subr.bf16.mxu0 0
        %4698 = vmatpush1.bf16.msra.mxu0 0
        %4699 = vmatprep.subr.bf16.mxu0 0
        %4700 = vmatpush1.bf16.msra.mxu0 0
        %4701 = vmatprep.subr.bf16.mxu0 0
        %4702 = vmatpush1.bf16.msra.mxu0 0
        %4703 = vmatprep.mubr.bf16.mxu0 0
        %4704 = vmatmul.mubr.bf16.gmra.mrb[0].mxu0 %v4660
        %v4705 = vpop.f32.mrb[0].mxu0
        %v4706 = vadd.f32 0.0, %v4705
        %v4707 = vpop.f32.mrb[0].mxu0
        %v4708 = vpop.f32.mrb[0].mxu0
        %v4709 = vadd.f32 0.0, %v4708
        %v4710 = vpop.f32.mrb[0].mxu0
        %4711 = vmatprep.mubr.bf16.mxu0 0
        %4712 = vmatmul.mubr.bf16.gmra.mrb[0].mxu0 %v4663
        %v4713 = vpop.f32.mrb[0].mxu0
        %v4714 = vadd.f32 0.0, %v4713
        %v4715 = vpop.f32.mrb[0].mxu0
        %v4716 = vpop.f32.mrb[0].mxu0
        %v4717 = vadd.f32 0.0, %v4716
        %v4718 = vpop.f32.mrb[0].mxu0
        %4719 = vmatprep.mubr.bf16.mxu0 0
        %4720 = vmatmul.mubr.bf16.gmra.mrb[0].mxu0 %v4666
        %v4721 = vpop.f32.mrb[0].mxu0
        %v4722 = vadd.f32 0.0, %v4721
        %v4723 = vpop.f32.mrb[0].mxu0
        %v4724 = vpop.f32.mrb[0].mxu0
        %v4725 = vadd.f32 0.0, %v4724
        %v4726 = vpop.f32.mrb[0].mxu0
        %4727 = vmatprep.mubr.bf16.mxu0 0
        %4728 = vmatmul.mubr.bf16.gmra.mrb[0].mxu0 %v4669
        %v4729 = vpop.f32.mrb[0].mxu0
        %v4730 = vadd.f32 0.0, %v4729
        %v4731 = vpop.f32.mrb[0].mxu0
        %v4732 = vpop.f32.mrb[0].mxu0
        %v4733 = vadd.f32 0.0, %v4732
        %v4734 = vpop.f32.mrb[0].mxu0
        %4735 = vdwg.mxu0
        %4736 = vrot.lane.b32.xlu0 %v3859, 56
        %v4737 = vpop.permute.xlu0 %4736
        %4738 = vrot.lane.b32.xlu0 %v3860, 56
        %v4739 = vpop.permute.xlu0 %4738
        %4740 = vrot.lane.b32.xlu0 %v3861, 56
        %v4741 = vpop.permute.xlu0 %4740
        %4742 = vrot.lane.b32.xlu0 %v3862, 56
        %v4743 = vpop.permute.xlu0 %4742
        %v4749 = vsel %vm1067, %v4635, 0
        %v4752 = vsel %vm1067, %v4636, 0
        %v4755 = vsel %vm1067, %v4637, 0
        %v4758 = vsel %vm1067, %v4638, 0
        %4760 = vmatprep.subr.bf16.mxu0 0
        %4761 = vmatpush1.bf16.msra.mxu0 %v4737
        %4762 = vmatprep.subr.bf16.mxu0 0
        %4763 = vmatpush1.bf16.msra.mxu0 %v4739
        %4764 = vmatprep.subr.bf16.mxu0 0
        %4765 = vmatpush1.bf16.msra.mxu0 %v4741
        %4766 = vmatprep.subr.bf16.mxu0 0
        %4767 = vmatpush1.bf16.msra.mxu0 %v4743
        %4768 = vmatprep.subr.bf16.mxu0 0
        %4769 = vmatpush1.bf16.msra.mxu0 0
        %4770 = vmatprep.subr.bf16.mxu0 0
        %4771 = vmatpush1.bf16.msra.mxu0 0
        %4772 = vmatprep.subr.bf16.mxu0 0
        %4773 = vmatpush1.bf16.msra.mxu0 0
        %4774 = vmatprep.subr.bf16.mxu0 0
        %4775 = vmatpush1.bf16.msra.mxu0 0
        %4776 = vmatprep.subr.bf16.mxu0 0
        %4777 = vmatpush1.bf16.msra.mxu0 0
        %4778 = vmatprep.subr.bf16.mxu0 0
        %4779 = vmatpush1.bf16.msra.mxu0 0
        %4780 = vmatprep.subr.bf16.mxu0 0
        %4781 = vmatpush1.bf16.msra.mxu0 0
        %4782 = vmatprep.subr.bf16.mxu0 0
        %4783 = vmatpush1.bf16.msra.mxu0 0
        %4784 = vmatprep.subr.bf16.mxu0 0
        %4785 = vmatpush1.bf16.msra.mxu0 0
        %4786 = vmatprep.subr.bf16.mxu0 0
        %4787 = vmatpush1.bf16.msra.mxu0 0
        %4788 = vmatprep.subr.bf16.mxu0 0
        %4789 = vmatpush1.bf16.msra.mxu0 0
        %4790 = vmatprep.subr.bf16.mxu0 0
        %4791 = vmatpush1.bf16.msra.mxu0 0
        %4792 = vmatprep.mubr.bf16.mxu0 0
        %4793 = vmatmul.mubr.bf16.gmra.mrb[0].mxu0 %v4749
        %v4794 = vpop.f32.mrb[0].mxu0
        %v4795 = vadd.f32 0.0, %v4794
        %v4796 = vpop.f32.mrb[0].mxu0
        %v4797 = vpop.f32.mrb[0].mxu0
        %v4798 = vadd.f32 0.0, %v4797
        %v4799 = vpop.f32.mrb[0].mxu0
        %4800 = vmatprep.mubr.bf16.mxu0 0
        %4801 = vmatmul.mubr.bf16.gmra.mrb[0].mxu0 %v4752
        %v4802 = vpop.f32.mrb[0].mxu0
        %v4803 = vadd.f32 0.0, %v4802
        %v4804 = vpop.f32.mrb[0].mxu0
        %v4805 = vpop.f32.mrb[0].mxu0
        %v4806 = vadd.f32 0.0, %v4805
        %v4807 = vpop.f32.mrb[0].mxu0
        %4808 = vmatprep.mubr.bf16.mxu0 0
        %4809 = vmatmul.mubr.bf16.gmra.mrb[0].mxu0 %v4755
        %v4810 = vpop.f32.mrb[0].mxu0
        %v4811 = vadd.f32 0.0, %v4810
        %v4812 = vpop.f32.mrb[0].mxu0
        %v4813 = vpop.f32.mrb[0].mxu0
        %v4814 = vadd.f32 0.0, %v4813
        %v4815 = vpop.f32.mrb[0].mxu0
        %4816 = vmatprep.mubr.bf16.mxu0 0
        %4817 = vmatmul.mubr.bf16.gmra.mrb[0].mxu0 %v4758
        %v4818 = vpop.f32.mrb[0].mxu0
        %v4819 = vadd.f32 0.0, %v4818
        %v4820 = vpop.f32.mrb[0].mxu0
        %v4821 = vpop.f32.mrb[0].mxu0
        %v4822 = vadd.f32 0.0, %v4821
        %v4823 = vpop.f32.mrb[0].mxu0
        %4824 = vdwg.mxu0
        %4825 = vrot.lane.b32.xlu0 %v3859, 48
        %v4826 = vpop.permute.xlu0 %4825
        %4827 = vrot.lane.b32.xlu0 %v3860, 48
        %v4828 = vpop.permute.xlu0 %4827
        %4829 = vrot.lane.b32.xlu0 %v3861, 48
        %v4830 = vpop.permute.xlu0 %4829
        %4831 = vrot.lane.b32.xlu0 %v3862, 48
        %v4832 = vpop.permute.xlu0 %4831
        %v4838 = vsel %vm1067, %v4639, 0
        %v4841 = vsel %vm1067, %v4640, 0
        %v4844 = vsel %vm1067, %v4641, 0
        %v4847 = vsel %vm1067, %v4642, 0
        %4849 = vmatprep.subr.bf16.mxu0 0
        %4850 = vmatpush1.bf16.msra.mxu0 %v4826
        %4851 = vmatprep.subr.bf16.mxu0 0
        %4852 = vmatpush1.bf16.msra.mxu0 %v4828
        %4853 = vmatprep.subr.bf16.mxu0 0
        %4854 = vmatpush1.bf16.msra.mxu0 %v4830
        %4855 = vmatprep.subr.bf16.mxu0 0
        %4856 = vmatpush1.bf16.msra.mxu0 %v4832
        %4857 = vmatprep.subr.bf16.mxu0 0
        %4858 = vmatpush1.bf16.msra.mxu0 0
        %4859 = vmatprep.subr.bf16.mxu0 0
        %4860 = vmatpush1.bf16.msra.mxu0 0
        %4861 = vmatprep.subr.bf16.mxu0 0
        %4862 = vmatpush1.bf16.msra.mxu0 0
        %4863 = vmatprep.subr.bf16.mxu0 0
        %4864 = vmatpush1.bf16.msra.mxu0 0
        %4865 = vmatprep.subr.bf16.mxu0 0
        %4866 = vmatpush1.bf16.msra.mxu0 0
        %4867 = vmatprep.subr.bf16.mxu0 0
        %4868 = vmatpush1.bf16.msra.mxu0 0
        %4869 = vmatprep.subr.bf16.mxu0 0
        %4870 = vmatpush1.bf16.msra.mxu0 0
        %4871 = vmatprep.subr.bf16.mxu0 0
        %4872 = vmatpush1.bf16.msra.mxu0 0
        %4873 = vmatprep.subr.bf16.mxu0 0
        %4874 = vmatpush1.bf16.msra.mxu0 0
        %4875 = vmatprep.subr.bf16.mxu0 0
        %4876 = vmatpush1.bf16.msra.mxu0 0
        %4877 = vmatprep.subr.bf16.mxu0 0
        %4878 = vmatpush1.bf16.msra.mxu0 0
        %4879 = vmatprep.subr.bf16.mxu0 0
        %4880 = vmatpush1.bf16.msra.mxu0 0
        %4881 = vmatprep.mubr.bf16.mxu0 0
        %4882 = vmatmul.mubr.bf16.gmra.mrb[0].mxu0 %v4838
        %v4883 = vpop.f32.mrb[0].mxu0
        %v4884 = vadd.f32 0.0, %v4883
        %v4885 = vpop.f32.mrb[0].mxu0
        %v4886 = vpop.f32.mrb[0].mxu0
        %v4887 = vadd.f32 0.0, %v4886
        %v4888 = vpop.f32.mrb[0].mxu0
        %4889 = vmatprep.mubr.bf16.mxu0 0
        %4890 = vmatmul.mubr.bf16.gmra.mrb[0].mxu0 %v4841
        %v4891 = vpop.f32.mrb[0].mxu0
        %v4892 = vadd.f32 0.0, %v4891
        %v4893 = vpop.f32.mrb[0].mxu0
        %v4894 = vpop.f32.mrb[0].mxu0
        %v4895 = vadd.f32 0.0, %v4894
        %v4896 = vpop.f32.mrb[0].mxu0
        %4897 = vmatprep.mubr.bf16.mxu0 0
        %4898 = vmatmul.mubr.bf16.gmra.mrb[0].mxu0 %v4844
        %v4899 = vpop.f32.mrb[0].mxu0
        %v4900 = vadd.f32 0.0, %v4899
        %v4901 = vpop.f32.mrb[0].mxu0
        %v4902 = vpop.f32.mrb[0].mxu0
        %v4903 = vadd.f32 0.0, %v4902
        %v4904 = vpop.f32.mrb[0].mxu0
        %4905 = vmatprep.mubr.bf16.mxu0 0
        %4906 = vmatmul.mubr.bf16.gmra.mrb[0].mxu0 %v4847
        %v4907 = vpop.f32.mrb[0].mxu0
        %v4908 = vadd.f32 0.0, %v4907
        %v4909 = vpop.f32.mrb[0].mxu0
        %v4910 = vpop.f32.mrb[0].mxu0
        %v4911 = vadd.f32 0.0, %v4910
        %v4912 = vpop.f32.mrb[0].mxu0
        %4913 = vdwg.mxu0
        %4914 = vrot.lane.b32.xlu0 %v3859, 40
        %v4915 = vpop.permute.xlu0 %4914
        %4916 = vrot.lane.b32.xlu0 %v3860, 40
        %v4917 = vpop.permute.xlu0 %4916
        %4918 = vrot.lane.b32.xlu0 %v3861, 40
        %v4919 = vpop.permute.xlu0 %4918
        %4920 = vrot.lane.b32.xlu0 %v3862, 40
        %v4921 = vpop.permute.xlu0 %4920
        %v4927 = vsel %vm1067, %v4643, 0
        %v4930 = vsel %vm1067, %v4644, 0
        %v4933 = vsel %vm1067, %v4645, 0
        %v4936 = vsel %vm1067, %v4646, 0
        %4938 = vmatprep.subr.bf16.mxu0 0
        %4939 = vmatpush1.bf16.msra.mxu0 %v4915
        %4940 = vmatprep.subr.bf16.mxu0 0
        %4941 = vmatpush1.bf16.msra.mxu0 %v4917
        %4942 = vmatprep.subr.bf16.mxu0 0
        %4943 = vmatpush1.bf16.msra.mxu0 %v4919
        %4944 = vmatprep.subr.bf16.mxu0 0
        %4945 = vmatpush1.bf16.msra.mxu0 %v4921
        %4946 = vmatprep.subr.bf16.mxu0 0
        %4947 = vmatpush1.bf16.msra.mxu0 0
        %4948 = vmatprep.subr.bf16.mxu0 0
        %4949 = vmatpush1.bf16.msra.mxu0 0
        %4950 = vmatprep.subr.bf16.mxu0 0
        %4951 = vmatpush1.bf16.msra.mxu0 0
        %4952 = vmatprep.subr.bf16.mxu0 0
        %4953 = vmatpush1.bf16.msra.mxu0 0
        %4954 = vmatprep.subr.bf16.mxu0 0
        %4955 = vmatpush1.bf16.msra.mxu0 0
        %4956 = vmatprep.subr.bf16.mxu0 0
        %4957 = vmatpush1.bf16.msra.mxu0 0
        %4958 = vmatprep.subr.bf16.mxu0 0
        %4959 = vmatpush1.bf16.msra.mxu0 0
        %4960 = vmatprep.subr.bf16.mxu0 0
        %4961 = vmatpush1.bf16.msra.mxu0 0
        %4962 = vmatprep.subr.bf16.mxu0 0
        %4963 = vmatpush1.bf16.msra.mxu0 0
        %4964 = vmatprep.subr.bf16.mxu0 0
        %4965 = vmatpush1.bf16.msra.mxu0 0
        %4966 = vmatprep.subr.bf16.mxu0 0
        %4967 = vmatpush1.bf16.msra.mxu0 0
        %4968 = vmatprep.subr.bf16.mxu0 0
        %4969 = vmatpush1.bf16.msra.mxu0 0
        %4970 = vmatprep.mubr.bf16.mxu0 0
        %4971 = vmatmul.mubr.bf16.gmra.mrb[0].mxu0 %v4927
        %v4972 = vpop.f32.mrb[0].mxu0
        %v4973 = vadd.f32 0.0, %v4972
        %v4974 = vpop.f32.mrb[0].mxu0
        %v4975 = vpop.f32.mrb[0].mxu0
        %v4976 = vadd.f32 0.0, %v4975
        %v4977 = vpop.f32.mrb[0].mxu0
        %4978 = vmatprep.mubr.bf16.mxu0 0
        %4979 = vmatmul.mubr.bf16.gmra.mrb[0].mxu0 %v4930
        %v4980 = vpop.f32.mrb[0].mxu0
        %v4981 = vadd.f32 0.0, %v4980
        %v4982 = vpop.f32.mrb[0].mxu0
        %v4983 = vpop.f32.mrb[0].mxu0
        %v4984 = vadd.f32 0.0, %v4983
        %v4985 = vpop.f32.mrb[0].mxu0
        %4986 = vmatprep.mubr.bf16.mxu0 0
        %4987 = vmatmul.mubr.bf16.gmra.mrb[0].mxu0 %v4933
        %v4988 = vpop.f32.mrb[0].mxu0
        %v4989 = vadd.f32 0.0, %v4988
        %v4990 = vpop.f32.mrb[0].mxu0
        %v4991 = vpop.f32.mrb[0].mxu0
        %v4992 = vadd.f32 0.0, %v4991
        %v4993 = vpop.f32.mrb[0].mxu0
        %4994 = vmatprep.mubr.bf16.mxu0 0
        %4995 = vmatmul.mubr.bf16.gmra.mrb[0].mxu0 %v4936
        %v4996 = vpop.f32.mrb[0].mxu0
        %v4997 = vadd.f32 0.0, %v4996
        %v4998 = vpop.f32.mrb[0].mxu0
        %v4999 = vpop.f32.mrb[0].mxu0
        %v5000 = vadd.f32 0.0, %v4999
        %v5001 = vpop.f32.mrb[0].mxu0
        %5002 = vdwg.mxu0
        %5011 = vrot.lane.b32.xlu0 %v4795, 8
        %v5012 = vpop.permute.xlu0 %5011
        %5013 = vrot.lane.b32.xlu0 %v4798, 8
        %v5014 = vpop.permute.xlu0 %5013
        %5015 = vrot.lane.b32.xlu0 %v4803, 8
        %v5016 = vpop.permute.xlu0 %5015
        %5017 = vrot.lane.b32.xlu0 %v4806, 8
        %v5018 = vpop.permute.xlu0 %5017
        %5019 = vrot.lane.b32.xlu0 %v4811, 8
        %v5020 = vpop.permute.xlu0 %5019
        %5021 = vrot.lane.b32.xlu0 %v4814, 8
        %v5022 = vpop.permute.xlu0 %5021
        %5023 = vrot.lane.b32.xlu0 %v4819, 8
        %v5024 = vpop.permute.xlu0 %5023
        %5025 = vrot.lane.b32.xlu0 %v4822, 8
        %v5026 = vpop.permute.xlu0 %5025
        %5043 = vrot.lane.b32.xlu0 %v4884, 16
        %v5044 = vpop.permute.xlu0 %5043
        %5045 = vrot.lane.b32.xlu0 %v4887, 16
        %v5046 = vpop.permute.xlu0 %5045
        %5047 = vrot.lane.b32.xlu0 %v4892, 16
        %v5048 = vpop.permute.xlu0 %5047
        %5049 = vrot.lane.b32.xlu0 %v4895, 16
        %v5050 = vpop.permute.xlu0 %5049
        %5051 = vrot.lane.b32.xlu0 %v4900, 16
        %v5052 = vpop.permute.xlu0 %5051
        %5053 = vrot.lane.b32.xlu0 %v4903, 16
        %v5054 = vpop.permute.xlu0 %5053
        %5055 = vrot.lane.b32.xlu0 %v4908, 16
        %v5056 = vpop.permute.xlu0 %5055
        %5057 = vrot.lane.b32.xlu0 %v4911, 16
        %v5058 = vpop.permute.xlu0 %5057
        %5075 = vrot.lane.b32.xlu0 %v4973, 24
        %v5076 = vpop.permute.xlu0 %5075
        %5077 = vrot.lane.b32.xlu0 %v4976, 24
        %v5078 = vpop.permute.xlu0 %5077
        %5079 = vrot.lane.b32.xlu0 %v4981, 24
        %v5080 = vpop.permute.xlu0 %5079
        %5081 = vrot.lane.b32.xlu0 %v4984, 24
        %v5082 = vpop.permute.xlu0 %5081
        %5083 = vrot.lane.b32.xlu0 %v4989, 24
        %v5084 = vpop.permute.xlu0 %5083
        %5085 = vrot.lane.b32.xlu0 %v4992, 24
        %v5086 = vpop.permute.xlu0 %5085
        %5087 = vrot.lane.b32.xlu0 %v4997, 24
        %v5088 = vpop.permute.xlu0 %5087
        %5089 = vrot.lane.b32.xlu0 %v5000, 24
        %v5090 = vpop.permute.xlu0 %5089
        %v5099 = vsel %vm1790, %v4706, %v5012
        %v5100 = vsel %vm1790, %v4709, %v5014
        %v5101 = vsel %vm1790, %v4714, %v5016
        %v5102 = vsel %vm1790, %v4717, %v5018
        %v5103 = vsel %vm1790, %v4722, %v5020
        %v5104 = vsel %vm1790, %v4725, %v5022
        %v5105 = vsel %vm1790, %v4730, %v5024
        %v5106 = vsel %vm1790, %v4733, %v5026
        %v5107 = vsel %vm847, %v5099, %v5044
        %v5108 = vsel %vm847, %v5100, %v5046
        %v5109 = vsel %vm847, %v5101, %v5048
        %v5110 = vsel %vm847, %v5102, %v5050
        %v5111 = vsel %vm847, %v5103, %v5052
        %v5112 = vsel %vm847, %v5104, %v5054
        %v5113 = vsel %vm847, %v5105, %v5056
        %v5114 = vsel %vm847, %v5106, %v5058
        %v5115 = vsel %vm3031, %v5107, %v5076
        %v5116 = vsel %vm3031, %v5108, %v5078
        %v5117 = vsel %vm3031, %v5109, %v5080
        %v5118 = vsel %vm3031, %v5110, %v5082
        %v5119 = vsel %vm3031, %v5111, %v5084
        %v5120 = vsel %vm3031, %v5112, %v5086
        %v5121 = vsel %vm3031, %v5113, %v5088
        %v5122 = vsel %vm3031, %v5114, %v5090
        %v5123 = vpack.c.bf16 %v5116, %v5115
        %v5124 = vpack.c.bf16 %v5118, %v5117
        %v5125 = vpack.c.bf16 %v5120, %v5119
        %v5126 = vpack.c.bf16 %v5122, %v5121
        %s5127 = scalar_lea.vmem %s13, 16
        %v5128 = vld [vmem:[%s5127] sm:$0xf]
        %v5129 = vld [vmem:[%s5127 + $0x4] sm:$0xf]
        %v5130 = vld [vmem:[%s5127 + $0x8] sm:$0xf]
        %v5131 = vld [vmem:[%s5127 + $0xc] sm:$0xf]
        %s5132 = scalar_lea.vmem %s14, 1
        %v5133 = vld [vmem:[%s5132] sm:$0x1]
        %v5135 = vlaneseq
        %v5136 = vshrl.u32 %v5135, 7
        %v5137 = vsub.s32 0, %v5136
        %v5138 = vrot.slane %v5133, %v5137
        %v5144 = vunpack.c.l.b16 %v5128
        %v5145 = vunpack.c.l.b16 %v5129
        %v5146 = vunpack.c.l.b16 %v5130
        %v5147 = vunpack.c.l.b16 %v5131
        %v5148 = vpack.c.b16 %v5145, %v5144
        %v5149 = vpack.c.b16 %v5147, %v5146
        %v5153 = vsel %vm1290, %v5123, 0
        %v5156 = vsel %vm1290, %v5124, 0
        %v5159 = vsel %vm1290, %v5125, 0
        %v5162 = vsel %vm1290, %v5126, 0
        %5164 = vmatprep.subr.bf16.mxu0 0
        %5165 = vmatpush1.bf16.msra.mxu0 %v5148
        %5166 = vmatprep.subr.bf16.mxu0 0
        %5167 = vmatpush1.bf16.msra.mxu0 %v5149
        %5168 = vmatprep.subr.bf16.mxu0 0
        %5169 = vmatpush1.bf16.msra.mxu0 0
        %5170 = vmatprep.subr.bf16.mxu0 0
        %5171 = vmatpush1.bf16.msra.mxu0 0
        %5172 = vmatprep.subr.bf16.mxu0 0
        %5173 = vmatpush1.bf16.msra.mxu0 0
        %5174 = vmatprep.subr.bf16.mxu0 0
        %5175 = vmatpush1.bf16.msra.mxu0 0
        %5176 = vmatprep.subr.bf16.mxu0 0
        %5177 = vmatpush1.bf16.msra.mxu0 0
        %5178 = vmatprep.subr.bf16.mxu0 0
        %5179 = vmatpush1.bf16.msra.mxu0 0
        %5180 = vmatprep.subr.bf16.mxu0 0
        %5181 = vmatpush1.bf16.msra.mxu0 0
        %5182 = vmatprep.subr.bf16.mxu0 0
        %5183 = vmatpush1.bf16.msra.mxu0 0
        %5184 = vmatprep.subr.bf16.mxu0 0
        %5185 = vmatpush1.bf16.msra.mxu0 0
        %5186 = vmatprep.subr.bf16.mxu0 0
        %5187 = vmatpush1.bf16.msra.mxu0 0
        %5188 = vmatprep.subr.bf16.mxu0 0
        %5189 = vmatpush1.bf16.msra.mxu0 0
        %5190 = vmatprep.subr.bf16.mxu0 0
        %5191 = vmatpush1.bf16.msra.mxu0 0
        %5192 = vmatprep.subr.bf16.mxu0 0
        %5193 = vmatpush1.bf16.msra.mxu0 0
        %5194 = vmatprep.subr.bf16.mxu0 0
        %5195 = vmatpush1.bf16.msra.mxu0 0
        %5196 = vmatprep.mubr.bf16.mxu0 0
        %5197 = vmatmul.mubr.bf16.gmra.mrb[0].mxu0 %v5153
        %v5198 = vpop.f32.mrb[0].mxu0
        %v5199 = vadd.f32 %v5138, %v5198
        %v5200 = vpop.f32.mrb[0].mxu0
        %v5201 = vpop.f32.mrb[0].mxu0
        %v5202 = vadd.f32 %v5138, %v5201
        %v5203 = vpop.f32.mrb[0].mxu0
        %5204 = vmatprep.mubr.bf16.mxu0 0
        %5205 = vmatmul.mubr.bf16.gmra.mrb[0].mxu0 %v5156
        %v5206 = vpop.f32.mrb[0].mxu0
        %v5207 = vadd.f32 %v5138, %v5206
        %v5208 = vpop.f32.mrb[0].mxu0
        %v5209 = vpop.f32.mrb[0].mxu0
        %v5210 = vadd.f32 %v5138, %v5209
        %v5211 = vpop.f32.mrb[0].mxu0
        %5212 = vmatprep.mubr.bf16.mxu0 0
        %5213 = vmatmul.mubr.bf16.gmra.mrb[0].mxu0 %v5159
        %v5214 = vpop.f32.mrb[0].mxu0
        %v5215 = vadd.f32 %v5138, %v5214
        %v5216 = vpop.f32.mrb[0].mxu0
        %v5217 = vpop.f32.mrb[0].mxu0
        %v5218 = vadd.f32 %v5138, %v5217
        %v5219 = vpop.f32.mrb[0].mxu0
        %5220 = vmatprep.mubr.bf16.mxu0 0
        %5221 = vmatmul.mubr.bf16.gmra.mrb[0].mxu0 %v5162
        %v5222 = vpop.f32.mrb[0].mxu0
        %v5223 = vadd.f32 %v5138, %v5222
        %v5224 = vpop.f32.mrb[0].mxu0
        %v5225 = vpop.f32.mrb[0].mxu0
        %v5226 = vadd.f32 %v5138, %v5225
        %v5227 = vpop.f32.mrb[0].mxu0
        %5228 = vdwg.mxu0
        %v5229 = vadd.f32 %v3736, %v5199
        %v5230 = vadd.f32 %v3737, %v5202
        %v5231 = vadd.f32 %v3738, %v5207
        %v5232 = vadd.f32 %v3739, %v5210
        %v5233 = vadd.f32 %v3740, %v5215
        %v5234 = vadd.f32 %v3741, %v5218
        %v5235 = vadd.f32 %v3742, %v5223
        %v5236 = vadd.f32 %v3743, %v5226
        %s5237 = scalar_lea.vmem %s15, 1
        %v5238 = vld [vmem:[%s5237] sm:$0x1]
        %s5239 = scalar_lea.vmem %s16, 1
        %v5240 = vld [vmem:[%s5239] sm:$0x1]
        %v5241 = vsel %vm1290, %v5229, 0.0
        %5242 = vadd.xlane.f32.xlu0 %v5241
        %v5243 = vpop.xlane.xlu0 %5242
        %v5244 = vsel %vm1290, %v5230, 0.0
        %5245 = vadd.xlane.f32.xlu0 %v5244
        %v5246 = vpop.xlane.xlu0 %5245
        %v5247 = vsel %vm1290, %v5231, 0.0
        %5248 = vadd.xlane.f32.xlu0 %v5247
        %v5249 = vpop.xlane.xlu0 %5248
        %v5250 = vsel %vm1290, %v5232, 0.0
        %5251 = vadd.xlane.f32.xlu0 %v5250
        %v5252 = vpop.xlane.xlu0 %5251
        %v5253 = vsel %vm1290, %v5233, 0.0
        %5254 = vadd.xlane.f32.xlu0 %v5253
        %v5255 = vpop.xlane.xlu0 %5254
        %v5256 = vsel %vm1290, %v5234, 0.0
        %5257 = vadd.xlane.f32.xlu0 %v5256
        %v5258 = vpop.xlane.xlu0 %5257
        %v5259 = vsel %vm1290, %v5235, 0.0
        %5260 = vadd.xlane.f32.xlu0 %v5259
        %v5261 = vpop.xlane.xlu0 %5260
        %v5262 = vsel %vm1290, %v5236, 0.0
        %5263 = vadd.xlane.f32.xlu0 %v5262
        %v5264 = vpop.xlane.xlu0 %5263
        %v5265 = vmul.f32 %v5243, %v1315
        %v5266 = vmul.f32 %v5246, %v1315
        %v5267 = vmul.f32 %v5249, %v1315
        %v5268 = vmul.f32 %v5252, %v1315
        %v5269 = vmul.f32 %v5255, %v1315
        %v5270 = vmul.f32 %v5258, %v1315
        %v5271 = vmul.f32 %v5261, %v1315
        %v5272 = vmul.f32 %v5264, %v1315
        %v5273 = vsub.f32 %v5229, %v5265
        %v5274 = vsub.f32 %v5230, %v5266
        %v5275 = vsub.f32 %v5231, %v5267
        %v5276 = vsub.f32 %v5232, %v5268
        %v5277 = vsub.f32 %v5233, %v5269
        %v5278 = vsub.f32 %v5234, %v5270
        %v5279 = vsub.f32 %v5235, %v5271
        %v5280 = vsub.f32 %v5236, %v5272
        %v5281 = vmul.f32 %v5273, %v5273
        %v5282 = vmul.f32 %v5274, %v5274
        %v5283 = vmul.f32 %v5275, %v5275
        %v5284 = vmul.f32 %v5276, %v5276
        %v5285 = vmul.f32 %v5277, %v5277
        %v5286 = vmul.f32 %v5278, %v5278
        %v5287 = vmul.f32 %v5279, %v5279
        %v5288 = vmul.f32 %v5280, %v5280
        %v5289 = vsel %vm1290, %v5281, 0.0
        %5290 = vadd.xlane.f32.xlu0 %v5289
        %v5291 = vpop.xlane.xlu0 %5290
        %v5292 = vsel %vm1290, %v5282, 0.0
        %5293 = vadd.xlane.f32.xlu0 %v5292
        %v5294 = vpop.xlane.xlu0 %5293
        %v5295 = vsel %vm1290, %v5283, 0.0
        %5296 = vadd.xlane.f32.xlu0 %v5295
        %v5297 = vpop.xlane.xlu0 %5296
        %v5298 = vsel %vm1290, %v5284, 0.0
        %5299 = vadd.xlane.f32.xlu0 %v5298
        %v5300 = vpop.xlane.xlu0 %5299
        %v5301 = vsel %vm1290, %v5285, 0.0
        %5302 = vadd.xlane.f32.xlu0 %v5301
        %v5303 = vpop.xlane.xlu0 %5302
        %v5304 = vsel %vm1290, %v5286, 0.0
        %5305 = vadd.xlane.f32.xlu0 %v5304
        %v5306 = vpop.xlane.xlu0 %5305
        %v5307 = vsel %vm1290, %v5287, 0.0
        %5308 = vadd.xlane.f32.xlu0 %v5307
        %v5309 = vpop.xlane.xlu0 %5308
        %v5310 = vsel %vm1290, %v5288, 0.0
        %5311 = vadd.xlane.f32.xlu0 %v5310
        %v5312 = vpop.xlane.xlu0 %5311
        %v5313 = vmul.f32 %v5291, %v1315
        %v5314 = vmul.f32 %v5294, %v1315
        %v5315 = vmul.f32 %v5297, %v1315
        %v5316 = vmul.f32 %v5300, %v1315
        %v5317 = vmul.f32 %v5303, %v1315
        %v5318 = vmul.f32 %v5306, %v1315
        %v5319 = vmul.f32 %v5309, %v1315
        %v5320 = vmul.f32 %v5312, %v1315
        %v5321 = vadd.f32 %v5313, 1e-05
        %v5322 = vadd.f32 %v5314, 1e-05
        %v5323 = vadd.f32 %v5315, 1e-05
        %v5324 = vadd.f32 %v5316, 1e-05
        %v5325 = vadd.f32 %v5317, 1e-05
        %v5326 = vadd.f32 %v5318, 1e-05
        %v5327 = vadd.f32 %v5319, 1e-05
        %v5328 = vadd.f32 %v5320, 1e-05
        %v5329 = vrsqrt.pop %v5321
        %v5330 = vrsqrt.pop %v5322
        %v5331 = vrsqrt.pop %v5323
        %v5332 = vrsqrt.pop %v5324
        %v5333 = vrsqrt.pop %v5325
        %v5334 = vrsqrt.pop %v5326
        %v5335 = vrsqrt.pop %v5327
        %v5336 = vrsqrt.pop %v5328
        %v5337 = vmul.f32 %v5273, %v5329
        %v5338 = vmul.f32 %v5274, %v5330
        %v5339 = vmul.f32 %v5275, %v5331
        %v5340 = vmul.f32 %v5276, %v5332
        %v5341 = vmul.f32 %v5277, %v5333
        %v5342 = vmul.f32 %v5278, %v5334
        %v5343 = vmul.f32 %v5279, %v5335
        %v5344 = vmul.f32 %v5280, %v5336
        %v5346 = vlaneseq
        %v5347 = vshrl.u32 %v5346, 7
        %v5348 = vsub.s32 0, %v5347
        %v5349 = vrot.slane %v5238, %v5348
        %v5351 = vmul.f32 %v5337, %v5349
        %v5352 = vmul.f32 %v5338, %v5349
        %v5353 = vmul.f32 %v5339, %v5349
        %v5354 = vmul.f32 %v5340, %v5349
        %v5355 = vmul.f32 %v5341, %v5349
        %v5356 = vmul.f32 %v5342, %v5349
        %v5357 = vmul.f32 %v5343, %v5349
        %v5358 = vmul.f32 %v5344, %v5349
        %v5360 = vlaneseq
        %v5361 = vshrl.u32 %v5360, 7
        %v5362 = vsub.s32 0, %v5361
        %v5363 = vrot.slane %v5240, %v5362
        %v5365 = vadd.f32 %v5351, %v5363
        %v5366 = vadd.f32 %v5352, %v5363
        %v5367 = vadd.f32 %v5353, %v5363
        %v5368 = vadd.f32 %v5354, %v5363
        %v5369 = vadd.f32 %v5355, %v5363
        %v5370 = vadd.f32 %v5356, %v5363
        %v5371 = vadd.f32 %v5357, %v5363
        %v5372 = vadd.f32 %v5358, %v5363
        %v5373 = vpack.c.bf16 %v5366, %v5365
        %v5374 = vpack.c.bf16 %v5368, %v5367
        %v5375 = vpack.c.bf16 %v5370, %v5369
        %v5376 = vpack.c.bf16 %v5372, %v5371
        %s5377 = scalar_lea.vmem %s17, 16
        %v5378 = vld [vmem:[%s5377] sm:$0xf]
        %v5379 = vld [vmem:[%s5377 + $0x4] sm:$0xf]
        %v5380 = vld [vmem:[%s5377 + $0x8] sm:$0xf]
        %v5381 = vld [vmem:[%s5377 + $0xc] sm:$0xf]
        %s5382 = scalar_lea.vmem %s18, 1
        %v5383 = vld [vmem:[%s5382] sm:$0x1]
        %v5385 = vlaneseq
        %v5386 = vshrl.u32 %v5385, 7
        %v5387 = vsub.s32 0, %v5386
        %v5388 = vrot.slane %v5383, %v5387
        %v5394 = vunpack.c.l.b16 %v5378
        %v5395 = vunpack.c.l.b16 %v5379
        %v5396 = vunpack.c.l.b16 %v5380
        %v5397 = vunpack.c.l.b16 %v5381
        %v5398 = vpack.c.b16 %v5395, %v5394
        %v5399 = vpack.c.b16 %v5397, %v5396
        %v5403 = vsel %vm1290, %v5373, 0
        %v5406 = vsel %vm1290, %v5374, 0
        %v5409 = vsel %vm1290, %v5375, 0
        %v5412 = vsel %vm1290, %v5376, 0
        %5414 = vmatprep.subr.bf16.mxu0 0
        %5415 = vmatpush1.bf16.msra.mxu0 %v5398
        %5416 = vmatprep.subr.bf16.mxu0 0
        %5417 = vmatpush1.bf16.msra.mxu0 %v5399
        %5418 = vmatprep.subr.bf16.mxu0 0
        %5419 = vmatpush1.bf16.msra.mxu0 0
        %5420 = vmatprep.subr.bf16.mxu0 0
        %5421 = vmatpush1.bf16.msra.mxu0 0
        %5422 = vmatprep.subr.bf16.mxu0 0
        %5423 = vmatpush1.bf16.msra.mxu0 0
        %5424 = vmatprep.subr.bf16.mxu0 0
        %5425 = vmatpush1.bf16.msra.mxu0 0
        %5426 = vmatprep.subr.bf16.mxu0 0
        %5427 = vmatpush1.bf16.msra.mxu0 0
        %5428 = vmatprep.subr.bf16.mxu0 0
        %5429 = vmatpush1.bf16.msra.mxu0 0
        %5430 = vmatprep.subr.bf16.mxu0 0
        %5431 = vmatpush1.bf16.msra.mxu0 0
        %5432 = vmatprep.subr.bf16.mxu0 0
        %5433 = vmatpush1.bf16.msra.mxu0 0
        %5434 = vmatprep.subr.bf16.mxu0 0
        %5435 = vmatpush1.bf16.msra.mxu0 0
        %5436 = vmatprep.subr.bf16.mxu0 0
        %5437 = vmatpush1.bf16.msra.mxu0 0
        %5438 = vmatprep.subr.bf16.mxu0 0
        %5439 = vmatpush1.bf16.msra.mxu0 0
        %5440 = vmatprep.subr.bf16.mxu0 0
        %5441 = vmatpush1.bf16.msra.mxu0 0
        %5442 = vmatprep.subr.bf16.mxu0 0
        %5443 = vmatpush1.bf16.msra.mxu0 0
        %5444 = vmatprep.subr.bf16.mxu0 0
        %5445 = vmatpush1.bf16.msra.mxu0 0
        %5446 = vmatprep.mubr.bf16.mxu0 0
        %5447 = vmatmul.mubr.bf16.gmra.mrb[0].mxu0 %v5403
        %v5448 = vpop.f32.mrb[0].mxu0
        %v5449 = vadd.f32 %v5388, %v5448
        %v5450 = vpop.f32.mrb[0].mxu0
        %v5451 = vpop.f32.mrb[0].mxu0
        %v5452 = vadd.f32 %v5388, %v5451
        %v5453 = vpop.f32.mrb[0].mxu0
        %5454 = vmatprep.mubr.bf16.mxu0 0
        %5455 = vmatmul.mubr.bf16.gmra.mrb[0].mxu0 %v5406
        %v5456 = vpop.f32.mrb[0].mxu0
        %v5457 = vadd.f32 %v5388, %v5456
        %v5458 = vpop.f32.mrb[0].mxu0
        %v5459 = vpop.f32.mrb[0].mxu0
        %v5460 = vadd.f32 %v5388, %v5459
        %v5461 = vpop.f32.mrb[0].mxu0
        %5462 = vmatprep.mubr.bf16.mxu0 0
        %5463 = vmatmul.mubr.bf16.gmra.mrb[0].mxu0 %v5409
        %v5464 = vpop.f32.mrb[0].mxu0
        %v5465 = vadd.f32 %v5388, %v5464
        %v5466 = vpop.f32.mrb[0].mxu0
        %v5467 = vpop.f32.mrb[0].mxu0
        %v5468 = vadd.f32 %v5388, %v5467
        %v5469 = vpop.f32.mrb[0].mxu0
        %5470 = vmatprep.mubr.bf16.mxu0 0
        %5471 = vmatmul.mubr.bf16.gmra.mrb[0].mxu0 %v5412
        %v5472 = vpop.f32.mrb[0].mxu0
        %v5473 = vadd.f32 %v5388, %v5472
        %v5474 = vpop.f32.mrb[0].mxu0
        %v5475 = vpop.f32.mrb[0].mxu0
        %v5476 = vadd.f32 %v5388, %v5475
        %v5477 = vpop.f32.mrb[0].mxu0
        %5478 = vdwg.mxu0
        %v5479 = vmul.f32 %v5449, 0.5
        %v5480 = vmul.f32 %v5452, 0.5
        %v5481 = vmul.f32 %v5457, 0.5
        %v5482 = vmul.f32 %v5460, 0.5
        %v5483 = vmul.f32 %v5465, 0.5
        %v5484 = vmul.f32 %v5468, 0.5
        %v5485 = vmul.f32 %v5473, 0.5
        %v5486 = vmul.f32 %v5476, 0.5
        %v5487 = vmul.f32 %v5449, 0.044715
        %v5488 = vmul.f32 %v5452, 0.044715
        %v5489 = vmul.f32 %v5457, 0.044715
        %v5490 = vmul.f32 %v5460, 0.044715
        %v5491 = vmul.f32 %v5465, 0.044715
        %v5492 = vmul.f32 %v5468, 0.044715
        %v5493 = vmul.f32 %v5473, 0.044715
        %v5494 = vmul.f32 %v5476, 0.044715
        %v5495 = vmul.f32 %v5487, %v5449
        %v5496 = vmul.f32 %v5488, %v5452
        %v5497 = vmul.f32 %v5489, %v5457
        %v5498 = vmul.f32 %v5490, %v5460
        %v5499 = vmul.f32 %v5491, %v5465
        %v5500 = vmul.f32 %v5492, %v5468
        %v5501 = vmul.f32 %v5493, %v5473
        %v5502 = vmul.f32 %v5494, %v5476
        %v5503 = vmul.f32 %v5495, %v5449
        %v5504 = vmul.f32 %v5496, %v5452
        %v5505 = vmul.f32 %v5497, %v5457
        %v5506 = vmul.f32 %v5498, %v5460
        %v5507 = vmul.f32 %v5499, %v5465
        %v5508 = vmul.f32 %v5500, %v5468
        %v5509 = vmul.f32 %v5501, %v5473
        %v5510 = vmul.f32 %v5502, %v5476
        %v5511 = vadd.f32 %v5449, %v5503
        %v5512 = vadd.f32 %v5452, %v5504
        %v5513 = vadd.f32 %v5457, %v5505
        %v5514 = vadd.f32 %v5460, %v5506
        %v5515 = vadd.f32 %v5465, %v5507
        %v5516 = vadd.f32 %v5468, %v5508
        %v5517 = vadd.f32 %v5473, %v5509
        %v5518 = vadd.f32 %v5476, %v5510
        %v5519 = vmul.f32 %v5511, 0.7978846
        %v5520 = vmul.f32 %v5512, 0.7978846
        %v5521 = vmul.f32 %v5513, 0.7978846
        %v5522 = vmul.f32 %v5514, 0.7978846
        %v5523 = vmul.f32 %v5515, 0.7978846
        %v5524 = vmul.f32 %v5516, 0.7978846
        %v5525 = vmul.f32 %v5517, 0.7978846
        %v5526 = vmul.f32 %v5518, 0.7978846
        %v5527 = vtanh.pop %v5519
        %v5528 = vtanh.pop %v5520
        %v5529 = vtanh.pop %v5521
        %v5530 = vtanh.pop %v5522
        %v5531 = vtanh.pop %v5523
        %v5532 = vtanh.pop %v5524
        %v5533 = vtanh.pop %v5525
        %v5534 = vtanh.pop %v5526
        %v5535 = vadd.f32 %v5527, 1.0
        %v5536 = vadd.f32 %v5528, 1.0
        %v5537 = vadd.f32 %v5529, 1.0
        %v5538 = vadd.f32 %v5530, 1.0
        %v5539 = vadd.f32 %v5531, 1.0
        %v5540 = vadd.f32 %v5532, 1.0
        %v5541 = vadd.f32 %v5533, 1.0
        %v5542 = vadd.f32 %v5534, 1.0
        %v5543 = vmul.f32 %v5479, %v5535
        %v5544 = vmul.f32 %v5480, %v5536
        %v5545 = vmul.f32 %v5481, %v5537
        %v5546 = vmul.f32 %v5482, %v5538
        %v5547 = vmul.f32 %v5483, %v5539
        %v5548 = vmul.f32 %v5484, %v5540
        %v5549 = vmul.f32 %v5485, %v5541
        %v5550 = vmul.f32 %v5486, %v5542
        %v5551 = vpack.c.bf16 %v5544, %v5543
        %v5552 = vpack.c.bf16 %v5546, %v5545
        %v5553 = vpack.c.bf16 %v5548, %v5547
        %v5554 = vpack.c.bf16 %v5550, %v5549
        %s5555 = scalar_lea.vmem %s19, 64
        %v5556 = vld [vmem:[%s5555] sm:$0xf]
        %v5557 = vld [vmem:[%s5555 + $0x4] sm:$0xf]
        %v5558 = vld [vmem:[%s5555 + $0x8] sm:$0xf]
        %v5559 = vld [vmem:[%s5555 + $0xc] sm:$0xf]
        %v5560 = vld [vmem:[%s5555 + $0x10] sm:$0xf]
        %v5561 = vld [vmem:[%s5555 + $0x14] sm:$0xf]
        %v5562 = vld [vmem:[%s5555 + $0x18] sm:$0xf]
        %v5563 = vld [vmem:[%s5555 + $0x1c] sm:$0xf]
        %v5564 = vld [vmem:[%s5555 + $0x20] sm:$0xf]
        %v5565 = vld [vmem:[%s5555 + $0x24] sm:$0xf]
        %v5566 = vld [vmem:[%s5555 + $0x28] sm:$0xf]
        %v5567 = vld [vmem:[%s5555 + $0x2c] sm:$0xf]
        %v5568 = vld [vmem:[%s5555 + $0x30] sm:$0xf]
        %v5569 = vld [vmem:[%s5555 + $0x34] sm:$0xf]
        %v5570 = vld [vmem:[%s5555 + $0x38] sm:$0xf]
        %v5571 = vld [vmem:[%s5555 + $0x3c] sm:$0xf]
        %s5572 = scalar_lea.vmem %s20, 1
        %v5573 = vld [vmem:[%s5572] sm:$0x1]
        %v5575 = vlaneseq
        %v5576 = vshrl.u32 %v5575, 7
        %v5577 = vsub.s32 0, %v5576
        %v5578 = vrot.slane %v5573, %v5577
        %v5596 = vunpack.c.l.b16 %v5556
        %v5597 = vunpack.c.l.b16 %v5557
        %v5598 = vunpack.c.l.b16 %v5558
        %v5599 = vunpack.c.l.b16 %v5559
        %v5600 = vunpack.c.l.b16 %v5560
        %v5601 = vunpack.c.l.b16 %v5561
        %v5602 = vunpack.c.l.b16 %v5562
        %v5603 = vunpack.c.l.b16 %v5563
        %v5604 = vunpack.c.l.b16 %v5564
        %v5605 = vunpack.c.l.b16 %v5565
        %v5606 = vunpack.c.l.b16 %v5566
        %v5607 = vunpack.c.l.b16 %v5567
        %v5608 = vunpack.c.l.b16 %v5568
        %v5609 = vunpack.c.l.b16 %v5569
        %v5610 = vunpack.c.l.b16 %v5570
        %v5611 = vunpack.c.l.b16 %v5571
        %v5612 = vpack.c.b16 %v5597, %v5596
        %v5613 = vpack.c.b16 %v5599, %v5598
        %v5614 = vpack.c.b16 %v5601, %v5600
        %v5615 = vpack.c.b16 %v5603, %v5602
        %v5616 = vpack.c.b16 %v5605, %v5604
        %v5617 = vpack.c.b16 %v5607, %v5606
        %v5618 = vpack.c.b16 %v5609, %v5608
        %v5619 = vpack.c.b16 %v5611, %v5610
        %5628 = vmatprep.subr.bf16.mxu0 0
        %5629 = vmatpush1.bf16.msra.mxu0 %v5612
        %5630 = vmatprep.subr.bf16.mxu0 0
        %5631 = vmatpush1.bf16.msra.mxu0 %v5613
        %5632 = vmatprep.subr.bf16.mxu0 0
        %5633 = vmatpush1.bf16.msra.mxu0 %v5614
        %5634 = vmatprep.subr.bf16.mxu0 0
        %5635 = vmatpush1.bf16.msra.mxu0 %v5615
        %5636 = vmatprep.subr.bf16.mxu0 0
        %5637 = vmatpush1.bf16.msra.mxu0 %v5616
        %5638 = vmatprep.subr.bf16.mxu0 0
        %5639 = vmatpush1.bf16.msra.mxu0 %v5617
        %5640 = vmatprep.subr.bf16.mxu0 0
        %5641 = vmatpush1.bf16.msra.mxu0 %v5618
        %5642 = vmatprep.subr.bf16.mxu0 0
        %5643 = vmatpush1.bf16.msra.mxu0 %v5619
        %5644 = vmatprep.subr.bf16.mxu0 0
        %5645 = vmatpush1.bf16.msra.mxu0 0
        %5646 = vmatprep.subr.bf16.mxu0 0
        %5647 = vmatpush1.bf16.msra.mxu0 0
        %5648 = vmatprep.subr.bf16.mxu0 0
        %5649 = vmatpush1.bf16.msra.mxu0 0
        %5650 = vmatprep.subr.bf16.mxu0 0
        %5651 = vmatpush1.bf16.msra.mxu0 0
        %5652 = vmatprep.subr.bf16.mxu0 0
        %5653 = vmatpush1.bf16.msra.mxu0 0
        %5654 = vmatprep.subr.bf16.mxu0 0
        %5655 = vmatpush1.bf16.msra.mxu0 0
        %5656 = vmatprep.subr.bf16.mxu0 0
        %5657 = vmatpush1.bf16.msra.mxu0 0
        %5658 = vmatprep.subr.bf16.mxu0 0
        %5659 = vmatpush1.bf16.msra.mxu0 0
        %5660 = vmatprep.mubr.bf16.mxu0 0
        %5661 = vmatmul.mubr.bf16.gmra.mrb[0].mxu0 %v5551
        %v5662 = vpop.f32.mrb[0].mxu0
        %v5663 = vadd.f32 %v5578, %v5662
        %v5664 = vpop.f32.mrb[0].mxu0
        %v5665 = vpop.f32.mrb[0].mxu0
        %v5666 = vadd.f32 %v5578, %v5665
        %v5667 = vpop.f32.mrb[0].mxu0
        %5668 = vmatprep.mubr.bf16.mxu0 0
        %5669 = vmatmul.mubr.bf16.gmra.mrb[0].mxu0 %v5552
        %v5670 = vpop.f32.mrb[0].mxu0
        %v5671 = vadd.f32 %v5578, %v5670
        %v5672 = vpop.f32.mrb[0].mxu0
        %v5673 = vpop.f32.mrb[0].mxu0
        %v5674 = vadd.f32 %v5578, %v5673
        %v5675 = vpop.f32.mrb[0].mxu0
        %5676 = vmatprep.mubr.bf16.mxu0 0
        %5677 = vmatmul.mubr.bf16.gmra.mrb[0].mxu0 %v5553
        %v5678 = vpop.f32.mrb[0].mxu0
        %v5679 = vadd.f32 %v5578, %v5678
        %v5680 = vpop.f32.mrb[0].mxu0
        %v5681 = vpop.f32.mrb[0].mxu0
        %v5682 = vadd.f32 %v5578, %v5681
        %v5683 = vpop.f32.mrb[0].mxu0
        %5684 = vmatprep.mubr.bf16.mxu0 0
        %5685 = vmatmul.mubr.bf16.gmra.mrb[0].mxu0 %v5554
        %v5686 = vpop.f32.mrb[0].mxu0
        %v5687 = vadd.f32 %v5578, %v5686
        %v5688 = vpop.f32.mrb[0].mxu0
        %v5689 = vpop.f32.mrb[0].mxu0
        %v5690 = vadd.f32 %v5578, %v5689
        %v5691 = vpop.f32.mrb[0].mxu0
        %5692 = vdwg.mxu0
        %v5693 = vadd.f32 %v5365, %v5663
        %v5694 = vadd.f32 %v5366, %v5666
        %v5695 = vadd.f32 %v5367, %v5671
        %v5696 = vadd.f32 %v5368, %v5674
        %v5697 = vadd.f32 %v5369, %v5679
        %v5698 = vadd.f32 %v5370, %v5682
        %v5699 = vadd.f32 %v5371, %v5687
        %v5700 = vadd.f32 %v5372, %v5690
        %s5701 = scalar_lea.vmem %s21, 1
        %v5702 = vld [vmem:[%s5701] sm:$0x1]
        %s5703 = scalar_lea.vmem %s22, 1
        %v5704 = vld [vmem:[%s5703] sm:$0x1]
        %v5705 = vsel %vm1290, %v5693, 0.0
        %5706 = vadd.xlane.f32.xlu0 %v5705
        %v5707 = vpop.xlane.xlu0 %5706
        %v5708 = vsel %vm1290, %v5694, 0.0
        %5709 = vadd.xlane.f32.xlu0 %v5708
        %v5710 = vpop.xlane.xlu0 %5709
        %v5711 = vsel %vm1290, %v5695, 0.0
        %5712 = vadd.xlane.f32.xlu0 %v5711
        %v5713 = vpop.xlane.xlu0 %5712
        %v5714 = vsel %vm1290, %v5696, 0.0
        %5715 = vadd.xlane.f32.xlu0 %v5714
        %v5716 = vpop.xlane.xlu0 %5715
        %v5717 = vsel %vm1290, %v5697, 0.0
        %5718 = vadd.xlane.f32.xlu0 %v5717
        %v5719 = vpop.xlane.xlu0 %5718
        %v5720 = vsel %vm1290, %v5698, 0.0
        %5721 = vadd.xlane.f32.xlu0 %v5720
        %v5722 = vpop.xlane.xlu0 %5721
        %v5723 = vsel %vm1290, %v5699, 0.0
        %5724 = vadd.xlane.f32.xlu0 %v5723
        %v5725 = vpop.xlane.xlu0 %5724
        %v5726 = vsel %vm1290, %v5700, 0.0
        %5727 = vadd.xlane.f32.xlu0 %v5726
        %v5728 = vpop.xlane.xlu0 %5727
        %v5729 = vmul.f32 %v5707, %v1315
        %v5730 = vmul.f32 %v5710, %v1315
        %v5731 = vmul.f32 %v5713, %v1315
        %v5732 = vmul.f32 %v5716, %v1315
        %v5733 = vmul.f32 %v5719, %v1315
        %v5734 = vmul.f32 %v5722, %v1315
        %v5735 = vmul.f32 %v5725, %v1315
        %v5736 = vmul.f32 %v5728, %v1315
        %v5737 = vsub.f32 %v5693, %v5729
        %v5738 = vsub.f32 %v5694, %v5730
        %v5739 = vsub.f32 %v5695, %v5731
        %v5740 = vsub.f32 %v5696, %v5732
        %v5741 = vsub.f32 %v5697, %v5733
        %v5742 = vsub.f32 %v5698, %v5734
        %v5743 = vsub.f32 %v5699, %v5735
        %v5744 = vsub.f32 %v5700, %v5736
        %v5745 = vmul.f32 %v5737, %v5737
        %v5746 = vmul.f32 %v5738, %v5738
        %v5747 = vmul.f32 %v5739, %v5739
        %v5748 = vmul.f32 %v5740, %v5740
        %v5749 = vmul.f32 %v5741, %v5741
        %v5750 = vmul.f32 %v5742, %v5742
        %v5751 = vmul.f32 %v5743, %v5743
        %v5752 = vmul.f32 %v5744, %v5744
        %v5753 = vsel %vm1290, %v5745, 0.0
        %5754 = vadd.xlane.f32.xlu0 %v5753
        %v5755 = vpop.xlane.xlu0 %5754
        %v5756 = vsel %vm1290, %v5746, 0.0
        %5757 = vadd.xlane.f32.xlu0 %v5756
        %v5758 = vpop.xlane.xlu0 %5757
        %v5759 = vsel %vm1290, %v5747, 0.0
        %5760 = vadd.xlane.f32.xlu0 %v5759
        %v5761 = vpop.xlane.xlu0 %5760
        %v5762 = vsel %vm1290, %v5748, 0.0
        %5763 = vadd.xlane.f32.xlu0 %v5762
        %v5764 = vpop.xlane.xlu0 %5763
        %v5765 = vsel %vm1290, %v5749, 0.0
        %5766 = vadd.xlane.f32.xlu0 %v5765
        %v5767 = vpop.xlane.xlu0 %5766
        %v5768 = vsel %vm1290, %v5750, 0.0
        %5769 = vadd.xlane.f32.xlu0 %v5768
        %v5770 = vpop.xlane.xlu0 %5769
        %v5771 = vsel %vm1290, %v5751, 0.0
        %5772 = vadd.xlane.f32.xlu0 %v5771
        %v5773 = vpop.xlane.xlu0 %5772
        %v5774 = vsel %vm1290, %v5752, 0.0
        %5775 = vadd.xlane.f32.xlu0 %v5774
        %v5776 = vpop.xlane.xlu0 %5775
        %v5777 = vmul.f32 %v5755, %v1315
        %v5778 = vmul.f32 %v5758, %v1315
        %v5779 = vmul.f32 %v5761, %v1315
        %v5780 = vmul.f32 %v5764, %v1315
        %v5781 = vmul.f32 %v5767, %v1315
        %v5782 = vmul.f32 %v5770, %v1315
        %v5783 = vmul.f32 %v5773, %v1315
        %v5784 = vmul.f32 %v5776, %v1315
        %v5785 = vadd.f32 %v5777, 1e-05
        %v5786 = vadd.f32 %v5778, 1e-05
        %v5787 = vadd.f32 %v5779, 1e-05
        %v5788 = vadd.f32 %v5780, 1e-05
        %v5789 = vadd.f32 %v5781, 1e-05
        %v5790 = vadd.f32 %v5782, 1e-05
        %v5791 = vadd.f32 %v5783, 1e-05
        %v5792 = vadd.f32 %v5784, 1e-05
        %v5793 = vrsqrt.pop %v5785
        %v5794 = vrsqrt.pop %v5786
        %v5795 = vrsqrt.pop %v5787
        %v5796 = vrsqrt.pop %v5788
        %v5797 = vrsqrt.pop %v5789
        %v5798 = vrsqrt.pop %v5790
        %v5799 = vrsqrt.pop %v5791
        %v5800 = vrsqrt.pop %v5792
        %v5801 = vmul.f32 %v5737, %v5793
        %v5802 = vmul.f32 %v5738, %v5794
        %v5803 = vmul.f32 %v5739, %v5795
        %v5804 = vmul.f32 %v5740, %v5796
        %v5805 = vmul.f32 %v5741, %v5797
        %v5806 = vmul.f32 %v5742, %v5798
        %v5807 = vmul.f32 %v5743, %v5799
        %v5808 = vmul.f32 %v5744, %v5800
        %v5810 = vlaneseq
        %v5811 = vshrl.u32 %v5810, 7
        %v5812 = vsub.s32 0, %v5811
        %v5813 = vrot.slane %v5702, %v5812
        %v5815 = vmul.f32 %v5801, %v5813
        %v5816 = vmul.f32 %v5802, %v5813
        %v5817 = vmul.f32 %v5803, %v5813
        %v5818 = vmul.f32 %v5804, %v5813
        %v5819 = vmul.f32 %v5805, %v5813
        %v5820 = vmul.f32 %v5806, %v5813
        %v5821 = vmul.f32 %v5807, %v5813
        %v5822 = vmul.f32 %v5808, %v5813
        %v5824 = vlaneseq
        %v5825 = vshrl.u32 %v5824, 7
        %v5826 = vsub.s32 0, %v5825
        %v5827 = vrot.slane %v5704, %v5826
        %v5829 = vadd.f32 %v5815, %v5827
        %v5830 = vadd.f32 %v5816, %v5827
        %v5831 = vadd.f32 %v5817, %v5827
        %v5832 = vadd.f32 %v5818, %v5827
        %v5833 = vadd.f32 %v5819, %v5827
        %v5834 = vadd.f32 %v5820, %v5827
        %v5835 = vadd.f32 %v5821, %v5827
        %v5836 = vadd.f32 %v5822, %v5827
        %s5837 = scalar_lea.vmem %s781, 128 [#allocation2]
        %5838 = vst.msk [vmem:[%s5837] sm:$0xff] %vm1290, %v5829
        %5839 = vst.msk [vmem:[%s5837 + $0x8] sm:$0xff] %vm1290, %v5830
        %5840 = vst.msk [vmem:[%s5837 + $0x10] sm:$0xff] %vm1290, %v5831
        %5841 = vst.msk [vmem:[%s5837 + $0x18] sm:$0xff] %vm1290, %v5832
        %5842 = vst.msk [vmem:[%s5837 + $0x20] sm:$0xff] %vm1290, %v5833
        %5843 = vst.msk [vmem:[%s5837 + $0x28] sm:$0xff] %vm1290, %v5834
        %5844 = vst.msk [vmem:[%s5837 + $0x30] sm:$0xff] %vm1290, %v5835
        %5845 = vst.msk [vmem:[%s5837 + $0x38] sm:$0xff] %vm1290, %v5836
        %v5846 = vpack.c.bf16 %v5830, %v5829
        %v5847 = vpack.c.bf16 %v5832, %v5831
        %v5848 = vpack.c.bf16 %v5834, %v5833
        %v5849 = vpack.c.bf16 %v5836, %v5835
        %v5850 = vld [vmem:[%s23] sm:$0xf]
        %v5851 = vld [vmem:[%s23 + $0x4] sm:$0xf]
        %v5852 = vld [vmem:[%s23 + $0x8] sm:$0xf]
        %v5853 = vld [vmem:[%s23 + $0xc] sm:$0xf]
        %v5854 = vld [vmem:[%s24] sm:$0x1]
        %v5856 = vlaneseq
        %v5857 = vshrl.u32 %v5856, 7
        %v5858 = vsub.s32 0, %v5857
        %v5859 = vrot.slane %v5854, %v5858
        %v5865 = vunpack.c.l.b16 %v5850
        %v5866 = vunpack.c.l.b16 %v5851
        %v5867 = vunpack.c.l.b16 %v5852
        %v5868 = vunpack.c.l.b16 %v5853
        %v5869 = vpack.c.b16 %v5866, %v5865
        %v5870 = vpack.c.b16 %v5868, %v5867
        %v5874 = vsel %vm1290, %v5846, 0
        %v5877 = vsel %vm1290, %v5847, 0
        %v5880 = vsel %vm1290, %v5848, 0
        %v5883 = vsel %vm1290, %v5849, 0
        %5885 = vmatprep.subr.bf16.mxu0 0
        %5886 = vmatpush1.bf16.msra.mxu0 %v5869
        %5887 = vmatprep.subr.bf16.mxu0 0
        %5888 = vmatpush1.bf16.msra.mxu0 %v5870
        %5889 = vmatprep.subr.bf16.mxu0 0
        %5890 = vmatpush1.bf16.msra.mxu0 0
        %5891 = vmatprep.subr.bf16.mxu0 0
        %5892 = vmatpush1.bf16.msra.mxu0 0
        %5893 = vmatprep.subr.bf16.mxu0 0
        %5894 = vmatpush1.bf16.msra.mxu0 0
        %5895 = vmatprep.subr.bf16.mxu0 0
        %5896 = vmatpush1.bf16.msra.mxu0 0
        %5897 = vmatprep.subr.bf16.mxu0 0
        %5898 = vmatpush1.bf16.msra.mxu0 0
        %5899 = vmatprep.subr.bf16.mxu0 0
        %5900 = vmatpush1.bf16.msra.mxu0 0
        %5901 = vmatprep.subr.bf16.mxu0 0
        %5902 = vmatpush1.bf16.msra.mxu0 0
        %5903 = vmatprep.subr.bf16.mxu0 0
        %5904 = vmatpush1.bf16.msra.mxu0 0
        %5905 = vmatprep.subr.bf16.mxu0 0
        %5906 = vmatpush1.bf16.msra.mxu0 0
        %5907 = vmatprep.subr.bf16.mxu0 0
        %5908 = vmatpush1.bf16.msra.mxu0 0
        %5909 = vmatprep.subr.bf16.mxu0 0
        %5910 = vmatpush1.bf16.msra.mxu0 0
        %5911 = vmatprep.subr.bf16.mxu0 0
        %5912 = vmatpush1.bf16.msra.mxu0 0
        %5913 = vmatprep.subr.bf16.mxu0 0
        %5914 = vmatpush1.bf16.msra.mxu0 0
        %5915 = vmatprep.subr.bf16.mxu0 0
        %5916 = vmatpush1.bf16.msra.mxu0 0
        %5917 = vmatprep.mubr.bf16.mxu0 0
        %5918 = vmatmul.mubr.bf16.gmra.mrb[0].mxu0 %v5874
        %v5919 = vpop.f32.mrb[0].mxu0
        %v5920 = vadd.f32 %v5859, %v5919
        %v5921 = vpop.f32.mrb[0].mxu0
        %v5922 = vpop.f32.mrb[0].mxu0
        %v5923 = vadd.f32 %v5859, %v5922
        %v5924 = vpop.f32.mrb[0].mxu0
        %5925 = vmatprep.mubr.bf16.mxu0 0
        %5926 = vmatmul.mubr.bf16.gmra.mrb[0].mxu0 %v5877
        %v5927 = vpop.f32.mrb[0].mxu0
        %v5928 = vadd.f32 %v5859, %v5927
        %v5929 = vpop.f32.mrb[0].mxu0
        %v5930 = vpop.f32.mrb[0].mxu0
        %v5931 = vadd.f32 %v5859, %v5930
        %v5932 = vpop.f32.mrb[0].mxu0
        %5933 = vmatprep.mubr.bf16.mxu0 0
        %5934 = vmatmul.mubr.bf16.gmra.mrb[0].mxu0 %v5880
        %v5935 = vpop.f32.mrb[0].mxu0
        %v5936 = vadd.f32 %v5859, %v5935
        %v5937 = vpop.f32.mrb[0].mxu0
        %v5938 = vpop.f32.mrb[0].mxu0
        %v5939 = vadd.f32 %v5859, %v5938
        %v5940 = vpop.f32.mrb[0].mxu0
        %5941 = vmatprep.mubr.bf16.mxu0 0
        %5942 = vmatmul.mubr.bf16.gmra.mrb[0].mxu0 %v5883
        %v5943 = vpop.f32.mrb[0].mxu0
        %v5944 = vadd.f32 %v5859, %v5943
        %v5945 = vpop.f32.mrb[0].mxu0
        %v5946 = vpop.f32.mrb[0].mxu0
        %v5947 = vadd.f32 %v5859, %v5946
        %v5948 = vpop.f32.mrb[0].mxu0
        %5949 = vdwg.mxu0
        %5950 = vst [vmem:[%s798] sm:$0xff] %v5920
        %5951 = vst [vmem:[%s798 + $0x8] sm:$0xff] %v5923
        %5952 = vst [vmem:[%s798 + $0x10] sm:$0xff] %v5928
        %5953 = vst [vmem:[%s798 + $0x18] sm:$0xff] %v5931
        %5954 = vst [vmem:[%s798 + $0x20] sm:$0xff] %v5936
        %5955 = vst [vmem:[%s798 + $0x28] sm:$0xff] %v5939
        %5956 = vst [vmem:[%s798 + $0x30] sm:$0xff] %v5944
        %5957 = vst [vmem:[%s798 + $0x38] sm:$0xff] %v5947
        %s5958 = sand.u32 %s576, 1
        %s5959 = sand.u32 %s576, 1
        %s5960 = smul.addr %s5959, 192
        %s5961 = scalar_lea.vmem [#allocation2], %s5960
        %p5962 = scmp.lt.s32.totalorder %s38, 1
        %s5963 = scalar_select %p5962, %s38, 1
        %s5964 = smul.addr %s5963, 8
        %s5965 = smul.addr %s5964, 8
        %s5966 = scalar_lea.vmem %s26, %s5965
        // Predicated region
        $region121: #{audio_encoder_forward.1} parent=119 // pred_check
          %p5967 = pneg %p586
        $region122: #{audio_encoder_forward.1} parent=119 // pred_check_branch
          %5969 = sbr.rel (%p5967) target = $region124
        $region123: #{audio_encoder_forward.1} parent=119 // pred_region
          %s5970 = smul.addr %s38, 8
          %s5971 = smul.addr %s5970, 8
          %s5972 = scalar_lea.vmem %s25, %s5971
          // Predicated region
          $region125: #{audio_encoder_forward.1} parent=123 // pred_check
            _
          $region126: #{audio_encoder_forward.1} parent=123 // pred_check_branch
            %5974 = sbr.rel (0) target = $region128
          $region127: #{audio_encoder_forward.1} parent=123 // pred_region
            // Predicated region
            $region129: #{audio_encoder_forward.1} parent=127 // pred_check
              _
            $region130: #{audio_encoder_forward.1} parent=127 // pred_check_branch
              %5976 = sbr.rel (0) target = $region132
            $region131: #{audio_encoder_forward.1} parent=127 // pred_region
              // Predicated region
              $region144: #{audio_encoder_forward.1} parent=131 // pred_check
                _
              $region145: #{audio_encoder_forward.1} parent=131 // pred_check_branch
                %6037 = sbr.rel (0) target = $region147
              $region146: #{audio_encoder_forward.1} parent=131 // pred_region
                loop: start=0, step=1, limit=1
                $region148: #{audio_encoder_forward.1} parent=146 // loop_pre_header
                  _
                $region149: #{audio_encoder_forward.1} parent=146 // loop_header
                  %s6039 = sphi 0, %s6043
                  %p6040 = scmp.ge.s32.totalorder %s6039, 1
                  %s6044 = sphi %s5961, %s5961
                  %s6045 = sphi %s5972, %s5972
                $region150: #{audio_encoder_forward.1} parent=146 // loop_header_branch
                  %6042 = sbr.rel (%p6040) target = $region154
                $region151: #{audio_encoder_forward.1} parent=146 // loop_body
                  %v6046 = vld [vmem:[%s6044] sm:$0xff]
                  %6047 = vst [vmem:[%s6045] sm:$0xff] %v6046
                  %v6048 = vld [vmem:[%s6044 + $0x8] sm:$0xff]
                  %6049 = vst [vmem:[%s6045 + $0x8] sm:$0xff] %v6048
                  %v6050 = vld [vmem:[%s6044 + $0x10] sm:$0xff]
                  %6051 = vst [vmem:[%s6045 + $0x10] sm:$0xff] %v6050
                  %v6052 = vld [vmem:[%s6044 + $0x18] sm:$0xff]
                  %6053 = vst [vmem:[%s6045 + $0x18] sm:$0xff] %v6052
                  %v6054 = vld [vmem:[%s6044 + $0x20] sm:$0xff]
                  %6055 = vst [vmem:[%s6045 + $0x20] sm:$0xff] %v6054
                  %v6056 = vld [vmem:[%s6044 + $0x28] sm:$0xff]
                  %6057 = vst [vmem:[%s6045 + $0x28] sm:$0xff] %v6056
                  %v6058 = vld [vmem:[%s6044 + $0x30] sm:$0xff]
                  %6059 = vst [vmem:[%s6045 + $0x30] sm:$0xff] %v6058
                  %v6060 = vld [vmem:[%s6044 + $0x38] sm:$0xff]
                  %6061 = vst [vmem:[%s6045 + $0x38] sm:$0xff] %v6060
                  %v6062 = vld [vmem:[%s6044 + $0x40] sm:$0xff]
                  %6063 = vst [vmem:[%s6045 + $0x80] sm:$0xff] %v6062
                  %v6064 = vld [vmem:[%s6044 + $0x48] sm:$0xff]
                  %6065 = vst [vmem:[%s6045 + $0x88] sm:$0xff] %v6064
                  %v6066 = vld [vmem:[%s6044 + $0x50] sm:$0xff]
                  %6067 = vst [vmem:[%s6045 + $0x90] sm:$0xff] %v6066
                  %v6068 = vld [vmem:[%s6044 + $0x58] sm:$0xff]
                  %6069 = vst [vmem:[%s6045 + $0x98] sm:$0xff] %v6068
                  %v6070 = vld [vmem:[%s6044 + $0x60] sm:$0xff]
                  %6071 = vst [vmem:[%s6045 + $0xa0] sm:$0xff] %v6070
                  %v6072 = vld [vmem:[%s6044 + $0x68] sm:$0xff]
                  %6073 = vst [vmem:[%s6045 + $0xa8] sm:$0xff] %v6072
                  %v6074 = vld [vmem:[%s6044 + $0x70] sm:$0xff]
                  %6075 = vst [vmem:[%s6045 + $0xb0] sm:$0xff] %v6074
                  %v6076 = vld [vmem:[%s6044 + $0x78] sm:$0xff]
                  %6077 = vst [vmem:[%s6045 + $0xb8] sm:$0xff] %v6076
                  %v6078 = vld [vmem:[%s6044 + $0x80] sm:$0xff]
                  %6079 = vst [vmem:[%s6045 + $0x100] sm:$0xff] %v6078
                  %v6080 = vld [vmem:[%s6044 + $0x88] sm:$0xff]
                  %6081 = vst [vmem:[%s6045 + $0x108] sm:$0xff] %v6080
                  %v6082 = vld [vmem:[%s6044 + $0x90] sm:$0xff]
                  %6083 = vst [vmem:[%s6045 + $0x110] sm:$0xff] %v6082
                  %v6084 = vld [vmem:[%s6044 + $0x98] sm:$0xff]
                  %6085 = vst [vmem:[%s6045 + $0x118] sm:$0xff] %v6084
                  %v6086 = vld [vmem:[%s6044 + $0xa0] sm:$0xff]
                  %6087 = vst [vmem:[%s6045 + $0x120] sm:$0xff] %v6086
                  %v6088 = vld [vmem:[%s6044 + $0xa8] sm:$0xff]
                  %6089 = vst [vmem:[%s6045 + $0x128] sm:$0xff] %v6088
                  %v6090 = vld [vmem:[%s6044 + $0xb0] sm:$0xff]
                  %6091 = vst [vmem:[%s6045 + $0x130] sm:$0xff] %v6090
                  %v6092 = vld [vmem:[%s6044 + $0xb8] sm:$0xff]
                  %6093 = vst [vmem:[%s6045 + $0x138] sm:$0xff] %v6092
                $region152: #{audio_encoder_forward.1} parent=146 // loop_footer
                  %s6043 = sadd.s32 1, %s6039
                $region153: #{audio_encoder_forward.1} parent=146 // loop_footer_branch
                  %6038 = sbr.rel target = $region149
                $region154: #{audio_encoder_forward.1} parent=146 // loop_exit
                  _
              $region147: #{audio_encoder_forward.1} parent=131 // pred_fallthru
                _
              // Predicated region
              $region155: #{audio_encoder_forward.1} parent=131 // pred_check
                _
              $region156: #{audio_encoder_forward.1} parent=131 // pred_check_branch
                %6095 = sbr.rel target = $region158
              $region157: #{audio_encoder_forward.1} parent=131 // pred_region
                _
              $region158: #{audio_encoder_forward.1} parent=131 // pred_fallthru
                _
            $region132: #{audio_encoder_forward.1} parent=127 // pred_fallthru
              _
            // Predicated region
            $region133: #{audio_encoder_forward.1} parent=127 // pred_check
              _
            $region134: #{audio_encoder_forward.1} parent=127 // pred_check_branch
              %5978 = sbr.rel target = $region136
            $region135: #{audio_encoder_forward.1} parent=127 // pred_region
              loop: start=0, step=1, limit=1
              $region137: #{audio_encoder_forward.1} parent=135 // loop_pre_header
                _
              $region138: #{audio_encoder_forward.1} parent=135 // loop_header
                %s5981 = sphi 0, %s5985
                %p5982 = scmp.ge.s32.totalorder %s5981, 1
                %s5986 = sphi %s5961, %s5961
                %s5987 = sphi %s5972, %s5972
              $region139: #{audio_encoder_forward.1} parent=135 // loop_header_branch
                %5984 = sbr.rel (%p5982) target = $region143
              $region140: #{audio_encoder_forward.1} parent=135 // loop_body
                %v5988 = vld [vmem:[%s5986] sm:$0xff]
                %5989 = vst [vmem:[%s5987] sm:$0xff] %v5988
                %v5990 = vld [vmem:[%s5986 + $0x8] sm:$0xff]
                %5991 = vst [vmem:[%s5987 + $0x8] sm:$0xff] %v5990
                %v5992 = vld [vmem:[%s5986 + $0x10] sm:$0xff]
                %5993 = vst [vmem:[%s5987 + $0x10] sm:$0xff] %v5992
                %v5994 = vld [vmem:[%s5986 + $0x18] sm:$0xff]
                %5995 = vst [vmem:[%s5987 + $0x18] sm:$0xff] %v5994
                %v5996 = vld [vmem:[%s5986 + $0x20] sm:$0xff]
                %5997 = vst [vmem:[%s5987 + $0x20] sm:$0xff] %v5996
                %v5998 = vld [vmem:[%s5986 + $0x28] sm:$0xff]
                %5999 = vst [vmem:[%s5987 + $0x28] sm:$0xff] %v5998
                %v6000 = vld [vmem:[%s5986 + $0x30] sm:$0xff]
                %6001 = vst [vmem:[%s5987 + $0x30] sm:$0xff] %v6000
                %v6002 = vld [vmem:[%s5986 + $0x38] sm:$0xff]
                %6003 = vst [vmem:[%s5987 + $0x38] sm:$0xff] %v6002
                %v6004 = vld [vmem:[%s5986 + $0x40] sm:$0xff]
                %6005 = vst [vmem:[%s5987 + $0x80] sm:$0xff] %v6004
                %v6006 = vld [vmem:[%s5986 + $0x48] sm:$0xff]
                %6007 = vst [vmem:[%s5987 + $0x88] sm:$0xff] %v6006
                %v6008 = vld [vmem:[%s5986 + $0x50] sm:$0xff]
                %6009 = vst [vmem:[%s5987 + $0x90] sm:$0xff] %v6008
                %v6010 = vld [vmem:[%s5986 + $0x58] sm:$0xff]
                %6011 = vst [vmem:[%s5987 + $0x98] sm:$0xff] %v6010
                %v6012 = vld [vmem:[%s5986 + $0x60] sm:$0xff]
                %6013 = vst [vmem:[%s5987 + $0xa0] sm:$0xff] %v6012
                %v6014 = vld [vmem:[%s5986 + $0x68] sm:$0xff]
                %6015 = vst [vmem:[%s5987 + $0xa8] sm:$0xff] %v6014
                %v6016 = vld [vmem:[%s5986 + $0x70] sm:$0xff]
                %6017 = vst [vmem:[%s5987 + $0xb0] sm:$0xff] %v6016
                %v6018 = vld [vmem:[%s5986 + $0x78] sm:$0xff]
                %6019 = vst [vmem:[%s5987 + $0xb8] sm:$0xff] %v6018
                %v6020 = vld [vmem:[%s5986 + $0x80] sm:$0xff]
                %6021 = vst [vmem:[%s5987 + $0x100] sm:$0xff] %v6020
                %v6022 = vld [vmem:[%s5986 + $0x88] sm:$0xff]
                %6023 = vst [vmem:[%s5987 + $0x108] sm:$0xff] %v6022
                %v6024 = vld [vmem:[%s5986 + $0x90] sm:$0xff]
                %6025 = vst [vmem:[%s5987 + $0x110] sm:$0xff] %v6024
                %v6026 = vld [vmem:[%s5986 + $0x98] sm:$0xff]
                %6027 = vst [vmem:[%s5987 + $0x118] sm:$0xff] %v6026
                %v6028 = vld [vmem:[%s5986 + $0xa0] sm:$0xff]
                %6029 = vst [vmem:[%s5987 + $0x120] sm:$0xff] %v6028
                %v6030 = vld [vmem:[%s5986 + $0xa8] sm:$0xff]
                %6031 = vst [vmem:[%s5987 + $0x128] sm:$0xff] %v6030
                %v6032 = vld [vmem:[%s5986 + $0xb0] sm:$0xff]
                %6033 = vst [vmem:[%s5987 + $0x130] sm:$0xff] %v6032
                %v6034 = vld [vmem:[%s5986 + $0xb8] sm:$0xff]
                %6035 = vst [vmem:[%s5987 + $0x138] sm:$0xff] %v6034
              $region141: #{audio_encoder_forward.1} parent=135 // loop_footer
                %s5985 = sadd.s32 1, %s5981
              $region142: #{audio_encoder_forward.1} parent=135 // loop_footer_branch
                %5980 = sbr.rel target = $region138
              $region143: #{audio_encoder_forward.1} parent=135 // loop_exit
                _
            $region136: #{audio_encoder_forward.1} parent=127 // pred_fallthru
              _
          $region128: #{audio_encoder_forward.1} parent=123 // pred_fallthru
            _
          %6096 = vnop
        $region124: #{audio_encoder_forward.1} parent=119 // pred_fallthru
          _
        // Predicated region
        $region159: #{audio_encoder_forward.1} parent=119 // pred_check
          %p6097 = pneg %p612
        $region160: #{audio_encoder_forward.1} parent=119 // pred_check_branch
          %6099 = sbr.rel (%p6097) target = $region162
        $region161: #{audio_encoder_forward.1} parent=119 // pred_region
          _
        $region162: #{audio_encoder_forward.1} parent=119 // pred_fallthru
          _
      $region120: #{audio_encoder_forward.1} parent=5 // pred_fallthru
        _
      %p6100 = scmp.le.s32.totalorder 2, %s33
      // Predicated region
      $region163: #{audio_encoder_forward.1} parent=5 // pred_check
        %p6101 = pneg %p6100
      $region164: #{audio_encoder_forward.1} parent=5 // pred_check_branch
        %6103 = sbr.rel (%p6101) target = $region166
      $region165: #{audio_encoder_forward.1} parent=5 // pred_region
        %s6104 = ssub.s32 %s33, 2
        // Predicated region
        $region167: #{audio_encoder_forward.1} parent=165 // pred_check
          %p6105 = pneg %p592
        $region168: #{audio_encoder_forward.1} parent=165 // pred_check_branch
          %6107 = sbr.rel (%p6105) target = $region170
        $region169: #{audio_encoder_forward.1} parent=165 // pred_region
          %s6108 = sand.u32 %s577, 1
          %s6109 = sand.u32 %s577, 1
          %s6110 = smul.addr %s6109, 192
          %s6111 = scalar_lea.vmem [#allocation2], %s6110
        $region170: #{audio_encoder_forward.1} parent=165 // pred_fallthru
          _
        // Predicated region
        $region171: #{audio_encoder_forward.1} parent=165 // pred_check
          %p6112 = pneg %p618
        $region172: #{audio_encoder_forward.1} parent=165 // pred_check_branch
          %6114 = sbr.rel (%p6112) target = $region174
        $region173: #{audio_encoder_forward.1} parent=165 // pred_region
          %p6115 = scmp.lt.s32.totalorder %s39, 1
          %s6116 = scalar_select %p6115, %s39, 1
          %s6117 = smul.addr %s6116, 8
          %s6118 = smul.addr %s6117, 8
          %s6119 = scalar_lea.vmem %s26, %s6118
        $region174: #{audio_encoder_forward.1} parent=165 // pred_fallthru
          _
      $region166: #{audio_encoder_forward.1} parent=5 // pred_fallthru
        _
    $region6: #{audio_encoder_forward.1} parent=1 // loop_footer
      %s37 = sadd.s32 1, %s33
    $region7: #{audio_encoder_forward.1} parent=1 // loop_footer_branch
      %32 = sbr.rel target = $region3
    $region8: #{audio_encoder_forward.1} parent=1 // loop_exit
      _

</llo_original>
